<compile_context>
chip_gen: v7x
topology: tpu7x:2x2x1
jax: 0.10.0
libtpu: 0.0.40
codegen_flags: <defaults>
</compile_context>

<pallas_src>
import functools

import jax
import jax.numpy as jnp
from jax.experimental import pallas as pl
from jax.experimental.pallas import tpu as pltpu

_PER_TAP_MIN_CH = 128  # per-tap K already fills the MXU K dim at this channel count


# ----------------------------------------------------------------------------
# Fused kernel: pad + conv1(BN,ReLU) + conv2(BN,ReLU) + SCSE, B images per step.
# ----------------------------------------------------------------------------
def _decoder_fused_kernel(*refs, has_e, has_scse, per_tap1, per_tap2):
    refs = list(refs)
    xu_ref = refs.pop(0)
    e_ref = refs.pop(0) if has_e else None
    w1_ref, s1_ref, t1_ref = refs.pop(0), refs.pop(0), refs.pop(0)
    w2_ref, s2_ref, t2_ref = refs.pop(0), refs.pop(0), refs.pop(0)
    if has_scse:
        scw_ref, scb_ref = refs.pop(0), refs.pop(0)
        fc1w_ref, fc1b_ref = refs.pop(0), refs.pop(0)
        fc2w_ref, fc2b_ref = refs.pop(0), refs.pop(0)
    o_ref, pad1_ref, pad2_ref = refs

    B, Ho, Wo, Cx = xu_ref.shape
    Cin = pad1_ref.shape[-1]
    Cmid = pad2_ref.shape[-1]
    Cout = s2_ref.shape[-1]
    M = B * Ho * Wo
    f32 = jnp.float32
    bf16 = jnp.bfloat16

    # ---- border-only zero of the 1-pixel halo (interior is overwritten) -------
    def zero_border(pad_ref, c):
        z_row = jnp.zeros((B, 1, Wo + 2, c), bf16)
        z_col = jnp.zeros((B, Ho, 1, c), bf16)
        pad_ref[:, 0:1, 0:Wo + 2, :] = z_row
        pad_ref[:, Ho + 1:Ho + 2, 0:Wo + 2, :] = z_row
        pad_ref[:, 1:Ho + 1, 0:1, :] = z_col
        pad_ref[:, 1:Ho + 1, Wo + 1:Wo + 2, :] = z_col

    # ---- stage 0: write xu / e into disjoint channel ranges (no concat) -------
    zero_border(pad1_ref, Cin)
    pad1_ref[:, 1:Ho + 1, 1:Wo + 1, 0:Cx] = xu_ref[...]
    if has_e:
        Ce = e_ref.shape[-1]
        pad1_ref[:, 1:Ho + 1, 1:Wo + 1, Cx:Cx + Ce] = e_ref[...]

    # ---- 3x3 conv (+ folded BN + ReLU); bf16 operands, f32 accumulate ---------
    # NOTE: the (B, Ho, Wo, C) -> (B*Ho*Wo, C) collapses are free when Wo % 8 == 0.
    def conv3x3_bn_relu(pad_ref, w_ref, s_ref, t_ref, cin, per_tap):
        if per_tap:
            acc = None
            for dy in range(3):
                for dx in range(3):
                    tap = pad_ref[:, dy:dy + Ho, dx:dx + Wo, :].reshape(M, cin)
                    wt = w_ref[(dy * 3 + dx) * cin:(dy * 3 + dx + 1) * cin, :]
                    part = jnp.dot(tap, wt, preferred_element_type=f32)
                    acc = part if acc is None else acc + part
        else:
            cols = [pad_ref[:, dy:dy + Ho, dx:dx + Wo, :]
                    for dy in range(3) for dx in range(3)]
            patch = jnp.concatenate(cols, axis=-1).reshape(M, 9 * cin)
            acc = jnp.dot(patch, w_ref[...], preferred_element_type=f32)
        # f32 epilogue: BN eval-mode scale/shift (conv bias already folded) + ReLU.
        return jnp.maximum(acc * s_ref[...] + t_ref[...], 0.0)

    # ---- conv1 + BN1 + ReLU ----------------------------------------------------
    y1 = conv3x3_bn_relu(pad1_ref, w1_ref, s1_ref, t1_ref, Cin, per_tap1)   # (M, Cmid)

    # ---- conv2 + BN2 + ReLU (re-padded in VMEM, bf16; never leaves the chip) ---
    zero_border(pad2_ref, Cmid)
    pad2_ref[:, 1:Ho + 1, 1:Wo + 1, :] = y1.reshape(B, Ho, Wo, Cmid).astype(bf16)
    y2 = conv3x3_bn_relu(pad2_ref, w2_ref, s2_ref, t2_ref, Cmid, per_tap2)  # (M, Cout)

    # ---- optional SCSE gating (fused f32 epilogue) ------------------------------
    if has_scse:
        # spatial gate: VPU multiply + cross-lane reduce (no narrow-lane matmul)
        g_sc = jax.nn.sigmoid(
            jnp.sum(y2 * scw_ref[...], axis=-1, keepdims=True) + scb_ref[...])  # (M,1)
        y2_3 = y2.reshape(B, Ho * Wo, Cout)
        # channel gate: per-image GAP -> fc1 -> ReLU -> fc2 -> sigmoid
        gap = jnp.mean(y2_3, axis=1)                                            # (B,Cout)
        h = jnp.maximum(
            jnp.dot(gap, fc1w_ref[...], preferred_element_type=f32) + fc1b_ref[...],
            0.0)
        g_se = jax.nn.sigmoid(
            jnp.dot(h, fc2w_ref[...], preferred_element_type=f32) + fc2b_ref[...])
        # (g_sc + g_se) * x  ==  g_sc*x + g_se*x, one multiply saved
        out3 = (g_sc.reshape(B, Ho * Wo, 1) + g_se[:, None, :]) * y2_3
    else:
        out3 = y2.reshape(B, Ho * Wo, Cout)

    o_ref[...] = out3.reshape(B, Ho, Wo, Cout).astype(o_ref.dtype)


# ----------------------------------------------------------------------------
# VMEM budgeting helpers.
# ----------------------------------------------------------------------------
def _lane_pad(c):
    return ((c + 127) // 128) * 128


def _vmem_bytes_estimate(B, Ho, Wo, Wp, Cin, Cmid, Cout, per_tap1, per_tap2):
    bf2, f4 = 2, 4
    m = B * Ho * Wo
    cin_p, cmid_p, cout_p = _lane_pad(Cin), _lane_pad(Cmid), _lane_pad(Cout)
    blocks = 2 * m * cin_p * bf2 + 2 * m * cout_p * f4           # double-buffered I/O
    pads = B * (Ho + 2) * Wp * (cin_p + cmid_p) * bf2            # bf16 pad scratch
    weights = 2 * 9 * (Cin * cmid_p + Cmid * cout_p) * bf2       # bf16 conv weights
    live = m * (cmid_p + 2 * cout_p) * f4                        # y1, y2, gated output
    patch = 0
    if not per_tap1:
        patch = max(patch, m * _lane_pad(9 * Cin) * bf2)
    if not per_tap2:
        patch = max(patch, m * _lane_pad(9 * Cmid) * bf2)
    return blocks + pads + weights + live + patch


def _vmem_capacity_bytes():
    try:
        return int(pltpu.get_tpu_info().vmem_capacity_bytes)
    except Exception:
        return 64 * 1024 * 1024  # conservative (v7x per-TC VMEM)


def _pick_vmem_limit(est_bytes):
    hi = int(_vmem_capacity_bytes() * 0.85)
    want = int(est_bytes * 1.25) + (8 << 20)
    lo = min(32 << 20, hi)
    return max(lo, min(want, hi))


def _pick_images_per_step(N, Ho, Wo, Wp, Cin, Cmid, Cout, per_tap1, per_tap2):
    # For big channel counts the MXU is already well fed; keep grid=(N,) parallel.
    if max(Cmid, Cout) >= 128:
        return 1
    budget = 20 << 20
    best = 1
    for b in range(1, N + 1):
        if N % b == 0 and _vmem_bytes_estimate(
                b, Ho, Wo, Wp, Cin, Cmid, Cout, per_tap1, per_tap2) <= budget:
            best = b
    return best


# ----------------------------------------------------------------------------
# pallas_call wrapper.
# ----------------------------------------------------------------------------
def decoder_fused(xu, e, p, *, scse=True, force_per_tap=None):
    """xu: (N, Ho, Wo, Cx) upsampled input (NHWC); e: (N, Ho, Wo, Ce) or None."""
    N, Ho, Wo, Cx = xu.shape
    has_e = e is not None
    Ce = e.shape[-1] if has_e else 0
    Cin = Cx + Ce
    Cmid = p["w1"].shape[-1]
    Cout = p["w2"].shape[-1]
    C2 = p["fc1_w"].shape[-1] if scse else 0
    assert p["w1"].shape[0] == 9 * Cin, (p["w1"].shape, Cin)

    if force_per_tap is None:
        per_tap1 = Cin >= _PER_TAP_MIN_CH
        per_tap2 = Cmid >= _PER_TAP_MIN_CH
    else:
        per_tap1 = per_tap2 = bool(force_per_tap)

    # Pad scratch sublane dim rounded up to a multiple of 8 (explicit, not implicit).
    Wp = ((Wo + 2 + 7) // 8) * 8

    B = _pick_images_per_step(N, Ho, Wo, Wp, Cin, Cmid, Cout, per_tap1, per_tap2)
    grid = (N // B,)

    def full_spec(shape):
        return pl.BlockSpec(shape, lambda n, _r=len(shape): (0,) * _r)

    in_specs = [pl.BlockSpec((B, Ho, Wo, Cx), lambda n: (n, 0, 0, 0))]
    inputs = [xu.astype(jnp.bfloat16)]
    if has_e:
        in_specs.append(pl.BlockSpec((B, Ho, Wo, Ce), lambda n: (n, 0, 0, 0)))
        inputs.append(e.astype(jnp.bfloat16))
    in_specs += [full_spec((9 * Cin, Cmid)), full_spec((1, Cmid)), full_spec((1, Cmid)),
                 full_spec((9 * Cmid, Cout)), full_spec((1, Cout)), full_spec((1, Cout))]
    inputs += [p["w1"], p["scale1"], p["shift1"],
               p["w2"], p["scale2"], p["shift2"]]
    if scse:
        in_specs += [full_spec((1, Cout)), full_spec((1, 1)),
                     full_spec((Cout, C2)), full_spec((1, C2)),
                     full_spec((C2, Cout)), full_spec((1, Cout))]
        inputs += [p["sc_w"], p["sc_b"],
                   p["fc1_w"], p["fc1_b"], p["fc2_w"], p["fc2_b"]]

    est = _vmem_bytes_estimate(B, Ho, Wo, Wp, Cin, Cmid, Cout, per_tap1, per_tap2)
    kernel = functools.partial(_decoder_fused_kernel, has_e=has_e, has_scse=scse,
                               per_tap1=per_tap1, per_tap2=per_tap2)

    return pl.pallas_call(
        kernel,
        out_shape=jax.ShapeDtypeStruct((N, Ho, Wo, Cout), jnp.float32),
        grid=grid,
        in_specs=in_specs,
        out_specs=pl.BlockSpec((B, Ho, Wo, Cout), lambda n: (n, 0, 0, 0)),
        scratch_shapes=[pltpu.VMEM((B, Ho + 2, Wp, Cin), jnp.bfloat16),
                        pltpu.VMEM((B, Ho + 2, Wp, Cmid), jnp.bfloat16)],
        compiler_params=pltpu.CompilerParams(
            dimension_semantics=("parallel",),
            vmem_limit_bytes=_pick_vmem_limit(est)),
    )(*inputs)


# ----------------------------------------------------------------------------
# Wrapper glue: gather-free bilinear x2 (align_corners=True) via interpolation
# matrices (two small XLA matmuls), NCHW <-> NHWC transposes, bf16 activations.
# ----------------------------------------------------------------------------
def _interp_matrix_x2_align_corners(n_in):
    n_out = 2 * n_in
    if n_in == 1:
        return jnp.ones((n_out, 1), jnp.float32)
    src = jnp.arange(n_out, dtype=jnp.float32) * (n_in - 1) / (n_out - 1)
    i0 = jnp.floor(src).astype(jnp.int32)
    i1 = jnp.minimum(i0 + 1, n_in - 1)
    a = src - i0.astype(jnp.float32)
    oh0 = jax.nn.one_hot(i0, n_in, dtype=jnp.float32)
    oh1 = jax.nn.one_hot(i1, n_in, dtype=jnp.float32)
    return oh0 * (1.0 - a)[:, None] + oh1 * a[:, None]


def bilinear_upsample_x2_align_corners(x):
    # x: (N, H, W, C) -> (N, 2H, 2W, C), no gathers.
    _, H, W, _ = x.shape
    Ry = _interp_matrix_x2_align_corners(H)   # (2H, H)
    Rx = _interp_matrix_x2_align_corners(W)   # (2W, W)
    xr = jnp.einsum("oh,nhwc->nowc", Ry, x)
    return jnp.einsum("pw,nowc->nopc", Rx, xr)


def decoder_forward(x_nchw, e_nchw, p, *, scse=True, force_per_tap=None):
    x = jnp.transpose(x_nchw, (0, 2, 3, 1))                          # NCHW -> NHWC
    xu = bilinear_upsample_x2_align_corners(x).astype(jnp.bfloat16)  # bf16 at boundary
    e = None
    if e_nchw is not None:
        e = jnp.transpose(e_nchw, (0, 2, 3, 1)).astype(jnp.bfloat16)
    y = decoder_fused(xu, e, p, scse=scse, force_per_tap=force_per_tap)
    return jnp.transpose(y, (0, 3, 1, 2))                            # NHWC -> NCHW


# ----------------------------------------------------------------------------
# Parameter construction (BN running-stats + conv bias folded; weights im2col bf16).
# ----------------------------------------------------------------------------
def fold_conv_bn(w_hwio, b, gamma, beta, mean, var, eps=1e-5):
    kh, kw, cin, cout = w_hwio.shape
    scale = gamma / jnp.sqrt(var + eps)
    shift = beta - mean * scale + b * scale              # conv bias folded into shift
    w_flat = w_hwio.reshape(kh * kw * cin, cout).astype(jnp.bfloat16)
    return (w_flat,
            scale[None, :].astype(jnp.float32),
            shift[None, :].astype(jnp.float32))


def init_params(key, in_channels, inter_channels, out_channels):
    ks = jax.random.split(key, 16)
    C2 = out_channels // 2

    def bn_stats(kg, kb, km, kv, c):
        g = 1.0 + 0.1 * jax.random.normal(kg, (c,), jnp.float32)
        b = 0.1 * jax.random.normal(kb, (c,), jnp.float32)
        m = 0.1 * jax.random.normal(km, (c,), jnp.float32)
        v = jax.random.uniform(kv, (c,), jnp.float32, 0.5, 1.5)
        return g, b, m, v

    p = {}
    w1 = 0.1 * jax.random.normal(ks[0], (3, 3, in_channels, inter_channels), jnp.float32)
    b1 = 0.1 * jax.random.normal(ks[1], (inter_channels,), jnp.float32)
    p["w1"], p["scale1"], p["shift1"] = fold_conv_bn(
        w1, b1, *bn_stats(ks[2], ks[3], ks[4], ks[5], inter_channels))

    w2 = 0.1 * jax.random.normal(ks[6], (3, 3, inter_channels, out_channels), jnp.float32)
    b2 = 0.1 * jax.random.normal(ks[7], (out_channels,), jnp.float32)
    p["w2"], p["scale2"], p["shift2"] = fold_conv_bn(
        w2, b2, *bn_stats(ks[8], ks[9], ks[10], ks[11], out_channels))

    # SC module: 1x1 conv (C -> 1), stored as a (1, C) row for the VPU reduce.
    p["sc_w"] = 0.1 * jax.random.normal(ks[12], (1, out_channels), jnp.float32)
    p["sc_b"] = 0.1 * jax.random.normal(ks[13], (1, 1), jnp.float32)
    # SE module: fc1 (C -> C/2), fc2 (C/2 -> C); stored as (in, out) for x @ W.
    p["fc1_w"] = 0.1 * jax.random.normal(ks[14], (out_channels, C2), jnp.float32)
    p["fc1_b"] = jnp.zeros((1, C2), jnp.float32)
    p["fc2_w"] = 0.1 * jax.random.normal(ks[15], (C2, out_channels), jnp.float32)
    p["fc2_b"] = jnp.zeros((1, out_channels), jnp.float32)
    return p


# ----------------------------------------------------------------------------
# Pure-JAX reference (mirrors the kernel's bf16 quantization points).
# ----------------------------------------------------------------------------
def decoder_reference(x_nchw, e_nchw, p, *, scse=True):
    hi = jax.lax.Precision.HIGHEST
    x = jnp.transpose(x_nchw, (0, 2, 3, 1))
    xu = bilinear_upsample_x2_align_corners(x).astype(jnp.bfloat16).astype(jnp.float32)
    if e_nchw is not None:
        e = jnp.transpose(e_nchw, (0, 2, 3, 1)).astype(jnp.bfloat16).astype(jnp.float32)
        xin = jnp.concatenate([xu, e], axis=-1)
    else:
        xin = xu
    cin = xin.shape[-1]
    cmid = p["w1"].shape[-1]
    cout = p["w2"].shape[-1]

    def conv_bn_relu(z, w_flat, scale, shift, ci, co):
        w = w_flat.astype(jnp.float32).reshape(3, 3, ci, co)
        y = jax.lax.conv_general_dilated(
            z, w, window_strides=(1, 1), padding="SAME",
            dimension_numbers=("NHWC", "HWIO", "NHWC"), precision=hi)
        return jnp.maximum(y * scale.reshape(1, 1, 1, -1) + shift.reshape(1, 1, 1, -1),
                           0.0)

    y1 = conv_bn_relu(xin, p["w1"], p["scale1"], p["shift1"], cin, cmid)
    y1 = y1.astype(jnp.bfloat16).astype(jnp.float32)   # mirror in-kernel bf16 staging
    y2 = conv_bn_relu(y1, p["w2"], p["scale2"], p["shift2"], cmid, cout)
    if scse:
        g_sc = jax.nn.sigmoid(
            jnp.sum(y2 * p["sc_w"].reshape(1, 1, 1, -1), axis=-1, keepdims=True)
            + p["sc_b"][0, 0])
        gap = jnp.mean(y2, axis=(1, 2))
        h = jnp.maximum(jnp.dot(gap, p["fc1_w"], precision=hi) + p["fc1_b"], 0.0)
        g_se = jax.nn.sigmoid(jnp.dot(h, p["fc2_w"], precision=hi) + p["fc2_b"])
        y2 = (g_sc + g_se[:, None, None, :]) * y2
    return jnp.transpose(y2, (0, 3, 1, 2))


if __name__ == "__main__":
    key = jax.random.PRNGKey(0)
    k_in, k_e, k_p = jax.random.split(key, 3)

    # Small shapes: x (N, Cx, H, W) is upsampled to (N, Cx, 2H, 2W), then
    # concatenated with e (N, Ce, 2H, 2W) -> in_channels = Cx + Ce.
    N, Cx, Ce, H, W = 2, 4, 4, 8, 8
    in_channels = Cx + Ce        # 8
    inter_channels = 8
    out_channels = 4

    x = jax.random.normal(k_in, (N, Cx, H, W), jnp.float32)         # NCHW
    e = jax.random.normal(k_e, (N, Ce, 2 * H, 2 * W), jnp.float32)  # NCHW

    params = init_params(k_p, in_channels, inter_channels, out_channels)

    # Reference (pure JAX, same bf16 quantization points).
    ref = decoder_reference(x, e, params, scse=True)
    ref = jax.block_until_ready(ref)

    # 1) Default path (im2col matmul at small channel counts, batch folded, SCSE on).
    out = decoder_forward(x, e, params, scse=True)
    out = jax.block_until_ready(out)
    assert out.shape == (N, out_channels, 2 * H, 2 * W), out.shape
    assert jnp.allclose(out, ref, atol=2e-2, rtol=2e-2), \
        float(jnp.max(jnp.abs(out - ref)))

    # 2) Per-tap accumulated-matmul path (the >=128-channel code path, forced here).
    out_pt = decoder_forward(x, e, params, scse=True, force_per_tap=True)
    out_pt = jax.block_until_ready(out_pt)
    assert jnp.allclose(out_pt, ref, atol=2e-2, rtol=2e-2), \
        float(jnp.max(jnp.abs(out_pt - ref)))

    # 3) scse=False branch (plain Decoder).
    ref_ns = decoder_reference(x, e, params, scse=False)
    out_ns = decoder_forward(x, e, params, scse=False)
    out_ns = jax.block_until_ready(out_ns)
    assert jnp.allclose(out_ns, ref_ns, atol=2e-2, rtol=2e-2), \
        float(jnp.max(jnp.abs(out_ns - ref_ns)))

    print("KERNEL_OK")
</pallas_src>

<mosaic_0001>
module attributes {stable_mosaic.version = 11 : i64} {
  func.func @_decoder_fused_kernel(%arg0: i32, %arg1: memref<2x16x16x4xbf16, #tpu.memory_space<vmem>>, %arg2: memref<2x16x16x4xbf16, #tpu.memory_space<vmem>>, %arg3: memref<72x8xbf16, #tpu.memory_space<vmem>>, %arg4: memref<1x8xf32, #tpu.memory_space<vmem>>, %arg5: memref<1x8xf32, #tpu.memory_space<vmem>>, %arg6: memref<72x4xbf16, #tpu.memory_space<vmem>>, %arg7: memref<1x4xf32, #tpu.memory_space<vmem>>, %arg8: memref<1x4xf32, #tpu.memory_space<vmem>>, %arg9: memref<1x4xf32, #tpu.memory_space<vmem>>, %arg10: memref<1x1xf32, #tpu.memory_space<vmem>>, %arg11: memref<4x2xf32, #tpu.memory_space<vmem>>, %arg12: memref<1x2xf32, #tpu.memory_space<vmem>>, %arg13: memref<2x4xf32, #tpu.memory_space<vmem>>, %arg14: memref<1x4xf32, #tpu.memory_space<vmem>>, %arg15: memref<2x16x16x4xf32, #tpu.memory_space<vmem>>, %arg16: memref<2x18x24x8xbf16, #tpu.memory_space<vmem>>, %arg17: memref<2x18x24x8xbf16, #tpu.memory_space<vmem>>) attributes {dimension_semantics = [#tpu.dimension_semantics<parallel>], iteration_bounds = array<i64: 1>, scalar_prefetch = 0 : i64, scratch_operands = 2 : i64, tpu.core_type = #tpu.core_type<tc>, window_params = [{transform_indices = @transform_0, window_bounds = array<i64: 2, 16, 16, 4>}, {transform_indices = @transform_1, window_bounds = array<i64: 2, 16, 16, 4>}, {pipeline_mode = #tpu.pipeline_mode<synchronous>, transform_indices = @transform_2, window_bounds = array<i64: 72, 8>}, {pipeline_mode = #tpu.pipeline_mode<synchronous>, transform_indices = @transform_3, window_bounds = array<i64: 1, 8>}, {pipeline_mode = #tpu.pipeline_mode<synchronous>, transform_indices = @transform_4, window_bounds = array<i64: 1, 8>}, {pipeline_mode = #tpu.pipeline_mode<synchronous>, transform_indices = @transform_5, window_bounds = array<i64: 72, 4>}, {pipeline_mode = #tpu.pipeline_mode<synchronous>, transform_indices = @transform_6, window_bounds = array<i64: 1, 4>}, {pipeline_mode = #tpu.pipeline_mode<synchronous>, transform_indices = @transform_7, window_bounds = array<i64: 1, 4>}, {pipeline_mode = #tpu.pipeline_mode<synchronous>, transform_indices = @transform_8, window_bounds = array<i64: 1, 4>}, {pipeline_mode = #tpu.pipeline_mode<synchronous>, transform_indices = @transform_9, window_bounds = array<i64: 1, 1>}, {pipeline_mode = #tpu.pipeline_mode<synchronous>, transform_indices = @transform_10, window_bounds = array<i64: 4, 2>}, {pipeline_mode = #tpu.pipeline_mode<synchronous>, transform_indices = @transform_11, window_bounds = array<i64: 1, 2>}, {pipeline_mode = #tpu.pipeline_mode<synchronous>, transform_indices = @transform_12, window_bounds = array<i64: 2, 4>}, {pipeline_mode = #tpu.pipeline_mode<synchronous>, transform_indices = @transform_13, window_bounds = array<i64: 1, 4>}, {transform_indices = @transform_14, window_bounds = array<i64: 2, 16, 16, 4>}]} {
    %cst = arith.constant 0.000000e+00 : bf16
    %0 = vector.broadcast %cst : bf16 to vector<2x1x18x8xbf16>
    %cst_0 = arith.constant 0.000000e+00 : bf16
    %1 = vector.broadcast %cst_0 : bf16 to vector<2x16x1x8xbf16>
    %c0 = arith.constant 0 : index
    %c0_1 = arith.constant 0 : index
    %c0_2 = arith.constant 0 : index
    %c0_3 = arith.constant 0 : index
    %2 = vector.load %arg16[%c0, %c0_1, %c0_2, %c0_3] : memref<2x18x24x8xbf16, #tpu.memory_space<vmem>>, vector<2x1x18x8xbf16>
    tpu.vector_store %arg16[%c0, %c0_1, %c0_2, %c0_3], %0 {strides = array<i32>} : memref<2x18x24x8xbf16, #tpu.memory_space<vmem>>, vector<2x1x18x8xbf16>,
    %c0_4 = arith.constant 0 : index
    %c17 = arith.constant 17 : index
    %c0_5 = arith.constant 0 : index
    %c0_6 = arith.constant 0 : index
    %3 = vector.load %arg16[%c0_4, %c17, %c0_5, %c0_6] : memref<2x18x24x8xbf16, #tpu.memory_space<vmem>>, vector<2x1x18x8xbf16>
    tpu.vector_store %arg16[%c0_4, %c17, %c0_5, %c0_6], %0 {strides = array<i32>} : memref<2x18x24x8xbf16, #tpu.memory_space<vmem>>, vector<2x1x18x8xbf16>,
    %c0_7 = arith.constant 0 : index
    %c1 = arith.constant 1 : index
    %c0_8 = arith.constant 0 : index
    %c0_9 = arith.constant 0 : index
    %4 = vector.load %arg16[%c0_7, %c1, %c0_8, %c0_9] : memref<2x18x24x8xbf16, #tpu.memory_space<vmem>>, vector<2x16x1x8xbf16>
    tpu.vector_store %arg16[%c0_7, %c1, %c0_8, %c0_9], %1 {strides = array<i32>} : memref<2x18x24x8xbf16, #tpu.memory_space<vmem>>, vector<2x16x1x8xbf16>,
    %c0_10 = arith.constant 0 : index
    %c1_11 = arith.constant 1 : index
    %c17_12 = arith.constant 17 : index
    %c0_13 = arith.constant 0 : index
    %5 = vector.load %arg16[%c0_10, %c1_11, %c17_12, %c0_13] : memref<2x18x24x8xbf16, #tpu.memory_space<vmem>>, vector<2x16x1x8xbf16>
    tpu.vector_store %arg16[%c0_10, %c1_11, %c17_12, %c0_13], %1 {strides = array<i32>} : memref<2x18x24x8xbf16, #tpu.memory_space<vmem>>, vector<2x16x1x8xbf16>,
    %c0_14 = arith.constant 0 : index
    %c0_15 = arith.constant 0 : index
    %c0_16 = arith.constant 0 : index
    %c0_17 = arith.constant 0 : index
    %6 = vector.load %arg1[%c0_14, %c0_15, %c0_16, %c0_17] : memref<2x16x16x4xbf16, #tpu.memory_space<vmem>>, vector<2x16x16x4xbf16>
    %c0_18 = arith.constant 0 : index
    %c1_19 = arith.constant 1 : index
    %c1_20 = arith.constant 1 : index
    %c0_21 = arith.constant 0 : index
    %7 = vector.load %arg16[%c0_18, %c1_19, %c1_20, %c0_21] : memref<2x18x24x8xbf16, #tpu.memory_space<vmem>>, vector<2x16x16x4xbf16>
    tpu.vector_store %arg16[%c0_18, %c1_19, %c1_20, %c0_21], %6 {strides = array<i32>} : memref<2x18x24x8xbf16, #tpu.memory_space<vmem>>, vector<2x16x16x4xbf16>,
    %c0_22 = arith.constant 0 : index
    %c0_23 = arith.constant 0 : index
    %c0_24 = arith.constant 0 : index
    %c0_25 = arith.constant 0 : index
    %8 = vector.load %arg2[%c0_22, %c0_23, %c0_24, %c0_25] : memref<2x16x16x4xbf16, #tpu.memory_space<vmem>>, vector<2x16x16x4xbf16>
    %c0_26 = arith.constant 0 : index
    %c1_27 = arith.constant 1 : index
    %c1_28 = arith.constant 1 : index
    %c4 = arith.constant 4 : index
    %9 = vector.load %arg16[%c0_26, %c1_27, %c1_28, %c4] : memref<2x18x24x8xbf16, #tpu.memory_space<vmem>>, vector<2x16x16x4xbf16>
    tpu.vector_store %arg16[%c0_26, %c1_27, %c1_28, %c4], %8 {strides = array<i32>} : memref<2x18x24x8xbf16, #tpu.memory_space<vmem>>, vector<2x16x16x4xbf16>,
    %c0_29 = arith.constant 0 : index
    %c0_30 = arith.constant 0 : index
    %c0_31 = arith.constant 0 : index
    %c0_32 = arith.constant 0 : index
    %10 = vector.load %arg16[%c0_29, %c0_30, %c0_31, %c0_32] : memref<2x18x24x8xbf16, #tpu.memory_space<vmem>>, vector<2x16x16x8xbf16>
    %c0_33 = arith.constant 0 : index
    %c0_34 = arith.constant 0 : index
    %c1_35 = arith.constant 1 : index
    %c0_36 = arith.constant 0 : index
    %11 = vector.load %arg16[%c0_33, %c0_34, %c1_35, %c0_36] : memref<2x18x24x8xbf16, #tpu.memory_space<vmem>>, vector<2x16x16x8xbf16>
    %c0_37 = arith.constant 0 : index
    %c0_38 = arith.constant 0 : index
    %c2 = arith.constant 2 : index
    %c0_39 = arith.constant 0 : index
    %12 = vector.load %arg16[%c0_37, %c0_38, %c2, %c0_39] : memref<2x18x24x8xbf16, #tpu.memory_space<vmem>>, vector<2x16x16x8xbf16>
    %c0_40 = arith.constant 0 : index
    %c1_41 = arith.constant 1 : index
    %c0_42 = arith.constant 0 : index
    %c0_43 = arith.constant 0 : index
    %13 = vector.load %arg16[%c0_40, %c1_41, %c0_42, %c0_43] : memref<2x18x24x8xbf16, #tpu.memory_space<vmem>>, vector<2x16x16x8xbf16>
    %c0_44 = arith.constant 0 : index
    %c1_45 = arith.constant 1 : index
    %c1_46 = arith.constant 1 : index
    %c0_47 = arith.constant 0 : index
    %14 = vector.load %arg16[%c0_44, %c1_45, %c1_46, %c0_47] : memref<2x18x24x8xbf16, #tpu.memory_space<vmem>>, vector<2x16x16x8xbf16>
    %c0_48 = arith.constant 0 : index
    %c1_49 = arith.constant 1 : index
    %c2_50 = arith.constant 2 : index
    %c0_51 = arith.constant 0 : index
    %15 = vector.load %arg16[%c0_48, %c1_49, %c2_50, %c0_51] : memref<2x18x24x8xbf16, #tpu.memory_space<vmem>>, vector<2x16x16x8xbf16>
    %c0_52 = arith.constant 0 : index
    %c2_53 = arith.constant 2 : index
    %c0_54 = arith.constant 0 : index
    %c0_55 = arith.constant 0 : index
    %16 = vector.load %arg16[%c0_52, %c2_53, %c0_54, %c0_55] : memref<2x18x24x8xbf16, #tpu.memory_space<vmem>>, vector<2x16x16x8xbf16>
    %c0_56 = arith.constant 0 : index
    %c2_57 = arith.constant 2 : index
    %c1_58 = arith.constant 1 : index
    %c0_59 = arith.constant 0 : index
    %17 = vector.load %arg16[%c0_56, %c2_57, %c1_58, %c0_59] : memref<2x18x24x8xbf16, #tpu.memory_space<vmem>>, vector<2x16x16x8xbf16>
    %c0_60 = arith.constant 0 : index
    %c2_61 = arith.constant 2 : index
    %c2_62 = arith.constant 2 : index
    %c0_63 = arith.constant 0 : index
    %18 = vector.load %arg16[%c0_60, %c2_61, %c2_62, %c0_63] : memref<2x18x24x8xbf16, #tpu.memory_space<vmem>>, vector<2x16x16x8xbf16>
    %19 = tpu.concatenate %10, %11, %12, %13, %14, %15, %16, %17, %18 in 3 : vector<2x16x16x8xbf16>, vector<2x16x16x8xbf16>, vector<2x16x16x8xbf16>, vector<2x16x16x8xbf16>, vector<2x16x16x8xbf16>, vector<2x16x16x8xbf16>, vector<2x16x16x8xbf16>, vector<2x16x16x8xbf16>, vector<2x16x16x8xbf16> -> vector<2x16x16x72xbf16>
    %20 = vector.shape_cast %19 : vector<2x16x16x72xbf16> to vector<512x72xbf16>
    %c0_64 = arith.constant 0 : index
    %c0_65 = arith.constant 0 : index
    %21 = vector.load %arg3[%c0_64, %c0_65] : memref<72x8xbf16, #tpu.memory_space<vmem>>, vector<72x8xbf16>
    %cst_66 = arith.constant dense<0.000000e+00> : vector<512x8xf32>
    %22 = tpu.matmul %20, %21, %cst_66 {dimension_numbers = #tpu.dot_dimension_numbers<[1], [0], [0], [1], [0, 0, 1, 1], [], []>} : vector<512x72xbf16>, vector<72x8xbf16>, vector<512x8xf32> -> vector<512x8xf32>
    %c0_67 = arith.constant 0 : index
    %c0_68 = arith.constant 0 : index
    %23 = vector.load %arg4[%c0_67, %c0_68] : memref<1x8xf32, #tpu.memory_space<vmem>>, vector<1x8xf32>
    %24 = vector.broadcast %23 : vector<1x8xf32> to vector<512x8xf32>
    %25 = arith.mulf %22, %24 : vector<512x8xf32>
    %c0_69 = arith.constant 0 : index
    %c0_70 = arith.constant 0 : index
    %26 = vector.load %arg5[%c0_69, %c0_70] : memref<1x8xf32, #tpu.memory_space<vmem>>, vector<1x8xf32>
    %27 = vector.broadcast %26 : vector<1x8xf32> to vector<512x8xf32>
    %28 = arith.addf %25, %27 : vector<512x8xf32>
    %cst_71 = arith.constant 0.000000e+00 : f32
    %29 = vector.broadcast %cst_71 : f32 to vector<512x8xf32>
    %30 = arith.maximumf %28, %29 : vector<512x8xf32>
    %cst_72 = arith.constant 0.000000e+00 : bf16
    %31 = vector.broadcast %cst_72 : bf16 to vector<2x1x18x8xbf16>
    %cst_73 = arith.constant 0.000000e+00 : bf16
    %32 = vector.broadcast %cst_73 : bf16 to vector<2x16x1x8xbf16>
    %c0_74 = arith.constant 0 : index
    %c0_75 = arith.constant 0 : index
    %c0_76 = arith.constant 0 : index
    %c0_77 = arith.constant 0 : index
    %33 = vector.load %arg17[%c0_74, %c0_75, %c0_76, %c0_77] : memref<2x18x24x8xbf16, #tpu.memory_space<vmem>>, vector<2x1x18x8xbf16>
    tpu.vector_store %arg17[%c0_74, %c0_75, %c0_76, %c0_77], %31 {strides = array<i32>} : memref<2x18x24x8xbf16, #tpu.memory_space<vmem>>, vector<2x1x18x8xbf16>,
    %c0_78 = arith.constant 0 : index
    %c17_79 = arith.constant 17 : index
    %c0_80 = arith.constant 0 : index
    %c0_81 = arith.constant 0 : index
    %34 = vector.load %arg17[%c0_78, %c17_79, %c0_80, %c0_81] : memref<2x18x24x8xbf16, #tpu.memory_space<vmem>>, vector<2x1x18x8xbf16>
    tpu.vector_store %arg17[%c0_78, %c17_79, %c0_80, %c0_81], %31 {strides = array<i32>} : memref<2x18x24x8xbf16, #tpu.memory_space<vmem>>, vector<2x1x18x8xbf16>,
    %c0_82 = arith.constant 0 : index
    %c1_83 = arith.constant 1 : index
    %c0_84 = arith.constant 0 : index
    %c0_85 = arith.constant 0 : index
    %35 = vector.load %arg17[%c0_82, %c1_83, %c0_84, %c0_85] : memref<2x18x24x8xbf16, #tpu.memory_space<vmem>>, vector<2x16x1x8xbf16>
    tpu.vector_store %arg17[%c0_82, %c1_83, %c0_84, %c0_85], %32 {strides = array<i32>} : memref<2x18x24x8xbf16, #tpu.memory_space<vmem>>, vector<2x16x1x8xbf16>,
    %c0_86 = arith.constant 0 : index
    %c1_87 = arith.constant 1 : index
    %c17_88 = arith.constant 17 : index
    %c0_89 = arith.constant 0 : index
    %36 = vector.load %arg17[%c0_86, %c1_87, %c17_88, %c0_89] : memref<2x18x24x8xbf16, #tpu.memory_space<vmem>>, vector<2x16x1x8xbf16>
    tpu.vector_store %arg17[%c0_86, %c1_87, %c17_88, %c0_89], %32 {strides = array<i32>} : memref<2x18x24x8xbf16, #tpu.memory_space<vmem>>, vector<2x16x1x8xbf16>,
    %37 = vector.shape_cast %30 : vector<512x8xf32> to vector<2x16x16x8xf32>
    %38 = arith.truncf %37 : vector<2x16x16x8xf32> to vector<2x16x16x8xbf16>
    %c0_90 = arith.constant 0 : index
    %c1_91 = arith.constant 1 : index
    %c1_92 = arith.constant 1 : index
    %c0_93 = arith.constant 0 : index
    %39 = vector.load %arg17[%c0_90, %c1_91, %c1_92, %c0_93] : memref<2x18x24x8xbf16, #tpu.memory_space<vmem>>, vector<2x16x16x8xbf16>
    tpu.vector_store %arg17[%c0_90, %c1_91, %c1_92, %c0_93], %38 {strides = array<i32>} : memref<2x18x24x8xbf16, #tpu.memory_space<vmem>>, vector<2x16x16x8xbf16>,
    %c0_94 = arith.constant 0 : index
    %c0_95 = arith.constant 0 : index
    %c0_96 = arith.constant 0 : index
    %c0_97 = arith.constant 0 : index
    %40 = vector.load %arg17[%c0_94, %c0_95, %c0_96, %c0_97] : memref<2x18x24x8xbf16, #tpu.memory_space<vmem>>, vector<2x16x16x8xbf16>
    %c0_98 = arith.constant 0 : index
    %c0_99 = arith.constant 0 : index
    %c1_100 = arith.constant 1 : index
    %c0_101 = arith.constant 0 : index
    %41 = vector.load %arg17[%c0_98, %c0_99, %c1_100, %c0_101] : memref<2x18x24x8xbf16, #tpu.memory_space<vmem>>, vector<2x16x16x8xbf16>
    %c0_102 = arith.constant 0 : index
    %c0_103 = arith.constant 0 : index
    %c2_104 = arith.constant 2 : index
    %c0_105 = arith.constant 0 : index
    %42 = vector.load %arg17[%c0_102, %c0_103, %c2_104, %c0_105] : memref<2x18x24x8xbf16, #tpu.memory_space<vmem>>, vector<2x16x16x8xbf16>
    %c0_106 = arith.constant 0 : index
    %c1_107 = arith.constant 1 : index
    %c0_108 = arith.constant 0 : index
    %c0_109 = arith.constant 0 : index
    %43 = vector.load %arg17[%c0_106, %c1_107, %c0_108, %c0_109] : memref<2x18x24x8xbf16, #tpu.memory_space<vmem>>, vector<2x16x16x8xbf16>
    %c0_110 = arith.constant 0 : index
    %c1_111 = arith.constant 1 : index
    %c1_112 = arith.constant 1 : index
    %c0_113 = arith.constant 0 : index
    %44 = vector.load %arg17[%c0_110, %c1_111, %c1_112, %c0_113] : memref<2x18x24x8xbf16, #tpu.memory_space<vmem>>, vector<2x16x16x8xbf16>
    %c0_114 = arith.constant 0 : index
    %c1_115 = arith.constant 1 : index
    %c2_116 = arith.constant 2 : index
    %c0_117 = arith.constant 0 : index
    %45 = vector.load %arg17[%c0_114, %c1_115, %c2_116, %c0_117] : memref<2x18x24x8xbf16, #tpu.memory_space<vmem>>, vector<2x16x16x8xbf16>
    %c0_118 = arith.constant 0 : index
    %c2_119 = arith.constant 2 : index
    %c0_120 = arith.constant 0 : index
    %c0_121 = arith.constant 0 : index
    %46 = vector.load %arg17[%c0_118, %c2_119, %c0_120, %c0_121] : memref<2x18x24x8xbf16, #tpu.memory_space<vmem>>, vector<2x16x16x8xbf16>
    %c0_122 = arith.constant 0 : index
    %c2_123 = arith.constant 2 : index
    %c1_124 = arith.constant 1 : index
    %c0_125 = arith.constant 0 : index
    %47 = vector.load %arg17[%c0_122, %c2_123, %c1_124, %c0_125] : memref<2x18x24x8xbf16, #tpu.memory_space<vmem>>, vector<2x16x16x8xbf16>
    %c0_126 = arith.constant 0 : index
    %c2_127 = arith.constant 2 : index
    %c2_128 = arith.constant 2 : index
    %c0_129 = arith.constant 0 : index
    %48 = vector.load %arg17[%c0_126, %c2_127, %c2_128, %c0_129] : memref<2x18x24x8xbf16, #tpu.memory_space<vmem>>, vector<2x16x16x8xbf16>
    %49 = tpu.concatenate %40, %41, %42, %43, %44, %45, %46, %47, %48 in 3 : vector<2x16x16x8xbf16>, vector<2x16x16x8xbf16>, vector<2x16x16x8xbf16>, vector<2x16x16x8xbf16>, vector<2x16x16x8xbf16>, vector<2x16x16x8xbf16>, vector<2x16x16x8xbf16>, vector<2x16x16x8xbf16>, vector<2x16x16x8xbf16> -> vector<2x16x16x72xbf16>
    %50 = vector.shape_cast %49 : vector<2x16x16x72xbf16> to vector<512x72xbf16>
    %c0_130 = arith.constant 0 : index
    %c0_131 = arith.constant 0 : index
    %51 = vector.load %arg6[%c0_130, %c0_131] : memref<72x4xbf16, #tpu.memory_space<vmem>>, vector<72x4xbf16>
    %cst_132 = arith.constant dense<0.000000e+00> : vector<512x4xf32>
    %52 = tpu.matmul %50, %51, %cst_132 {dimension_numbers = #tpu.dot_dimension_numbers<[1], [0], [0], [1], [0, 0, 1, 1], [], []>} : vector<512x72xbf16>, vector<72x4xbf16>, vector<512x4xf32> -> vector<512x4xf32>
    %c0_133 = arith.constant 0 : index
    %c0_134 = arith.constant 0 : index
    %53 = vector.load %arg7[%c0_133, %c0_134] : memref<1x4xf32, #tpu.memory_space<vmem>>, vector<1x4xf32>
    %54 = vector.broadcast %53 : vector<1x4xf32> to vector<512x4xf32>
    %55 = arith.mulf %52, %54 : vector<512x4xf32>
    %c0_135 = arith.constant 0 : index
    %c0_136 = arith.constant 0 : index
    %56 = vector.load %arg8[%c0_135, %c0_136] : memref<1x4xf32, #tpu.memory_space<vmem>>, vector<1x4xf32>
    %57 = vector.broadcast %56 : vector<1x4xf32> to vector<512x4xf32>
    %58 = arith.addf %55, %57 : vector<512x4xf32>
    %cst_137 = arith.constant 0.000000e+00 : f32
    %59 = vector.broadcast %cst_137 : f32 to vector<512x4xf32>
    %60 = arith.maximumf %58, %59 : vector<512x4xf32>
    %c0_138 = arith.constant 0 : index
    %c0_139 = arith.constant 0 : index
    %61 = vector.load %arg9[%c0_138, %c0_139] : memref<1x4xf32, #tpu.memory_space<vmem>>, vector<1x4xf32>
    %62 = vector.broadcast %61 : vector<1x4xf32> to vector<512x4xf32>
    %63 = arith.mulf %60, %62 : vector<512x4xf32>
    %cst_140 = arith.constant dense<0.000000e+00> : vector<512xf32>
    %64 = vector.multi_reduction <add>, %63, %cst_140 [1] : vector<512x4xf32> to vector<512xf32>
    %65 = vector.shape_cast %64 : vector<512xf32> to vector<512x1xf32>
    %c0_141 = arith.constant 0 : index
    %c0_142 = arith.constant 0 : index
    %66 = vector.load %arg10[%c0_141, %c0_142] : memref<1x1xf32, #tpu.memory_space<vmem>>, vector<1x1xf32>
    %67 = vector.broadcast %66 : vector<1x1xf32> to vector<512x1xf32>
    %68 = arith.addf %65, %67 : vector<512x1xf32>
    %69 = arith.negf %68 : vector<512x1xf32>
    %70 = math.exp %69 : vector<512x1xf32>
    %cst_143 = arith.constant 1.000000e+00 : f32
    %71 = vector.broadcast %cst_143 : f32 to vector<512x1xf32>
    %72 = arith.addf %71, %70 : vector<512x1xf32>
    %73 = arith.divf %71, %72 : vector<512x1xf32>
    %74 = vector.shape_cast %60 : vector<512x4xf32> to vector<2x256x4xf32>
    %cst_144 = arith.constant dense<0.000000e+00> : vector<2x4xf32>
    %75 = vector.multi_reduction <add>, %74, %cst_144 [1] : vector<2x256x4xf32> to vector<2x4xf32>
    %cst_145 = arith.constant 2.560000e+02 : f32
    %76 = vector.broadcast %cst_145 : f32 to vector<2x4xf32>
    %77 = arith.divf %75, %76 : vector<2x4xf32>
    %c0_146 = arith.constant 0 : index
    %c0_147 = arith.constant 0 : index
    %78 = vector.load %arg11[%c0_146, %c0_147] : memref<4x2xf32, #tpu.memory_space<vmem>>, vector<4x2xf32>
    %cst_148 = arith.constant dense<0.000000e+00> : vector<2x2xf32>
    %79 = tpu.matmul %77, %78, %cst_148 {dimension_numbers = #tpu.dot_dimension_numbers<[1], [0], [0], [1], [0, 0, 1, 1], [], []>} : vector<2x4xf32>, vector<4x2xf32>, vector<2x2xf32> -> vector<2x2xf32>
    %c0_149 = arith.constant 0 : index
    %c0_150 = arith.constant 0 : index
    %80 = vector.load %arg12[%c0_149, %c0_150] : memref<1x2xf32, #tpu.memory_space<vmem>>, vector<1x2xf32>
    %81 = vector.broadcast %80 : vector<1x2xf32> to vector<2x2xf32>
    %82 = arith.addf %79, %81 : vector<2x2xf32>
    %cst_151 = arith.constant 0.000000e+00 : f32
    %83 = vector.broadcast %cst_151 : f32 to vector<2x2xf32>
    %84 = arith.maximumf %82, %83 : vector<2x2xf32>
    %c0_152 = arith.constant 0 : index
    %c0_153 = arith.constant 0 : index
    %85 = vector.load %arg13[%c0_152, %c0_153] : memref<2x4xf32, #tpu.memory_space<vmem>>, vector<2x4xf32>
    %cst_154 = arith.constant dense<0.000000e+00> : vector<2x4xf32>
    %86 = tpu.matmul %84, %85, %cst_154 {dimension_numbers = #tpu.dot_dimension_numbers<[1], [0], [0], [1], [0, 0, 1, 1], [], []>} : vector<2x2xf32>, vector<2x4xf32>, vector<2x4xf32> -> vector<2x4xf32>
    %c0_155 = arith.constant 0 : index
    %c0_156 = arith.constant 0 : index
    %87 = vector.load %arg14[%c0_155, %c0_156] : memref<1x4xf32, #tpu.memory_space<vmem>>, vector<1x4xf32>
    %88 = vector.broadcast %87 : vector<1x4xf32> to vector<2x4xf32>
    %89 = arith.addf %86, %88 : vector<2x4xf32>
    %90 = arith.negf %89 : vector<2x4xf32>
    %91 = math.exp %90 : vector<2x4xf32>
    %cst_157 = arith.constant 1.000000e+00 : f32
    %92 = vector.broadcast %cst_157 : f32 to vector<2x4xf32>
    %93 = arith.addf %92, %91 : vector<2x4xf32>
    %94 = arith.divf %92, %93 : vector<2x4xf32>
    %95 = vector.shape_cast %73 : vector<512x1xf32> to vector<2x256x1xf32>
    %96 = vector.shape_cast %94 : vector<2x4xf32> to vector<2x1x4xf32>
    %97 = vector.broadcast %95 : vector<2x256x1xf32> to vector<2x256x4xf32>
    %98 = vector.broadcast %96 : vector<2x1x4xf32> to vector<2x256x4xf32>
    %99 = arith.addf %97, %98 : vector<2x256x4xf32>
    %100 = arith.mulf %99, %74 : vector<2x256x4xf32>
    %101 = vector.shape_cast %100 : vector<2x256x4xf32> to vector<2x16x16x4xf32>
    %c0_158 = arith.constant 0 : index
    %c0_159 = arith.constant 0 : index
    %c0_160 = arith.constant 0 : index
    %c0_161 = arith.constant 0 : index
    %102 = vector.load %arg15[%c0_158, %c0_159, %c0_160, %c0_161] : memref<2x16x16x4xf32, #tpu.memory_space<vmem>>, vector<2x16x16x4xf32>
    tpu.vector_store %arg15[%c0_158, %c0_159, %c0_160, %c0_161], %101 {strides = array<i32>} : memref<2x16x16x4xf32, #tpu.memory_space<vmem>>, vector<2x16x16x4xf32>,
    return
  }
  func.func @transform_0(%arg0: i32) -> (i32, i32, i32, i32) {
    %c0_i32 = arith.constant 0 : i32
    %c0_i32_0 = arith.constant 0 : i32
    %c0_i32_1 = arith.constant 0 : i32
    %c0_i32_2 = arith.constant 0 : i32
    return %arg0, %c0_i32, %c0_i32_0, %c0_i32_1 : i32, i32, i32, i32
  }
  func.func @transform_1(%arg0: i32) -> (i32, i32, i32, i32) {
    %c0_i32 = arith.constant 0 : i32
    %c0_i32_0 = arith.constant 0 : i32
    %c0_i32_1 = arith.constant 0 : i32
    %c0_i32_2 = arith.constant 0 : i32
    return %arg0, %c0_i32, %c0_i32_0, %c0_i32_1 : i32, i32, i32, i32
  }
  func.func @transform_2(%arg0: i32) -> (i32, i32) {
    %c0_i32 = arith.constant 0 : i32
    %c0_i32_0 = arith.constant 0 : i32
    %c0_i32_1 = arith.constant 0 : i32
    return %c0_i32, %c0_i32_0 : i32, i32
  }
  func.func @transform_3(%arg0: i32) -> (i32, i32) {
    %c0_i32 = arith.constant 0 : i32
    %c0_i32_0 = arith.constant 0 : i32
    %c0_i32_1 = arith.constant 0 : i32
    return %c0_i32, %c0_i32_0 : i32, i32
  }
  func.func @transform_4(%arg0: i32) -> (i32, i32) {
    %c0_i32 = arith.constant 0 : i32
    %c0_i32_0 = arith.constant 0 : i32
    %c0_i32_1 = arith.constant 0 : i32
    return %c0_i32, %c0_i32_0 : i32, i32
  }
  func.func @transform_5(%arg0: i32) -> (i32, i32) {
    %c0_i32 = arith.constant 0 : i32
    %c0_i32_0 = arith.constant 0 : i32
    %c0_i32_1 = arith.constant 0 : i32
    return %c0_i32, %c0_i32_0 : i32, i32
  }
  func.func @transform_6(%arg0: i32) -> (i32, i32) {
    %c0_i32 = arith.constant 0 : i32
    %c0_i32_0 = arith.constant 0 : i32
    %c0_i32_1 = arith.constant 0 : i32
    return %c0_i32, %c0_i32_0 : i32, i32
  }
  func.func @transform_7(%arg0: i32) -> (i32, i32) {
    %c0_i32 = arith.constant 0 : i32
    %c0_i32_0 = arith.constant 0 : i32
    %c0_i32_1 = arith.constant 0 : i32
    return %c0_i32, %c0_i32_0 : i32, i32
  }
  func.func @transform_8(%arg0: i32) -> (i32, i32) {
    %c0_i32 = arith.constant 0 : i32
    %c0_i32_0 = arith.constant 0 : i32
    %c0_i32_1 = arith.constant 0 : i32
    return %c0_i32, %c0_i32_0 : i32, i32
  }
  func.func @transform_9(%arg0: i32) -> (i32, i32) {
    %c0_i32 = arith.constant 0 : i32
    %c0_i32_0 = arith.constant 0 : i32
    %c0_i32_1 = arith.constant 0 : i32
    return %c0_i32, %c0_i32_0 : i32, i32
  }
  func.func @transform_10(%arg0: i32) -> (i32, i32) {
    %c0_i32 = arith.constant 0 : i32
    %c0_i32_0 = arith.constant 0 : i32
    %c0_i32_1 = arith.constant 0 : i32
    return %c0_i32, %c0_i32_0 : i32, i32
  }
  func.func @transform_11(%arg0: i32) -> (i32, i32) {
    %c0_i32 = arith.constant 0 : i32
    %c0_i32_0 = arith.constant 0 : i32
    %c0_i32_1 = arith.constant 0 : i32
    return %c0_i32, %c0_i32_0 : i32, i32
  }
  func.func @transform_12(%arg0: i32) -> (i32, i32) {
    %c0_i32 = arith.constant 0 : i32
    %c0_i32_0 = arith.constant 0 : i32
    %c0_i32_1 = arith.constant 0 : i32
    return %c0_i32, %c0_i32_0 : i32, i32
  }
  func.func @transform_13(%arg0: i32) -> (i32, i32) {
    %c0_i32 = arith.constant 0 : i32
    %c0_i32_0 = arith.constant 0 : i32
    %c0_i32_1 = arith.constant 0 : i32
    return %c0_i32, %c0_i32_0 : i32, i32
  }
  func.func @transform_14(%arg0: i32) -> (i32, i32, i32, i32) {
    %c0_i32 = arith.constant 0 : i32
    %c0_i32_0 = arith.constant 0 : i32
    %c0_i32_1 = arith.constant 0 : i32
    %c0_i32_2 = arith.constant 0 : i32
    return %arg0, %c0_i32, %c0_i32_0, %c0_i32_1 : i32, i32, i32, i32
  }
}

</mosaic_0001>

<llo_original>
// kernel: tpu_custom_call.1
$region0: #{tpu_custom_call.1}
  #allocation0 [shape = 'u32[]', space=smem, size = 0x4, offset = 0x4, fixed_abs, tag = 'smem constant byte address 0x4 - core index']
  #allocation1 [shape = 'u32[144,128]{1,0:T(1,128)}', space=vmem, size = 0x12000, scoped, tag = 'internal scratch']
  #allocation2 [shape = 'bf16[2,18,24,8]{3,2,1,0:T(8,128)(2,1)}', space=vmem, size = 0x36000, scoped, tag = 'scratch operand']
  #allocation3 [shape = 'bf16[2,18,24,8]{3,2,1,0:T(8,128)(2,1)}', space=vmem, size = 0x36000, scoped, tag = 'scratch operand']
  #allocation4 [shape = 'f32[1,1]{1,0:T(1,128)S(1)}', space=vmem, size = 0x200, scoped, tag = 'scoped memory for tpu_custom_call.1']
  %s0 = inlined_call_operand.vmem [shape: bf16[2,16,16,4], index: 0, kind: input, shape index: {}]
  %s1 = inlined_call_operand.vmem [shape: bf16[2,16,16,4], index: 1, kind: input, shape index: {}]
  %s2 = inlined_call_operand.vmem [shape: bf16[72,8], index: 2, kind: input, shape index: {}]
  %s3 = inlined_call_operand.vmem [shape: f32[1,8], index: 3, kind: input, shape index: {}]
  %s4 = inlined_call_operand.vmem [shape: f32[1,8], index: 4, kind: input, shape index: {}]
  %s5 = inlined_call_operand.vmem [shape: bf16[72,4], index: 5, kind: input, shape index: {}]
  %s6 = inlined_call_operand.vmem [shape: f32[1,4], index: 6, kind: input, shape index: {}]
  %s7 = inlined_call_operand.vmem [shape: f32[1,4], index: 7, kind: input, shape index: {}]
  %s8 = inlined_call_operand.vmem [shape: f32[1,4], index: 8, kind: input, shape index: {}]
  %s9 = inlined_call_operand.<no memory space> [shape: f32[1,1], index: 9, kind: input, shape index: {}]
  %s10 = inlined_call_operand.vmem [shape: f32[4,2], index: 10, kind: input, shape index: {}]
  %s11 = inlined_call_operand.vmem [shape: f32[1,2], index: 11, kind: input, shape index: {}]
  %s12 = inlined_call_operand.vmem [shape: f32[2,4], index: 12, kind: input, shape index: {}]
  %s13 = inlined_call_operand.vmem [shape: f32[1,4], index: 13, kind: input, shape index: {}]
  %s14 = inlined_call_operand.vmem [shape: f32[2,16,16,4], index: 14, kind: output, shape index: {}]
  %s15 = sld [smem:[#allocation0]]
  $region66: #{tpu_custom_call.1} parent=0
    _
  %s17 = ssub.s32 1, %s15
  %s18 = scalar_select 0, %s17, %s15
  %v19 = vstv %s9
  %20 = vst [vmem:[#allocation4] sm:$0x1] %v19
  // Predicated region
  $region2: #{tpu_custom_call.1} parent=0 // pred_check
    _
  $region3: #{tpu_custom_call.1} parent=0 // pred_check_branch
    %22 = sbr.rel (0) target = $region5
  $region4: #{tpu_custom_call.1} parent=0 // pred_region
    _
  $region5: #{tpu_custom_call.1} parent=0 // pred_fallthru
    _
  // Predicated region
  $region6: #{tpu_custom_call.1} parent=0 // pred_check
    _
  $region7: #{tpu_custom_call.1} parent=0 // pred_check_branch
    %24 = sbr.rel (0) target = $region9
  $region8: #{tpu_custom_call.1} parent=0 // pred_region
    _
  $region9: #{tpu_custom_call.1} parent=0 // pred_fallthru
    _
  // Predicated region
  $region10: #{tpu_custom_call.1} parent=0 // pred_check
    _
  $region11: #{tpu_custom_call.1} parent=0 // pred_check_branch
    %26 = sbr.rel (0) target = $region13
  $region12: #{tpu_custom_call.1} parent=0 // pred_region
    _
  $region13: #{tpu_custom_call.1} parent=0 // pred_fallthru
    _
  // Predicated region
  $region14: #{tpu_custom_call.1} parent=0 // pred_check
    _
  $region15: #{tpu_custom_call.1} parent=0 // pred_check_branch
    %28 = sbr.rel (0) target = $region17
  $region16: #{tpu_custom_call.1} parent=0 // pred_region
    _
  $region17: #{tpu_custom_call.1} parent=0 // pred_fallthru
    _
  // Predicated region
  $region18: #{tpu_custom_call.1} parent=0 // pred_check
    _
  $region19: #{tpu_custom_call.1} parent=0 // pred_check_branch
    %30 = sbr.rel (0) target = $region21
  $region20: #{tpu_custom_call.1} parent=0 // pred_region
    _
  $region21: #{tpu_custom_call.1} parent=0 // pred_fallthru
    _
  // Predicated region
  $region22: #{tpu_custom_call.1} parent=0 // pred_check
    _
  $region23: #{tpu_custom_call.1} parent=0 // pred_check_branch
    %32 = sbr.rel (0) target = $region25
  $region24: #{tpu_custom_call.1} parent=0 // pred_region
    _
  $region25: #{tpu_custom_call.1} parent=0 // pred_fallthru
    _
  // Predicated region
  $region26: #{tpu_custom_call.1} parent=0 // pred_check
    _
  $region27: #{tpu_custom_call.1} parent=0 // pred_check_branch
    %34 = sbr.rel (0) target = $region29
  $region28: #{tpu_custom_call.1} parent=0 // pred_region
    _
  $region29: #{tpu_custom_call.1} parent=0 // pred_fallthru
    _
  // Predicated region
  $region30: #{tpu_custom_call.1} parent=0 // pred_check
    _
  $region31: #{tpu_custom_call.1} parent=0 // pred_check_branch
    %36 = sbr.rel (0) target = $region33
  $region32: #{tpu_custom_call.1} parent=0 // pred_region
    _
  $region33: #{tpu_custom_call.1} parent=0 // pred_fallthru
    _
  // Predicated region
  $region34: #{tpu_custom_call.1} parent=0 // pred_check
    _
  $region35: #{tpu_custom_call.1} parent=0 // pred_check_branch
    %38 = sbr.rel (0) target = $region37
  $region36: #{tpu_custom_call.1} parent=0 // pred_region
    _
  $region37: #{tpu_custom_call.1} parent=0 // pred_fallthru
    _
  // Predicated region
  $region38: #{tpu_custom_call.1} parent=0 // pred_check
    _
  $region39: #{tpu_custom_call.1} parent=0 // pred_check_branch
    %40 = sbr.rel (0) target = $region41
  $region40: #{tpu_custom_call.1} parent=0 // pred_region
    _
  $region41: #{tpu_custom_call.1} parent=0 // pred_fallthru
    _
  // Predicated region
  $region42: #{tpu_custom_call.1} parent=0 // pred_check
    _
  $region43: #{tpu_custom_call.1} parent=0 // pred_check_branch
    %42 = sbr.rel (0) target = $region45
  $region44: #{tpu_custom_call.1} parent=0 // pred_region
    _
  $region45: #{tpu_custom_call.1} parent=0 // pred_fallthru
    _
  // Predicated region
  $region46: #{tpu_custom_call.1} parent=0 // pred_check
    _
  $region47: #{tpu_custom_call.1} parent=0 // pred_check_branch
    %44 = sbr.rel (0) target = $region49
  $region48: #{tpu_custom_call.1} parent=0 // pred_region
    _
  $region49: #{tpu_custom_call.1} parent=0 // pred_fallthru
    _
  // Predicated region
  $region50: #{tpu_custom_call.1} parent=0 // pred_check
    _
  $region51: #{tpu_custom_call.1} parent=0 // pred_check_branch
    %46 = sbr.rel (0) target = $region53
  $region52: #{tpu_custom_call.1} parent=0 // pred_region
    _
  $region53: #{tpu_custom_call.1} parent=0 // pred_fallthru
    _
  // Predicated region
  $region54: #{tpu_custom_call.1} parent=0 // pred_check
    _
  $region55: #{tpu_custom_call.1} parent=0 // pred_check_branch
    %48 = sbr.rel (0) target = $region57
  $region56: #{tpu_custom_call.1} parent=0 // pred_region
    _
  $region57: #{tpu_custom_call.1} parent=0 // pred_fallthru
    _
  %vm50 = vcmask 60416
  %51 = vst.msk [vmem:[#allocation2] sm:$0xf] %vm50, 0
  %52 = vst.msk [vmem:[#allocation2 + $0x4] sm:$0xf] %vm50, 0
  %vm53 = vcmask 57344
  %54 = vst.msk [vmem:[#allocation2 + $0x8] sm:$0x1] %vm53, 0
  %55 = vst.msk [vmem:[#allocation2 + $0xd8] sm:$0xf] %vm50, 0
  %56 = vst.msk [vmem:[#allocation2 + $0xdc] sm:$0xf] %vm50, 0
  %57 = vst.msk [vmem:[#allocation2 + $0xe0] sm:$0x1] %vm53, 0
  %s58 = scalar_lea.vmem [#allocation2], 204
  %59 = vst.msk [vmem:[%s58] sm:$0xf] %vm50, 0
  %60 = vst.msk [vmem:[%s58 + $0x4] sm:$0xf] %vm50, 0
  %61 = vst.msk [vmem:[%s58 + $0x8] sm:$0x1] %vm53, 0
  %62 = vst.msk [vmem:[%s58 + $0xd8] sm:$0xf] %vm50, 0
  %63 = vst.msk [vmem:[%s58 + $0xdc] sm:$0xf] %vm50, 0
  %64 = vst.msk [vmem:[%s58 + $0xe0] sm:$0x1] %vm53, 0
  %s65 = scalar_lea.vmem [#allocation2], 12
  %vm66 = vcmask 57344
  %vm67 = vsmask.f32 256
  %vm68 = vmand %vm66, %vm67
  %v69 = vld [vmem:[%s65] sm:$0x1]
  %v70 = vsel %vm68, 0, %v69
  %71 = vst [vmem:[%s65] sm:$0x1] %v70
  %v72 = vld [vmem:[%s65 + $0xc] sm:$0x1]
  %v73 = vsel %vm68, 0, %v72
  %74 = vst [vmem:[%s65 + $0xc] sm:$0x1] %v73
  %v75 = vld [vmem:[%s65 + $0x18] sm:$0x1]
  %v76 = vsel %vm68, 0, %v75
  %77 = vst [vmem:[%s65 + $0x18] sm:$0x1] %v76
  %v78 = vld [vmem:[%s65 + $0x24] sm:$0x1]
  %v79 = vsel %vm68, 0, %v78
  %80 = vst [vmem:[%s65 + $0x24] sm:$0x1] %v79
  %v81 = vld [vmem:[%s65 + $0x30] sm:$0x1]
  %v82 = vsel %vm68, 0, %v81
  %83 = vst [vmem:[%s65 + $0x30] sm:$0x1] %v82
  %v84 = vld [vmem:[%s65 + $0x3c] sm:$0x1]
  %v85 = vsel %vm68, 0, %v84
  %86 = vst [vmem:[%s65 + $0x3c] sm:$0x1] %v85
  %v87 = vld [vmem:[%s65 + $0x48] sm:$0x1]
  %v88 = vsel %vm68, 0, %v87
  %89 = vst [vmem:[%s65 + $0x48] sm:$0x1] %v88
  %v90 = vld [vmem:[%s65 + $0x54] sm:$0x1]
  %v91 = vsel %vm68, 0, %v90
  %92 = vst [vmem:[%s65 + $0x54] sm:$0x1] %v91
  %v93 = vld [vmem:[%s65 + $0x60] sm:$0x1]
  %v94 = vsel %vm68, 0, %v93
  %95 = vst [vmem:[%s65 + $0x60] sm:$0x1] %v94
  %v96 = vld [vmem:[%s65 + $0x6c] sm:$0x1]
  %v97 = vsel %vm68, 0, %v96
  %98 = vst [vmem:[%s65 + $0x6c] sm:$0x1] %v97
  %v99 = vld [vmem:[%s65 + $0x78] sm:$0x1]
  %v100 = vsel %vm68, 0, %v99
  %101 = vst [vmem:[%s65 + $0x78] sm:$0x1] %v100
  %v102 = vld [vmem:[%s65 + $0x84] sm:$0x1]
  %v103 = vsel %vm68, 0, %v102
  %104 = vst [vmem:[%s65 + $0x84] sm:$0x1] %v103
  %v105 = vld [vmem:[%s65 + $0x90] sm:$0x1]
  %v106 = vsel %vm68, 0, %v105
  %107 = vst [vmem:[%s65 + $0x90] sm:$0x1] %v106
  %v108 = vld [vmem:[%s65 + $0x9c] sm:$0x1]
  %v109 = vsel %vm68, 0, %v108
  %110 = vst [vmem:[%s65 + $0x9c] sm:$0x1] %v109
  %v111 = vld [vmem:[%s65 + $0xa8] sm:$0x1]
  %v112 = vsel %vm68, 0, %v111
  %113 = vst [vmem:[%s65 + $0xa8] sm:$0x1] %v112
  %v114 = vld [vmem:[%s65 + $0xb4] sm:$0x1]
  %v115 = vsel %vm68, 0, %v114
  %116 = vst [vmem:[%s65 + $0xb4] sm:$0x1] %v115
  %v117 = vld [vmem:[%s65 + $0xd8] sm:$0x1]
  %v118 = vsel %vm68, 0, %v117
  %119 = vst [vmem:[%s65 + $0xd8] sm:$0x1] %v118
  %v120 = vld [vmem:[%s65 + $0xe4] sm:$0x1]
  %v121 = vsel %vm68, 0, %v120
  %122 = vst [vmem:[%s65 + $0xe4] sm:$0x1] %v121
  %v123 = vld [vmem:[%s65 + $0xf0] sm:$0x1]
  %v124 = vsel %vm68, 0, %v123
  %125 = vst [vmem:[%s65 + $0xf0] sm:$0x1] %v124
  %v126 = vld [vmem:[%s65 + $0xfc] sm:$0x1]
  %v127 = vsel %vm68, 0, %v126
  %128 = vst [vmem:[%s65 + $0xfc] sm:$0x1] %v127
  %v129 = vld [vmem:[%s65 + $0x108] sm:$0x1]
  %v130 = vsel %vm68, 0, %v129
  %131 = vst [vmem:[%s65 + $0x108] sm:$0x1] %v130
  %v132 = vld [vmem:[%s65 + $0x114] sm:$0x1]
  %v133 = vsel %vm68, 0, %v132
  %134 = vst [vmem:[%s65 + $0x114] sm:$0x1] %v133
  %v135 = vld [vmem:[%s65 + $0x120] sm:$0x1]
  %v136 = vsel %vm68, 0, %v135
  %137 = vst [vmem:[%s65 + $0x120] sm:$0x1] %v136
  %v138 = vld [vmem:[%s65 + $0x12c] sm:$0x1]
  %v139 = vsel %vm68, 0, %v138
  %140 = vst [vmem:[%s65 + $0x12c] sm:$0x1] %v139
  %v141 = vld [vmem:[%s65 + $0x138] sm:$0x1]
  %v142 = vsel %vm68, 0, %v141
  %143 = vst [vmem:[%s65 + $0x138] sm:$0x1] %v142
  %v144 = vld [vmem:[%s65 + $0x144] sm:$0x1]
  %v145 = vsel %vm68, 0, %v144
  %146 = vst [vmem:[%s65 + $0x144] sm:$0x1] %v145
  %v147 = vld [vmem:[%s65 + $0x150] sm:$0x1]
  %v148 = vsel %vm68, 0, %v147
  %149 = vst [vmem:[%s65 + $0x150] sm:$0x1] %v148
  %v150 = vld [vmem:[%s65 + $0x15c] sm:$0x1]
  %v151 = vsel %vm68, 0, %v150
  %152 = vst [vmem:[%s65 + $0x15c] sm:$0x1] %v151
  %v153 = vld [vmem:[%s65 + $0x168] sm:$0x1]
  %v154 = vsel %vm68, 0, %v153
  %155 = vst [vmem:[%s65 + $0x168] sm:$0x1] %v154
  %v156 = vld [vmem:[%s65 + $0x174] sm:$0x1]
  %v157 = vsel %vm68, 0, %v156
  %158 = vst [vmem:[%s65 + $0x174] sm:$0x1] %v157
  %v159 = vld [vmem:[%s65 + $0x180] sm:$0x1]
  %v160 = vsel %vm68, 0, %v159
  %161 = vst [vmem:[%s65 + $0x180] sm:$0x1] %v160
  %v162 = vld [vmem:[%s65 + $0x18c] sm:$0x1]
  %v163 = vsel %vm68, 0, %v162
  %164 = vst [vmem:[%s65 + $0x18c] sm:$0x1] %v163
  %vm165 = vsmask.f32 7938
  %vm166 = vmand %vm66, %vm165
  %v167 = vld [vmem:[%s65 + $0x8] sm:$0x1]
  %v168 = vsel %vm166, 0, %v167
  %169 = vst [vmem:[%s65 + $0x8] sm:$0x1] %v168
  %v170 = vld [vmem:[%s65 + $0x14] sm:$0x1]
  %v171 = vsel %vm166, 0, %v170
  %172 = vst [vmem:[%s65 + $0x14] sm:$0x1] %v171
  %v173 = vld [vmem:[%s65 + $0x20] sm:$0x1]
  %v174 = vsel %vm166, 0, %v173
  %175 = vst [vmem:[%s65 + $0x20] sm:$0x1] %v174
  %v176 = vld [vmem:[%s65 + $0x2c] sm:$0x1]
  %v177 = vsel %vm166, 0, %v176
  %178 = vst [vmem:[%s65 + $0x2c] sm:$0x1] %v177
  %v179 = vld [vmem:[%s65 + $0x38] sm:$0x1]
  %v180 = vsel %vm166, 0, %v179
  %181 = vst [vmem:[%s65 + $0x38] sm:$0x1] %v180
  %v182 = vld [vmem:[%s65 + $0x44] sm:$0x1]
  %v183 = vsel %vm166, 0, %v182
  %184 = vst [vmem:[%s65 + $0x44] sm:$0x1] %v183
  %v185 = vld [vmem:[%s65 + $0x50] sm:$0x1]
  %v186 = vsel %vm166, 0, %v185
  %187 = vst [vmem:[%s65 + $0x50] sm:$0x1] %v186
  %v188 = vld [vmem:[%s65 + $0x5c] sm:$0x1]
  %v189 = vsel %vm166, 0, %v188
  %190 = vst [vmem:[%s65 + $0x5c] sm:$0x1] %v189
  %v191 = vld [vmem:[%s65 + $0x68] sm:$0x1]
  %v192 = vsel %vm166, 0, %v191
  %193 = vst [vmem:[%s65 + $0x68] sm:$0x1] %v192
  %v194 = vld [vmem:[%s65 + $0x74] sm:$0x1]
  %v195 = vsel %vm166, 0, %v194
  %196 = vst [vmem:[%s65 + $0x74] sm:$0x1] %v195
  %v197 = vld [vmem:[%s65 + $0x80] sm:$0x1]
  %v198 = vsel %vm166, 0, %v197
  %199 = vst [vmem:[%s65 + $0x80] sm:$0x1] %v198
  %v200 = vld [vmem:[%s65 + $0x8c] sm:$0x1]
  %v201 = vsel %vm166, 0, %v200
  %202 = vst [vmem:[%s65 + $0x8c] sm:$0x1] %v201
  %v203 = vld [vmem:[%s65 + $0x98] sm:$0x1]
  %v204 = vsel %vm166, 0, %v203
  %205 = vst [vmem:[%s65 + $0x98] sm:$0x1] %v204
  %v206 = vld [vmem:[%s65 + $0xa4] sm:$0x1]
  %v207 = vsel %vm166, 0, %v206
  %208 = vst [vmem:[%s65 + $0xa4] sm:$0x1] %v207
  %v209 = vld [vmem:[%s65 + $0xb0] sm:$0x1]
  %v210 = vsel %vm166, 0, %v209
  %211 = vst [vmem:[%s65 + $0xb0] sm:$0x1] %v210
  %v212 = vld [vmem:[%s65 + $0xbc] sm:$0x1]
  %v213 = vsel %vm166, 0, %v212
  %214 = vst [vmem:[%s65 + $0xbc] sm:$0x1] %v213
  %v215 = vld [vmem:[%s65 + $0xe0] sm:$0x1]
  %v216 = vsel %vm166, 0, %v215
  %217 = vst [vmem:[%s65 + $0xe0] sm:$0x1] %v216
  %v218 = vld [vmem:[%s65 + $0xec] sm:$0x1]
  %v219 = vsel %vm166, 0, %v218
  %220 = vst [vmem:[%s65 + $0xec] sm:$0x1] %v219
  %v221 = vld [vmem:[%s65 + $0xf8] sm:$0x1]
  %v222 = vsel %vm166, 0, %v221
  %223 = vst [vmem:[%s65 + $0xf8] sm:$0x1] %v222
  %v224 = vld [vmem:[%s65 + $0x104] sm:$0x1]
  %v225 = vsel %vm166, 0, %v224
  %226 = vst [vmem:[%s65 + $0x104] sm:$0x1] %v225
  %v227 = vld [vmem:[%s65 + $0x110] sm:$0x1]
  %v228 = vsel %vm166, 0, %v227
  %229 = vst [vmem:[%s65 + $0x110] sm:$0x1] %v228
  %v230 = vld [vmem:[%s65 + $0x11c] sm:$0x1]
  %v231 = vsel %vm166, 0, %v230
  %232 = vst [vmem:[%s65 + $0x11c] sm:$0x1] %v231
  %v233 = vld [vmem:[%s65 + $0x128] sm:$0x1]
  %v234 = vsel %vm166, 0, %v233
  %235 = vst [vmem:[%s65 + $0x128] sm:$0x1] %v234
  %v236 = vld [vmem:[%s65 + $0x134] sm:$0x1]
  %v237 = vsel %vm166, 0, %v236
  %238 = vst [vmem:[%s65 + $0x134] sm:$0x1] %v237
  %v239 = vld [vmem:[%s65 + $0x140] sm:$0x1]
  %v240 = vsel %vm166, 0, %v239
  %241 = vst [vmem:[%s65 + $0x140] sm:$0x1] %v240
  %v242 = vld [vmem:[%s65 + $0x14c] sm:$0x1]
  %v243 = vsel %vm166, 0, %v242
  %244 = vst [vmem:[%s65 + $0x14c] sm:$0x1] %v243
  %v245 = vld [vmem:[%s65 + $0x158] sm:$0x1]
  %v246 = vsel %vm166, 0, %v245
  %247 = vst [vmem:[%s65 + $0x158] sm:$0x1] %v246
  %v248 = vld [vmem:[%s65 + $0x164] sm:$0x1]
  %v249 = vsel %vm166, 0, %v248
  %250 = vst [vmem:[%s65 + $0x164] sm:$0x1] %v249
  %v251 = vld [vmem:[%s65 + $0x170] sm:$0x1]
  %v252 = vsel %vm166, 0, %v251
  %253 = vst [vmem:[%s65 + $0x170] sm:$0x1] %v252
  %v254 = vld [vmem:[%s65 + $0x17c] sm:$0x1]
  %v255 = vsel %vm166, 0, %v254
  %256 = vst [vmem:[%s65 + $0x17c] sm:$0x1] %v255
  %v257 = vld [vmem:[%s65 + $0x188] sm:$0x1]
  %v258 = vsel %vm166, 0, %v257
  %259 = vst [vmem:[%s65 + $0x188] sm:$0x1] %v258
  %v260 = vld [vmem:[%s65 + $0x194] sm:$0x1]
  %v261 = vsel %vm166, 0, %v260
  %262 = vst [vmem:[%s65 + $0x194] sm:$0x1] %v261
  %v263 = vld [vmem:[%s0] sm:$0xf]
  %v264 = vld [vmem:[%s0 + $0x4] sm:$0xf]
  %v265 = vld [vmem:[%s0 + $0x8] sm:$0xf]
  %v266 = vld [vmem:[%s0 + $0xc] sm:$0xf]
  %v267 = vld [vmem:[%s0 + $0x10] sm:$0xf]
  %v268 = vld [vmem:[%s0 + $0x14] sm:$0xf]
  %v269 = vld [vmem:[%s0 + $0x18] sm:$0xf]
  %v270 = vld [vmem:[%s0 + $0x1c] sm:$0xf]
  %v271 = vld [vmem:[%s0 + $0x20] sm:$0xf]
  %v272 = vld [vmem:[%s0 + $0x24] sm:$0xf]
  %v273 = vld [vmem:[%s0 + $0x28] sm:$0xf]
  %v274 = vld [vmem:[%s0 + $0x2c] sm:$0xf]
  %v275 = vld [vmem:[%s0 + $0x30] sm:$0xf]
  %v276 = vld [vmem:[%s0 + $0x34] sm:$0xf]
  %v277 = vld [vmem:[%s0 + $0x38] sm:$0xf]
  %v278 = vld [vmem:[%s0 + $0x3c] sm:$0xf]
  %v279 = vld [vmem:[%s0 + $0x40] sm:$0xf]
  %v280 = vld [vmem:[%s0 + $0x44] sm:$0xf]
  %v281 = vld [vmem:[%s0 + $0x48] sm:$0xf]
  %v282 = vld [vmem:[%s0 + $0x4c] sm:$0xf]
  %v283 = vld [vmem:[%s0 + $0x50] sm:$0xf]
  %v284 = vld [vmem:[%s0 + $0x54] sm:$0xf]
  %v285 = vld [vmem:[%s0 + $0x58] sm:$0xf]
  %v286 = vld [vmem:[%s0 + $0x5c] sm:$0xf]
  %v287 = vld [vmem:[%s0 + $0x60] sm:$0xf]
  %v288 = vld [vmem:[%s0 + $0x64] sm:$0xf]
  %v289 = vld [vmem:[%s0 + $0x68] sm:$0xf]
  %v290 = vld [vmem:[%s0 + $0x6c] sm:$0xf]
  %v291 = vld [vmem:[%s0 + $0x70] sm:$0xf]
  %v292 = vld [vmem:[%s0 + $0x74] sm:$0xf]
  %v293 = vld [vmem:[%s0 + $0x78] sm:$0xf]
  %v294 = vld [vmem:[%s0 + $0x7c] sm:$0xf]
  %v295 = vld [vmem:[%s0 + $0x80] sm:$0xf]
  %v296 = vld [vmem:[%s0 + $0x84] sm:$0xf]
  %v297 = vld [vmem:[%s0 + $0x88] sm:$0xf]
  %v298 = vld [vmem:[%s0 + $0x8c] sm:$0xf]
  %v299 = vld [vmem:[%s0 + $0x90] sm:$0xf]
  %v300 = vld [vmem:[%s0 + $0x94] sm:$0xf]
  %v301 = vld [vmem:[%s0 + $0x98] sm:$0xf]
  %v302 = vld [vmem:[%s0 + $0x9c] sm:$0xf]
  %v303 = vld [vmem:[%s0 + $0xa0] sm:$0xf]
  %v304 = vld [vmem:[%s0 + $0xa4] sm:$0xf]
  %v305 = vld [vmem:[%s0 + $0xa8] sm:$0xf]
  %v306 = vld [vmem:[%s0 + $0xac] sm:$0xf]
  %v307 = vld [vmem:[%s0 + $0xb0] sm:$0xf]
  %v308 = vld [vmem:[%s0 + $0xb4] sm:$0xf]
  %v309 = vld [vmem:[%s0 + $0xb8] sm:$0xf]
  %v310 = vld [vmem:[%s0 + $0xbc] sm:$0xf]
  %v311 = vld [vmem:[%s0 + $0xc0] sm:$0xf]
  %v312 = vld [vmem:[%s0 + $0xc4] sm:$0xf]
  %v313 = vld [vmem:[%s0 + $0xc8] sm:$0xf]
  %v314 = vld [vmem:[%s0 + $0xcc] sm:$0xf]
  %v315 = vld [vmem:[%s0 + $0xd0] sm:$0xf]
  %v316 = vld [vmem:[%s0 + $0xd4] sm:$0xf]
  %v317 = vld [vmem:[%s0 + $0xd8] sm:$0xf]
  %v318 = vld [vmem:[%s0 + $0xdc] sm:$0xf]
  %v319 = vld [vmem:[%s0 + $0xe0] sm:$0xf]
  %v320 = vld [vmem:[%s0 + $0xe4] sm:$0xf]
  %v321 = vld [vmem:[%s0 + $0xe8] sm:$0xf]
  %v322 = vld [vmem:[%s0 + $0xec] sm:$0xf]
  %v323 = vld [vmem:[%s0 + $0xf0] sm:$0xf]
  %v324 = vld [vmem:[%s0 + $0xf4] sm:$0xf]
  %v325 = vld [vmem:[%s0 + $0xf8] sm:$0xf]
  %v326 = vld [vmem:[%s0 + $0xfc] sm:$0xf]
  %vm327 = vsmask.f32 4368
  %vm328 = vmor %vm67, %vm327
  %v330 = vshrl.u32 %v263, 16
  %v332 = vrot.slane %v330, 7
  %v333 = vshll.u32 %v263, 16
  %v335 = vor.u32 %v332, %v333
  %v336 = vrot.slane %v332, 4
  %v338 = vshrl.u32 %v264, 16
  %v340 = vrot.slane %v338, 7
  %v341 = vshll.u32 %v264, 16
  %v343 = vor.u32 %v340, %v341
  %v344 = vsel %vm328, %v336, %v343
  %v345 = vrot.slane %v340, 4
  %v347 = vshrl.u32 %v265, 16
  %v349 = vrot.slane %v347, 7
  %v350 = vshll.u32 %v265, 16
  %v352 = vor.u32 %v349, %v350
  %v353 = vrot.slane %v349, 4
  %v355 = vshrl.u32 %v266, 16
  %v357 = vrot.slane %v355, 7
  %v358 = vshll.u32 %v266, 16
  %v360 = vor.u32 %v357, %v358
  %v361 = vsel %vm328, %v353, %v360
  %v362 = vrot.slane %v357, 4
  %v364 = vshrl.u32 %v267, 16
  %v366 = vrot.slane %v364, 7
  %v367 = vshll.u32 %v267, 16
  %v369 = vor.u32 %v366, %v367
  %v370 = vrot.slane %v366, 4
  %v372 = vshrl.u32 %v268, 16
  %v374 = vrot.slane %v372, 7
  %v375 = vshll.u32 %v268, 16
  %v377 = vor.u32 %v374, %v375
  %v378 = vsel %vm328, %v370, %v377
  %v379 = vrot.slane %v374, 4
  %v381 = vshrl.u32 %v269, 16
  %v383 = vrot.slane %v381, 7
  %v384 = vshll.u32 %v269, 16
  %v386 = vor.u32 %v383, %v384
  %v387 = vrot.slane %v383, 4
  %v389 = vshrl.u32 %v270, 16
  %v391 = vrot.slane %v389, 7
  %v392 = vshll.u32 %v270, 16
  %v394 = vor.u32 %v391, %v392
  %v395 = vsel %vm328, %v387, %v394
  %v396 = vrot.slane %v391, 4
  %v398 = vshrl.u32 %v271, 16
  %v400 = vrot.slane %v398, 7
  %v401 = vshll.u32 %v271, 16
  %v403 = vor.u32 %v400, %v401
  %v404 = vrot.slane %v400, 4
  %v406 = vshrl.u32 %v272, 16
  %v408 = vrot.slane %v406, 7
  %v409 = vshll.u32 %v272, 16
  %v411 = vor.u32 %v408, %v409
  %v412 = vsel %vm328, %v404, %v411
  %v413 = vrot.slane %v408, 4
  %v415 = vshrl.u32 %v273, 16
  %v417 = vrot.slane %v415, 7
  %v418 = vshll.u32 %v273, 16
  %v420 = vor.u32 %v417, %v418
  %v421 = vrot.slane %v417, 4
  %v423 = vshrl.u32 %v274, 16
  %v425 = vrot.slane %v423, 7
  %v426 = vshll.u32 %v274, 16
  %v428 = vor.u32 %v425, %v426
  %v429 = vsel %vm328, %v421, %v428
  %v430 = vrot.slane %v425, 4
  %v432 = vshrl.u32 %v275, 16
  %v434 = vrot.slane %v432, 7
  %v435 = vshll.u32 %v275, 16
  %v437 = vor.u32 %v434, %v435
  %v438 = vrot.slane %v434, 4
  %v440 = vshrl.u32 %v276, 16
  %v442 = vrot.slane %v440, 7
  %v443 = vshll.u32 %v276, 16
  %v445 = vor.u32 %v442, %v443
  %v446 = vsel %vm328, %v438, %v445
  %v447 = vrot.slane %v442, 4
  %v449 = vshrl.u32 %v277, 16
  %v451 = vrot.slane %v449, 7
  %v452 = vshll.u32 %v277, 16
  %v454 = vor.u32 %v451, %v452
  %v455 = vrot.slane %v451, 4
  %v457 = vshrl.u32 %v278, 16
  %v459 = vrot.slane %v457, 7
  %v460 = vshll.u32 %v278, 16
  %v462 = vor.u32 %v459, %v460
  %v463 = vsel %vm328, %v455, %v462
  %v464 = vrot.slane %v459, 4
  %v466 = vshrl.u32 %v279, 16
  %v468 = vrot.slane %v466, 7
  %v469 = vshll.u32 %v279, 16
  %v471 = vor.u32 %v468, %v469
  %v472 = vrot.slane %v468, 4
  %v474 = vshrl.u32 %v280, 16
  %v476 = vrot.slane %v474, 7
  %v477 = vshll.u32 %v280, 16
  %v479 = vor.u32 %v476, %v477
  %v480 = vsel %vm328, %v472, %v479
  %v481 = vrot.slane %v476, 4
  %v483 = vshrl.u32 %v281, 16
  %v485 = vrot.slane %v483, 7
  %v486 = vshll.u32 %v281, 16
  %v488 = vor.u32 %v485, %v486
  %v489 = vrot.slane %v485, 4
  %v491 = vshrl.u32 %v282, 16
  %v493 = vrot.slane %v491, 7
  %v494 = vshll.u32 %v282, 16
  %v496 = vor.u32 %v493, %v494
  %v497 = vsel %vm328, %v489, %v496
  %v498 = vrot.slane %v493, 4
  %v500 = vshrl.u32 %v283, 16
  %v502 = vrot.slane %v500, 7
  %v503 = vshll.u32 %v283, 16
  %v505 = vor.u32 %v502, %v503
  %v506 = vrot.slane %v502, 4
  %v508 = vshrl.u32 %v284, 16
  %v510 = vrot.slane %v508, 7
  %v511 = vshll.u32 %v284, 16
  %v513 = vor.u32 %v510, %v511
  %v514 = vsel %vm328, %v506, %v513
  %v515 = vrot.slane %v510, 4
  %v517 = vshrl.u32 %v285, 16
  %v519 = vrot.slane %v517, 7
  %v520 = vshll.u32 %v285, 16
  %v522 = vor.u32 %v519, %v520
  %v523 = vrot.slane %v519, 4
  %v525 = vshrl.u32 %v286, 16
  %v527 = vrot.slane %v525, 7
  %v528 = vshll.u32 %v286, 16
  %v530 = vor.u32 %v527, %v528
  %v531 = vsel %vm328, %v523, %v530
  %v532 = vrot.slane %v527, 4
  %v534 = vshrl.u32 %v287, 16
  %v536 = vrot.slane %v534, 7
  %v537 = vshll.u32 %v287, 16
  %v539 = vor.u32 %v536, %v537
  %v540 = vrot.slane %v536, 4
  %v542 = vshrl.u32 %v288, 16
  %v544 = vrot.slane %v542, 7
  %v545 = vshll.u32 %v288, 16
  %v547 = vor.u32 %v544, %v545
  %v548 = vsel %vm328, %v540, %v547
  %v549 = vrot.slane %v544, 4
  %v551 = vshrl.u32 %v289, 16
  %v553 = vrot.slane %v551, 7
  %v554 = vshll.u32 %v289, 16
  %v556 = vor.u32 %v553, %v554
  %v557 = vrot.slane %v553, 4
  %v559 = vshrl.u32 %v290, 16
  %v561 = vrot.slane %v559, 7
  %v562 = vshll.u32 %v290, 16
  %v564 = vor.u32 %v561, %v562
  %v565 = vsel %vm328, %v557, %v564
  %v566 = vrot.slane %v561, 4
  %v568 = vshrl.u32 %v291, 16
  %v570 = vrot.slane %v568, 7
  %v571 = vshll.u32 %v291, 16
  %v573 = vor.u32 %v570, %v571
  %v574 = vrot.slane %v570, 4
  %v576 = vshrl.u32 %v292, 16
  %v578 = vrot.slane %v576, 7
  %v579 = vshll.u32 %v292, 16
  %v581 = vor.u32 %v578, %v579
  %v582 = vsel %vm328, %v574, %v581
  %v583 = vrot.slane %v578, 4
  %v585 = vshrl.u32 %v293, 16
  %v587 = vrot.slane %v585, 7
  %v588 = vshll.u32 %v293, 16
  %v590 = vor.u32 %v587, %v588
  %v591 = vrot.slane %v587, 4
  %v593 = vshrl.u32 %v294, 16
  %v595 = vrot.slane %v593, 7
  %v596 = vshll.u32 %v294, 16
  %v598 = vor.u32 %v595, %v596
  %v599 = vsel %vm328, %v591, %v598
  %v600 = vrot.slane %v595, 4
  %v602 = vshrl.u32 %v295, 16
  %v604 = vrot.slane %v602, 7
  %v605 = vshll.u32 %v295, 16
  %v607 = vor.u32 %v604, %v605
  %v608 = vrot.slane %v604, 4
  %v610 = vshrl.u32 %v296, 16
  %v612 = vrot.slane %v610, 7
  %v613 = vshll.u32 %v296, 16
  %v615 = vor.u32 %v612, %v613
  %v616 = vsel %vm328, %v608, %v615
  %v617 = vrot.slane %v612, 4
  %v619 = vshrl.u32 %v297, 16
  %v621 = vrot.slane %v619, 7
  %v622 = vshll.u32 %v297, 16
  %v624 = vor.u32 %v621, %v622
  %v625 = vrot.slane %v621, 4
  %v627 = vshrl.u32 %v298, 16
  %v629 = vrot.slane %v627, 7
  %v630 = vshll.u32 %v298, 16
  %v632 = vor.u32 %v629, %v630
  %v633 = vsel %vm328, %v625, %v632
  %v634 = vrot.slane %v629, 4
  %v636 = vshrl.u32 %v299, 16
  %v638 = vrot.slane %v636, 7
  %v639 = vshll.u32 %v299, 16
  %v641 = vor.u32 %v638, %v639
  %v642 = vrot.slane %v638, 4
  %v644 = vshrl.u32 %v300, 16
  %v646 = vrot.slane %v644, 7
  %v647 = vshll.u32 %v300, 16
  %v649 = vor.u32 %v646, %v647
  %v650 = vsel %vm328, %v642, %v649
  %v651 = vrot.slane %v646, 4
  %v653 = vshrl.u32 %v301, 16
  %v655 = vrot.slane %v653, 7
  %v656 = vshll.u32 %v301, 16
  %v658 = vor.u32 %v655, %v656
  %v659 = vrot.slane %v655, 4
  %v661 = vshrl.u32 %v302, 16
  %v663 = vrot.slane %v661, 7
  %v664 = vshll.u32 %v302, 16
  %v666 = vor.u32 %v663, %v664
  %v667 = vsel %vm328, %v659, %v666
  %v668 = vrot.slane %v663, 4
  %v670 = vshrl.u32 %v303, 16
  %v672 = vrot.slane %v670, 7
  %v673 = vshll.u32 %v303, 16
  %v675 = vor.u32 %v672, %v673
  %v676 = vrot.slane %v672, 4
  %v678 = vshrl.u32 %v304, 16
  %v680 = vrot.slane %v678, 7
  %v681 = vshll.u32 %v304, 16
  %v683 = vor.u32 %v680, %v681
  %v684 = vsel %vm328, %v676, %v683
  %v685 = vrot.slane %v680, 4
  %v687 = vshrl.u32 %v305, 16
  %v689 = vrot.slane %v687, 7
  %v690 = vshll.u32 %v305, 16
  %v692 = vor.u32 %v689, %v690
  %v693 = vrot.slane %v689, 4
  %v695 = vshrl.u32 %v306, 16
  %v697 = vrot.slane %v695, 7
  %v698 = vshll.u32 %v306, 16
  %v700 = vor.u32 %v697, %v698
  %v701 = vsel %vm328, %v693, %v700
  %v702 = vrot.slane %v697, 4
  %v704 = vshrl.u32 %v307, 16
  %v706 = vrot.slane %v704, 7
  %v707 = vshll.u32 %v307, 16
  %v709 = vor.u32 %v706, %v707
  %v710 = vrot.slane %v706, 4
  %v712 = vshrl.u32 %v308, 16
  %v714 = vrot.slane %v712, 7
  %v715 = vshll.u32 %v308, 16
  %v717 = vor.u32 %v714, %v715
  %v718 = vsel %vm328, %v710, %v717
  %v719 = vrot.slane %v714, 4
  %v721 = vshrl.u32 %v309, 16
  %v723 = vrot.slane %v721, 7
  %v724 = vshll.u32 %v309, 16
  %v726 = vor.u32 %v723, %v724
  %v727 = vrot.slane %v723, 4
  %v729 = vshrl.u32 %v310, 16
  %v731 = vrot.slane %v729, 7
  %v732 = vshll.u32 %v310, 16
  %v734 = vor.u32 %v731, %v732
  %v735 = vsel %vm328, %v727, %v734
  %v736 = vrot.slane %v731, 4
  %v738 = vshrl.u32 %v311, 16
  %v740 = vrot.slane %v738, 7
  %v741 = vshll.u32 %v311, 16
  %v743 = vor.u32 %v740, %v741
  %v744 = vrot.slane %v740, 4
  %v746 = vshrl.u32 %v312, 16
  %v748 = vrot.slane %v746, 7
  %v749 = vshll.u32 %v312, 16
  %v751 = vor.u32 %v748, %v749
  %v752 = vsel %vm328, %v744, %v751
  %v753 = vrot.slane %v748, 4
  %v755 = vshrl.u32 %v313, 16
  %v757 = vrot.slane %v755, 7
  %v758 = vshll.u32 %v313, 16
  %v760 = vor.u32 %v757, %v758
  %v761 = vrot.slane %v757, 4
  %v763 = vshrl.u32 %v314, 16
  %v765 = vrot.slane %v763, 7
  %v766 = vshll.u32 %v314, 16
  %v768 = vor.u32 %v765, %v766
  %v769 = vsel %vm328, %v761, %v768
  %v770 = vrot.slane %v765, 4
  %v772 = vshrl.u32 %v315, 16
  %v774 = vrot.slane %v772, 7
  %v775 = vshll.u32 %v315, 16
  %v777 = vor.u32 %v774, %v775
  %v778 = vrot.slane %v774, 4
  %v780 = vshrl.u32 %v316, 16
  %v782 = vrot.slane %v780, 7
  %v783 = vshll.u32 %v316, 16
  %v785 = vor.u32 %v782, %v783
  %v786 = vsel %vm328, %v778, %v785
  %v787 = vrot.slane %v782, 4
  %v789 = vshrl.u32 %v317, 16
  %v791 = vrot.slane %v789, 7
  %v792 = vshll.u32 %v317, 16
  %v794 = vor.u32 %v791, %v792
  %v795 = vrot.slane %v791, 4
  %v797 = vshrl.u32 %v318, 16
  %v799 = vrot.slane %v797, 7
  %v800 = vshll.u32 %v318, 16
  %v802 = vor.u32 %v799, %v800
  %v803 = vsel %vm328, %v795, %v802
  %v804 = vrot.slane %v799, 4
  %v806 = vshrl.u32 %v319, 16
  %v808 = vrot.slane %v806, 7
  %v809 = vshll.u32 %v319, 16
  %v811 = vor.u32 %v808, %v809
  %v812 = vrot.slane %v808, 4
  %v814 = vshrl.u32 %v320, 16
  %v816 = vrot.slane %v814, 7
  %v817 = vshll.u32 %v320, 16
  %v819 = vor.u32 %v816, %v817
  %v820 = vsel %vm328, %v812, %v819
  %v821 = vrot.slane %v816, 4
  %v823 = vshrl.u32 %v321, 16
  %v825 = vrot.slane %v823, 7
  %v826 = vshll.u32 %v321, 16
  %v828 = vor.u32 %v825, %v826
  %v829 = vrot.slane %v825, 4
  %v831 = vshrl.u32 %v322, 16
  %v833 = vrot.slane %v831, 7
  %v834 = vshll.u32 %v322, 16
  %v836 = vor.u32 %v833, %v834
  %v837 = vsel %vm328, %v829, %v836
  %v838 = vrot.slane %v833, 4
  %v840 = vshrl.u32 %v323, 16
  %v842 = vrot.slane %v840, 7
  %v843 = vshll.u32 %v323, 16
  %v845 = vor.u32 %v842, %v843
  %v846 = vrot.slane %v842, 4
  %v848 = vshrl.u32 %v324, 16
  %v850 = vrot.slane %v848, 7
  %v851 = vshll.u32 %v324, 16
  %v853 = vor.u32 %v850, %v851
  %v854 = vsel %vm328, %v846, %v853
  %v855 = vrot.slane %v850, 4
  %v857 = vshrl.u32 %v325, 16
  %v859 = vrot.slane %v857, 7
  %v860 = vshll.u32 %v325, 16
  %v862 = vor.u32 %v859, %v860
  %v863 = vrot.slane %v859, 4
  %v865 = vshrl.u32 %v326, 16
  %v867 = vrot.slane %v865, 7
  %v868 = vshll.u32 %v326, 16
  %v870 = vor.u32 %v867, %v868
  %v871 = vsel %vm328, %v863, %v870
  %v872 = vrot.slane %v867, 4
  %vm969 = vcmask 27648
  %vm970 = vmand %vm969, %vm165
  %v971 = vld [vmem:[%s65] sm:$0xf]
  %v972 = vsel %vm970, %v335, %v971
  %973 = vst [vmem:[%s65] sm:$0xf] %v972
  %vm974 = vcmask 27648
  %975 = vst.msk [vmem:[%s65 + $0x4] sm:$0xf] %vm974, %v344
  %vm976 = vcmask 24576
  %vm977 = vmand %vm976, %vm67
  %v978 = vld [vmem:[%s65 + $0x8] sm:$0x1]
  %v979 = vsel %vm977, %v345, %v978
  %980 = vst [vmem:[%s65 + $0x8] sm:$0x1] %v979
  %v981 = vld [vmem:[%s65 + $0xc] sm:$0xf]
  %v982 = vsel %vm970, %v352, %v981
  %983 = vst [vmem:[%s65 + $0xc] sm:$0xf] %v982
  %984 = vst.msk [vmem:[%s65 + $0x10] sm:$0xf] %vm974, %v361
  %v985 = vld [vmem:[%s65 + $0x14] sm:$0x1]
  %v986 = vsel %vm977, %v362, %v985
  %987 = vst [vmem:[%s65 + $0x14] sm:$0x1] %v986
  %v988 = vld [vmem:[%s65 + $0x18] sm:$0xf]
  %v989 = vsel %vm970, %v369, %v988
  %990 = vst [vmem:[%s65 + $0x18] sm:$0xf] %v989
  %991 = vst.msk [vmem:[%s65 + $0x1c] sm:$0xf] %vm974, %v378
  %v992 = vld [vmem:[%s65 + $0x20] sm:$0x1]
  %v993 = vsel %vm977, %v379, %v992
  %994 = vst [vmem:[%s65 + $0x20] sm:$0x1] %v993
  %v995 = vld [vmem:[%s65 + $0x24] sm:$0xf]
  %v996 = vsel %vm970, %v386, %v995
  %997 = vst [vmem:[%s65 + $0x24] sm:$0xf] %v996
  %998 = vst.msk [vmem:[%s65 + $0x28] sm:$0xf] %vm974, %v395
  %v999 = vld [vmem:[%s65 + $0x2c] sm:$0x1]
  %v1000 = vsel %vm977, %v396, %v999
  %1001 = vst [vmem:[%s65 + $0x2c] sm:$0x1] %v1000
  %v1002 = vld [vmem:[%s65 + $0x30] sm:$0xf]
  %v1003 = vsel %vm970, %v403, %v1002
  %1004 = vst [vmem:[%s65 + $0x30] sm:$0xf] %v1003
  %1005 = vst.msk [vmem:[%s65 + $0x34] sm:$0xf] %vm974, %v412
  %v1006 = vld [vmem:[%s65 + $0x38] sm:$0x1]
  %v1007 = vsel %vm977, %v413, %v1006
  %1008 = vst [vmem:[%s65 + $0x38] sm:$0x1] %v1007
  %v1009 = vld [vmem:[%s65 + $0x3c] sm:$0xf]
  %v1010 = vsel %vm970, %v420, %v1009
  %1011 = vst [vmem:[%s65 + $0x3c] sm:$0xf] %v1010
  %1012 = vst.msk [vmem:[%s65 + $0x40] sm:$0xf] %vm974, %v429
  %v1013 = vld [vmem:[%s65 + $0x44] sm:$0x1]
  %v1014 = vsel %vm977, %v430, %v1013
  %1015 = vst [vmem:[%s65 + $0x44] sm:$0x1] %v1014
  %v1016 = vld [vmem:[%s65 + $0x48] sm:$0xf]
  %v1017 = vsel %vm970, %v437, %v1016
  %1018 = vst [vmem:[%s65 + $0x48] sm:$0xf] %v1017
  %1019 = vst.msk [vmem:[%s65 + $0x4c] sm:$0xf] %vm974, %v446
  %v1020 = vld [vmem:[%s65 + $0x50] sm:$0x1]
  %v1021 = vsel %vm977, %v447, %v1020
  %1022 = vst [vmem:[%s65 + $0x50] sm:$0x1] %v1021
  %v1023 = vld [vmem:[%s65 + $0x54] sm:$0xf]
  %v1024 = vsel %vm970, %v454, %v1023
  %1025 = vst [vmem:[%s65 + $0x54] sm:$0xf] %v1024
  %1026 = vst.msk [vmem:[%s65 + $0x58] sm:$0xf] %vm974, %v463
  %v1027 = vld [vmem:[%s65 + $0x5c] sm:$0x1]
  %v1028 = vsel %vm977, %v464, %v1027
  %1029 = vst [vmem:[%s65 + $0x5c] sm:$0x1] %v1028
  %v1030 = vld [vmem:[%s65 + $0x60] sm:$0xf]
  %v1031 = vsel %vm970, %v471, %v1030
  %1032 = vst [vmem:[%s65 + $0x60] sm:$0xf] %v1031
  %1033 = vst.msk [vmem:[%s65 + $0x64] sm:$0xf] %vm974, %v480
  %v1034 = vld [vmem:[%s65 + $0x68] sm:$0x1]
  %v1035 = vsel %vm977, %v481, %v1034
  %1036 = vst [vmem:[%s65 + $0x68] sm:$0x1] %v1035
  %v1037 = vld [vmem:[%s65 + $0x6c] sm:$0xf]
  %v1038 = vsel %vm970, %v488, %v1037
  %1039 = vst [vmem:[%s65 + $0x6c] sm:$0xf] %v1038
  %1040 = vst.msk [vmem:[%s65 + $0x70] sm:$0xf] %vm974, %v497
  %v1041 = vld [vmem:[%s65 + $0x74] sm:$0x1]
  %v1042 = vsel %vm977, %v498, %v1041
  %1043 = vst [vmem:[%s65 + $0x74] sm:$0x1] %v1042
  %v1044 = vld [vmem:[%s65 + $0x78] sm:$0xf]
  %v1045 = vsel %vm970, %v505, %v1044
  %1046 = vst [vmem:[%s65 + $0x78] sm:$0xf] %v1045
  %1047 = vst.msk [vmem:[%s65 + $0x7c] sm:$0xf] %vm974, %v514
  %v1048 = vld [vmem:[%s65 + $0x80] sm:$0x1]
  %v1049 = vsel %vm977, %v515, %v1048
  %1050 = vst [vmem:[%s65 + $0x80] sm:$0x1] %v1049
  %v1051 = vld [vmem:[%s65 + $0x84] sm:$0xf]
  %v1052 = vsel %vm970, %v522, %v1051
  %1053 = vst [vmem:[%s65 + $0x84] sm:$0xf] %v1052
  %1054 = vst.msk [vmem:[%s65 + $0x88] sm:$0xf] %vm974, %v531
  %v1055 = vld [vmem:[%s65 + $0x8c] sm:$0x1]
  %v1056 = vsel %vm977, %v532, %v1055
  %1057 = vst [vmem:[%s65 + $0x8c] sm:$0x1] %v1056
  %v1058 = vld [vmem:[%s65 + $0x90] sm:$0xf]
  %v1059 = vsel %vm970, %v539, %v1058
  %1060 = vst [vmem:[%s65 + $0x90] sm:$0xf] %v1059
  %1061 = vst.msk [vmem:[%s65 + $0x94] sm:$0xf] %vm974, %v548
  %v1062 = vld [vmem:[%s65 + $0x98] sm:$0x1]
  %v1063 = vsel %vm977, %v549, %v1062
  %1064 = vst [vmem:[%s65 + $0x98] sm:$0x1] %v1063
  %v1065 = vld [vmem:[%s65 + $0x9c] sm:$0xf]
  %v1066 = vsel %vm970, %v556, %v1065
  %1067 = vst [vmem:[%s65 + $0x9c] sm:$0xf] %v1066
  %1068 = vst.msk [vmem:[%s65 + $0xa0] sm:$0xf] %vm974, %v565
  %v1069 = vld [vmem:[%s65 + $0xa4] sm:$0x1]
  %v1070 = vsel %vm977, %v566, %v1069
  %1071 = vst [vmem:[%s65 + $0xa4] sm:$0x1] %v1070
  %v1072 = vld [vmem:[%s65 + $0xa8] sm:$0xf]
  %v1073 = vsel %vm970, %v573, %v1072
  %1074 = vst [vmem:[%s65 + $0xa8] sm:$0xf] %v1073
  %1075 = vst.msk [vmem:[%s65 + $0xac] sm:$0xf] %vm974, %v582
  %v1076 = vld [vmem:[%s65 + $0xb0] sm:$0x1]
  %v1077 = vsel %vm977, %v583, %v1076
  %1078 = vst [vmem:[%s65 + $0xb0] sm:$0x1] %v1077
  %v1079 = vld [vmem:[%s65 + $0xb4] sm:$0xf]
  %v1080 = vsel %vm970, %v590, %v1079
  %1081 = vst [vmem:[%s65 + $0xb4] sm:$0xf] %v1080
  %1082 = vst.msk [vmem:[%s65 + $0xb8] sm:$0xf] %vm974, %v599
  %v1083 = vld [vmem:[%s65 + $0xbc] sm:$0x1]
  %v1084 = vsel %vm977, %v600, %v1083
  %1085 = vst [vmem:[%s65 + $0xbc] sm:$0x1] %v1084
  %v1086 = vld [vmem:[%s65 + $0xd8] sm:$0xf]
  %v1087 = vsel %vm970, %v607, %v1086
  %1088 = vst [vmem:[%s65 + $0xd8] sm:$0xf] %v1087
  %1089 = vst.msk [vmem:[%s65 + $0xdc] sm:$0xf] %vm974, %v616
  %v1090 = vld [vmem:[%s65 + $0xe0] sm:$0x1]
  %v1091 = vsel %vm977, %v617, %v1090
  %1092 = vst [vmem:[%s65 + $0xe0] sm:$0x1] %v1091
  %v1093 = vld [vmem:[%s65 + $0xe4] sm:$0xf]
  %v1094 = vsel %vm970, %v624, %v1093
  %1095 = vst [vmem:[%s65 + $0xe4] sm:$0xf] %v1094
  %1096 = vst.msk [vmem:[%s65 + $0xe8] sm:$0xf] %vm974, %v633
  %v1097 = vld [vmem:[%s65 + $0xec] sm:$0x1]
  %v1098 = vsel %vm977, %v634, %v1097
  %1099 = vst [vmem:[%s65 + $0xec] sm:$0x1] %v1098
  %v1100 = vld [vmem:[%s65 + $0xf0] sm:$0xf]
  %v1101 = vsel %vm970, %v641, %v1100
  %1102 = vst [vmem:[%s65 + $0xf0] sm:$0xf] %v1101
  %1103 = vst.msk [vmem:[%s65 + $0xf4] sm:$0xf] %vm974, %v650
  %v1104 = vld [vmem:[%s65 + $0xf8] sm:$0x1]
  %v1105 = vsel %vm977, %v651, %v1104
  %1106 = vst [vmem:[%s65 + $0xf8] sm:$0x1] %v1105
  %v1107 = vld [vmem:[%s65 + $0xfc] sm:$0xf]
  %v1108 = vsel %vm970, %v658, %v1107
  %1109 = vst [vmem:[%s65 + $0xfc] sm:$0xf] %v1108
  %1110 = vst.msk [vmem:[%s65 + $0x100] sm:$0xf] %vm974, %v667
  %v1111 = vld [vmem:[%s65 + $0x104] sm:$0x1]
  %v1112 = vsel %vm977, %v668, %v1111
  %1113 = vst [vmem:[%s65 + $0x104] sm:$0x1] %v1112
  %v1114 = vld [vmem:[%s65 + $0x108] sm:$0xf]
  %v1115 = vsel %vm970, %v675, %v1114
  %1116 = vst [vmem:[%s65 + $0x108] sm:$0xf] %v1115
  %1117 = vst.msk [vmem:[%s65 + $0x10c] sm:$0xf] %vm974, %v684
  %v1118 = vld [vmem:[%s65 + $0x110] sm:$0x1]
  %v1119 = vsel %vm977, %v685, %v1118
  %1120 = vst [vmem:[%s65 + $0x110] sm:$0x1] %v1119
  %v1121 = vld [vmem:[%s65 + $0x114] sm:$0xf]
  %v1122 = vsel %vm970, %v692, %v1121
  %1123 = vst [vmem:[%s65 + $0x114] sm:$0xf] %v1122
  %1124 = vst.msk [vmem:[%s65 + $0x118] sm:$0xf] %vm974, %v701
  %v1125 = vld [vmem:[%s65 + $0x11c] sm:$0x1]
  %v1126 = vsel %vm977, %v702, %v1125
  %1127 = vst [vmem:[%s65 + $0x11c] sm:$0x1] %v1126
  %v1128 = vld [vmem:[%s65 + $0x120] sm:$0xf]
  %v1129 = vsel %vm970, %v709, %v1128
  %1130 = vst [vmem:[%s65 + $0x120] sm:$0xf] %v1129
  %1131 = vst.msk [vmem:[%s65 + $0x124] sm:$0xf] %vm974, %v718
  %v1132 = vld [vmem:[%s65 + $0x128] sm:$0x1]
  %v1133 = vsel %vm977, %v719, %v1132
  %1134 = vst [vmem:[%s65 + $0x128] sm:$0x1] %v1133
  %v1135 = vld [vmem:[%s65 + $0x12c] sm:$0xf]
  %v1136 = vsel %vm970, %v726, %v1135
  %1137 = vst [vmem:[%s65 + $0x12c] sm:$0xf] %v1136
  %1138 = vst.msk [vmem:[%s65 + $0x130] sm:$0xf] %vm974, %v735
  %v1139 = vld [vmem:[%s65 + $0x134] sm:$0x1]
  %v1140 = vsel %vm977, %v736, %v1139
  %1141 = vst [vmem:[%s65 + $0x134] sm:$0x1] %v1140
  %v1142 = vld [vmem:[%s65 + $0x138] sm:$0xf]
  %v1143 = vsel %vm970, %v743, %v1142
  %1144 = vst [vmem:[%s65 + $0x138] sm:$0xf] %v1143
  %1145 = vst.msk [vmem:[%s65 + $0x13c] sm:$0xf] %vm974, %v752
  %v1146 = vld [vmem:[%s65 + $0x140] sm:$0x1]
  %v1147 = vsel %vm977, %v753, %v1146
  %1148 = vst [vmem:[%s65 + $0x140] sm:$0x1] %v1147
  %v1149 = vld [vmem:[%s65 + $0x144] sm:$0xf]
  %v1150 = vsel %vm970, %v760, %v1149
  %1151 = vst [vmem:[%s65 + $0x144] sm:$0xf] %v1150
  %1152 = vst.msk [vmem:[%s65 + $0x148] sm:$0xf] %vm974, %v769
  %v1153 = vld [vmem:[%s65 + $0x14c] sm:$0x1]
  %v1154 = vsel %vm977, %v770, %v1153
  %1155 = vst [vmem:[%s65 + $0x14c] sm:$0x1] %v1154
  %v1156 = vld [vmem:[%s65 + $0x150] sm:$0xf]
  %v1157 = vsel %vm970, %v777, %v1156
  %1158 = vst [vmem:[%s65 + $0x150] sm:$0xf] %v1157
  %1159 = vst.msk [vmem:[%s65 + $0x154] sm:$0xf] %vm974, %v786
  %v1160 = vld [vmem:[%s65 + $0x158] sm:$0x1]
  %v1161 = vsel %vm977, %v787, %v1160
  %1162 = vst [vmem:[%s65 + $0x158] sm:$0x1] %v1161
  %v1163 = vld [vmem:[%s65 + $0x15c] sm:$0xf]
  %v1164 = vsel %vm970, %v794, %v1163
  %1165 = vst [vmem:[%s65 + $0x15c] sm:$0xf] %v1164
  %1166 = vst.msk [vmem:[%s65 + $0x160] sm:$0xf] %vm974, %v803
  %v1167 = vld [vmem:[%s65 + $0x164] sm:$0x1]
  %v1168 = vsel %vm977, %v804, %v1167
  %1169 = vst [vmem:[%s65 + $0x164] sm:$0x1] %v1168
  %v1170 = vld [vmem:[%s65 + $0x168] sm:$0xf]
  %v1171 = vsel %vm970, %v811, %v1170
  %1172 = vst [vmem:[%s65 + $0x168] sm:$0xf] %v1171
  %1173 = vst.msk [vmem:[%s65 + $0x16c] sm:$0xf] %vm974, %v820
  %v1174 = vld [vmem:[%s65 + $0x170] sm:$0x1]
  %v1175 = vsel %vm977, %v821, %v1174
  %1176 = vst [vmem:[%s65 + $0x170] sm:$0x1] %v1175
  %v1177 = vld [vmem:[%s65 + $0x174] sm:$0xf]
  %v1178 = vsel %vm970, %v828, %v1177
  %1179 = vst [vmem:[%s65 + $0x174] sm:$0xf] %v1178
  %1180 = vst.msk [vmem:[%s65 + $0x178] sm:$0xf] %vm974, %v837
  %v1181 = vld [vmem:[%s65 + $0x17c] sm:$0x1]
  %v1182 = vsel %vm977, %v838, %v1181
  %1183 = vst [vmem:[%s65 + $0x17c] sm:$0x1] %v1182
  %v1184 = vld [vmem:[%s65 + $0x180] sm:$0xf]
  %v1185 = vsel %vm970, %v845, %v1184
  %1186 = vst [vmem:[%s65 + $0x180] sm:$0xf] %v1185
  %1187 = vst.msk [vmem:[%s65 + $0x184] sm:$0xf] %vm974, %v854
  %v1188 = vld [vmem:[%s65 + $0x188] sm:$0x1]
  %v1189 = vsel %vm977, %v855, %v1188
  %1190 = vst [vmem:[%s65 + $0x188] sm:$0x1] %v1189
  %v1191 = vld [vmem:[%s65 + $0x18c] sm:$0xf]
  %v1192 = vsel %vm970, %v862, %v1191
  %1193 = vst [vmem:[%s65 + $0x18c] sm:$0xf] %v1192
  %1194 = vst.msk [vmem:[%s65 + $0x190] sm:$0xf] %vm974, %v871
  %v1195 = vld [vmem:[%s65 + $0x194] sm:$0x1]
  %v1196 = vsel %vm977, %v872, %v1195
  %1197 = vst [vmem:[%s65 + $0x194] sm:$0x1] %v1196
  %v1198 = vld [vmem:[%s1] sm:$0xf]
  %v1199 = vld [vmem:[%s1 + $0x4] sm:$0xf]
  %v1200 = vld [vmem:[%s1 + $0x8] sm:$0xf]
  %v1201 = vld [vmem:[%s1 + $0xc] sm:$0xf]
  %v1202 = vld [vmem:[%s1 + $0x10] sm:$0xf]
  %v1203 = vld [vmem:[%s1 + $0x14] sm:$0xf]
  %v1204 = vld [vmem:[%s1 + $0x18] sm:$0xf]
  %v1205 = vld [vmem:[%s1 + $0x1c] sm:$0xf]
  %v1206 = vld [vmem:[%s1 + $0x20] sm:$0xf]
  %v1207 = vld [vmem:[%s1 + $0x24] sm:$0xf]
  %v1208 = vld [vmem:[%s1 + $0x28] sm:$0xf]
  %v1209 = vld [vmem:[%s1 + $0x2c] sm:$0xf]
  %v1210 = vld [vmem:[%s1 + $0x30] sm:$0xf]
  %v1211 = vld [vmem:[%s1 + $0x34] sm:$0xf]
  %v1212 = vld [vmem:[%s1 + $0x38] sm:$0xf]
  %v1213 = vld [vmem:[%s1 + $0x3c] sm:$0xf]
  %v1214 = vld [vmem:[%s1 + $0x40] sm:$0xf]
  %v1215 = vld [vmem:[%s1 + $0x44] sm:$0xf]
  %v1216 = vld [vmem:[%s1 + $0x48] sm:$0xf]
  %v1217 = vld [vmem:[%s1 + $0x4c] sm:$0xf]
  %v1218 = vld [vmem:[%s1 + $0x50] sm:$0xf]
  %v1219 = vld [vmem:[%s1 + $0x54] sm:$0xf]
  %v1220 = vld [vmem:[%s1 + $0x58] sm:$0xf]
  %v1221 = vld [vmem:[%s1 + $0x5c] sm:$0xf]
  %v1222 = vld [vmem:[%s1 + $0x60] sm:$0xf]
  %v1223 = vld [vmem:[%s1 + $0x64] sm:$0xf]
  %v1224 = vld [vmem:[%s1 + $0x68] sm:$0xf]
  %v1225 = vld [vmem:[%s1 + $0x6c] sm:$0xf]
  %v1226 = vld [vmem:[%s1 + $0x70] sm:$0xf]
  %v1227 = vld [vmem:[%s1 + $0x74] sm:$0xf]
  %v1228 = vld [vmem:[%s1 + $0x78] sm:$0xf]
  %v1229 = vld [vmem:[%s1 + $0x7c] sm:$0xf]
  %v1230 = vld [vmem:[%s1 + $0x80] sm:$0xf]
  %v1231 = vld [vmem:[%s1 + $0x84] sm:$0xf]
  %v1232 = vld [vmem:[%s1 + $0x88] sm:$0xf]
  %v1233 = vld [vmem:[%s1 + $0x8c] sm:$0xf]
  %v1234 = vld [vmem:[%s1 + $0x90] sm:$0xf]
  %v1235 = vld [vmem:[%s1 + $0x94] sm:$0xf]
  %v1236 = vld [vmem:[%s1 + $0x98] sm:$0xf]
  %v1237 = vld [vmem:[%s1 + $0x9c] sm:$0xf]
  %v1238 = vld [vmem:[%s1 + $0xa0] sm:$0xf]
  %v1239 = vld [vmem:[%s1 + $0xa4] sm:$0xf]
  %v1240 = vld [vmem:[%s1 + $0xa8] sm:$0xf]
  %v1241 = vld [vmem:[%s1 + $0xac] sm:$0xf]
  %v1242 = vld [vmem:[%s1 + $0xb0] sm:$0xf]
  %v1243 = vld [vmem:[%s1 + $0xb4] sm:$0xf]
  %v1244 = vld [vmem:[%s1 + $0xb8] sm:$0xf]
  %v1245 = vld [vmem:[%s1 + $0xbc] sm:$0xf]
  %v1246 = vld [vmem:[%s1 + $0xc0] sm:$0xf]
  %v1247 = vld [vmem:[%s1 + $0xc4] sm:$0xf]
  %v1248 = vld [vmem:[%s1 + $0xc8] sm:$0xf]
  %v1249 = vld [vmem:[%s1 + $0xcc] sm:$0xf]
  %v1250 = vld [vmem:[%s1 + $0xd0] sm:$0xf]
  %v1251 = vld [vmem:[%s1 + $0xd4] sm:$0xf]
  %v1252 = vld [vmem:[%s1 + $0xd8] sm:$0xf]
  %v1253 = vld [vmem:[%s1 + $0xdc] sm:$0xf]
  %v1254 = vld [vmem:[%s1 + $0xe0] sm:$0xf]
  %v1255 = vld [vmem:[%s1 + $0xe4] sm:$0xf]
  %v1256 = vld [vmem:[%s1 + $0xe8] sm:$0xf]
  %v1257 = vld [vmem:[%s1 + $0xec] sm:$0xf]
  %v1258 = vld [vmem:[%s1 + $0xf0] sm:$0xf]
  %v1259 = vld [vmem:[%s1 + $0xf4] sm:$0xf]
  %v1260 = vld [vmem:[%s1 + $0xf8] sm:$0xf]
  %v1261 = vld [vmem:[%s1 + $0xfc] sm:$0xf]
  %v1263 = vshrl.u32 %v1198, 16
  %v1265 = vrot.slane %v1263, 7
  %v1266 = vshll.u32 %v1198, 16
  %v1268 = vor.u32 %v1265, %v1266
  %v1269 = vrot.slane %v1265, 4
  %v1271 = vshrl.u32 %v1199, 16
  %v1273 = vrot.slane %v1271, 7
  %v1274 = vshll.u32 %v1199, 16
  %v1276 = vor.u32 %v1273, %v1274
  %v1277 = vsel %vm328, %v1269, %v1276
  %v1278 = vrot.slane %v1273, 4
  %v1280 = vshrl.u32 %v1200, 16
  %v1282 = vrot.slane %v1280, 7
  %v1283 = vshll.u32 %v1200, 16
  %v1285 = vor.u32 %v1282, %v1283
  %v1286 = vrot.slane %v1282, 4
  %v1288 = vshrl.u32 %v1201, 16
  %v1290 = vrot.slane %v1288, 7
  %v1291 = vshll.u32 %v1201, 16
  %v1293 = vor.u32 %v1290, %v1291
  %v1294 = vsel %vm328, %v1286, %v1293
  %v1295 = vrot.slane %v1290, 4
  %v1297 = vshrl.u32 %v1202, 16
  %v1299 = vrot.slane %v1297, 7
  %v1300 = vshll.u32 %v1202, 16
  %v1302 = vor.u32 %v1299, %v1300
  %v1303 = vrot.slane %v1299, 4
  %v1305 = vshrl.u32 %v1203, 16
  %v1307 = vrot.slane %v1305, 7
  %v1308 = vshll.u32 %v1203, 16
  %v1310 = vor.u32 %v1307, %v1308
  %v1311 = vsel %vm328, %v1303, %v1310
  %v1312 = vrot.slane %v1307, 4
  %v1314 = vshrl.u32 %v1204, 16
  %v1316 = vrot.slane %v1314, 7
  %v1317 = vshll.u32 %v1204, 16
  %v1319 = vor.u32 %v1316, %v1317
  %v1320 = vrot.slane %v1316, 4
  %v1322 = vshrl.u32 %v1205, 16
  %v1324 = vrot.slane %v1322, 7
  %v1325 = vshll.u32 %v1205, 16
  %v1327 = vor.u32 %v1324, %v1325
  %v1328 = vsel %vm328, %v1320, %v1327
  %v1329 = vrot.slane %v1324, 4
  %v1331 = vshrl.u32 %v1206, 16
  %v1333 = vrot.slane %v1331, 7
  %v1334 = vshll.u32 %v1206, 16
  %v1336 = vor.u32 %v1333, %v1334
  %v1337 = vrot.slane %v1333, 4
  %v1339 = vshrl.u32 %v1207, 16
  %v1341 = vrot.slane %v1339, 7
  %v1342 = vshll.u32 %v1207, 16
  %v1344 = vor.u32 %v1341, %v1342
  %v1345 = vsel %vm328, %v1337, %v1344
  %v1346 = vrot.slane %v1341, 4
  %v1348 = vshrl.u32 %v1208, 16
  %v1350 = vrot.slane %v1348, 7
  %v1351 = vshll.u32 %v1208, 16
  %v1353 = vor.u32 %v1350, %v1351
  %v1354 = vrot.slane %v1350, 4
  %v1356 = vshrl.u32 %v1209, 16
  %v1358 = vrot.slane %v1356, 7
  %v1359 = vshll.u32 %v1209, 16
  %v1361 = vor.u32 %v1358, %v1359
  %v1362 = vsel %vm328, %v1354, %v1361
  %v1363 = vrot.slane %v1358, 4
  %v1365 = vshrl.u32 %v1210, 16
  %v1367 = vrot.slane %v1365, 7
  %v1368 = vshll.u32 %v1210, 16
  %v1370 = vor.u32 %v1367, %v1368
  %v1371 = vrot.slane %v1367, 4
  %v1373 = vshrl.u32 %v1211, 16
  %v1375 = vrot.slane %v1373, 7
  %v1376 = vshll.u32 %v1211, 16
  %v1378 = vor.u32 %v1375, %v1376
  %v1379 = vsel %vm328, %v1371, %v1378
  %v1380 = vrot.slane %v1375, 4
  %v1382 = vshrl.u32 %v1212, 16
  %v1384 = vrot.slane %v1382, 7
  %v1385 = vshll.u32 %v1212, 16
  %v1387 = vor.u32 %v1384, %v1385
  %v1388 = vrot.slane %v1384, 4
  %v1390 = vshrl.u32 %v1213, 16
  %v1392 = vrot.slane %v1390, 7
  %v1393 = vshll.u32 %v1213, 16
  %v1395 = vor.u32 %v1392, %v1393
  %v1396 = vsel %vm328, %v1388, %v1395
  %v1397 = vrot.slane %v1392, 4
  %v1399 = vshrl.u32 %v1214, 16
  %v1401 = vrot.slane %v1399, 7
  %v1402 = vshll.u32 %v1214, 16
  %v1404 = vor.u32 %v1401, %v1402
  %v1405 = vrot.slane %v1401, 4
  %v1407 = vshrl.u32 %v1215, 16
  %v1409 = vrot.slane %v1407, 7
  %v1410 = vshll.u32 %v1215, 16
  %v1412 = vor.u32 %v1409, %v1410
  %v1413 = vsel %vm328, %v1405, %v1412
  %v1414 = vrot.slane %v1409, 4
  %v1416 = vshrl.u32 %v1216, 16
  %v1418 = vrot.slane %v1416, 7
  %v1419 = vshll.u32 %v1216, 16
  %v1421 = vor.u32 %v1418, %v1419
  %v1422 = vrot.slane %v1418, 4
  %v1424 = vshrl.u32 %v1217, 16
  %v1426 = vrot.slane %v1424, 7
  %v1427 = vshll.u32 %v1217, 16
  %v1429 = vor.u32 %v1426, %v1427
  %v1430 = vsel %vm328, %v1422, %v1429
  %v1431 = vrot.slane %v1426, 4
  %v1433 = vshrl.u32 %v1218, 16
  %v1435 = vrot.slane %v1433, 7
  %v1436 = vshll.u32 %v1218, 16
  %v1438 = vor.u32 %v1435, %v1436
  %v1439 = vrot.slane %v1435, 4
  %v1441 = vshrl.u32 %v1219, 16
  %v1443 = vrot.slane %v1441, 7
  %v1444 = vshll.u32 %v1219, 16
  %v1446 = vor.u32 %v1443, %v1444
  %v1447 = vsel %vm328, %v1439, %v1446
  %v1448 = vrot.slane %v1443, 4
  %v1450 = vshrl.u32 %v1220, 16
  %v1452 = vrot.slane %v1450, 7
  %v1453 = vshll.u32 %v1220, 16
  %v1455 = vor.u32 %v1452, %v1453
  %v1456 = vrot.slane %v1452, 4
  %v1458 = vshrl.u32 %v1221, 16
  %v1460 = vrot.slane %v1458, 7
  %v1461 = vshll.u32 %v1221, 16
  %v1463 = vor.u32 %v1460, %v1461
  %v1464 = vsel %vm328, %v1456, %v1463
  %v1465 = vrot.slane %v1460, 4
  %v1467 = vshrl.u32 %v1222, 16
  %v1469 = vrot.slane %v1467, 7
  %v1470 = vshll.u32 %v1222, 16
  %v1472 = vor.u32 %v1469, %v1470
  %v1473 = vrot.slane %v1469, 4
  %v1475 = vshrl.u32 %v1223, 16
  %v1477 = vrot.slane %v1475, 7
  %v1478 = vshll.u32 %v1223, 16
  %v1480 = vor.u32 %v1477, %v1478
  %v1481 = vsel %vm328, %v1473, %v1480
  %v1482 = vrot.slane %v1477, 4
  %v1484 = vshrl.u32 %v1224, 16
  %v1486 = vrot.slane %v1484, 7
  %v1487 = vshll.u32 %v1224, 16
  %v1489 = vor.u32 %v1486, %v1487
  %v1490 = vrot.slane %v1486, 4
  %v1492 = vshrl.u32 %v1225, 16
  %v1494 = vrot.slane %v1492, 7
  %v1495 = vshll.u32 %v1225, 16
  %v1497 = vor.u32 %v1494, %v1495
  %v1498 = vsel %vm328, %v1490, %v1497
  %v1499 = vrot.slane %v1494, 4
  %v1501 = vshrl.u32 %v1226, 16
  %v1503 = vrot.slane %v1501, 7
  %v1504 = vshll.u32 %v1226, 16
  %v1506 = vor.u32 %v1503, %v1504
  %v1507 = vrot.slane %v1503, 4
  %v1509 = vshrl.u32 %v1227, 16
  %v1511 = vrot.slane %v1509, 7
  %v1512 = vshll.u32 %v1227, 16
  %v1514 = vor.u32 %v1511, %v1512
  %v1515 = vsel %vm328, %v1507, %v1514
  %v1516 = vrot.slane %v1511, 4
  %v1518 = vshrl.u32 %v1228, 16
  %v1520 = vrot.slane %v1518, 7
  %v1521 = vshll.u32 %v1228, 16
  %v1523 = vor.u32 %v1520, %v1521
  %v1524 = vrot.slane %v1520, 4
  %v1526 = vshrl.u32 %v1229, 16
  %v1528 = vrot.slane %v1526, 7
  %v1529 = vshll.u32 %v1229, 16
  %v1531 = vor.u32 %v1528, %v1529
  %v1532 = vsel %vm328, %v1524, %v1531
  %v1533 = vrot.slane %v1528, 4
  %v1535 = vshrl.u32 %v1230, 16
  %v1537 = vrot.slane %v1535, 7
  %v1538 = vshll.u32 %v1230, 16
  %v1540 = vor.u32 %v1537, %v1538
  %v1541 = vrot.slane %v1537, 4
  %v1543 = vshrl.u32 %v1231, 16
  %v1545 = vrot.slane %v1543, 7
  %v1546 = vshll.u32 %v1231, 16
  %v1548 = vor.u32 %v1545, %v1546
  %v1549 = vsel %vm328, %v1541, %v1548
  %v1550 = vrot.slane %v1545, 4
  %v1552 = vshrl.u32 %v1232, 16
  %v1554 = vrot.slane %v1552, 7
  %v1555 = vshll.u32 %v1232, 16
  %v1557 = vor.u32 %v1554, %v1555
  %v1558 = vrot.slane %v1554, 4
  %v1560 = vshrl.u32 %v1233, 16
  %v1562 = vrot.slane %v1560, 7
  %v1563 = vshll.u32 %v1233, 16
  %v1565 = vor.u32 %v1562, %v1563
  %v1566 = vsel %vm328, %v1558, %v1565
  %v1567 = vrot.slane %v1562, 4
  %v1569 = vshrl.u32 %v1234, 16
  %v1571 = vrot.slane %v1569, 7
  %v1572 = vshll.u32 %v1234, 16
  %v1574 = vor.u32 %v1571, %v1572
  %v1575 = vrot.slane %v1571, 4
  %v1577 = vshrl.u32 %v1235, 16
  %v1579 = vrot.slane %v1577, 7
  %v1580 = vshll.u32 %v1235, 16
  %v1582 = vor.u32 %v1579, %v1580
  %v1583 = vsel %vm328, %v1575, %v1582
  %v1584 = vrot.slane %v1579, 4
  %v1586 = vshrl.u32 %v1236, 16
  %v1588 = vrot.slane %v1586, 7
  %v1589 = vshll.u32 %v1236, 16
  %v1591 = vor.u32 %v1588, %v1589
  %v1592 = vrot.slane %v1588, 4
  %v1594 = vshrl.u32 %v1237, 16
  %v1596 = vrot.slane %v1594, 7
  %v1597 = vshll.u32 %v1237, 16
  %v1599 = vor.u32 %v1596, %v1597
  %v1600 = vsel %vm328, %v1592, %v1599
  %v1601 = vrot.slane %v1596, 4
  %v1603 = vshrl.u32 %v1238, 16
  %v1605 = vrot.slane %v1603, 7
  %v1606 = vshll.u32 %v1238, 16
  %v1608 = vor.u32 %v1605, %v1606
  %v1609 = vrot.slane %v1605, 4
  %v1611 = vshrl.u32 %v1239, 16
  %v1613 = vrot.slane %v1611, 7
  %v1614 = vshll.u32 %v1239, 16
  %v1616 = vor.u32 %v1613, %v1614
  %v1617 = vsel %vm328, %v1609, %v1616
  %v1618 = vrot.slane %v1613, 4
  %v1620 = vshrl.u32 %v1240, 16
  %v1622 = vrot.slane %v1620, 7
  %v1623 = vshll.u32 %v1240, 16
  %v1625 = vor.u32 %v1622, %v1623
  %v1626 = vrot.slane %v1622, 4
  %v1628 = vshrl.u32 %v1241, 16
  %v1630 = vrot.slane %v1628, 7
  %v1631 = vshll.u32 %v1241, 16
  %v1633 = vor.u32 %v1630, %v1631
  %v1634 = vsel %vm328, %v1626, %v1633
  %v1635 = vrot.slane %v1630, 4
  %v1637 = vshrl.u32 %v1242, 16
  %v1639 = vrot.slane %v1637, 7
  %v1640 = vshll.u32 %v1242, 16
  %v1642 = vor.u32 %v1639, %v1640
  %v1643 = vrot.slane %v1639, 4
  %v1645 = vshrl.u32 %v1243, 16
  %v1647 = vrot.slane %v1645, 7
  %v1648 = vshll.u32 %v1243, 16
  %v1650 = vor.u32 %v1647, %v1648
  %v1651 = vsel %vm328, %v1643, %v1650
  %v1652 = vrot.slane %v1647, 4
  %v1654 = vshrl.u32 %v1244, 16
  %v1656 = vrot.slane %v1654, 7
  %v1657 = vshll.u32 %v1244, 16
  %v1659 = vor.u32 %v1656, %v1657
  %v1660 = vrot.slane %v1656, 4
  %v1662 = vshrl.u32 %v1245, 16
  %v1664 = vrot.slane %v1662, 7
  %v1665 = vshll.u32 %v1245, 16
  %v1667 = vor.u32 %v1664, %v1665
  %v1668 = vsel %vm328, %v1660, %v1667
  %v1669 = vrot.slane %v1664, 4
  %v1671 = vshrl.u32 %v1246, 16
  %v1673 = vrot.slane %v1671, 7
  %v1674 = vshll.u32 %v1246, 16
  %v1676 = vor.u32 %v1673, %v1674
  %v1677 = vrot.slane %v1673, 4
  %v1679 = vshrl.u32 %v1247, 16
  %v1681 = vrot.slane %v1679, 7
  %v1682 = vshll.u32 %v1247, 16
  %v1684 = vor.u32 %v1681, %v1682
  %v1685 = vsel %vm328, %v1677, %v1684
  %v1686 = vrot.slane %v1681, 4
  %v1688 = vshrl.u32 %v1248, 16
  %v1690 = vrot.slane %v1688, 7
  %v1691 = vshll.u32 %v1248, 16
  %v1693 = vor.u32 %v1690, %v1691
  %v1694 = vrot.slane %v1690, 4
  %v1696 = vshrl.u32 %v1249, 16
  %v1698 = vrot.slane %v1696, 7
  %v1699 = vshll.u32 %v1249, 16
  %v1701 = vor.u32 %v1698, %v1699
  %v1702 = vsel %vm328, %v1694, %v1701
  %v1703 = vrot.slane %v1698, 4
  %v1705 = vshrl.u32 %v1250, 16
  %v1707 = vrot.slane %v1705, 7
  %v1708 = vshll.u32 %v1250, 16
  %v1710 = vor.u32 %v1707, %v1708
  %v1711 = vrot.slane %v1707, 4
  %v1713 = vshrl.u32 %v1251, 16
  %v1715 = vrot.slane %v1713, 7
  %v1716 = vshll.u32 %v1251, 16
  %v1718 = vor.u32 %v1715, %v1716
  %v1719 = vsel %vm328, %v1711, %v1718
  %v1720 = vrot.slane %v1715, 4
  %v1722 = vshrl.u32 %v1252, 16
  %v1724 = vrot.slane %v1722, 7
  %v1725 = vshll.u32 %v1252, 16
  %v1727 = vor.u32 %v1724, %v1725
  %v1728 = vrot.slane %v1724, 4
  %v1730 = vshrl.u32 %v1253, 16
  %v1732 = vrot.slane %v1730, 7
  %v1733 = vshll.u32 %v1253, 16
  %v1735 = vor.u32 %v1732, %v1733
  %v1736 = vsel %vm328, %v1728, %v1735
  %v1737 = vrot.slane %v1732, 4
  %v1739 = vshrl.u32 %v1254, 16
  %v1741 = vrot.slane %v1739, 7
  %v1742 = vshll.u32 %v1254, 16
  %v1744 = vor.u32 %v1741, %v1742
  %v1745 = vrot.slane %v1741, 4
  %v1747 = vshrl.u32 %v1255, 16
  %v1749 = vrot.slane %v1747, 7
  %v1750 = vshll.u32 %v1255, 16
  %v1752 = vor.u32 %v1749, %v1750
  %v1753 = vsel %vm328, %v1745, %v1752
  %v1754 = vrot.slane %v1749, 4
  %v1756 = vshrl.u32 %v1256, 16
  %v1758 = vrot.slane %v1756, 7
  %v1759 = vshll.u32 %v1256, 16
  %v1761 = vor.u32 %v1758, %v1759
  %v1762 = vrot.slane %v1758, 4
  %v1764 = vshrl.u32 %v1257, 16
  %v1766 = vrot.slane %v1764, 7
  %v1767 = vshll.u32 %v1257, 16
  %v1769 = vor.u32 %v1766, %v1767
  %v1770 = vsel %vm328, %v1762, %v1769
  %v1771 = vrot.slane %v1766, 4
  %v1773 = vshrl.u32 %v1258, 16
  %v1775 = vrot.slane %v1773, 7
  %v1776 = vshll.u32 %v1258, 16
  %v1778 = vor.u32 %v1775, %v1776
  %v1779 = vrot.slane %v1775, 4
  %v1781 = vshrl.u32 %v1259, 16
  %v1783 = vrot.slane %v1781, 7
  %v1784 = vshll.u32 %v1259, 16
  %v1786 = vor.u32 %v1783, %v1784
  %v1787 = vsel %vm328, %v1779, %v1786
  %v1788 = vrot.slane %v1783, 4
  %v1790 = vshrl.u32 %v1260, 16
  %v1792 = vrot.slane %v1790, 7
  %v1793 = vshll.u32 %v1260, 16
  %v1795 = vor.u32 %v1792, %v1793
  %v1796 = vrot.slane %v1792, 4
  %v1798 = vshrl.u32 %v1261, 16
  %v1800 = vrot.slane %v1798, 7
  %v1801 = vshll.u32 %v1261, 16
  %v1803 = vor.u32 %v1800, %v1801
  %v1804 = vsel %vm328, %v1796, %v1803
  %v1805 = vrot.slane %v1800, 4
  %1806 = vrot.lane.b32.xlu0 %v1268, 4
  %v1807 = vpop.permute.xlu0 %1806
  %1808 = vrot.lane.b32.xlu0 %v1277, 4
  %v1809 = vpop.permute.xlu0 %1808
  %1810 = vrot.lane.b32.xlu0 %v1278, 4
  %v1811 = vpop.permute.xlu0 %1810
  %1812 = vrot.lane.b32.xlu0 %v1285, 4
  %v1813 = vpop.permute.xlu0 %1812
  %1814 = vrot.lane.b32.xlu0 %v1294, 4
  %v1815 = vpop.permute.xlu0 %1814
  %1816 = vrot.lane.b32.xlu0 %v1295, 4
  %v1817 = vpop.permute.xlu0 %1816
  %1818 = vrot.lane.b32.xlu0 %v1302, 4
  %v1819 = vpop.permute.xlu0 %1818
  %1820 = vrot.lane.b32.xlu0 %v1311, 4
  %v1821 = vpop.permute.xlu0 %1820
  %1822 = vrot.lane.b32.xlu0 %v1312, 4
  %v1823 = vpop.permute.xlu0 %1822
  %1824 = vrot.lane.b32.xlu0 %v1319, 4
  %v1825 = vpop.permute.xlu0 %1824
  %1826 = vrot.lane.b32.xlu0 %v1328, 4
  %v1827 = vpop.permute.xlu0 %1826
  %1828 = vrot.lane.b32.xlu0 %v1329, 4
  %v1829 = vpop.permute.xlu0 %1828
  %1830 = vrot.lane.b32.xlu0 %v1336, 4
  %v1831 = vpop.permute.xlu0 %1830
  %1832 = vrot.lane.b32.xlu0 %v1345, 4
  %v1833 = vpop.permute.xlu0 %1832
  %1834 = vrot.lane.b32.xlu0 %v1346, 4
  %v1835 = vpop.permute.xlu0 %1834
  %1836 = vrot.lane.b32.xlu0 %v1353, 4
  %v1837 = vpop.permute.xlu0 %1836
  %1838 = vrot.lane.b32.xlu0 %v1362, 4
  %v1839 = vpop.permute.xlu0 %1838
  %1840 = vrot.lane.b32.xlu0 %v1363, 4
  %v1841 = vpop.permute.xlu0 %1840
  %1842 = vrot.lane.b32.xlu0 %v1370, 4
  %v1843 = vpop.permute.xlu0 %1842
  %1844 = vrot.lane.b32.xlu0 %v1379, 4
  %v1845 = vpop.permute.xlu0 %1844
  %1846 = vrot.lane.b32.xlu0 %v1380, 4
  %v1847 = vpop.permute.xlu0 %1846
  %1848 = vrot.lane.b32.xlu0 %v1387, 4
  %v1849 = vpop.permute.xlu0 %1848
  %1850 = vrot.lane.b32.xlu0 %v1396, 4
  %v1851 = vpop.permute.xlu0 %1850
  %1852 = vrot.lane.b32.xlu0 %v1397, 4
  %v1853 = vpop.permute.xlu0 %1852
  %1854 = vrot.lane.b32.xlu0 %v1404, 4
  %v1855 = vpop.permute.xlu0 %1854
  %1856 = vrot.lane.b32.xlu0 %v1413, 4
  %v1857 = vpop.permute.xlu0 %1856
  %1858 = vrot.lane.b32.xlu0 %v1414, 4
  %v1859 = vpop.permute.xlu0 %1858
  %1860 = vrot.lane.b32.xlu0 %v1421, 4
  %v1861 = vpop.permute.xlu0 %1860
  %1862 = vrot.lane.b32.xlu0 %v1430, 4
  %v1863 = vpop.permute.xlu0 %1862
  %1864 = vrot.lane.b32.xlu0 %v1431, 4
  %v1865 = vpop.permute.xlu0 %1864
  %1866 = vrot.lane.b32.xlu0 %v1438, 4
  %v1867 = vpop.permute.xlu0 %1866
  %1868 = vrot.lane.b32.xlu0 %v1447, 4
  %v1869 = vpop.permute.xlu0 %1868
  %1870 = vrot.lane.b32.xlu0 %v1448, 4
  %v1871 = vpop.permute.xlu0 %1870
  %1872 = vrot.lane.b32.xlu0 %v1455, 4
  %v1873 = vpop.permute.xlu0 %1872
  %1874 = vrot.lane.b32.xlu0 %v1464, 4
  %v1875 = vpop.permute.xlu0 %1874
  %1876 = vrot.lane.b32.xlu0 %v1465, 4
  %v1877 = vpop.permute.xlu0 %1876
  %1878 = vrot.lane.b32.xlu0 %v1472, 4
  %v1879 = vpop.permute.xlu0 %1878
  %1880 = vrot.lane.b32.xlu0 %v1481, 4
  %v1881 = vpop.permute.xlu0 %1880
  %1882 = vrot.lane.b32.xlu0 %v1482, 4
  %v1883 = vpop.permute.xlu0 %1882
  %1884 = vrot.lane.b32.xlu0 %v1489, 4
  %v1885 = vpop.permute.xlu0 %1884
  %1886 = vrot.lane.b32.xlu0 %v1498, 4
  %v1887 = vpop.permute.xlu0 %1886
  %1888 = vrot.lane.b32.xlu0 %v1499, 4
  %v1889 = vpop.permute.xlu0 %1888
  %1890 = vrot.lane.b32.xlu0 %v1506, 4
  %v1891 = vpop.permute.xlu0 %1890
  %1892 = vrot.lane.b32.xlu0 %v1515, 4
  %v1893 = vpop.permute.xlu0 %1892
  %1894 = vrot.lane.b32.xlu0 %v1516, 4
  %v1895 = vpop.permute.xlu0 %1894
  %1896 = vrot.lane.b32.xlu0 %v1523, 4
  %v1897 = vpop.permute.xlu0 %1896
  %1898 = vrot.lane.b32.xlu0 %v1532, 4
  %v1899 = vpop.permute.xlu0 %1898
  %1900 = vrot.lane.b32.xlu0 %v1533, 4
  %v1901 = vpop.permute.xlu0 %1900
  %1902 = vrot.lane.b32.xlu0 %v1540, 4
  %v1903 = vpop.permute.xlu0 %1902
  %1904 = vrot.lane.b32.xlu0 %v1549, 4
  %v1905 = vpop.permute.xlu0 %1904
  %1906 = vrot.lane.b32.xlu0 %v1550, 4
  %v1907 = vpop.permute.xlu0 %1906
  %1908 = vrot.lane.b32.xlu0 %v1557, 4
  %v1909 = vpop.permute.xlu0 %1908
  %1910 = vrot.lane.b32.xlu0 %v1566, 4
  %v1911 = vpop.permute.xlu0 %1910
  %1912 = vrot.lane.b32.xlu0 %v1567, 4
  %v1913 = vpop.permute.xlu0 %1912
  %1914 = vrot.lane.b32.xlu0 %v1574, 4
  %v1915 = vpop.permute.xlu0 %1914
  %1916 = vrot.lane.b32.xlu0 %v1583, 4
  %v1917 = vpop.permute.xlu0 %1916
  %1918 = vrot.lane.b32.xlu0 %v1584, 4
  %v1919 = vpop.permute.xlu0 %1918
  %1920 = vrot.lane.b32.xlu0 %v1591, 4
  %v1921 = vpop.permute.xlu0 %1920
  %1922 = vrot.lane.b32.xlu0 %v1600, 4
  %v1923 = vpop.permute.xlu0 %1922
  %1924 = vrot.lane.b32.xlu0 %v1601, 4
  %v1925 = vpop.permute.xlu0 %1924
  %1926 = vrot.lane.b32.xlu0 %v1608, 4
  %v1927 = vpop.permute.xlu0 %1926
  %1928 = vrot.lane.b32.xlu0 %v1617, 4
  %v1929 = vpop.permute.xlu0 %1928
  %1930 = vrot.lane.b32.xlu0 %v1618, 4
  %v1931 = vpop.permute.xlu0 %1930
  %1932 = vrot.lane.b32.xlu0 %v1625, 4
  %v1933 = vpop.permute.xlu0 %1932
  %1934 = vrot.lane.b32.xlu0 %v1634, 4
  %v1935 = vpop.permute.xlu0 %1934
  %1936 = vrot.lane.b32.xlu0 %v1635, 4
  %v1937 = vpop.permute.xlu0 %1936
  %1938 = vrot.lane.b32.xlu0 %v1642, 4
  %v1939 = vpop.permute.xlu0 %1938
  %1940 = vrot.lane.b32.xlu0 %v1651, 4
  %v1941 = vpop.permute.xlu0 %1940
  %1942 = vrot.lane.b32.xlu0 %v1652, 4
  %v1943 = vpop.permute.xlu0 %1942
  %1944 = vrot.lane.b32.xlu0 %v1659, 4
  %v1945 = vpop.permute.xlu0 %1944
  %1946 = vrot.lane.b32.xlu0 %v1668, 4
  %v1947 = vpop.permute.xlu0 %1946
  %1948 = vrot.lane.b32.xlu0 %v1669, 4
  %v1949 = vpop.permute.xlu0 %1948
  %1950 = vrot.lane.b32.xlu0 %v1676, 4
  %v1951 = vpop.permute.xlu0 %1950
  %1952 = vrot.lane.b32.xlu0 %v1685, 4
  %v1953 = vpop.permute.xlu0 %1952
  %1954 = vrot.lane.b32.xlu0 %v1686, 4
  %v1955 = vpop.permute.xlu0 %1954
  %1956 = vrot.lane.b32.xlu0 %v1693, 4
  %v1957 = vpop.permute.xlu0 %1956
  %1958 = vrot.lane.b32.xlu0 %v1702, 4
  %v1959 = vpop.permute.xlu0 %1958
  %1960 = vrot.lane.b32.xlu0 %v1703, 4
  %v1961 = vpop.permute.xlu0 %1960
  %1962 = vrot.lane.b32.xlu0 %v1710, 4
  %v1963 = vpop.permute.xlu0 %1962
  %1964 = vrot.lane.b32.xlu0 %v1719, 4
  %v1965 = vpop.permute.xlu0 %1964
  %1966 = vrot.lane.b32.xlu0 %v1720, 4
  %v1967 = vpop.permute.xlu0 %1966
  %1968 = vrot.lane.b32.xlu0 %v1727, 4
  %v1969 = vpop.permute.xlu0 %1968
  %1970 = vrot.lane.b32.xlu0 %v1736, 4
  %v1971 = vpop.permute.xlu0 %1970
  %1972 = vrot.lane.b32.xlu0 %v1737, 4
  %v1973 = vpop.permute.xlu0 %1972
  %1974 = vrot.lane.b32.xlu0 %v1744, 4
  %v1975 = vpop.permute.xlu0 %1974
  %1976 = vrot.lane.b32.xlu0 %v1753, 4
  %v1977 = vpop.permute.xlu0 %1976
  %1978 = vrot.lane.b32.xlu0 %v1754, 4
  %v1979 = vpop.permute.xlu0 %1978
  %1980 = vrot.lane.b32.xlu0 %v1761, 4
  %v1981 = vpop.permute.xlu0 %1980
  %1982 = vrot.lane.b32.xlu0 %v1770, 4
  %v1983 = vpop.permute.xlu0 %1982
  %1984 = vrot.lane.b32.xlu0 %v1771, 4
  %v1985 = vpop.permute.xlu0 %1984
  %1986 = vrot.lane.b32.xlu0 %v1778, 4
  %v1987 = vpop.permute.xlu0 %1986
  %1988 = vrot.lane.b32.xlu0 %v1787, 4
  %v1989 = vpop.permute.xlu0 %1988
  %1990 = vrot.lane.b32.xlu0 %v1788, 4
  %v1991 = vpop.permute.xlu0 %1990
  %1992 = vrot.lane.b32.xlu0 %v1795, 4
  %v1993 = vpop.permute.xlu0 %1992
  %1994 = vrot.lane.b32.xlu0 %v1804, 4
  %v1995 = vpop.permute.xlu0 %1994
  %1996 = vrot.lane.b32.xlu0 %v1805, 4
  %v1997 = vpop.permute.xlu0 %1996
  %vm2094 = vcmask 60448
  %vm2095 = vmand %vm2094, %vm165
  %v2096 = vld [vmem:[%s65] sm:$0xf]
  %v2097 = vsel %vm2095, %v1807, %v2096
  %2098 = vst [vmem:[%s65] sm:$0xf] %v2097
  %vm2099 = vcmask 60448
  %2100 = vst.msk [vmem:[%s65 + $0x4] sm:$0xf] %vm2099, %v1809
  %vm2101 = vcmask 57376
  %vm2102 = vmand %vm2101, %vm67
  %v2103 = vld [vmem:[%s65 + $0x8] sm:$0x1]
  %v2104 = vsel %vm2102, %v1811, %v2103
  %2105 = vst [vmem:[%s65 + $0x8] sm:$0x1] %v2104
  %v2106 = vld [vmem:[%s65 + $0xc] sm:$0xf]
  %v2107 = vsel %vm2095, %v1813, %v2106
  %2108 = vst [vmem:[%s65 + $0xc] sm:$0xf] %v2107
  %2109 = vst.msk [vmem:[%s65 + $0x10] sm:$0xf] %vm2099, %v1815
  %v2110 = vld [vmem:[%s65 + $0x14] sm:$0x1]
  %v2111 = vsel %vm2102, %v1817, %v2110
  %2112 = vst [vmem:[%s65 + $0x14] sm:$0x1] %v2111
  %v2113 = vld [vmem:[%s65 + $0x18] sm:$0xf]
  %v2114 = vsel %vm2095, %v1819, %v2113
  %2115 = vst [vmem:[%s65 + $0x18] sm:$0xf] %v2114
  %2116 = vst.msk [vmem:[%s65 + $0x1c] sm:$0xf] %vm2099, %v1821
  %v2117 = vld [vmem:[%s65 + $0x20] sm:$0x1]
  %v2118 = vsel %vm2102, %v1823, %v2117
  %2119 = vst [vmem:[%s65 + $0x20] sm:$0x1] %v2118
  %v2120 = vld [vmem:[%s65 + $0x24] sm:$0xf]
  %v2121 = vsel %vm2095, %v1825, %v2120
  %2122 = vst [vmem:[%s65 + $0x24] sm:$0xf] %v2121
  %2123 = vst.msk [vmem:[%s65 + $0x28] sm:$0xf] %vm2099, %v1827
  %v2124 = vld [vmem:[%s65 + $0x2c] sm:$0x1]
  %v2125 = vsel %vm2102, %v1829, %v2124
  %2126 = vst [vmem:[%s65 + $0x2c] sm:$0x1] %v2125
  %v2127 = vld [vmem:[%s65 + $0x30] sm:$0xf]
  %v2128 = vsel %vm2095, %v1831, %v2127
  %2129 = vst [vmem:[%s65 + $0x30] sm:$0xf] %v2128
  %2130 = vst.msk [vmem:[%s65 + $0x34] sm:$0xf] %vm2099, %v1833
  %v2131 = vld [vmem:[%s65 + $0x38] sm:$0x1]
  %v2132 = vsel %vm2102, %v1835, %v2131
  %2133 = vst [vmem:[%s65 + $0x38] sm:$0x1] %v2132
  %v2134 = vld [vmem:[%s65 + $0x3c] sm:$0xf]
  %v2135 = vsel %vm2095, %v1837, %v2134
  %2136 = vst [vmem:[%s65 + $0x3c] sm:$0xf] %v2135
  %2137 = vst.msk [vmem:[%s65 + $0x40] sm:$0xf] %vm2099, %v1839
  %v2138 = vld [vmem:[%s65 + $0x44] sm:$0x1]
  %v2139 = vsel %vm2102, %v1841, %v2138
  %2140 = vst [vmem:[%s65 + $0x44] sm:$0x1] %v2139
  %v2141 = vld [vmem:[%s65 + $0x48] sm:$0xf]
  %v2142 = vsel %vm2095, %v1843, %v2141
  %2143 = vst [vmem:[%s65 + $0x48] sm:$0xf] %v2142
  %2144 = vst.msk [vmem:[%s65 + $0x4c] sm:$0xf] %vm2099, %v1845
  %v2145 = vld [vmem:[%s65 + $0x50] sm:$0x1]
  %v2146 = vsel %vm2102, %v1847, %v2145
  %2147 = vst [vmem:[%s65 + $0x50] sm:$0x1] %v2146
  %v2148 = vld [vmem:[%s65 + $0x54] sm:$0xf]
  %v2149 = vsel %vm2095, %v1849, %v2148
  %2150 = vst [vmem:[%s65 + $0x54] sm:$0xf] %v2149
  %2151 = vst.msk [vmem:[%s65 + $0x58] sm:$0xf] %vm2099, %v1851
  %v2152 = vld [vmem:[%s65 + $0x5c] sm:$0x1]
  %v2153 = vsel %vm2102, %v1853, %v2152
  %2154 = vst [vmem:[%s65 + $0x5c] sm:$0x1] %v2153
  %v2155 = vld [vmem:[%s65 + $0x60] sm:$0xf]
  %v2156 = vsel %vm2095, %v1855, %v2155
  %2157 = vst [vmem:[%s65 + $0x60] sm:$0xf] %v2156
  %2158 = vst.msk [vmem:[%s65 + $0x64] sm:$0xf] %vm2099, %v1857
  %v2159 = vld [vmem:[%s65 + $0x68] sm:$0x1]
  %v2160 = vsel %vm2102, %v1859, %v2159
  %2161 = vst [vmem:[%s65 + $0x68] sm:$0x1] %v2160
  %v2162 = vld [vmem:[%s65 + $0x6c] sm:$0xf]
  %v2163 = vsel %vm2095, %v1861, %v2162
  %2164 = vst [vmem:[%s65 + $0x6c] sm:$0xf] %v2163
  %2165 = vst.msk [vmem:[%s65 + $0x70] sm:$0xf] %vm2099, %v1863
  %v2166 = vld [vmem:[%s65 + $0x74] sm:$0x1]
  %v2167 = vsel %vm2102, %v1865, %v2166
  %2168 = vst [vmem:[%s65 + $0x74] sm:$0x1] %v2167
  %v2169 = vld [vmem:[%s65 + $0x78] sm:$0xf]
  %v2170 = vsel %vm2095, %v1867, %v2169
  %2171 = vst [vmem:[%s65 + $0x78] sm:$0xf] %v2170
  %2172 = vst.msk [vmem:[%s65 + $0x7c] sm:$0xf] %vm2099, %v1869
  %v2173 = vld [vmem:[%s65 + $0x80] sm:$0x1]
  %v2174 = vsel %vm2102, %v1871, %v2173
  %2175 = vst [vmem:[%s65 + $0x80] sm:$0x1] %v2174
  %v2176 = vld [vmem:[%s65 + $0x84] sm:$0xf]
  %v2177 = vsel %vm2095, %v1873, %v2176
  %2178 = vst [vmem:[%s65 + $0x84] sm:$0xf] %v2177
  %2179 = vst.msk [vmem:[%s65 + $0x88] sm:$0xf] %vm2099, %v1875
  %v2180 = vld [vmem:[%s65 + $0x8c] sm:$0x1]
  %v2181 = vsel %vm2102, %v1877, %v2180
  %2182 = vst [vmem:[%s65 + $0x8c] sm:$0x1] %v2181
  %v2183 = vld [vmem:[%s65 + $0x90] sm:$0xf]
  %v2184 = vsel %vm2095, %v1879, %v2183
  %2185 = vst [vmem:[%s65 + $0x90] sm:$0xf] %v2184
  %2186 = vst.msk [vmem:[%s65 + $0x94] sm:$0xf] %vm2099, %v1881
  %v2187 = vld [vmem:[%s65 + $0x98] sm:$0x1]
  %v2188 = vsel %vm2102, %v1883, %v2187
  %2189 = vst [vmem:[%s65 + $0x98] sm:$0x1] %v2188
  %v2190 = vld [vmem:[%s65 + $0x9c] sm:$0xf]
  %v2191 = vsel %vm2095, %v1885, %v2190
  %2192 = vst [vmem:[%s65 + $0x9c] sm:$0xf] %v2191
  %2193 = vst.msk [vmem:[%s65 + $0xa0] sm:$0xf] %vm2099, %v1887
  %v2194 = vld [vmem:[%s65 + $0xa4] sm:$0x1]
  %v2195 = vsel %vm2102, %v1889, %v2194
  %2196 = vst [vmem:[%s65 + $0xa4] sm:$0x1] %v2195
  %v2197 = vld [vmem:[%s65 + $0xa8] sm:$0xf]
  %v2198 = vsel %vm2095, %v1891, %v2197
  %2199 = vst [vmem:[%s65 + $0xa8] sm:$0xf] %v2198
  %2200 = vst.msk [vmem:[%s65 + $0xac] sm:$0xf] %vm2099, %v1893
  %v2201 = vld [vmem:[%s65 + $0xb0] sm:$0x1]
  %v2202 = vsel %vm2102, %v1895, %v2201
  %2203 = vst [vmem:[%s65 + $0xb0] sm:$0x1] %v2202
  %v2204 = vld [vmem:[%s65 + $0xb4] sm:$0xf]
  %v2205 = vsel %vm2095, %v1897, %v2204
  %2206 = vst [vmem:[%s65 + $0xb4] sm:$0xf] %v2205
  %2207 = vst.msk [vmem:[%s65 + $0xb8] sm:$0xf] %vm2099, %v1899
  %v2208 = vld [vmem:[%s65 + $0xbc] sm:$0x1]
  %v2209 = vsel %vm2102, %v1901, %v2208
  %2210 = vst [vmem:[%s65 + $0xbc] sm:$0x1] %v2209
  %v2211 = vld [vmem:[%s65 + $0xd8] sm:$0xf]
  %v2212 = vsel %vm2095, %v1903, %v2211
  %2213 = vst [vmem:[%s65 + $0xd8] sm:$0xf] %v2212
  %2214 = vst.msk [vmem:[%s65 + $0xdc] sm:$0xf] %vm2099, %v1905
  %v2215 = vld [vmem:[%s65 + $0xe0] sm:$0x1]
  %v2216 = vsel %vm2102, %v1907, %v2215
  %2217 = vst [vmem:[%s65 + $0xe0] sm:$0x1] %v2216
  %v2218 = vld [vmem:[%s65 + $0xe4] sm:$0xf]
  %v2219 = vsel %vm2095, %v1909, %v2218
  %2220 = vst [vmem:[%s65 + $0xe4] sm:$0xf] %v2219
  %2221 = vst.msk [vmem:[%s65 + $0xe8] sm:$0xf] %vm2099, %v1911
  %v2222 = vld [vmem:[%s65 + $0xec] sm:$0x1]
  %v2223 = vsel %vm2102, %v1913, %v2222
  %2224 = vst [vmem:[%s65 + $0xec] sm:$0x1] %v2223
  %v2225 = vld [vmem:[%s65 + $0xf0] sm:$0xf]
  %v2226 = vsel %vm2095, %v1915, %v2225
  %2227 = vst [vmem:[%s65 + $0xf0] sm:$0xf] %v2226
  %2228 = vst.msk [vmem:[%s65 + $0xf4] sm:$0xf] %vm2099, %v1917
  %v2229 = vld [vmem:[%s65 + $0xf8] sm:$0x1]
  %v2230 = vsel %vm2102, %v1919, %v2229
  %2231 = vst [vmem:[%s65 + $0xf8] sm:$0x1] %v2230
  %v2232 = vld [vmem:[%s65 + $0xfc] sm:$0xf]
  %v2233 = vsel %vm2095, %v1921, %v2232
  %2234 = vst [vmem:[%s65 + $0xfc] sm:$0xf] %v2233
  %2235 = vst.msk [vmem:[%s65 + $0x100] sm:$0xf] %vm2099, %v1923
  %v2236 = vld [vmem:[%s65 + $0x104] sm:$0x1]
  %v2237 = vsel %vm2102, %v1925, %v2236
  %2238 = vst [vmem:[%s65 + $0x104] sm:$0x1] %v2237
  %v2239 = vld [vmem:[%s65 + $0x108] sm:$0xf]
  %v2240 = vsel %vm2095, %v1927, %v2239
  %2241 = vst [vmem:[%s65 + $0x108] sm:$0xf] %v2240
  %2242 = vst.msk [vmem:[%s65 + $0x10c] sm:$0xf] %vm2099, %v1929
  %v2243 = vld [vmem:[%s65 + $0x110] sm:$0x1]
  %v2244 = vsel %vm2102, %v1931, %v2243
  %2245 = vst [vmem:[%s65 + $0x110] sm:$0x1] %v2244
  %v2246 = vld [vmem:[%s65 + $0x114] sm:$0xf]
  %v2247 = vsel %vm2095, %v1933, %v2246
  %2248 = vst [vmem:[%s65 + $0x114] sm:$0xf] %v2247
  %2249 = vst.msk [vmem:[%s65 + $0x118] sm:$0xf] %vm2099, %v1935
  %v2250 = vld [vmem:[%s65 + $0x11c] sm:$0x1]
  %v2251 = vsel %vm2102, %v1937, %v2250
  %2252 = vst [vmem:[%s65 + $0x11c] sm:$0x1] %v2251
  %v2253 = vld [vmem:[%s65 + $0x120] sm:$0xf]
  %v2254 = vsel %vm2095, %v1939, %v2253
  %2255 = vst [vmem:[%s65 + $0x120] sm:$0xf] %v2254
  %2256 = vst.msk [vmem:[%s65 + $0x124] sm:$0xf] %vm2099, %v1941
  %v2257 = vld [vmem:[%s65 + $0x128] sm:$0x1]
  %v2258 = vsel %vm2102, %v1943, %v2257
  %2259 = vst [vmem:[%s65 + $0x128] sm:$0x1] %v2258
  %v2260 = vld [vmem:[%s65 + $0x12c] sm:$0xf]
  %v2261 = vsel %vm2095, %v1945, %v2260
  %2262 = vst [vmem:[%s65 + $0x12c] sm:$0xf] %v2261
  %2263 = vst.msk [vmem:[%s65 + $0x130] sm:$0xf] %vm2099, %v1947
  %v2264 = vld [vmem:[%s65 + $0x134] sm:$0x1]
  %v2265 = vsel %vm2102, %v1949, %v2264
  %2266 = vst [vmem:[%s65 + $0x134] sm:$0x1] %v2265
  %v2267 = vld [vmem:[%s65 + $0x138] sm:$0xf]
  %v2268 = vsel %vm2095, %v1951, %v2267
  %2269 = vst [vmem:[%s65 + $0x138] sm:$0xf] %v2268
  %2270 = vst.msk [vmem:[%s65 + $0x13c] sm:$0xf] %vm2099, %v1953
  %v2271 = vld [vmem:[%s65 + $0x140] sm:$0x1]
  %v2272 = vsel %vm2102, %v1955, %v2271
  %2273 = vst [vmem:[%s65 + $0x140] sm:$0x1] %v2272
  %v2274 = vld [vmem:[%s65 + $0x144] sm:$0xf]
  %v2275 = vsel %vm2095, %v1957, %v2274
  %2276 = vst [vmem:[%s65 + $0x144] sm:$0xf] %v2275
  %2277 = vst.msk [vmem:[%s65 + $0x148] sm:$0xf] %vm2099, %v1959
  %v2278 = vld [vmem:[%s65 + $0x14c] sm:$0x1]
  %v2279 = vsel %vm2102, %v1961, %v2278
  %2280 = vst [vmem:[%s65 + $0x14c] sm:$0x1] %v2279
  %v2281 = vld [vmem:[%s65 + $0x150] sm:$0xf]
  %v2282 = vsel %vm2095, %v1963, %v2281
  %2283 = vst [vmem:[%s65 + $0x150] sm:$0xf] %v2282
  %2284 = vst.msk [vmem:[%s65 + $0x154] sm:$0xf] %vm2099, %v1965
  %v2285 = vld [vmem:[%s65 + $0x158] sm:$0x1]
  %v2286 = vsel %vm2102, %v1967, %v2285
  %2287 = vst [vmem:[%s65 + $0x158] sm:$0x1] %v2286
  %v2288 = vld [vmem:[%s65 + $0x15c] sm:$0xf]
  %v2289 = vsel %vm2095, %v1969, %v2288
  %2290 = vst [vmem:[%s65 + $0x15c] sm:$0xf] %v2289
  %2291 = vst.msk [vmem:[%s65 + $0x160] sm:$0xf] %vm2099, %v1971
  %v2292 = vld [vmem:[%s65 + $0x164] sm:$0x1]
  %v2293 = vsel %vm2102, %v1973, %v2292
  %2294 = vst [vmem:[%s65 + $0x164] sm:$0x1] %v2293
  %v2295 = vld [vmem:[%s65 + $0x168] sm:$0xf]
  %v2296 = vsel %vm2095, %v1975, %v2295
  %2297 = vst [vmem:[%s65 + $0x168] sm:$0xf] %v2296
  %2298 = vst.msk [vmem:[%s65 + $0x16c] sm:$0xf] %vm2099, %v1977
  %v2299 = vld [vmem:[%s65 + $0x170] sm:$0x1]
  %v2300 = vsel %vm2102, %v1979, %v2299
  %2301 = vst [vmem:[%s65 + $0x170] sm:$0x1] %v2300
  %v2302 = vld [vmem:[%s65 + $0x174] sm:$0xf]
  %v2303 = vsel %vm2095, %v1981, %v2302
  %2304 = vst [vmem:[%s65 + $0x174] sm:$0xf] %v2303
  %2305 = vst.msk [vmem:[%s65 + $0x178] sm:$0xf] %vm2099, %v1983
  %v2306 = vld [vmem:[%s65 + $0x17c] sm:$0x1]
  %v2307 = vsel %vm2102, %v1985, %v2306
  %2308 = vst [vmem:[%s65 + $0x17c] sm:$0x1] %v2307
  %v2309 = vld [vmem:[%s65 + $0x180] sm:$0xf]
  %v2310 = vsel %vm2095, %v1987, %v2309
  %2311 = vst [vmem:[%s65 + $0x180] sm:$0xf] %v2310
  %2312 = vst.msk [vmem:[%s65 + $0x184] sm:$0xf] %vm2099, %v1989
  %v2313 = vld [vmem:[%s65 + $0x188] sm:$0x1]
  %v2314 = vsel %vm2102, %v1991, %v2313
  %2315 = vst [vmem:[%s65 + $0x188] sm:$0x1] %v2314
  %v2316 = vld [vmem:[%s65 + $0x18c] sm:$0xf]
  %v2317 = vsel %vm2095, %v1993, %v2316
  %2318 = vst [vmem:[%s65 + $0x18c] sm:$0xf] %v2317
  %2319 = vst.msk [vmem:[%s65 + $0x190] sm:$0xf] %vm2099, %v1995
  %v2320 = vld [vmem:[%s65 + $0x194] sm:$0x1]
  %v2321 = vsel %vm2102, %v1997, %v2320
  %2322 = vst [vmem:[%s65 + $0x194] sm:$0x1] %v2321
  %v2323 = vld [vmem:[#allocation2] sm:$0xf]
  %v2324 = vld [vmem:[#allocation2 + $0x4] sm:$0xf]
  %v2325 = vld [vmem:[#allocation2 + $0xc] sm:$0xf]
  %v2326 = vld [vmem:[#allocation2 + $0x10] sm:$0xf]
  %v2327 = vld [vmem:[#allocation2 + $0x18] sm:$0xf]
  %v2328 = vld [vmem:[#allocation2 + $0x1c] sm:$0xf]
  %v2329 = vld [vmem:[#allocation2 + $0x24] sm:$0xf]
  %v2330 = vld [vmem:[#allocation2 + $0x28] sm:$0xf]
  %v2331 = vld [vmem:[#allocation2 + $0x30] sm:$0xf]
  %v2332 = vld [vmem:[#allocation2 + $0x34] sm:$0xf]
  %v2333 = vld [vmem:[#allocation2 + $0x3c] sm:$0xf]
  %v2334 = vld [vmem:[#allocation2 + $0x40] sm:$0xf]
  %v2335 = vld [vmem:[#allocation2 + $0x48] sm:$0xf]
  %v2336 = vld [vmem:[#allocation2 + $0x4c] sm:$0xf]
  %v2337 = vld [vmem:[#allocation2 + $0x54] sm:$0xf]
  %v2338 = vld [vmem:[#allocation2 + $0x58] sm:$0xf]
  %v2339 = vld [vmem:[#allocation2 + $0x60] sm:$0xf]
  %v2340 = vld [vmem:[#allocation2 + $0x64] sm:$0xf]
  %v2341 = vld [vmem:[#allocation2 + $0x6c] sm:$0xf]
  %v2342 = vld [vmem:[#allocation2 + $0x70] sm:$0xf]
  %v2343 = vld [vmem:[#allocation2 + $0x78] sm:$0xf]
  %v2344 = vld [vmem:[#allocation2 + $0x7c] sm:$0xf]
  %v2345 = vld [vmem:[#allocation2 + $0x84] sm:$0xf]
  %v2346 = vld [vmem:[#allocation2 + $0x88] sm:$0xf]
  %v2347 = vld [vmem:[#allocation2 + $0x90] sm:$0xf]
  %v2348 = vld [vmem:[#allocation2 + $0x94] sm:$0xf]
  %v2349 = vld [vmem:[#allocation2 + $0x9c] sm:$0xf]
  %v2350 = vld [vmem:[#allocation2 + $0xa0] sm:$0xf]
  %v2351 = vld [vmem:[#allocation2 + $0xa8] sm:$0xf]
  %v2352 = vld [vmem:[#allocation2 + $0xac] sm:$0xf]
  %v2353 = vld [vmem:[#allocation2 + $0xb4] sm:$0xf]
  %v2354 = vld [vmem:[#allocation2 + $0xb8] sm:$0xf]
  %v2355 = vld [vmem:[#allocation2 + $0xd8] sm:$0xf]
  %v2356 = vld [vmem:[#allocation2 + $0xdc] sm:$0xf]
  %v2357 = vld [vmem:[#allocation2 + $0xe4] sm:$0xf]
  %v2358 = vld [vmem:[#allocation2 + $0xe8] sm:$0xf]
  %v2359 = vld [vmem:[#allocation2 + $0xf0] sm:$0xf]
  %v2360 = vld [vmem:[#allocation2 + $0xf4] sm:$0xf]
  %v2361 = vld [vmem:[#allocation2 + $0xfc] sm:$0xf]
  %v2362 = vld [vmem:[#allocation2 + $0x100] sm:$0xf]
  %v2363 = vld [vmem:[#allocation2 + $0x108] sm:$0xf]
  %v2364 = vld [vmem:[#allocation2 + $0x10c] sm:$0xf]
  %v2365 = vld [vmem:[#allocation2 + $0x114] sm:$0xf]
  %v2366 = vld [vmem:[#allocation2 + $0x118] sm:$0xf]
  %v2367 = vld [vmem:[#allocation2 + $0x120] sm:$0xf]
  %v2368 = vld [vmem:[#allocation2 + $0x124] sm:$0xf]
  %v2369 = vld [vmem:[#allocation2 + $0x12c] sm:$0xf]
  %v2370 = vld [vmem:[#allocation2 + $0x130] sm:$0xf]
  %v2371 = vld [vmem:[#allocation2 + $0x138] sm:$0xf]
  %v2372 = vld [vmem:[#allocation2 + $0x13c] sm:$0xf]
  %v2373 = vld [vmem:[#allocation2 + $0x144] sm:$0xf]
  %v2374 = vld [vmem:[#allocation2 + $0x148] sm:$0xf]
  %v2375 = vld [vmem:[#allocation2 + $0x150] sm:$0xf]
  %v2376 = vld [vmem:[#allocation2 + $0x154] sm:$0xf]
  %v2377 = vld [vmem:[#allocation2 + $0x15c] sm:$0xf]
  %v2378 = vld [vmem:[#allocation2 + $0x160] sm:$0xf]
  %v2379 = vld [vmem:[#allocation2 + $0x168] sm:$0xf]
  %v2380 = vld [vmem:[#allocation2 + $0x16c] sm:$0xf]
  %v2381 = vld [vmem:[#allocation2 + $0x174] sm:$0xf]
  %v2382 = vld [vmem:[#allocation2 + $0x178] sm:$0xf]
  %v2383 = vld [vmem:[#allocation2 + $0x180] sm:$0xf]
  %v2384 = vld [vmem:[#allocation2 + $0x184] sm:$0xf]
  %v2385 = vld [vmem:[#allocation2 + $0x18c] sm:$0xf]
  %v2386 = vld [vmem:[#allocation2 + $0x190] sm:$0xf]
  %v2387 = vld [vmem:[#allocation2 + $0x8] sm:$0x1]
  %v2388 = vld [vmem:[#allocation2 + $0x14] sm:$0x1]
  %v2389 = vld [vmem:[#allocation2 + $0x20] sm:$0x1]
  %v2390 = vld [vmem:[#allocation2 + $0x2c] sm:$0x1]
  %v2391 = vld [vmem:[#allocation2 + $0x38] sm:$0x1]
  %v2392 = vld [vmem:[#allocation2 + $0x44] sm:$0x1]
  %v2393 = vld [vmem:[#allocation2 + $0x50] sm:$0x1]
  %v2394 = vld [vmem:[#allocation2 + $0x5c] sm:$0x1]
  %v2395 = vld [vmem:[#allocation2 + $0x68] sm:$0x1]
  %v2396 = vld [vmem:[#allocation2 + $0x74] sm:$0x1]
  %v2397 = vld [vmem:[#allocation2 + $0x80] sm:$0x1]
  %v2398 = vld [vmem:[#allocation2 + $0x8c] sm:$0x1]
  %v2399 = vld [vmem:[#allocation2 + $0x98] sm:$0x1]
  %v2400 = vld [vmem:[#allocation2 + $0xa4] sm:$0x1]
  %v2401 = vld [vmem:[#allocation2 + $0xb0] sm:$0x1]
  %v2402 = vld [vmem:[#allocation2 + $0xbc] sm:$0x1]
  %v2403 = vld [vmem:[#allocation2 + $0xe0] sm:$0x1]
  %v2404 = vld [vmem:[#allocation2 + $0xec] sm:$0x1]
  %v2405 = vld [vmem:[#allocation2 + $0xf8] sm:$0x1]
  %v2406 = vld [vmem:[#allocation2 + $0x104] sm:$0x1]
  %v2407 = vld [vmem:[#allocation2 + $0x110] sm:$0x1]
  %v2408 = vld [vmem:[#allocation2 + $0x11c] sm:$0x1]
  %v2409 = vld [vmem:[#allocation2 + $0x128] sm:$0x1]
  %v2410 = vld [vmem:[#allocation2 + $0x134] sm:$0x1]
  %v2411 = vld [vmem:[#allocation2 + $0x140] sm:$0x1]
  %v2412 = vld [vmem:[#allocation2 + $0x14c] sm:$0x1]
  %v2413 = vld [vmem:[#allocation2 + $0x158] sm:$0x1]
  %v2414 = vld [vmem:[#allocation2 + $0x164] sm:$0x1]
  %v2415 = vld [vmem:[#allocation2 + $0x170] sm:$0x1]
  %v2416 = vld [vmem:[#allocation2 + $0x17c] sm:$0x1]
  %v2417 = vld [vmem:[#allocation2 + $0x188] sm:$0x1]
  %v2418 = vld [vmem:[#allocation2 + $0x194] sm:$0x1]
  %v2419 = vld [vmem:[#allocation2] sm:$0xe]
  %v2420 = vld [vmem:[#allocation2 + $0xc] sm:$0xe]
  %v2421 = vld [vmem:[#allocation2 + $0x18] sm:$0xe]
  %v2422 = vld [vmem:[#allocation2 + $0x24] sm:$0xe]
  %v2423 = vld [vmem:[#allocation2 + $0x30] sm:$0xe]
  %v2424 = vld [vmem:[#allocation2 + $0x3c] sm:$0xe]
  %v2425 = vld [vmem:[#allocation2 + $0x48] sm:$0xe]
  %v2426 = vld [vmem:[#allocation2 + $0x54] sm:$0xe]
  %v2427 = vld [vmem:[#allocation2 + $0x60] sm:$0xe]
  %v2428 = vld [vmem:[#allocation2 + $0x6c] sm:$0xe]
  %v2429 = vld [vmem:[#allocation2 + $0x78] sm:$0xe]
  %v2430 = vld [vmem:[#allocation2 + $0x84] sm:$0xe]
  %v2431 = vld [vmem:[#allocation2 + $0x90] sm:$0xe]
  %v2432 = vld [vmem:[#allocation2 + $0x9c] sm:$0xe]
  %v2433 = vld [vmem:[#allocation2 + $0xa8] sm:$0xe]
  %v2434 = vld [vmem:[#allocation2 + $0xb4] sm:$0xe]
  %v2435 = vld [vmem:[#allocation2 + $0xd8] sm:$0xe]
  %v2436 = vld [vmem:[#allocation2 + $0xe4] sm:$0xe]
  %v2437 = vld [vmem:[#allocation2 + $0xf0] sm:$0xe]
  %v2438 = vld [vmem:[#allocation2 + $0xfc] sm:$0xe]
  %v2439 = vld [vmem:[#allocation2 + $0x108] sm:$0xe]
  %v2440 = vld [vmem:[#allocation2 + $0x114] sm:$0xe]
  %v2441 = vld [vmem:[#allocation2 + $0x120] sm:$0xe]
  %v2442 = vld [vmem:[#allocation2 + $0x12c] sm:$0xe]
  %v2443 = vld [vmem:[#allocation2 + $0x138] sm:$0xe]
  %v2444 = vld [vmem:[#allocation2 + $0x144] sm:$0xe]
  %v2445 = vld [vmem:[#allocation2 + $0x150] sm:$0xe]
  %v2446 = vld [vmem:[#allocation2 + $0x15c] sm:$0xe]
  %v2447 = vld [vmem:[#allocation2 + $0x168] sm:$0xe]
  %v2448 = vld [vmem:[#allocation2 + $0x174] sm:$0xe]
  %v2449 = vld [vmem:[#allocation2 + $0x180] sm:$0xe]
  %v2450 = vld [vmem:[#allocation2 + $0x18c] sm:$0xe]
  %v2451 = vld [vmem:[%s65] sm:$0xf]
  %v2452 = vld [vmem:[%s65 + $0x4] sm:$0xf]
  %v2453 = vld [vmem:[%s65 + $0xc] sm:$0xf]
  %v2454 = vld [vmem:[%s65 + $0x10] sm:$0xf]
  %v2455 = vld [vmem:[%s65 + $0x18] sm:$0xf]
  %v2456 = vld [vmem:[%s65 + $0x1c] sm:$0xf]
  %v2457 = vld [vmem:[%s65 + $0x24] sm:$0xf]
  %v2458 = vld [vmem:[%s65 + $0x28] sm:$0xf]
  %v2459 = vld [vmem:[%s65 + $0x30] sm:$0xf]
  %v2460 = vld [vmem:[%s65 + $0x34] sm:$0xf]
  %v2461 = vld [vmem:[%s65 + $0x3c] sm:$0xf]
  %v2462 = vld [vmem:[%s65 + $0x40] sm:$0xf]
  %v2463 = vld [vmem:[%s65 + $0x48] sm:$0xf]
  %v2464 = vld [vmem:[%s65 + $0x4c] sm:$0xf]
  %v2465 = vld [vmem:[%s65 + $0x54] sm:$0xf]
  %v2466 = vld [vmem:[%s65 + $0x58] sm:$0xf]
  %v2467 = vld [vmem:[%s65 + $0x60] sm:$0xf]
  %v2468 = vld [vmem:[%s65 + $0x64] sm:$0xf]
  %v2469 = vld [vmem:[%s65 + $0x6c] sm:$0xf]
  %v2470 = vld [vmem:[%s65 + $0x70] sm:$0xf]
  %v2471 = vld [vmem:[%s65 + $0x78] sm:$0xf]
  %v2472 = vld [vmem:[%s65 + $0x7c] sm:$0xf]
  %v2473 = vld [vmem:[%s65 + $0x84] sm:$0xf]
  %v2474 = vld [vmem:[%s65 + $0x88] sm:$0xf]
  %v2475 = vld [vmem:[%s65 + $0x90] sm:$0xf]
  %v2476 = vld [vmem:[%s65 + $0x94] sm:$0xf]
  %v2477 = vld [vmem:[%s65 + $0x9c] sm:$0xf]
  %v2478 = vld [vmem:[%s65 + $0xa0] sm:$0xf]
  %v2479 = vld [vmem:[%s65 + $0xa8] sm:$0xf]
  %v2480 = vld [vmem:[%s65 + $0xac] sm:$0xf]
  %v2481 = vld [vmem:[%s65 + $0xb4] sm:$0xf]
  %v2482 = vld [vmem:[%s65 + $0xb8] sm:$0xf]
  %v2483 = vld [vmem:[%s65 + $0xd8] sm:$0xf]
  %v2484 = vld [vmem:[%s65 + $0xdc] sm:$0xf]
  %v2485 = vld [vmem:[%s65 + $0xe4] sm:$0xf]
  %v2486 = vld [vmem:[%s65 + $0xe8] sm:$0xf]
  %v2487 = vld [vmem:[%s65 + $0xf0] sm:$0xf]
  %v2488 = vld [vmem:[%s65 + $0xf4] sm:$0xf]
  %v2489 = vld [vmem:[%s65 + $0xfc] sm:$0xf]
  %v2490 = vld [vmem:[%s65 + $0x100] sm:$0xf]
  %v2491 = vld [vmem:[%s65 + $0x108] sm:$0xf]
  %v2492 = vld [vmem:[%s65 + $0x10c] sm:$0xf]
  %v2493 = vld [vmem:[%s65 + $0x114] sm:$0xf]
  %v2494 = vld [vmem:[%s65 + $0x118] sm:$0xf]
  %v2495 = vld [vmem:[%s65 + $0x120] sm:$0xf]
  %v2496 = vld [vmem:[%s65 + $0x124] sm:$0xf]
  %v2497 = vld [vmem:[%s65 + $0x12c] sm:$0xf]
  %v2498 = vld [vmem:[%s65 + $0x130] sm:$0xf]
  %v2499 = vld [vmem:[%s65 + $0x138] sm:$0xf]
  %v2500 = vld [vmem:[%s65 + $0x13c] sm:$0xf]
  %v2501 = vld [vmem:[%s65 + $0x144] sm:$0xf]
  %v2502 = vld [vmem:[%s65 + $0x148] sm:$0xf]
  %v2503 = vld [vmem:[%s65 + $0x150] sm:$0xf]
  %v2504 = vld [vmem:[%s65 + $0x154] sm:$0xf]
  %v2505 = vld [vmem:[%s65 + $0x15c] sm:$0xf]
  %v2506 = vld [vmem:[%s65 + $0x160] sm:$0xf]
  %v2507 = vld [vmem:[%s65 + $0x168] sm:$0xf]
  %v2508 = vld [vmem:[%s65 + $0x16c] sm:$0xf]
  %v2509 = vld [vmem:[%s65 + $0x174] sm:$0xf]
  %v2510 = vld [vmem:[%s65 + $0x178] sm:$0xf]
  %v2511 = vld [vmem:[%s65 + $0x180] sm:$0xf]
  %v2512 = vld [vmem:[%s65 + $0x184] sm:$0xf]
  %v2513 = vld [vmem:[%s65 + $0x18c] sm:$0xf]
  %v2514 = vld [vmem:[%s65 + $0x190] sm:$0xf]
  %v2515 = vld [vmem:[%s65 + $0x8] sm:$0x1]
  %v2516 = vld [vmem:[%s65 + $0x14] sm:$0x1]
  %v2517 = vld [vmem:[%s65 + $0x20] sm:$0x1]
  %v2518 = vld [vmem:[%s65 + $0x2c] sm:$0x1]
  %v2519 = vld [vmem:[%s65 + $0x38] sm:$0x1]
  %v2520 = vld [vmem:[%s65 + $0x44] sm:$0x1]
  %v2521 = vld [vmem:[%s65 + $0x50] sm:$0x1]
  %v2522 = vld [vmem:[%s65 + $0x5c] sm:$0x1]
  %v2523 = vld [vmem:[%s65 + $0x68] sm:$0x1]
  %v2524 = vld [vmem:[%s65 + $0x74] sm:$0x1]
  %v2525 = vld [vmem:[%s65 + $0x80] sm:$0x1]
  %v2526 = vld [vmem:[%s65 + $0x8c] sm:$0x1]
  %v2527 = vld [vmem:[%s65 + $0x98] sm:$0x1]
  %v2528 = vld [vmem:[%s65 + $0xa4] sm:$0x1]
  %v2529 = vld [vmem:[%s65 + $0xb0] sm:$0x1]
  %v2530 = vld [vmem:[%s65 + $0xbc] sm:$0x1]
  %v2531 = vld [vmem:[%s65 + $0xe0] sm:$0x1]
  %v2532 = vld [vmem:[%s65 + $0xec] sm:$0x1]
  %v2533 = vld [vmem:[%s65 + $0xf8] sm:$0x1]
  %v2534 = vld [vmem:[%s65 + $0x104] sm:$0x1]
  %v2535 = vld [vmem:[%s65 + $0x110] sm:$0x1]
  %v2536 = vld [vmem:[%s65 + $0x11c] sm:$0x1]
  %v2537 = vld [vmem:[%s65 + $0x128] sm:$0x1]
  %v2538 = vld [vmem:[%s65 + $0x134] sm:$0x1]
  %v2539 = vld [vmem:[%s65 + $0x140] sm:$0x1]
  %v2540 = vld [vmem:[%s65 + $0x14c] sm:$0x1]
  %v2541 = vld [vmem:[%s65 + $0x158] sm:$0x1]
  %v2542 = vld [vmem:[%s65 + $0x164] sm:$0x1]
  %v2543 = vld [vmem:[%s65 + $0x170] sm:$0x1]
  %v2544 = vld [vmem:[%s65 + $0x17c] sm:$0x1]
  %v2545 = vld [vmem:[%s65 + $0x188] sm:$0x1]
  %v2546 = vld [vmem:[%s65 + $0x194] sm:$0x1]
  %v2547 = vld [vmem:[%s65] sm:$0xe]
  %v2548 = vld [vmem:[%s65 + $0xc] sm:$0xe]
  %v2549 = vld [vmem:[%s65 + $0x18] sm:$0xe]
  %v2550 = vld [vmem:[%s65 + $0x24] sm:$0xe]
  %v2551 = vld [vmem:[%s65 + $0x30] sm:$0xe]
  %v2552 = vld [vmem:[%s65 + $0x3c] sm:$0xe]
  %v2553 = vld [vmem:[%s65 + $0x48] sm:$0xe]
  %v2554 = vld [vmem:[%s65 + $0x54] sm:$0xe]
  %v2555 = vld [vmem:[%s65 + $0x60] sm:$0xe]
  %v2556 = vld [vmem:[%s65 + $0x6c] sm:$0xe]
  %v2557 = vld [vmem:[%s65 + $0x78] sm:$0xe]
  %v2558 = vld [vmem:[%s65 + $0x84] sm:$0xe]
  %v2559 = vld [vmem:[%s65 + $0x90] sm:$0xe]
  %v2560 = vld [vmem:[%s65 + $0x9c] sm:$0xe]
  %v2561 = vld [vmem:[%s65 + $0xa8] sm:$0xe]
  %v2562 = vld [vmem:[%s65 + $0xb4] sm:$0xe]
  %v2563 = vld [vmem:[%s65 + $0xd8] sm:$0xe]
  %v2564 = vld [vmem:[%s65 + $0xe4] sm:$0xe]
  %v2565 = vld [vmem:[%s65 + $0xf0] sm:$0xe]
  %v2566 = vld [vmem:[%s65 + $0xfc] sm:$0xe]
  %v2567 = vld [vmem:[%s65 + $0x108] sm:$0xe]
  %v2568 = vld [vmem:[%s65 + $0x114] sm:$0xe]
  %v2569 = vld [vmem:[%s65 + $0x120] sm:$0xe]
  %v2570 = vld [vmem:[%s65 + $0x12c] sm:$0xe]
  %v2571 = vld [vmem:[%s65 + $0x138] sm:$0xe]
  %v2572 = vld [vmem:[%s65 + $0x144] sm:$0xe]
  %v2573 = vld [vmem:[%s65 + $0x150] sm:$0xe]
  %v2574 = vld [vmem:[%s65 + $0x15c] sm:$0xe]
  %v2575 = vld [vmem:[%s65 + $0x168] sm:$0xe]
  %v2576 = vld [vmem:[%s65 + $0x174] sm:$0xe]
  %v2577 = vld [vmem:[%s65 + $0x180] sm:$0xe]
  %v2578 = vld [vmem:[%s65 + $0x18c] sm:$0xe]
  %s2579 = scalar_lea.vmem [#allocation2], 24
  %v2580 = vld [vmem:[%s2579] sm:$0xf]
  %v2581 = vld [vmem:[%s2579 + $0x4] sm:$0xf]
  %v2582 = vld [vmem:[%s2579 + $0xc] sm:$0xf]
  %v2583 = vld [vmem:[%s2579 + $0x10] sm:$0xf]
  %v2584 = vld [vmem:[%s2579 + $0x18] sm:$0xf]
  %v2585 = vld [vmem:[%s2579 + $0x1c] sm:$0xf]
  %v2586 = vld [vmem:[%s2579 + $0x24] sm:$0xf]
  %v2587 = vld [vmem:[%s2579 + $0x28] sm:$0xf]
  %v2588 = vld [vmem:[%s2579 + $0x30] sm:$0xf]
  %v2589 = vld [vmem:[%s2579 + $0x34] sm:$0xf]
  %v2590 = vld [vmem:[%s2579 + $0x3c] sm:$0xf]
  %v2591 = vld [vmem:[%s2579 + $0x40] sm:$0xf]
  %v2592 = vld [vmem:[%s2579 + $0x48] sm:$0xf]
  %v2593 = vld [vmem:[%s2579 + $0x4c] sm:$0xf]
  %v2594 = vld [vmem:[%s2579 + $0x54] sm:$0xf]
  %v2595 = vld [vmem:[%s2579 + $0x58] sm:$0xf]
  %v2596 = vld [vmem:[%s2579 + $0x60] sm:$0xf]
  %v2597 = vld [vmem:[%s2579 + $0x64] sm:$0xf]
  %v2598 = vld [vmem:[%s2579 + $0x6c] sm:$0xf]
  %v2599 = vld [vmem:[%s2579 + $0x70] sm:$0xf]
  %v2600 = vld [vmem:[%s2579 + $0x78] sm:$0xf]
  %v2601 = vld [vmem:[%s2579 + $0x7c] sm:$0xf]
  %v2602 = vld [vmem:[%s2579 + $0x84] sm:$0xf]
  %v2603 = vld [vmem:[%s2579 + $0x88] sm:$0xf]
  %v2604 = vld [vmem:[%s2579 + $0x90] sm:$0xf]
  %v2605 = vld [vmem:[%s2579 + $0x94] sm:$0xf]
  %v2606 = vld [vmem:[%s2579 + $0x9c] sm:$0xf]
  %v2607 = vld [vmem:[%s2579 + $0xa0] sm:$0xf]
  %v2608 = vld [vmem:[%s2579 + $0xa8] sm:$0xf]
  %v2609 = vld [vmem:[%s2579 + $0xac] sm:$0xf]
  %v2610 = vld [vmem:[%s2579 + $0xb4] sm:$0xf]
  %v2611 = vld [vmem:[%s2579 + $0xb8] sm:$0xf]
  %v2612 = vld [vmem:[%s2579 + $0xd8] sm:$0xf]
  %v2613 = vld [vmem:[%s2579 + $0xdc] sm:$0xf]
  %v2614 = vld [vmem:[%s2579 + $0xe4] sm:$0xf]
  %v2615 = vld [vmem:[%s2579 + $0xe8] sm:$0xf]
  %v2616 = vld [vmem:[%s2579 + $0xf0] sm:$0xf]
  %v2617 = vld [vmem:[%s2579 + $0xf4] sm:$0xf]
  %v2618 = vld [vmem:[%s2579 + $0xfc] sm:$0xf]
  %v2619 = vld [vmem:[%s2579 + $0x100] sm:$0xf]
  %v2620 = vld [vmem:[%s2579 + $0x108] sm:$0xf]
  %v2621 = vld [vmem:[%s2579 + $0x10c] sm:$0xf]
  %v2622 = vld [vmem:[%s2579 + $0x114] sm:$0xf]
  %v2623 = vld [vmem:[%s2579 + $0x118] sm:$0xf]
  %v2624 = vld [vmem:[%s2579 + $0x120] sm:$0xf]
  %v2625 = vld [vmem:[%s2579 + $0x124] sm:$0xf]
  %v2626 = vld [vmem:[%s2579 + $0x12c] sm:$0xf]
  %v2627 = vld [vmem:[%s2579 + $0x130] sm:$0xf]
  %v2628 = vld [vmem:[%s2579 + $0x138] sm:$0xf]
  %v2629 = vld [vmem:[%s2579 + $0x13c] sm:$0xf]
  %v2630 = vld [vmem:[%s2579 + $0x144] sm:$0xf]
  %v2631 = vld [vmem:[%s2579 + $0x148] sm:$0xf]
  %v2632 = vld [vmem:[%s2579 + $0x150] sm:$0xf]
  %v2633 = vld [vmem:[%s2579 + $0x154] sm:$0xf]
  %v2634 = vld [vmem:[%s2579 + $0x15c] sm:$0xf]
  %v2635 = vld [vmem:[%s2579 + $0x160] sm:$0xf]
  %v2636 = vld [vmem:[%s2579 + $0x168] sm:$0xf]
  %v2637 = vld [vmem:[%s2579 + $0x16c] sm:$0xf]
  %v2638 = vld [vmem:[%s2579 + $0x174] sm:$0xf]
  %v2639 = vld [vmem:[%s2579 + $0x178] sm:$0xf]
  %v2640 = vld [vmem:[%s2579 + $0x180] sm:$0xf]
  %v2641 = vld [vmem:[%s2579 + $0x184] sm:$0xf]
  %v2642 = vld [vmem:[%s2579 + $0x18c] sm:$0xf]
  %v2643 = vld [vmem:[%s2579 + $0x190] sm:$0xf]
  %v2644 = vld [vmem:[%s2579 + $0x8] sm:$0x1]
  %v2645 = vld [vmem:[%s2579 + $0x14] sm:$0x1]
  %v2646 = vld [vmem:[%s2579 + $0x20] sm:$0x1]
  %v2647 = vld [vmem:[%s2579 + $0x2c] sm:$0x1]
  %v2648 = vld [vmem:[%s2579 + $0x38] sm:$0x1]
  %v2649 = vld [vmem:[%s2579 + $0x44] sm:$0x1]
  %v2650 = vld [vmem:[%s2579 + $0x50] sm:$0x1]
  %v2651 = vld [vmem:[%s2579 + $0x5c] sm:$0x1]
  %v2652 = vld [vmem:[%s2579 + $0x68] sm:$0x1]
  %v2653 = vld [vmem:[%s2579 + $0x74] sm:$0x1]
  %v2654 = vld [vmem:[%s2579 + $0x80] sm:$0x1]
  %v2655 = vld [vmem:[%s2579 + $0x8c] sm:$0x1]
  %v2656 = vld [vmem:[%s2579 + $0x98] sm:$0x1]
  %v2657 = vld [vmem:[%s2579 + $0xa4] sm:$0x1]
  %v2658 = vld [vmem:[%s2579 + $0xb0] sm:$0x1]
  %v2659 = vld [vmem:[%s2579 + $0xbc] sm:$0x1]
  %v2660 = vld [vmem:[%s2579 + $0xe0] sm:$0x1]
  %v2661 = vld [vmem:[%s2579 + $0xec] sm:$0x1]
  %v2662 = vld [vmem:[%s2579 + $0xf8] sm:$0x1]
  %v2663 = vld [vmem:[%s2579 + $0x104] sm:$0x1]
  %v2664 = vld [vmem:[%s2579 + $0x110] sm:$0x1]
  %v2665 = vld [vmem:[%s2579 + $0x11c] sm:$0x1]
  %v2666 = vld [vmem:[%s2579 + $0x128] sm:$0x1]
  %v2667 = vld [vmem:[%s2579 + $0x134] sm:$0x1]
  %v2668 = vld [vmem:[%s2579 + $0x140] sm:$0x1]
  %v2669 = vld [vmem:[%s2579 + $0x14c] sm:$0x1]
  %v2670 = vld [vmem:[%s2579 + $0x158] sm:$0x1]
  %v2671 = vld [vmem:[%s2579 + $0x164] sm:$0x1]
  %v2672 = vld [vmem:[%s2579 + $0x170] sm:$0x1]
  %v2673 = vld [vmem:[%s2579 + $0x17c] sm:$0x1]
  %v2674 = vld [vmem:[%s2579 + $0x188] sm:$0x1]
  %v2675 = vld [vmem:[%s2579 + $0x194] sm:$0x1]
  %v2676 = vld [vmem:[%s2579] sm:$0xe]
  %v2677 = vld [vmem:[%s2579 + $0xc] sm:$0xe]
  %v2678 = vld [vmem:[%s2579 + $0x18] sm:$0xe]
  %v2679 = vld [vmem:[%s2579 + $0x24] sm:$0xe]
  %v2680 = vld [vmem:[%s2579 + $0x30] sm:$0xe]
  %v2681 = vld [vmem:[%s2579 + $0x3c] sm:$0xe]
  %v2682 = vld [vmem:[%s2579 + $0x48] sm:$0xe]
  %v2683 = vld [vmem:[%s2579 + $0x54] sm:$0xe]
  %v2684 = vld [vmem:[%s2579 + $0x60] sm:$0xe]
  %v2685 = vld [vmem:[%s2579 + $0x6c] sm:$0xe]
  %v2686 = vld [vmem:[%s2579 + $0x78] sm:$0xe]
  %v2687 = vld [vmem:[%s2579 + $0x84] sm:$0xe]
  %v2688 = vld [vmem:[%s2579 + $0x90] sm:$0xe]
  %v2689 = vld [vmem:[%s2579 + $0x9c] sm:$0xe]
  %v2690 = vld [vmem:[%s2579 + $0xa8] sm:$0xe]
  %v2691 = vld [vmem:[%s2579 + $0xb4] sm:$0xe]
  %v2692 = vld [vmem:[%s2579 + $0xd8] sm:$0xe]
  %v2693 = vld [vmem:[%s2579 + $0xe4] sm:$0xe]
  %v2694 = vld [vmem:[%s2579 + $0xf0] sm:$0xe]
  %v2695 = vld [vmem:[%s2579 + $0xfc] sm:$0xe]
  %v2696 = vld [vmem:[%s2579 + $0x108] sm:$0xe]
  %v2697 = vld [vmem:[%s2579 + $0x114] sm:$0xe]
  %v2698 = vld [vmem:[%s2579 + $0x120] sm:$0xe]
  %v2699 = vld [vmem:[%s2579 + $0x12c] sm:$0xe]
  %v2700 = vld [vmem:[%s2579 + $0x138] sm:$0xe]
  %v2701 = vld [vmem:[%s2579 + $0x144] sm:$0xe]
  %v2702 = vld [vmem:[%s2579 + $0x150] sm:$0xe]
  %v2703 = vld [vmem:[%s2579 + $0x15c] sm:$0xe]
  %v2704 = vld [vmem:[%s2579 + $0x168] sm:$0xe]
  %v2705 = vld [vmem:[%s2579 + $0x174] sm:$0xe]
  %v2706 = vld [vmem:[%s2579 + $0x180] sm:$0xe]
  %v2707 = vld [vmem:[%s2579 + $0x18c] sm:$0xe]
  %v2772 = vunpack.c.l.b16 %v2323
  %v2773 = vunpack.c.l.b16 %v2324
  %v2774 = vunpack.c.l.b16 %v2325
  %v2775 = vunpack.c.l.b16 %v2326
  %v2776 = vunpack.c.l.b16 %v2327
  %v2777 = vunpack.c.l.b16 %v2328
  %v2778 = vunpack.c.l.b16 %v2329
  %v2779 = vunpack.c.l.b16 %v2330
  %v2780 = vunpack.c.l.b16 %v2331
  %v2781 = vunpack.c.l.b16 %v2332
  %v2782 = vunpack.c.l.b16 %v2333
  %v2783 = vunpack.c.l.b16 %v2334
  %v2784 = vunpack.c.l.b16 %v2335
  %v2785 = vunpack.c.l.b16 %v2336
  %v2786 = vunpack.c.l.b16 %v2337
  %v2787 = vunpack.c.l.b16 %v2338
  %v2788 = vunpack.c.l.b16 %v2339
  %v2789 = vunpack.c.l.b16 %v2340
  %v2790 = vunpack.c.l.b16 %v2341
  %v2791 = vunpack.c.l.b16 %v2342
  %v2792 = vunpack.c.l.b16 %v2343
  %v2793 = vunpack.c.l.b16 %v2344
  %v2794 = vunpack.c.l.b16 %v2345
  %v2795 = vunpack.c.l.b16 %v2346
  %v2796 = vunpack.c.l.b16 %v2347
  %v2797 = vunpack.c.l.b16 %v2348
  %v2798 = vunpack.c.l.b16 %v2349
  %v2799 = vunpack.c.l.b16 %v2350
  %v2800 = vunpack.c.l.b16 %v2351
  %v2801 = vunpack.c.l.b16 %v2352
  %v2802 = vunpack.c.l.b16 %v2353
  %v2803 = vunpack.c.l.b16 %v2354
  %v2804 = vunpack.c.l.b16 %v2355
  %v2805 = vunpack.c.l.b16 %v2356
  %v2806 = vunpack.c.l.b16 %v2357
  %v2807 = vunpack.c.l.b16 %v2358
  %v2808 = vunpack.c.l.b16 %v2359
  %v2809 = vunpack.c.l.b16 %v2360
  %v2810 = vunpack.c.l.b16 %v2361
  %v2811 = vunpack.c.l.b16 %v2362
  %v2812 = vunpack.c.l.b16 %v2363
  %v2813 = vunpack.c.l.b16 %v2364
  %v2814 = vunpack.c.l.b16 %v2365
  %v2815 = vunpack.c.l.b16 %v2366
  %v2816 = vunpack.c.l.b16 %v2367
  %v2817 = vunpack.c.l.b16 %v2368
  %v2818 = vunpack.c.l.b16 %v2369
  %v2819 = vunpack.c.l.b16 %v2370
  %v2820 = vunpack.c.l.b16 %v2371
  %v2821 = vunpack.c.l.b16 %v2372
  %v2822 = vunpack.c.l.b16 %v2373
  %v2823 = vunpack.c.l.b16 %v2374
  %v2824 = vunpack.c.l.b16 %v2375
  %v2825 = vunpack.c.l.b16 %v2376
  %v2826 = vunpack.c.l.b16 %v2377
  %v2827 = vunpack.c.l.b16 %v2378
  %v2828 = vunpack.c.l.b16 %v2379
  %v2829 = vunpack.c.l.b16 %v2380
  %v2830 = vunpack.c.l.b16 %v2381
  %v2831 = vunpack.c.l.b16 %v2382
  %v2832 = vunpack.c.l.b16 %v2383
  %v2833 = vunpack.c.l.b16 %v2384
  %v2834 = vunpack.c.l.b16 %v2385
  %v2835 = vunpack.c.l.b16 %v2386
  %v2836 = vpack.c.b16 %v2773, %v2772
  %v2837 = vpack.c.b16 %v2775, %v2774
  %v2838 = vpack.c.b16 %v2777, %v2776
  %v2839 = vpack.c.b16 %v2779, %v2778
  %v2840 = vpack.c.b16 %v2781, %v2780
  %v2841 = vpack.c.b16 %v2783, %v2782
  %v2842 = vpack.c.b16 %v2785, %v2784
  %v2843 = vpack.c.b16 %v2787, %v2786
  %v2844 = vpack.c.b16 %v2789, %v2788
  %v2845 = vpack.c.b16 %v2791, %v2790
  %v2846 = vpack.c.b16 %v2793, %v2792
  %v2847 = vpack.c.b16 %v2795, %v2794
  %v2848 = vpack.c.b16 %v2797, %v2796
  %v2849 = vpack.c.b16 %v2799, %v2798
  %v2850 = vpack.c.b16 %v2801, %v2800
  %v2851 = vpack.c.b16 %v2803, %v2802
  %v2852 = vpack.c.b16 %v2805, %v2804
  %v2853 = vpack.c.b16 %v2807, %v2806
  %v2854 = vpack.c.b16 %v2809, %v2808
  %v2855 = vpack.c.b16 %v2811, %v2810
  %v2856 = vpack.c.b16 %v2813, %v2812
  %v2857 = vpack.c.b16 %v2815, %v2814
  %v2858 = vpack.c.b16 %v2817, %v2816
  %v2859 = vpack.c.b16 %v2819, %v2818
  %v2860 = vpack.c.b16 %v2821, %v2820
  %v2861 = vpack.c.b16 %v2823, %v2822
  %v2862 = vpack.c.b16 %v2825, %v2824
  %v2863 = vpack.c.b16 %v2827, %v2826
  %v2864 = vpack.c.b16 %v2829, %v2828
  %v2865 = vpack.c.b16 %v2831, %v2830
  %v2866 = vpack.c.b16 %v2833, %v2832
  %v2867 = vpack.c.b16 %v2835, %v2834
  %v2900 = vunpack.c.l.b16 %v2387
  %v2901 = vunpack.c.l.b16 %v2388
  %v2902 = vunpack.c.l.b16 %v2389
  %v2903 = vunpack.c.l.b16 %v2390
  %v2904 = vunpack.c.l.b16 %v2391
  %v2905 = vunpack.c.l.b16 %v2392
  %v2906 = vunpack.c.l.b16 %v2393
  %v2907 = vunpack.c.l.b16 %v2394
  %v2908 = vunpack.c.l.b16 %v2395
  %v2909 = vunpack.c.l.b16 %v2396
  %v2910 = vunpack.c.l.b16 %v2397
  %v2911 = vunpack.c.l.b16 %v2398
  %v2912 = vunpack.c.l.b16 %v2399
  %v2913 = vunpack.c.l.b16 %v2400
  %v2914 = vunpack.c.l.b16 %v2401
  %v2915 = vunpack.c.l.b16 %v2402
  %v2916 = vunpack.c.l.b16 %v2403
  %v2917 = vunpack.c.l.b16 %v2404
  %v2918 = vunpack.c.l.b16 %v2405
  %v2919 = vunpack.c.l.b16 %v2406
  %v2920 = vunpack.c.l.b16 %v2407
  %v2921 = vunpack.c.l.b16 %v2408
  %v2922 = vunpack.c.l.b16 %v2409
  %v2923 = vunpack.c.l.b16 %v2410
  %v2924 = vunpack.c.l.b16 %v2411
  %v2925 = vunpack.c.l.b16 %v2412
  %v2926 = vunpack.c.l.b16 %v2413
  %v2927 = vunpack.c.l.b16 %v2414
  %v2928 = vunpack.c.l.b16 %v2415
  %v2929 = vunpack.c.l.b16 %v2416
  %v2930 = vunpack.c.l.b16 %v2417
  %v2931 = vunpack.c.l.b16 %v2418
  %v2932 = vpack.c.b16 %v2900, %v2900
  %v2933 = vpack.c.b16 %v2901, %v2901
  %v2934 = vpack.c.b16 %v2902, %v2902
  %v2935 = vpack.c.b16 %v2903, %v2903
  %v2936 = vpack.c.b16 %v2904, %v2904
  %v2937 = vpack.c.b16 %v2905, %v2905
  %v2938 = vpack.c.b16 %v2906, %v2906
  %v2939 = vpack.c.b16 %v2907, %v2907
  %v2940 = vpack.c.b16 %v2908, %v2908
  %v2941 = vpack.c.b16 %v2909, %v2909
  %v2942 = vpack.c.b16 %v2910, %v2910
  %v2943 = vpack.c.b16 %v2911, %v2911
  %v2944 = vpack.c.b16 %v2912, %v2912
  %v2945 = vpack.c.b16 %v2913, %v2913
  %v2946 = vpack.c.b16 %v2914, %v2914
  %v2947 = vpack.c.b16 %v2915, %v2915
  %v2948 = vpack.c.b16 %v2916, %v2916
  %v2949 = vpack.c.b16 %v2917, %v2917
  %v2950 = vpack.c.b16 %v2918, %v2918
  %v2951 = vpack.c.b16 %v2919, %v2919
  %v2952 = vpack.c.b16 %v2920, %v2920
  %v2953 = vpack.c.b16 %v2921, %v2921
  %v2954 = vpack.c.b16 %v2922, %v2922
  %v2955 = vpack.c.b16 %v2923, %v2923
  %v2956 = vpack.c.b16 %v2924, %v2924
  %v2957 = vpack.c.b16 %v2925, %v2925
  %v2958 = vpack.c.b16 %v2926, %v2926
  %v2959 = vpack.c.b16 %v2927, %v2927
  %v2960 = vpack.c.b16 %v2928, %v2928
  %v2961 = vpack.c.b16 %v2929, %v2929
  %v2962 = vpack.c.b16 %v2930, %v2930
  %v2963 = vpack.c.b16 %v2931, %v2931
  %vm2964 = vsmask.f32 7424
  %v2966 = vshrl.u32 %v2836, 16
  %v2968 = vshll.u32 %v2836, 16
  %v2970 = vrot.slane %v2968, 1
  %v2971 = vor.u32 %v2966, %v2970
  %v2973 = vshll.u32 %v2932, 16
  %v2975 = vrot.slane %v2973, 1
  %v2976 = vsel %vm2964, %v2971, %v2975
  %v2978 = vshrl.u32 %v2837, 16
  %v2980 = vshll.u32 %v2837, 16
  %v2982 = vrot.slane %v2980, 1
  %v2983 = vor.u32 %v2978, %v2982
  %v2985 = vshll.u32 %v2933, 16
  %v2987 = vrot.slane %v2985, 1
  %v2988 = vsel %vm2964, %v2983, %v2987
  %v2990 = vshrl.u32 %v2838, 16
  %v2992 = vshll.u32 %v2838, 16
  %v2994 = vrot.slane %v2992, 1
  %v2995 = vor.u32 %v2990, %v2994
  %v2997 = vshll.u32 %v2934, 16
  %v2999 = vrot.slane %v2997, 1
  %v3000 = vsel %vm2964, %v2995, %v2999
  %v3002 = vshrl.u32 %v2839, 16
  %v3004 = vshll.u32 %v2839, 16
  %v3006 = vrot.slane %v3004, 1
  %v3007 = vor.u32 %v3002, %v3006
  %v3009 = vshll.u32 %v2935, 16
  %v3011 = vrot.slane %v3009, 1
  %v3012 = vsel %vm2964, %v3007, %v3011
  %v3014 = vshrl.u32 %v2840, 16
  %v3016 = vshll.u32 %v2840, 16
  %v3018 = vrot.slane %v3016, 1
  %v3019 = vor.u32 %v3014, %v3018
  %v3021 = vshll.u32 %v2936, 16
  %v3023 = vrot.slane %v3021, 1
  %v3024 = vsel %vm2964, %v3019, %v3023
  %v3026 = vshrl.u32 %v2841, 16
  %v3028 = vshll.u32 %v2841, 16
  %v3030 = vrot.slane %v3028, 1
  %v3031 = vor.u32 %v3026, %v3030
  %v3033 = vshll.u32 %v2937, 16
  %v3035 = vrot.slane %v3033, 1
  %v3036 = vsel %vm2964, %v3031, %v3035
  %v3038 = vshrl.u32 %v2842, 16
  %v3040 = vshll.u32 %v2842, 16
  %v3042 = vrot.slane %v3040, 1
  %v3043 = vor.u32 %v3038, %v3042
  %v3045 = vshll.u32 %v2938, 16
  %v3047 = vrot.slane %v3045, 1
  %v3048 = vsel %vm2964, %v3043, %v3047
  %v3050 = vshrl.u32 %v2843, 16
  %v3052 = vshll.u32 %v2843, 16
  %v3054 = vrot.slane %v3052, 1
  %v3055 = vor.u32 %v3050, %v3054
  %v3057 = vshll.u32 %v2939, 16
  %v3059 = vrot.slane %v3057, 1
  %v3060 = vsel %vm2964, %v3055, %v3059
  %v3062 = vshrl.u32 %v2844, 16
  %v3064 = vshll.u32 %v2844, 16
  %v3066 = vrot.slane %v3064, 1
  %v3067 = vor.u32 %v3062, %v3066
  %v3069 = vshll.u32 %v2940, 16
  %v3071 = vrot.slane %v3069, 1
  %v3072 = vsel %vm2964, %v3067, %v3071
  %v3074 = vshrl.u32 %v2845, 16
  %v3076 = vshll.u32 %v2845, 16
  %v3078 = vrot.slane %v3076, 1
  %v3079 = vor.u32 %v3074, %v3078
  %v3081 = vshll.u32 %v2941, 16
  %v3083 = vrot.slane %v3081, 1
  %v3084 = vsel %vm2964, %v3079, %v3083
  %v3086 = vshrl.u32 %v2846, 16
  %v3088 = vshll.u32 %v2846, 16
  %v3090 = vrot.slane %v3088, 1
  %v3091 = vor.u32 %v3086, %v3090
  %v3093 = vshll.u32 %v2942, 16
  %v3095 = vrot.slane %v3093, 1
  %v3096 = vsel %vm2964, %v3091, %v3095
  %v3098 = vshrl.u32 %v2847, 16
  %v3100 = vshll.u32 %v2847, 16
  %v3102 = vrot.slane %v3100, 1
  %v3103 = vor.u32 %v3098, %v3102
  %v3105 = vshll.u32 %v2943, 16
  %v3107 = vrot.slane %v3105, 1
  %v3108 = vsel %vm2964, %v3103, %v3107
  %v3110 = vshrl.u32 %v2848, 16
  %v3112 = vshll.u32 %v2848, 16
  %v3114 = vrot.slane %v3112, 1
  %v3115 = vor.u32 %v3110, %v3114
  %v3117 = vshll.u32 %v2944, 16
  %v3119 = vrot.slane %v3117, 1
  %v3120 = vsel %vm2964, %v3115, %v3119
  %v3122 = vshrl.u32 %v2849, 16
  %v3124 = vshll.u32 %v2849, 16
  %v3126 = vrot.slane %v3124, 1
  %v3127 = vor.u32 %v3122, %v3126
  %v3129 = vshll.u32 %v2945, 16
  %v3131 = vrot.slane %v3129, 1
  %v3132 = vsel %vm2964, %v3127, %v3131
  %v3134 = vshrl.u32 %v2850, 16
  %v3136 = vshll.u32 %v2850, 16
  %v3138 = vrot.slane %v3136, 1
  %v3139 = vor.u32 %v3134, %v3138
  %v3141 = vshll.u32 %v2946, 16
  %v3143 = vrot.slane %v3141, 1
  %v3144 = vsel %vm2964, %v3139, %v3143
  %v3146 = vshrl.u32 %v2851, 16
  %v3148 = vshll.u32 %v2851, 16
  %v3150 = vrot.slane %v3148, 1
  %v3151 = vor.u32 %v3146, %v3150
  %v3153 = vshll.u32 %v2947, 16
  %v3155 = vrot.slane %v3153, 1
  %v3156 = vsel %vm2964, %v3151, %v3155
  %v3158 = vshrl.u32 %v2852, 16
  %v3160 = vshll.u32 %v2852, 16
  %v3162 = vrot.slane %v3160, 1
  %v3163 = vor.u32 %v3158, %v3162
  %v3165 = vshll.u32 %v2948, 16
  %v3167 = vrot.slane %v3165, 1
  %v3168 = vsel %vm2964, %v3163, %v3167
  %v3170 = vshrl.u32 %v2853, 16
  %v3172 = vshll.u32 %v2853, 16
  %v3174 = vrot.slane %v3172, 1
  %v3175 = vor.u32 %v3170, %v3174
  %v3177 = vshll.u32 %v2949, 16
  %v3179 = vrot.slane %v3177, 1
  %v3180 = vsel %vm2964, %v3175, %v3179
  %v3182 = vshrl.u32 %v2854, 16
  %v3184 = vshll.u32 %v2854, 16
  %v3186 = vrot.slane %v3184, 1
  %v3187 = vor.u32 %v3182, %v3186
  %v3189 = vshll.u32 %v2950, 16
  %v3191 = vrot.slane %v3189, 1
  %v3192 = vsel %vm2964, %v3187, %v3191
  %v3194 = vshrl.u32 %v2855, 16
  %v3196 = vshll.u32 %v2855, 16
  %v3198 = vrot.slane %v3196, 1
  %v3199 = vor.u32 %v3194, %v3198
  %v3201 = vshll.u32 %v2951, 16
  %v3203 = vrot.slane %v3201, 1
  %v3204 = vsel %vm2964, %v3199, %v3203
  %v3206 = vshrl.u32 %v2856, 16
  %v3208 = vshll.u32 %v2856, 16
  %v3210 = vrot.slane %v3208, 1
  %v3211 = vor.u32 %v3206, %v3210
  %v3213 = vshll.u32 %v2952, 16
  %v3215 = vrot.slane %v3213, 1
  %v3216 = vsel %vm2964, %v3211, %v3215
  %v3218 = vshrl.u32 %v2857, 16
  %v3220 = vshll.u32 %v2857, 16
  %v3222 = vrot.slane %v3220, 1
  %v3223 = vor.u32 %v3218, %v3222
  %v3225 = vshll.u32 %v2953, 16
  %v3227 = vrot.slane %v3225, 1
  %v3228 = vsel %vm2964, %v3223, %v3227
  %v3230 = vshrl.u32 %v2858, 16
  %v3232 = vshll.u32 %v2858, 16
  %v3234 = vrot.slane %v3232, 1
  %v3235 = vor.u32 %v3230, %v3234
  %v3237 = vshll.u32 %v2954, 16
  %v3239 = vrot.slane %v3237, 1
  %v3240 = vsel %vm2964, %v3235, %v3239
  %v3242 = vshrl.u32 %v2859, 16
  %v3244 = vshll.u32 %v2859, 16
  %v3246 = vrot.slane %v3244, 1
  %v3247 = vor.u32 %v3242, %v3246
  %v3249 = vshll.u32 %v2955, 16
  %v3251 = vrot.slane %v3249, 1
  %v3252 = vsel %vm2964, %v3247, %v3251
  %v3254 = vshrl.u32 %v2860, 16
  %v3256 = vshll.u32 %v2860, 16
  %v3258 = vrot.slane %v3256, 1
  %v3259 = vor.u32 %v3254, %v3258
  %v3261 = vshll.u32 %v2956, 16
  %v3263 = vrot.slane %v3261, 1
  %v3264 = vsel %vm2964, %v3259, %v3263
  %v3266 = vshrl.u32 %v2861, 16
  %v3268 = vshll.u32 %v2861, 16
  %v3270 = vrot.slane %v3268, 1
  %v3271 = vor.u32 %v3266, %v3270
  %v3273 = vshll.u32 %v2957, 16
  %v3275 = vrot.slane %v3273, 1
  %v3276 = vsel %vm2964, %v3271, %v3275
  %v3278 = vshrl.u32 %v2862, 16
  %v3280 = vshll.u32 %v2862, 16
  %v3282 = vrot.slane %v3280, 1
  %v3283 = vor.u32 %v3278, %v3282
  %v3285 = vshll.u32 %v2958, 16
  %v3287 = vrot.slane %v3285, 1
  %v3288 = vsel %vm2964, %v3283, %v3287
  %v3290 = vshrl.u32 %v2863, 16
  %v3292 = vshll.u32 %v2863, 16
  %v3294 = vrot.slane %v3292, 1
  %v3295 = vor.u32 %v3290, %v3294
  %v3297 = vshll.u32 %v2959, 16
  %v3299 = vrot.slane %v3297, 1
  %v3300 = vsel %vm2964, %v3295, %v3299
  %v3302 = vshrl.u32 %v2864, 16
  %v3304 = vshll.u32 %v2864, 16
  %v3306 = vrot.slane %v3304, 1
  %v3307 = vor.u32 %v3302, %v3306
  %v3309 = vshll.u32 %v2960, 16
  %v3311 = vrot.slane %v3309, 1
  %v3312 = vsel %vm2964, %v3307, %v3311
  %v3314 = vshrl.u32 %v2865, 16
  %v3316 = vshll.u32 %v2865, 16
  %v3318 = vrot.slane %v3316, 1
  %v3319 = vor.u32 %v3314, %v3318
  %v3321 = vshll.u32 %v2961, 16
  %v3323 = vrot.slane %v3321, 1
  %v3324 = vsel %vm2964, %v3319, %v3323
  %v3326 = vshrl.u32 %v2866, 16
  %v3328 = vshll.u32 %v2866, 16
  %v3330 = vrot.slane %v3328, 1
  %v3331 = vor.u32 %v3326, %v3330
  %v3333 = vshll.u32 %v2962, 16
  %v3335 = vrot.slane %v3333, 1
  %v3336 = vsel %vm2964, %v3331, %v3335
  %v3338 = vshrl.u32 %v2867, 16
  %v3340 = vshll.u32 %v2867, 16
  %v3342 = vrot.slane %v3340, 1
  %v3343 = vor.u32 %v3338, %v3342
  %v3345 = vshll.u32 %v2963, 16
  %v3347 = vrot.slane %v3345, 1
  %v3348 = vsel %vm2964, %v3343, %v3347
  %3349 = vrot.lane.b32.xlu0 %v2976, 8
  %v3350 = vpop.permute.xlu0 %3349
  %3351 = vrot.lane.b32.xlu0 %v2988, 8
  %v3352 = vpop.permute.xlu0 %3351
  %3353 = vrot.lane.b32.xlu0 %v3000, 8
  %v3354 = vpop.permute.xlu0 %3353
  %3355 = vrot.lane.b32.xlu0 %v3012, 8
  %v3356 = vpop.permute.xlu0 %3355
  %3357 = vrot.lane.b32.xlu0 %v3024, 8
  %v3358 = vpop.permute.xlu0 %3357
  %3359 = vrot.lane.b32.xlu0 %v3036, 8
  %v3360 = vpop.permute.xlu0 %3359
  %3361 = vrot.lane.b32.xlu0 %v3048, 8
  %v3362 = vpop.permute.xlu0 %3361
  %3363 = vrot.lane.b32.xlu0 %v3060, 8
  %v3364 = vpop.permute.xlu0 %3363
  %3365 = vrot.lane.b32.xlu0 %v3072, 8
  %v3366 = vpop.permute.xlu0 %3365
  %3367 = vrot.lane.b32.xlu0 %v3084, 8
  %v3368 = vpop.permute.xlu0 %3367
  %3369 = vrot.lane.b32.xlu0 %v3096, 8
  %v3370 = vpop.permute.xlu0 %3369
  %3371 = vrot.lane.b32.xlu0 %v3108, 8
  %v3372 = vpop.permute.xlu0 %3371
  %3373 = vrot.lane.b32.xlu0 %v3120, 8
  %v3374 = vpop.permute.xlu0 %3373
  %3375 = vrot.lane.b32.xlu0 %v3132, 8
  %v3376 = vpop.permute.xlu0 %3375
  %3377 = vrot.lane.b32.xlu0 %v3144, 8
  %v3378 = vpop.permute.xlu0 %3377
  %3379 = vrot.lane.b32.xlu0 %v3156, 8
  %v3380 = vpop.permute.xlu0 %3379
  %3381 = vrot.lane.b32.xlu0 %v3168, 8
  %v3382 = vpop.permute.xlu0 %3381
  %3383 = vrot.lane.b32.xlu0 %v3180, 8
  %v3384 = vpop.permute.xlu0 %3383
  %3385 = vrot.lane.b32.xlu0 %v3192, 8
  %v3386 = vpop.permute.xlu0 %3385
  %3387 = vrot.lane.b32.xlu0 %v3204, 8
  %v3388 = vpop.permute.xlu0 %3387
  %3389 = vrot.lane.b32.xlu0 %v3216, 8
  %v3390 = vpop.permute.xlu0 %3389
  %3391 = vrot.lane.b32.xlu0 %v3228, 8
  %v3392 = vpop.permute.xlu0 %3391
  %3393 = vrot.lane.b32.xlu0 %v3240, 8
  %v3394 = vpop.permute.xlu0 %3393
  %3395 = vrot.lane.b32.xlu0 %v3252, 8
  %v3396 = vpop.permute.xlu0 %3395
  %3397 = vrot.lane.b32.xlu0 %v3264, 8
  %v3398 = vpop.permute.xlu0 %3397
  %3399 = vrot.lane.b32.xlu0 %v3276, 8
  %v3400 = vpop.permute.xlu0 %3399
  %3401 = vrot.lane.b32.xlu0 %v3288, 8
  %v3402 = vpop.permute.xlu0 %3401
  %3403 = vrot.lane.b32.xlu0 %v3300, 8
  %v3404 = vpop.permute.xlu0 %3403
  %3405 = vrot.lane.b32.xlu0 %v3312, 8
  %v3406 = vpop.permute.xlu0 %3405
  %3407 = vrot.lane.b32.xlu0 %v3324, 8
  %v3408 = vpop.permute.xlu0 %3407
  %3409 = vrot.lane.b32.xlu0 %v3336, 8
  %v3410 = vpop.permute.xlu0 %3409
  %3411 = vrot.lane.b32.xlu0 %v3348, 8
  %v3412 = vpop.permute.xlu0 %3411
  %v3445 = vunpack.c.l.b16 %v2419
  %v3446 = vunpack.c.l.b16 %v2420
  %v3447 = vunpack.c.l.b16 %v2421
  %v3448 = vunpack.c.l.b16 %v2422
  %v3449 = vunpack.c.l.b16 %v2423
  %v3450 = vunpack.c.l.b16 %v2424
  %v3451 = vunpack.c.l.b16 %v2425
  %v3452 = vunpack.c.l.b16 %v2426
  %v3453 = vunpack.c.l.b16 %v2427
  %v3454 = vunpack.c.l.b16 %v2428
  %v3455 = vunpack.c.l.b16 %v2429
  %v3456 = vunpack.c.l.b16 %v2430
  %v3457 = vunpack.c.l.b16 %v2431
  %v3458 = vunpack.c.l.b16 %v2432
  %v3459 = vunpack.c.l.b16 %v2433
  %v3460 = vunpack.c.l.b16 %v2434
  %v3461 = vunpack.c.l.b16 %v2435
  %v3462 = vunpack.c.l.b16 %v2436
  %v3463 = vunpack.c.l.b16 %v2437
  %v3464 = vunpack.c.l.b16 %v2438
  %v3465 = vunpack.c.l.b16 %v2439
  %v3466 = vunpack.c.l.b16 %v2440
  %v3467 = vunpack.c.l.b16 %v2441
  %v3468 = vunpack.c.l.b16 %v2442
  %v3469 = vunpack.c.l.b16 %v2443
  %v3470 = vunpack.c.l.b16 %v2444
  %v3471 = vunpack.c.l.b16 %v2445
  %v3472 = vunpack.c.l.b16 %v2446
  %v3473 = vunpack.c.l.b16 %v2447
  %v3474 = vunpack.c.l.b16 %v2448
  %v3475 = vunpack.c.l.b16 %v2449
  %v3476 = vunpack.c.l.b16 %v2450
  %v3477 = vpack.c.b16 %v2773, %v3445
  %v3478 = vpack.c.b16 %v2775, %v3446
  %v3479 = vpack.c.b16 %v2777, %v3447
  %v3480 = vpack.c.b16 %v2779, %v3448
  %v3481 = vpack.c.b16 %v2781, %v3449
  %v3482 = vpack.c.b16 %v2783, %v3450
  %v3483 = vpack.c.b16 %v2785, %v3451
  %v3484 = vpack.c.b16 %v2787, %v3452
  %v3485 = vpack.c.b16 %v2789, %v3453
  %v3486 = vpack.c.b16 %v2791, %v3454
  %v3487 = vpack.c.b16 %v2793, %v3455
  %v3488 = vpack.c.b16 %v2795, %v3456
  %v3489 = vpack.c.b16 %v2797, %v3457
  %v3490 = vpack.c.b16 %v2799, %v3458
  %v3491 = vpack.c.b16 %v2801, %v3459
  %v3492 = vpack.c.b16 %v2803, %v3460
  %v3493 = vpack.c.b16 %v2805, %v3461
  %v3494 = vpack.c.b16 %v2807, %v3462
  %v3495 = vpack.c.b16 %v2809, %v3463
  %v3496 = vpack.c.b16 %v2811, %v3464
  %v3497 = vpack.c.b16 %v2813, %v3465
  %v3498 = vpack.c.b16 %v2815, %v3466
  %v3499 = vpack.c.b16 %v2817, %v3467
  %v3500 = vpack.c.b16 %v2819, %v3468
  %v3501 = vpack.c.b16 %v2821, %v3469
  %v3502 = vpack.c.b16 %v2823, %v3470
  %v3503 = vpack.c.b16 %v2825, %v3471
  %v3504 = vpack.c.b16 %v2827, %v3472
  %v3505 = vpack.c.b16 %v2829, %v3473
  %v3506 = vpack.c.b16 %v2831, %v3474
  %v3507 = vpack.c.b16 %v2833, %v3475
  %v3508 = vpack.c.b16 %v2835, %v3476
  %vm3509 = vcmask 1046528
  %v3510 = vrot.slane %v3477, 1
  %v3511 = vrot.slane %v2932, 1
  %v3512 = vsel %vm3509, %v3510, %v3511
  %v3513 = vrot.slane %v3478, 1
  %v3514 = vrot.slane %v2933, 1
  %v3515 = vsel %vm3509, %v3513, %v3514
  %v3516 = vrot.slane %v3479, 1
  %v3517 = vrot.slane %v2934, 1
  %v3518 = vsel %vm3509, %v3516, %v3517
  %v3519 = vrot.slane %v3480, 1
  %v3520 = vrot.slane %v2935, 1
  %v3521 = vsel %vm3509, %v3519, %v3520
  %v3522 = vrot.slane %v3481, 1
  %v3523 = vrot.slane %v2936, 1
  %v3524 = vsel %vm3509, %v3522, %v3523
  %v3525 = vrot.slane %v3482, 1
  %v3526 = vrot.slane %v2937, 1
  %v3527 = vsel %vm3509, %v3525, %v3526
  %v3528 = vrot.slane %v3483, 1
  %v3529 = vrot.slane %v2938, 1
  %v3530 = vsel %vm3509, %v3528, %v3529
  %v3531 = vrot.slane %v3484, 1
  %v3532 = vrot.slane %v2939, 1
  %v3533 = vsel %vm3509, %v3531, %v3532
  %v3534 = vrot.slane %v3485, 1
  %v3535 = vrot.slane %v2940, 1
  %v3536 = vsel %vm3509, %v3534, %v3535
  %v3537 = vrot.slane %v3486, 1
  %v3538 = vrot.slane %v2941, 1
  %v3539 = vsel %vm3509, %v3537, %v3538
  %v3540 = vrot.slane %v3487, 1
  %v3541 = vrot.slane %v2942, 1
  %v3542 = vsel %vm3509, %v3540, %v3541
  %v3543 = vrot.slane %v3488, 1
  %v3544 = vrot.slane %v2943, 1
  %v3545 = vsel %vm3509, %v3543, %v3544
  %v3546 = vrot.slane %v3489, 1
  %v3547 = vrot.slane %v2944, 1
  %v3548 = vsel %vm3509, %v3546, %v3547
  %v3549 = vrot.slane %v3490, 1
  %v3550 = vrot.slane %v2945, 1
  %v3551 = vsel %vm3509, %v3549, %v3550
  %v3552 = vrot.slane %v3491, 1
  %v3553 = vrot.slane %v2946, 1
  %v3554 = vsel %vm3509, %v3552, %v3553
  %v3555 = vrot.slane %v3492, 1
  %v3556 = vrot.slane %v2947, 1
  %v3557 = vsel %vm3509, %v3555, %v3556
  %v3558 = vrot.slane %v3493, 1
  %v3559 = vrot.slane %v2948, 1
  %v3560 = vsel %vm3509, %v3558, %v3559
  %v3561 = vrot.slane %v3494, 1
  %v3562 = vrot.slane %v2949, 1
  %v3563 = vsel %vm3509, %v3561, %v3562
  %v3564 = vrot.slane %v3495, 1
  %v3565 = vrot.slane %v2950, 1
  %v3566 = vsel %vm3509, %v3564, %v3565
  %v3567 = vrot.slane %v3496, 1
  %v3568 = vrot.slane %v2951, 1
  %v3569 = vsel %vm3509, %v3567, %v3568
  %v3570 = vrot.slane %v3497, 1
  %v3571 = vrot.slane %v2952, 1
  %v3572 = vsel %vm3509, %v3570, %v3571
  %v3573 = vrot.slane %v3498, 1
  %v3574 = vrot.slane %v2953, 1
  %v3575 = vsel %vm3509, %v3573, %v3574
  %v3576 = vrot.slane %v3499, 1
  %v3577 = vrot.slane %v2954, 1
  %v3578 = vsel %vm3509, %v3576, %v3577
  %v3579 = vrot.slane %v3500, 1
  %v3580 = vrot.slane %v2955, 1
  %v3581 = vsel %vm3509, %v3579, %v3580
  %v3582 = vrot.slane %v3501, 1
  %v3583 = vrot.slane %v2956, 1
  %v3584 = vsel %vm3509, %v3582, %v3583
  %v3585 = vrot.slane %v3502, 1
  %v3586 = vrot.slane %v2957, 1
  %v3587 = vsel %vm3509, %v3585, %v3586
  %v3588 = vrot.slane %v3503, 1
  %v3589 = vrot.slane %v2958, 1
  %v3590 = vsel %vm3509, %v3588, %v3589
  %v3591 = vrot.slane %v3504, 1
  %v3592 = vrot.slane %v2959, 1
  %v3593 = vsel %vm3509, %v3591, %v3592
  %v3594 = vrot.slane %v3505, 1
  %v3595 = vrot.slane %v2960, 1
  %v3596 = vsel %vm3509, %v3594, %v3595
  %v3597 = vrot.slane %v3506, 1
  %v3598 = vrot.slane %v2961, 1
  %v3599 = vsel %vm3509, %v3597, %v3598
  %v3600 = vrot.slane %v3507, 1
  %v3601 = vrot.slane %v2962, 1
  %v3602 = vsel %vm3509, %v3600, %v3601
  %v3603 = vrot.slane %v3508, 1
  %v3604 = vrot.slane %v2963, 1
  %v3605 = vsel %vm3509, %v3603, %v3604
  %3606 = vrot.lane.b32.xlu0 %v3512, 16
  %v3607 = vpop.permute.xlu0 %3606
  %3608 = vrot.lane.b32.xlu0 %v3515, 16
  %v3609 = vpop.permute.xlu0 %3608
  %3610 = vrot.lane.b32.xlu0 %v3518, 16
  %v3611 = vpop.permute.xlu0 %3610
  %3612 = vrot.lane.b32.xlu0 %v3521, 16
  %v3613 = vpop.permute.xlu0 %3612
  %3614 = vrot.lane.b32.xlu0 %v3524, 16
  %v3615 = vpop.permute.xlu0 %3614
  %3616 = vrot.lane.b32.xlu0 %v3527, 16
  %v3617 = vpop.permute.xlu0 %3616
  %3618 = vrot.lane.b32.xlu0 %v3530, 16
  %v3619 = vpop.permute.xlu0 %3618
  %3620 = vrot.lane.b32.xlu0 %v3533, 16
  %v3621 = vpop.permute.xlu0 %3620
  %3622 = vrot.lane.b32.xlu0 %v3536, 16
  %v3623 = vpop.permute.xlu0 %3622
  %3624 = vrot.lane.b32.xlu0 %v3539, 16
  %v3625 = vpop.permute.xlu0 %3624
  %3626 = vrot.lane.b32.xlu0 %v3542, 16
  %v3627 = vpop.permute.xlu0 %3626
  %3628 = vrot.lane.b32.xlu0 %v3545, 16
  %v3629 = vpop.permute.xlu0 %3628
  %3630 = vrot.lane.b32.xlu0 %v3548, 16
  %v3631 = vpop.permute.xlu0 %3630
  %3632 = vrot.lane.b32.xlu0 %v3551, 16
  %v3633 = vpop.permute.xlu0 %3632
  %3634 = vrot.lane.b32.xlu0 %v3554, 16
  %v3635 = vpop.permute.xlu0 %3634
  %3636 = vrot.lane.b32.xlu0 %v3557, 16
  %v3637 = vpop.permute.xlu0 %3636
  %3638 = vrot.lane.b32.xlu0 %v3560, 16
  %v3639 = vpop.permute.xlu0 %3638
  %3640 = vrot.lane.b32.xlu0 %v3563, 16
  %v3641 = vpop.permute.xlu0 %3640
  %3642 = vrot.lane.b32.xlu0 %v3566, 16
  %v3643 = vpop.permute.xlu0 %3642
  %3644 = vrot.lane.b32.xlu0 %v3569, 16
  %v3645 = vpop.permute.xlu0 %3644
  %3646 = vrot.lane.b32.xlu0 %v3572, 16
  %v3647 = vpop.permute.xlu0 %3646
  %3648 = vrot.lane.b32.xlu0 %v3575, 16
  %v3649 = vpop.permute.xlu0 %3648
  %3650 = vrot.lane.b32.xlu0 %v3578, 16
  %v3651 = vpop.permute.xlu0 %3650
  %3652 = vrot.lane.b32.xlu0 %v3581, 16
  %v3653 = vpop.permute.xlu0 %3652
  %3654 = vrot.lane.b32.xlu0 %v3584, 16
  %v3655 = vpop.permute.xlu0 %3654
  %3656 = vrot.lane.b32.xlu0 %v3587, 16
  %v3657 = vpop.permute.xlu0 %3656
  %3658 = vrot.lane.b32.xlu0 %v3590, 16
  %v3659 = vpop.permute.xlu0 %3658
  %3660 = vrot.lane.b32.xlu0 %v3593, 16
  %v3661 = vpop.permute.xlu0 %3660
  %3662 = vrot.lane.b32.xlu0 %v3596, 16
  %v3663 = vpop.permute.xlu0 %3662
  %3664 = vrot.lane.b32.xlu0 %v3599, 16
  %v3665 = vpop.permute.xlu0 %3664
  %3666 = vrot.lane.b32.xlu0 %v3602, 16
  %v3667 = vpop.permute.xlu0 %3666
  %3668 = vrot.lane.b32.xlu0 %v3605, 16
  %v3669 = vpop.permute.xlu0 %3668
  %v3734 = vunpack.c.l.b16 %v2451
  %v3735 = vunpack.c.l.b16 %v2452
  %v3736 = vunpack.c.l.b16 %v2453
  %v3737 = vunpack.c.l.b16 %v2454
  %v3738 = vunpack.c.l.b16 %v2455
  %v3739 = vunpack.c.l.b16 %v2456
  %v3740 = vunpack.c.l.b16 %v2457
  %v3741 = vunpack.c.l.b16 %v2458
  %v3742 = vunpack.c.l.b16 %v2459
  %v3743 = vunpack.c.l.b16 %v2460
  %v3744 = vunpack.c.l.b16 %v2461
  %v3745 = vunpack.c.l.b16 %v2462
  %v3746 = vunpack.c.l.b16 %v2463
  %v3747 = vunpack.c.l.b16 %v2464
  %v3748 = vunpack.c.l.b16 %v2465
  %v3749 = vunpack.c.l.b16 %v2466
  %v3750 = vunpack.c.l.b16 %v2467
  %v3751 = vunpack.c.l.b16 %v2468
  %v3752 = vunpack.c.l.b16 %v2469
  %v3753 = vunpack.c.l.b16 %v2470
  %v3754 = vunpack.c.l.b16 %v2471
  %v3755 = vunpack.c.l.b16 %v2472
  %v3756 = vunpack.c.l.b16 %v2473
  %v3757 = vunpack.c.l.b16 %v2474
  %v3758 = vunpack.c.l.b16 %v2475
  %v3759 = vunpack.c.l.b16 %v2476
  %v3760 = vunpack.c.l.b16 %v2477
  %v3761 = vunpack.c.l.b16 %v2478
  %v3762 = vunpack.c.l.b16 %v2479
  %v3763 = vunpack.c.l.b16 %v2480
  %v3764 = vunpack.c.l.b16 %v2481
  %v3765 = vunpack.c.l.b16 %v2482
  %v3766 = vunpack.c.l.b16 %v2483
  %v3767 = vunpack.c.l.b16 %v2484
  %v3768 = vunpack.c.l.b16 %v2485
  %v3769 = vunpack.c.l.b16 %v2486
  %v3770 = vunpack.c.l.b16 %v2487
  %v3771 = vunpack.c.l.b16 %v2488
  %v3772 = vunpack.c.l.b16 %v2489
  %v3773 = vunpack.c.l.b16 %v2490
  %v3774 = vunpack.c.l.b16 %v2491
  %v3775 = vunpack.c.l.b16 %v2492
  %v3776 = vunpack.c.l.b16 %v2493
  %v3777 = vunpack.c.l.b16 %v2494
  %v3778 = vunpack.c.l.b16 %v2495
  %v3779 = vunpack.c.l.b16 %v2496
  %v3780 = vunpack.c.l.b16 %v2497
  %v3781 = vunpack.c.l.b16 %v2498
  %v3782 = vunpack.c.l.b16 %v2499
  %v3783 = vunpack.c.l.b16 %v2500
  %v3784 = vunpack.c.l.b16 %v2501
  %v3785 = vunpack.c.l.b16 %v2502
  %v3786 = vunpack.c.l.b16 %v2503
  %v3787 = vunpack.c.l.b16 %v2504
  %v3788 = vunpack.c.l.b16 %v2505
  %v3789 = vunpack.c.l.b16 %v2506
  %v3790 = vunpack.c.l.b16 %v2507
  %v3791 = vunpack.c.l.b16 %v2508
  %v3792 = vunpack.c.l.b16 %v2509
  %v3793 = vunpack.c.l.b16 %v2510
  %v3794 = vunpack.c.l.b16 %v2511
  %v3795 = vunpack.c.l.b16 %v2512
  %v3796 = vunpack.c.l.b16 %v2513
  %v3797 = vunpack.c.l.b16 %v2514
  %v3798 = vpack.c.b16 %v3735, %v3734
  %v3799 = vpack.c.b16 %v3737, %v3736
  %v3800 = vpack.c.b16 %v3739, %v3738
  %v3801 = vpack.c.b16 %v3741, %v3740
  %v3802 = vpack.c.b16 %v3743, %v3742
  %v3803 = vpack.c.b16 %v3745, %v3744
  %v3804 = vpack.c.b16 %v3747, %v3746
  %v3805 = vpack.c.b16 %v3749, %v3748
  %v3806 = vpack.c.b16 %v3751, %v3750
  %v3807 = vpack.c.b16 %v3753, %v3752
  %v3808 = vpack.c.b16 %v3755, %v3754
  %v3809 = vpack.c.b16 %v3757, %v3756
  %v3810 = vpack.c.b16 %v3759, %v3758
  %v3811 = vpack.c.b16 %v3761, %v3760
  %v3812 = vpack.c.b16 %v3763, %v3762
  %v3813 = vpack.c.b16 %v3765, %v3764
  %v3814 = vpack.c.b16 %v3767, %v3766
  %v3815 = vpack.c.b16 %v3769, %v3768
  %v3816 = vpack.c.b16 %v3771, %v3770
  %v3817 = vpack.c.b16 %v3773, %v3772
  %v3818 = vpack.c.b16 %v3775, %v3774
  %v3819 = vpack.c.b16 %v3777, %v3776
  %v3820 = vpack.c.b16 %v3779, %v3778
  %v3821 = vpack.c.b16 %v3781, %v3780
  %v3822 = vpack.c.b16 %v3783, %v3782
  %v3823 = vpack.c.b16 %v3785, %v3784
  %v3824 = vpack.c.b16 %v3787, %v3786
  %v3825 = vpack.c.b16 %v3789, %v3788
  %v3826 = vpack.c.b16 %v3791, %v3790
  %v3827 = vpack.c.b16 %v3793, %v3792
  %v3828 = vpack.c.b16 %v3795, %v3794
  %v3829 = vpack.c.b16 %v3797, %v3796
  %3830 = vrot.lane.b32.xlu0 %v3798, 24
  %v3831 = vpop.permute.xlu0 %3830
  %3832 = vrot.lane.b32.xlu0 %v3799, 24
  %v3833 = vpop.permute.xlu0 %3832
  %3834 = vrot.lane.b32.xlu0 %v3800, 24
  %v3835 = vpop.permute.xlu0 %3834
  %3836 = vrot.lane.b32.xlu0 %v3801, 24
  %v3837 = vpop.permute.xlu0 %3836
  %3838 = vrot.lane.b32.xlu0 %v3802, 24
  %v3839 = vpop.permute.xlu0 %3838
  %3840 = vrot.lane.b32.xlu0 %v3803, 24
  %v3841 = vpop.permute.xlu0 %3840
  %3842 = vrot.lane.b32.xlu0 %v3804, 24
  %v3843 = vpop.permute.xlu0 %3842
  %3844 = vrot.lane.b32.xlu0 %v3805, 24
  %v3845 = vpop.permute.xlu0 %3844
  %3846 = vrot.lane.b32.xlu0 %v3806, 24
  %v3847 = vpop.permute.xlu0 %3846
  %3848 = vrot.lane.b32.xlu0 %v3807, 24
  %v3849 = vpop.permute.xlu0 %3848
  %3850 = vrot.lane.b32.xlu0 %v3808, 24
  %v3851 = vpop.permute.xlu0 %3850
  %3852 = vrot.lane.b32.xlu0 %v3809, 24
  %v3853 = vpop.permute.xlu0 %3852
  %3854 = vrot.lane.b32.xlu0 %v3810, 24
  %v3855 = vpop.permute.xlu0 %3854
  %3856 = vrot.lane.b32.xlu0 %v3811, 24
  %v3857 = vpop.permute.xlu0 %3856
  %3858 = vrot.lane.b32.xlu0 %v3812, 24
  %v3859 = vpop.permute.xlu0 %3858
  %3860 = vrot.lane.b32.xlu0 %v3813, 24
  %v3861 = vpop.permute.xlu0 %3860
  %3862 = vrot.lane.b32.xlu0 %v3814, 24
  %v3863 = vpop.permute.xlu0 %3862
  %3864 = vrot.lane.b32.xlu0 %v3815, 24
  %v3865 = vpop.permute.xlu0 %3864
  %3866 = vrot.lane.b32.xlu0 %v3816, 24
  %v3867 = vpop.permute.xlu0 %3866
  %3868 = vrot.lane.b32.xlu0 %v3817, 24
  %v3869 = vpop.permute.xlu0 %3868
  %3870 = vrot.lane.b32.xlu0 %v3818, 24
  %v3871 = vpop.permute.xlu0 %3870
  %3872 = vrot.lane.b32.xlu0 %v3819, 24
  %v3873 = vpop.permute.xlu0 %3872
  %3874 = vrot.lane.b32.xlu0 %v3820, 24
  %v3875 = vpop.permute.xlu0 %3874
  %3876 = vrot.lane.b32.xlu0 %v3821, 24
  %v3877 = vpop.permute.xlu0 %3876
  %3878 = vrot.lane.b32.xlu0 %v3822, 24
  %v3879 = vpop.permute.xlu0 %3878
  %3880 = vrot.lane.b32.xlu0 %v3823, 24
  %v3881 = vpop.permute.xlu0 %3880
  %3882 = vrot.lane.b32.xlu0 %v3824, 24
  %v3883 = vpop.permute.xlu0 %3882
  %3884 = vrot.lane.b32.xlu0 %v3825, 24
  %v3885 = vpop.permute.xlu0 %3884
  %3886 = vrot.lane.b32.xlu0 %v3826, 24
  %v3887 = vpop.permute.xlu0 %3886
  %3888 = vrot.lane.b32.xlu0 %v3827, 24
  %v3889 = vpop.permute.xlu0 %3888
  %3890 = vrot.lane.b32.xlu0 %v3828, 24
  %v3891 = vpop.permute.xlu0 %3890
  %3892 = vrot.lane.b32.xlu0 %v3829, 24
  %v3893 = vpop.permute.xlu0 %3892
  %v3926 = vunpack.c.l.b16 %v2515
  %v3927 = vunpack.c.l.b16 %v2516
  %v3928 = vunpack.c.l.b16 %v2517
  %v3929 = vunpack.c.l.b16 %v2518
  %v3930 = vunpack.c.l.b16 %v2519
  %v3931 = vunpack.c.l.b16 %v2520
  %v3932 = vunpack.c.l.b16 %v2521
  %v3933 = vunpack.c.l.b16 %v2522
  %v3934 = vunpack.c.l.b16 %v2523
  %v3935 = vunpack.c.l.b16 %v2524
  %v3936 = vunpack.c.l.b16 %v2525
  %v3937 = vunpack.c.l.b16 %v2526
  %v3938 = vunpack.c.l.b16 %v2527
  %v3939 = vunpack.c.l.b16 %v2528
  %v3940 = vunpack.c.l.b16 %v2529
  %v3941 = vunpack.c.l.b16 %v2530
  %v3942 = vunpack.c.l.b16 %v2531
  %v3943 = vunpack.c.l.b16 %v2532
  %v3944 = vunpack.c.l.b16 %v2533
  %v3945 = vunpack.c.l.b16 %v2534
  %v3946 = vunpack.c.l.b16 %v2535
  %v3947 = vunpack.c.l.b16 %v2536
  %v3948 = vunpack.c.l.b16 %v2537
  %v3949 = vunpack.c.l.b16 %v2538
  %v3950 = vunpack.c.l.b16 %v2539
  %v3951 = vunpack.c.l.b16 %v2540
  %v3952 = vunpack.c.l.b16 %v2541
  %v3953 = vunpack.c.l.b16 %v2542
  %v3954 = vunpack.c.l.b16 %v2543
  %v3955 = vunpack.c.l.b16 %v2544
  %v3956 = vunpack.c.l.b16 %v2545
  %v3957 = vunpack.c.l.b16 %v2546
  %v3958 = vpack.c.b16 %v3926, %v3926
  %v3959 = vpack.c.b16 %v3927, %v3927
  %v3960 = vpack.c.b16 %v3928, %v3928
  %v3961 = vpack.c.b16 %v3929, %v3929
  %v3962 = vpack.c.b16 %v3930, %v3930
  %v3963 = vpack.c.b16 %v3931, %v3931
  %v3964 = vpack.c.b16 %v3932, %v3932
  %v3965 = vpack.c.b16 %v3933, %v3933
  %v3966 = vpack.c.b16 %v3934, %v3934
  %v3967 = vpack.c.b16 %v3935, %v3935
  %v3968 = vpack.c.b16 %v3936, %v3936
  %v3969 = vpack.c.b16 %v3937, %v3937
  %v3970 = vpack.c.b16 %v3938, %v3938
  %v3971 = vpack.c.b16 %v3939, %v3939
  %v3972 = vpack.c.b16 %v3940, %v3940
  %v3973 = vpack.c.b16 %v3941, %v3941
  %v3974 = vpack.c.b16 %v3942, %v3942
  %v3975 = vpack.c.b16 %v3943, %v3943
  %v3976 = vpack.c.b16 %v3944, %v3944
  %v3977 = vpack.c.b16 %v3945, %v3945
  %v3978 = vpack.c.b16 %v3946, %v3946
  %v3979 = vpack.c.b16 %v3947, %v3947
  %v3980 = vpack.c.b16 %v3948, %v3948
  %v3981 = vpack.c.b16 %v3949, %v3949
  %v3982 = vpack.c.b16 %v3950, %v3950
  %v3983 = vpack.c.b16 %v3951, %v3951
  %v3984 = vpack.c.b16 %v3952, %v3952
  %v3985 = vpack.c.b16 %v3953, %v3953
  %v3986 = vpack.c.b16 %v3954, %v3954
  %v3987 = vpack.c.b16 %v3955, %v3955
  %v3988 = vpack.c.b16 %v3956, %v3956
  %v3989 = vpack.c.b16 %v3957, %v3957
  %v3991 = vshrl.u32 %v3798, 16
  %v3993 = vshll.u32 %v3798, 16
  %v3995 = vrot.slane %v3993, 1
  %v3996 = vor.u32 %v3991, %v3995
  %v3998 = vshll.u32 %v3958, 16
  %v4000 = vrot.slane %v3998, 1
  %v4001 = vsel %vm2964, %v3996, %v4000
  %v4003 = vshrl.u32 %v3799, 16
  %v4005 = vshll.u32 %v3799, 16
  %v4007 = vrot.slane %v4005, 1
  %v4008 = vor.u32 %v4003, %v4007
  %v4010 = vshll.u32 %v3959, 16
  %v4012 = vrot.slane %v4010, 1
  %v4013 = vsel %vm2964, %v4008, %v4012
  %v4015 = vshrl.u32 %v3800, 16
  %v4017 = vshll.u32 %v3800, 16
  %v4019 = vrot.slane %v4017, 1
  %v4020 = vor.u32 %v4015, %v4019
  %v4022 = vshll.u32 %v3960, 16
  %v4024 = vrot.slane %v4022, 1
  %v4025 = vsel %vm2964, %v4020, %v4024
  %v4027 = vshrl.u32 %v3801, 16
  %v4029 = vshll.u32 %v3801, 16
  %v4031 = vrot.slane %v4029, 1
  %v4032 = vor.u32 %v4027, %v4031
  %v4034 = vshll.u32 %v3961, 16
  %v4036 = vrot.slane %v4034, 1
  %v4037 = vsel %vm2964, %v4032, %v4036
  %v4039 = vshrl.u32 %v3802, 16
  %v4041 = vshll.u32 %v3802, 16
  %v4043 = vrot.slane %v4041, 1
  %v4044 = vor.u32 %v4039, %v4043
  %v4046 = vshll.u32 %v3962, 16
  %v4048 = vrot.slane %v4046, 1
  %v4049 = vsel %vm2964, %v4044, %v4048
  %v4051 = vshrl.u32 %v3803, 16
  %v4053 = vshll.u32 %v3803, 16
  %v4055 = vrot.slane %v4053, 1
  %v4056 = vor.u32 %v4051, %v4055
  %v4058 = vshll.u32 %v3963, 16
  %v4060 = vrot.slane %v4058, 1
  %v4061 = vsel %vm2964, %v4056, %v4060
  %v4063 = vshrl.u32 %v3804, 16
  %v4065 = vshll.u32 %v3804, 16
  %v4067 = vrot.slane %v4065, 1
  %v4068 = vor.u32 %v4063, %v4067
  %v4070 = vshll.u32 %v3964, 16
  %v4072 = vrot.slane %v4070, 1
  %v4073 = vsel %vm2964, %v4068, %v4072
  %v4075 = vshrl.u32 %v3805, 16
  %v4077 = vshll.u32 %v3805, 16
  %v4079 = vrot.slane %v4077, 1
  %v4080 = vor.u32 %v4075, %v4079
  %v4082 = vshll.u32 %v3965, 16
  %v4084 = vrot.slane %v4082, 1
  %v4085 = vsel %vm2964, %v4080, %v4084
  %v4087 = vshrl.u32 %v3806, 16
  %v4089 = vshll.u32 %v3806, 16
  %v4091 = vrot.slane %v4089, 1
  %v4092 = vor.u32 %v4087, %v4091
  %v4094 = vshll.u32 %v3966, 16
  %v4096 = vrot.slane %v4094, 1
  %v4097 = vsel %vm2964, %v4092, %v4096
  %v4099 = vshrl.u32 %v3807, 16
  %v4101 = vshll.u32 %v3807, 16
  %v4103 = vrot.slane %v4101, 1
  %v4104 = vor.u32 %v4099, %v4103
  %v4106 = vshll.u32 %v3967, 16
  %v4108 = vrot.slane %v4106, 1
  %v4109 = vsel %vm2964, %v4104, %v4108
  %v4111 = vshrl.u32 %v3808, 16
  %v4113 = vshll.u32 %v3808, 16
  %v4115 = vrot.slane %v4113, 1
  %v4116 = vor.u32 %v4111, %v4115
  %v4118 = vshll.u32 %v3968, 16
  %v4120 = vrot.slane %v4118, 1
  %v4121 = vsel %vm2964, %v4116, %v4120
  %v4123 = vshrl.u32 %v3809, 16
  %v4125 = vshll.u32 %v3809, 16
  %v4127 = vrot.slane %v4125, 1
  %v4128 = vor.u32 %v4123, %v4127
  %v4130 = vshll.u32 %v3969, 16
  %v4132 = vrot.slane %v4130, 1
  %v4133 = vsel %vm2964, %v4128, %v4132
  %v4135 = vshrl.u32 %v3810, 16
  %v4137 = vshll.u32 %v3810, 16
  %v4139 = vrot.slane %v4137, 1
  %v4140 = vor.u32 %v4135, %v4139
  %v4142 = vshll.u32 %v3970, 16
  %v4144 = vrot.slane %v4142, 1
  %v4145 = vsel %vm2964, %v4140, %v4144
  %v4147 = vshrl.u32 %v3811, 16
  %v4149 = vshll.u32 %v3811, 16
  %v4151 = vrot.slane %v4149, 1
  %v4152 = vor.u32 %v4147, %v4151
  %v4154 = vshll.u32 %v3971, 16
  %v4156 = vrot.slane %v4154, 1
  %v4157 = vsel %vm2964, %v4152, %v4156
  %v4159 = vshrl.u32 %v3812, 16
  %v4161 = vshll.u32 %v3812, 16
  %v4163 = vrot.slane %v4161, 1
  %v4164 = vor.u32 %v4159, %v4163
  %v4166 = vshll.u32 %v3972, 16
  %v4168 = vrot.slane %v4166, 1
  %v4169 = vsel %vm2964, %v4164, %v4168
  %v4171 = vshrl.u32 %v3813, 16
  %v4173 = vshll.u32 %v3813, 16
  %v4175 = vrot.slane %v4173, 1
  %v4176 = vor.u32 %v4171, %v4175
  %v4178 = vshll.u32 %v3973, 16
  %v4180 = vrot.slane %v4178, 1
  %v4181 = vsel %vm2964, %v4176, %v4180
  %v4183 = vshrl.u32 %v3814, 16
  %v4185 = vshll.u32 %v3814, 16
  %v4187 = vrot.slane %v4185, 1
  %v4188 = vor.u32 %v4183, %v4187
  %v4190 = vshll.u32 %v3974, 16
  %v4192 = vrot.slane %v4190, 1
  %v4193 = vsel %vm2964, %v4188, %v4192
  %v4195 = vshrl.u32 %v3815, 16
  %v4197 = vshll.u32 %v3815, 16
  %v4199 = vrot.slane %v4197, 1
  %v4200 = vor.u32 %v4195, %v4199
  %v4202 = vshll.u32 %v3975, 16
  %v4204 = vrot.slane %v4202, 1
  %v4205 = vsel %vm2964, %v4200, %v4204
  %v4207 = vshrl.u32 %v3816, 16
  %v4209 = vshll.u32 %v3816, 16
  %v4211 = vrot.slane %v4209, 1
  %v4212 = vor.u32 %v4207, %v4211
  %v4214 = vshll.u32 %v3976, 16
  %v4216 = vrot.slane %v4214, 1
  %v4217 = vsel %vm2964, %v4212, %v4216
  %v4219 = vshrl.u32 %v3817, 16
  %v4221 = vshll.u32 %v3817, 16
  %v4223 = vrot.slane %v4221, 1
  %v4224 = vor.u32 %v4219, %v4223
  %v4226 = vshll.u32 %v3977, 16
  %v4228 = vrot.slane %v4226, 1
  %v4229 = vsel %vm2964, %v4224, %v4228
  %v4231 = vshrl.u32 %v3818, 16
  %v4233 = vshll.u32 %v3818, 16
  %v4235 = vrot.slane %v4233, 1
  %v4236 = vor.u32 %v4231, %v4235
  %v4238 = vshll.u32 %v3978, 16
  %v4240 = vrot.slane %v4238, 1
  %v4241 = vsel %vm2964, %v4236, %v4240
  %v4243 = vshrl.u32 %v3819, 16
  %v4245 = vshll.u32 %v3819, 16
  %v4247 = vrot.slane %v4245, 1
  %v4248 = vor.u32 %v4243, %v4247
  %v4250 = vshll.u32 %v3979, 16
  %v4252 = vrot.slane %v4250, 1
  %v4253 = vsel %vm2964, %v4248, %v4252
  %v4255 = vshrl.u32 %v3820, 16
  %v4257 = vshll.u32 %v3820, 16
  %v4259 = vrot.slane %v4257, 1
  %v4260 = vor.u32 %v4255, %v4259
  %v4262 = vshll.u32 %v3980, 16
  %v4264 = vrot.slane %v4262, 1
  %v4265 = vsel %vm2964, %v4260, %v4264
  %v4267 = vshrl.u32 %v3821, 16
  %v4269 = vshll.u32 %v3821, 16
  %v4271 = vrot.slane %v4269, 1
  %v4272 = vor.u32 %v4267, %v4271
  %v4274 = vshll.u32 %v3981, 16
  %v4276 = vrot.slane %v4274, 1
  %v4277 = vsel %vm2964, %v4272, %v4276
  %v4279 = vshrl.u32 %v3822, 16
  %v4281 = vshll.u32 %v3822, 16
  %v4283 = vrot.slane %v4281, 1
  %v4284 = vor.u32 %v4279, %v4283
  %v4286 = vshll.u32 %v3982, 16
  %v4288 = vrot.slane %v4286, 1
  %v4289 = vsel %vm2964, %v4284, %v4288
  %v4291 = vshrl.u32 %v3823, 16
  %v4293 = vshll.u32 %v3823, 16
  %v4295 = vrot.slane %v4293, 1
  %v4296 = vor.u32 %v4291, %v4295
  %v4298 = vshll.u32 %v3983, 16
  %v4300 = vrot.slane %v4298, 1
  %v4301 = vsel %vm2964, %v4296, %v4300
  %v4303 = vshrl.u32 %v3824, 16
  %v4305 = vshll.u32 %v3824, 16
  %v4307 = vrot.slane %v4305, 1
  %v4308 = vor.u32 %v4303, %v4307
  %v4310 = vshll.u32 %v3984, 16
  %v4312 = vrot.slane %v4310, 1
  %v4313 = vsel %vm2964, %v4308, %v4312
  %v4315 = vshrl.u32 %v3825, 16
  %v4317 = vshll.u32 %v3825, 16
  %v4319 = vrot.slane %v4317, 1
  %v4320 = vor.u32 %v4315, %v4319
  %v4322 = vshll.u32 %v3985, 16
  %v4324 = vrot.slane %v4322, 1
  %v4325 = vsel %vm2964, %v4320, %v4324
  %v4327 = vshrl.u32 %v3826, 16
  %v4329 = vshll.u32 %v3826, 16
  %v4331 = vrot.slane %v4329, 1
  %v4332 = vor.u32 %v4327, %v4331
  %v4334 = vshll.u32 %v3986, 16
  %v4336 = vrot.slane %v4334, 1
  %v4337 = vsel %vm2964, %v4332, %v4336
  %v4339 = vshrl.u32 %v3827, 16
  %v4341 = vshll.u32 %v3827, 16
  %v4343 = vrot.slane %v4341, 1
  %v4344 = vor.u32 %v4339, %v4343
  %v4346 = vshll.u32 %v3987, 16
  %v4348 = vrot.slane %v4346, 1
  %v4349 = vsel %vm2964, %v4344, %v4348
  %v4351 = vshrl.u32 %v3828, 16
  %v4353 = vshll.u32 %v3828, 16
  %v4355 = vrot.slane %v4353, 1
  %v4356 = vor.u32 %v4351, %v4355
  %v4358 = vshll.u32 %v3988, 16
  %v4360 = vrot.slane %v4358, 1
  %v4361 = vsel %vm2964, %v4356, %v4360
  %v4363 = vshrl.u32 %v3829, 16
  %v4365 = vshll.u32 %v3829, 16
  %v4367 = vrot.slane %v4365, 1
  %v4368 = vor.u32 %v4363, %v4367
  %v4370 = vshll.u32 %v3989, 16
  %v4372 = vrot.slane %v4370, 1
  %v4373 = vsel %vm2964, %v4368, %v4372
  %4374 = vrot.lane.b32.xlu0 %v4001, 32
  %v4375 = vpop.permute.xlu0 %4374
  %4376 = vrot.lane.b32.xlu0 %v4013, 32
  %v4377 = vpop.permute.xlu0 %4376
  %4378 = vrot.lane.b32.xlu0 %v4025, 32
  %v4379 = vpop.permute.xlu0 %4378
  %4380 = vrot.lane.b32.xlu0 %v4037, 32
  %v4381 = vpop.permute.xlu0 %4380
  %4382 = vrot.lane.b32.xlu0 %v4049, 32
  %v4383 = vpop.permute.xlu0 %4382
  %4384 = vrot.lane.b32.xlu0 %v4061, 32
  %v4385 = vpop.permute.xlu0 %4384
  %4386 = vrot.lane.b32.xlu0 %v4073, 32
  %v4387 = vpop.permute.xlu0 %4386
  %4388 = vrot.lane.b32.xlu0 %v4085, 32
  %v4389 = vpop.permute.xlu0 %4388
  %4390 = vrot.lane.b32.xlu0 %v4097, 32
  %v4391 = vpop.permute.xlu0 %4390
  %4392 = vrot.lane.b32.xlu0 %v4109, 32
  %v4393 = vpop.permute.xlu0 %4392
  %4394 = vrot.lane.b32.xlu0 %v4121, 32
  %v4395 = vpop.permute.xlu0 %4394
  %4396 = vrot.lane.b32.xlu0 %v4133, 32
  %v4397 = vpop.permute.xlu0 %4396
  %4398 = vrot.lane.b32.xlu0 %v4145, 32
  %v4399 = vpop.permute.xlu0 %4398
  %4400 = vrot.lane.b32.xlu0 %v4157, 32
  %v4401 = vpop.permute.xlu0 %4400
  %4402 = vrot.lane.b32.xlu0 %v4169, 32
  %v4403 = vpop.permute.xlu0 %4402
  %4404 = vrot.lane.b32.xlu0 %v4181, 32
  %v4405 = vpop.permute.xlu0 %4404
  %4406 = vrot.lane.b32.xlu0 %v4193, 32
  %v4407 = vpop.permute.xlu0 %4406
  %4408 = vrot.lane.b32.xlu0 %v4205, 32
  %v4409 = vpop.permute.xlu0 %4408
  %4410 = vrot.lane.b32.xlu0 %v4217, 32
  %v4411 = vpop.permute.xlu0 %4410
  %4412 = vrot.lane.b32.xlu0 %v4229, 32
  %v4413 = vpop.permute.xlu0 %4412
  %4414 = vrot.lane.b32.xlu0 %v4241, 32
  %v4415 = vpop.permute.xlu0 %4414
  %4416 = vrot.lane.b32.xlu0 %v4253, 32
  %v4417 = vpop.permute.xlu0 %4416
  %4418 = vrot.lane.b32.xlu0 %v4265, 32
  %v4419 = vpop.permute.xlu0 %4418
  %4420 = vrot.lane.b32.xlu0 %v4277, 32
  %v4421 = vpop.permute.xlu0 %4420
  %4422 = vrot.lane.b32.xlu0 %v4289, 32
  %v4423 = vpop.permute.xlu0 %4422
  %4424 = vrot.lane.b32.xlu0 %v4301, 32
  %v4425 = vpop.permute.xlu0 %4424
  %4426 = vrot.lane.b32.xlu0 %v4313, 32
  %v4427 = vpop.permute.xlu0 %4426
  %4428 = vrot.lane.b32.xlu0 %v4325, 32
  %v4429 = vpop.permute.xlu0 %4428
  %4430 = vrot.lane.b32.xlu0 %v4337, 32
  %v4431 = vpop.permute.xlu0 %4430
  %4432 = vrot.lane.b32.xlu0 %v4349, 32
  %v4433 = vpop.permute.xlu0 %4432
  %4434 = vrot.lane.b32.xlu0 %v4361, 32
  %v4435 = vpop.permute.xlu0 %4434
  %4436 = vrot.lane.b32.xlu0 %v4373, 32
  %v4437 = vpop.permute.xlu0 %4436
  %v4470 = vunpack.c.l.b16 %v2547
  %v4471 = vunpack.c.l.b16 %v2548
  %v4472 = vunpack.c.l.b16 %v2549
  %v4473 = vunpack.c.l.b16 %v2550
  %v4474 = vunpack.c.l.b16 %v2551
  %v4475 = vunpack.c.l.b16 %v2552
  %v4476 = vunpack.c.l.b16 %v2553
  %v4477 = vunpack.c.l.b16 %v2554
  %v4478 = vunpack.c.l.b16 %v2555
  %v4479 = vunpack.c.l.b16 %v2556
  %v4480 = vunpack.c.l.b16 %v2557
  %v4481 = vunpack.c.l.b16 %v2558
  %v4482 = vunpack.c.l.b16 %v2559
  %v4483 = vunpack.c.l.b16 %v2560
  %v4484 = vunpack.c.l.b16 %v2561
  %v4485 = vunpack.c.l.b16 %v2562
  %v4486 = vunpack.c.l.b16 %v2563
  %v4487 = vunpack.c.l.b16 %v2564
  %v4488 = vunpack.c.l.b16 %v2565
  %v4489 = vunpack.c.l.b16 %v2566
  %v4490 = vunpack.c.l.b16 %v2567
  %v4491 = vunpack.c.l.b16 %v2568
  %v4492 = vunpack.c.l.b16 %v2569
  %v4493 = vunpack.c.l.b16 %v2570
  %v4494 = vunpack.c.l.b16 %v2571
  %v4495 = vunpack.c.l.b16 %v2572
  %v4496 = vunpack.c.l.b16 %v2573
  %v4497 = vunpack.c.l.b16 %v2574
  %v4498 = vunpack.c.l.b16 %v2575
  %v4499 = vunpack.c.l.b16 %v2576
  %v4500 = vunpack.c.l.b16 %v2577
  %v4501 = vunpack.c.l.b16 %v2578
  %v4502 = vpack.c.b16 %v3735, %v4470
  %v4503 = vpack.c.b16 %v3737, %v4471
  %v4504 = vpack.c.b16 %v3739, %v4472
  %v4505 = vpack.c.b16 %v3741, %v4473
  %v4506 = vpack.c.b16 %v3743, %v4474
  %v4507 = vpack.c.b16 %v3745, %v4475
  %v4508 = vpack.c.b16 %v3747, %v4476
  %v4509 = vpack.c.b16 %v3749, %v4477
  %v4510 = vpack.c.b16 %v3751, %v4478
  %v4511 = vpack.c.b16 %v3753, %v4479
  %v4512 = vpack.c.b16 %v3755, %v4480
  %v4513 = vpack.c.b16 %v3757, %v4481
  %v4514 = vpack.c.b16 %v3759, %v4482
  %v4515 = vpack.c.b16 %v3761, %v4483
  %v4516 = vpack.c.b16 %v3763, %v4484
  %v4517 = vpack.c.b16 %v3765, %v4485
  %v4518 = vpack.c.b16 %v3767, %v4486
  %v4519 = vpack.c.b16 %v3769, %v4487
  %v4520 = vpack.c.b16 %v3771, %v4488
  %v4521 = vpack.c.b16 %v3773, %v4489
  %v4522 = vpack.c.b16 %v3775, %v4490
  %v4523 = vpack.c.b16 %v3777, %v4491
  %v4524 = vpack.c.b16 %v3779, %v4492
  %v4525 = vpack.c.b16 %v3781, %v4493
  %v4526 = vpack.c.b16 %v3783, %v4494
  %v4527 = vpack.c.b16 %v3785, %v4495
  %v4528 = vpack.c.b16 %v3787, %v4496
  %v4529 = vpack.c.b16 %v3789, %v4497
  %v4530 = vpack.c.b16 %v3791, %v4498
  %v4531 = vpack.c.b16 %v3793, %v4499
  %v4532 = vpack.c.b16 %v3795, %v4500
  %v4533 = vpack.c.b16 %v3797, %v4501
  %v4534 = vrot.slane %v4502, 1
  %v4535 = vrot.slane %v3958, 1
  %v4536 = vsel %vm3509, %v4534, %v4535
  %v4537 = vrot.slane %v4503, 1
  %v4538 = vrot.slane %v3959, 1
  %v4539 = vsel %vm3509, %v4537, %v4538
  %v4540 = vrot.slane %v4504, 1
  %v4541 = vrot.slane %v3960, 1
  %v4542 = vsel %vm3509, %v4540, %v4541
  %v4543 = vrot.slane %v4505, 1
  %v4544 = vrot.slane %v3961, 1
  %v4545 = vsel %vm3509, %v4543, %v4544
  %v4546 = vrot.slane %v4506, 1
  %v4547 = vrot.slane %v3962, 1
  %v4548 = vsel %vm3509, %v4546, %v4547
  %v4549 = vrot.slane %v4507, 1
  %v4550 = vrot.slane %v3963, 1
  %v4551 = vsel %vm3509, %v4549, %v4550
  %v4552 = vrot.slane %v4508, 1
  %v4553 = vrot.slane %v3964, 1
  %v4554 = vsel %vm3509, %v4552, %v4553
  %v4555 = vrot.slane %v4509, 1
  %v4556 = vrot.slane %v3965, 1
  %v4557 = vsel %vm3509, %v4555, %v4556
  %v4558 = vrot.slane %v4510, 1
  %v4559 = vrot.slane %v3966, 1
  %v4560 = vsel %vm3509, %v4558, %v4559
  %v4561 = vrot.slane %v4511, 1
  %v4562 = vrot.slane %v3967, 1
  %v4563 = vsel %vm3509, %v4561, %v4562
  %v4564 = vrot.slane %v4512, 1
  %v4565 = vrot.slane %v3968, 1
  %v4566 = vsel %vm3509, %v4564, %v4565
  %v4567 = vrot.slane %v4513, 1
  %v4568 = vrot.slane %v3969, 1
  %v4569 = vsel %vm3509, %v4567, %v4568
  %v4570 = vrot.slane %v4514, 1
  %v4571 = vrot.slane %v3970, 1
  %v4572 = vsel %vm3509, %v4570, %v4571
  %v4573 = vrot.slane %v4515, 1
  %v4574 = vrot.slane %v3971, 1
  %v4575 = vsel %vm3509, %v4573, %v4574
  %v4576 = vrot.slane %v4516, 1
  %v4577 = vrot.slane %v3972, 1
  %v4578 = vsel %vm3509, %v4576, %v4577
  %v4579 = vrot.slane %v4517, 1
  %v4580 = vrot.slane %v3973, 1
  %v4581 = vsel %vm3509, %v4579, %v4580
  %v4582 = vrot.slane %v4518, 1
  %v4583 = vrot.slane %v3974, 1
  %v4584 = vsel %vm3509, %v4582, %v4583
  %v4585 = vrot.slane %v4519, 1
  %v4586 = vrot.slane %v3975, 1
  %v4587 = vsel %vm3509, %v4585, %v4586
  %v4588 = vrot.slane %v4520, 1
  %v4589 = vrot.slane %v3976, 1
  %v4590 = vsel %vm3509, %v4588, %v4589
  %v4591 = vrot.slane %v4521, 1
  %v4592 = vrot.slane %v3977, 1
  %v4593 = vsel %vm3509, %v4591, %v4592
  %v4594 = vrot.slane %v4522, 1
  %v4595 = vrot.slane %v3978, 1
  %v4596 = vsel %vm3509, %v4594, %v4595
  %v4597 = vrot.slane %v4523, 1
  %v4598 = vrot.slane %v3979, 1
  %v4599 = vsel %vm3509, %v4597, %v4598
  %v4600 = vrot.slane %v4524, 1
  %v4601 = vrot.slane %v3980, 1
  %v4602 = vsel %vm3509, %v4600, %v4601
  %v4603 = vrot.slane %v4525, 1
  %v4604 = vrot.slane %v3981, 1
  %v4605 = vsel %vm3509, %v4603, %v4604
  %v4606 = vrot.slane %v4526, 1
  %v4607 = vrot.slane %v3982, 1
  %v4608 = vsel %vm3509, %v4606, %v4607
  %v4609 = vrot.slane %v4527, 1
  %v4610 = vrot.slane %v3983, 1
  %v4611 = vsel %vm3509, %v4609, %v4610
  %v4612 = vrot.slane %v4528, 1
  %v4613 = vrot.slane %v3984, 1
  %v4614 = vsel %vm3509, %v4612, %v4613
  %v4615 = vrot.slane %v4529, 1
  %v4616 = vrot.slane %v3985, 1
  %v4617 = vsel %vm3509, %v4615, %v4616
  %v4618 = vrot.slane %v4530, 1
  %v4619 = vrot.slane %v3986, 1
  %v4620 = vsel %vm3509, %v4618, %v4619
  %v4621 = vrot.slane %v4531, 1
  %v4622 = vrot.slane %v3987, 1
  %v4623 = vsel %vm3509, %v4621, %v4622
  %v4624 = vrot.slane %v4532, 1
  %v4625 = vrot.slane %v3988, 1
  %v4626 = vsel %vm3509, %v4624, %v4625
  %v4627 = vrot.slane %v4533, 1
  %v4628 = vrot.slane %v3989, 1
  %v4629 = vsel %vm3509, %v4627, %v4628
  %4630 = vrot.lane.b32.xlu0 %v4536, 40
  %v4631 = vpop.permute.xlu0 %4630
  %4632 = vrot.lane.b32.xlu0 %v4539, 40
  %v4633 = vpop.permute.xlu0 %4632
  %4634 = vrot.lane.b32.xlu0 %v4542, 40
  %v4635 = vpop.permute.xlu0 %4634
  %4636 = vrot.lane.b32.xlu0 %v4545, 40
  %v4637 = vpop.permute.xlu0 %4636
  %4638 = vrot.lane.b32.xlu0 %v4548, 40
  %v4639 = vpop.permute.xlu0 %4638
  %4640 = vrot.lane.b32.xlu0 %v4551, 40
  %v4641 = vpop.permute.xlu0 %4640
  %4642 = vrot.lane.b32.xlu0 %v4554, 40
  %v4643 = vpop.permute.xlu0 %4642
  %4644 = vrot.lane.b32.xlu0 %v4557, 40
  %v4645 = vpop.permute.xlu0 %4644
  %4646 = vrot.lane.b32.xlu0 %v4560, 40
  %v4647 = vpop.permute.xlu0 %4646
  %4648 = vrot.lane.b32.xlu0 %v4563, 40
  %v4649 = vpop.permute.xlu0 %4648
  %4650 = vrot.lane.b32.xlu0 %v4566, 40
  %v4651 = vpop.permute.xlu0 %4650
  %4652 = vrot.lane.b32.xlu0 %v4569, 40
  %v4653 = vpop.permute.xlu0 %4652
  %4654 = vrot.lane.b32.xlu0 %v4572, 40
  %v4655 = vpop.permute.xlu0 %4654
  %4656 = vrot.lane.b32.xlu0 %v4575, 40
  %v4657 = vpop.permute.xlu0 %4656
  %4658 = vrot.lane.b32.xlu0 %v4578, 40
  %v4659 = vpop.permute.xlu0 %4658
  %4660 = vrot.lane.b32.xlu0 %v4581, 40
  %v4661 = vpop.permute.xlu0 %4660
  %4662 = vrot.lane.b32.xlu0 %v4584, 40
  %v4663 = vpop.permute.xlu0 %4662
  %4664 = vrot.lane.b32.xlu0 %v4587, 40
  %v4665 = vpop.permute.xlu0 %4664
  %4666 = vrot.lane.b32.xlu0 %v4590, 40
  %v4667 = vpop.permute.xlu0 %4666
  %4668 = vrot.lane.b32.xlu0 %v4593, 40
  %v4669 = vpop.permute.xlu0 %4668
  %4670 = vrot.lane.b32.xlu0 %v4596, 40
  %v4671 = vpop.permute.xlu0 %4670
  %4672 = vrot.lane.b32.xlu0 %v4599, 40
  %v4673 = vpop.permute.xlu0 %4672
  %4674 = vrot.lane.b32.xlu0 %v4602, 40
  %v4675 = vpop.permute.xlu0 %4674
  %4676 = vrot.lane.b32.xlu0 %v4605, 40
  %v4677 = vpop.permute.xlu0 %4676
  %4678 = vrot.lane.b32.xlu0 %v4608, 40
  %v4679 = vpop.permute.xlu0 %4678
  %4680 = vrot.lane.b32.xlu0 %v4611, 40
  %v4681 = vpop.permute.xlu0 %4680
  %4682 = vrot.lane.b32.xlu0 %v4614, 40
  %v4683 = vpop.permute.xlu0 %4682
  %4684 = vrot.lane.b32.xlu0 %v4617, 40
  %v4685 = vpop.permute.xlu0 %4684
  %4686 = vrot.lane.b32.xlu0 %v4620, 40
  %v4687 = vpop.permute.xlu0 %4686
  %4688 = vrot.lane.b32.xlu0 %v4623, 40
  %v4689 = vpop.permute.xlu0 %4688
  %4690 = vrot.lane.b32.xlu0 %v4626, 40
  %v4691 = vpop.permute.xlu0 %4690
  %4692 = vrot.lane.b32.xlu0 %v4629, 40
  %v4693 = vpop.permute.xlu0 %4692
  %v4758 = vunpack.c.l.b16 %v2580
  %v4759 = vunpack.c.l.b16 %v2581
  %v4760 = vunpack.c.l.b16 %v2582
  %v4761 = vunpack.c.l.b16 %v2583
  %v4762 = vunpack.c.l.b16 %v2584
  %v4763 = vunpack.c.l.b16 %v2585
  %v4764 = vunpack.c.l.b16 %v2586
  %v4765 = vunpack.c.l.b16 %v2587
  %v4766 = vunpack.c.l.b16 %v2588
  %v4767 = vunpack.c.l.b16 %v2589
  %v4768 = vunpack.c.l.b16 %v2590
  %v4769 = vunpack.c.l.b16 %v2591
  %v4770 = vunpack.c.l.b16 %v2592
  %v4771 = vunpack.c.l.b16 %v2593
  %v4772 = vunpack.c.l.b16 %v2594
  %v4773 = vunpack.c.l.b16 %v2595
  %v4774 = vunpack.c.l.b16 %v2596
  %v4775 = vunpack.c.l.b16 %v2597
  %v4776 = vunpack.c.l.b16 %v2598
  %v4777 = vunpack.c.l.b16 %v2599
  %v4778 = vunpack.c.l.b16 %v2600
  %v4779 = vunpack.c.l.b16 %v2601
  %v4780 = vunpack.c.l.b16 %v2602
  %v4781 = vunpack.c.l.b16 %v2603
  %v4782 = vunpack.c.l.b16 %v2604
  %v4783 = vunpack.c.l.b16 %v2605
  %v4784 = vunpack.c.l.b16 %v2606
  %v4785 = vunpack.c.l.b16 %v2607
  %v4786 = vunpack.c.l.b16 %v2608
  %v4787 = vunpack.c.l.b16 %v2609
  %v4788 = vunpack.c.l.b16 %v2610
  %v4789 = vunpack.c.l.b16 %v2611
  %v4790 = vunpack.c.l.b16 %v2612
  %v4791 = vunpack.c.l.b16 %v2613
  %v4792 = vunpack.c.l.b16 %v2614
  %v4793 = vunpack.c.l.b16 %v2615
  %v4794 = vunpack.c.l.b16 %v2616
  %v4795 = vunpack.c.l.b16 %v2617
  %v4796 = vunpack.c.l.b16 %v2618
  %v4797 = vunpack.c.l.b16 %v2619
  %v4798 = vunpack.c.l.b16 %v2620
  %v4799 = vunpack.c.l.b16 %v2621
  %v4800 = vunpack.c.l.b16 %v2622
  %v4801 = vunpack.c.l.b16 %v2623
  %v4802 = vunpack.c.l.b16 %v2624
  %v4803 = vunpack.c.l.b16 %v2625
  %v4804 = vunpack.c.l.b16 %v2626
  %v4805 = vunpack.c.l.b16 %v2627
  %v4806 = vunpack.c.l.b16 %v2628
  %v4807 = vunpack.c.l.b16 %v2629
  %v4808 = vunpack.c.l.b16 %v2630
  %v4809 = vunpack.c.l.b16 %v2631
  %v4810 = vunpack.c.l.b16 %v2632
  %v4811 = vunpack.c.l.b16 %v2633
  %v4812 = vunpack.c.l.b16 %v2634
  %v4813 = vunpack.c.l.b16 %v2635
  %v4814 = vunpack.c.l.b16 %v2636
  %v4815 = vunpack.c.l.b16 %v2637
  %v4816 = vunpack.c.l.b16 %v2638
  %v4817 = vunpack.c.l.b16 %v2639
  %v4818 = vunpack.c.l.b16 %v2640
  %v4819 = vunpack.c.l.b16 %v2641
  %v4820 = vunpack.c.l.b16 %v2642
  %v4821 = vunpack.c.l.b16 %v2643
  %v4822 = vpack.c.b16 %v4759, %v4758
  %v4823 = vpack.c.b16 %v4761, %v4760
  %v4824 = vpack.c.b16 %v4763, %v4762
  %v4825 = vpack.c.b16 %v4765, %v4764
  %v4826 = vpack.c.b16 %v4767, %v4766
  %v4827 = vpack.c.b16 %v4769, %v4768
  %v4828 = vpack.c.b16 %v4771, %v4770
  %v4829 = vpack.c.b16 %v4773, %v4772
  %v4830 = vpack.c.b16 %v4775, %v4774
  %v4831 = vpack.c.b16 %v4777, %v4776
  %v4832 = vpack.c.b16 %v4779, %v4778
  %v4833 = vpack.c.b16 %v4781, %v4780
  %v4834 = vpack.c.b16 %v4783, %v4782
  %v4835 = vpack.c.b16 %v4785, %v4784
  %v4836 = vpack.c.b16 %v4787, %v4786
  %v4837 = vpack.c.b16 %v4789, %v4788
  %v4838 = vpack.c.b16 %v4791, %v4790
  %v4839 = vpack.c.b16 %v4793, %v4792
  %v4840 = vpack.c.b16 %v4795, %v4794
  %v4841 = vpack.c.b16 %v4797, %v4796
  %v4842 = vpack.c.b16 %v4799, %v4798
  %v4843 = vpack.c.b16 %v4801, %v4800
  %v4844 = vpack.c.b16 %v4803, %v4802
  %v4845 = vpack.c.b16 %v4805, %v4804
  %v4846 = vpack.c.b16 %v4807, %v4806
  %v4847 = vpack.c.b16 %v4809, %v4808
  %v4848 = vpack.c.b16 %v4811, %v4810
  %v4849 = vpack.c.b16 %v4813, %v4812
  %v4850 = vpack.c.b16 %v4815, %v4814
  %v4851 = vpack.c.b16 %v4817, %v4816
  %v4852 = vpack.c.b16 %v4819, %v4818
  %v4853 = vpack.c.b16 %v4821, %v4820
  %4854 = vrot.lane.b32.xlu0 %v4822, 48
  %v4855 = vpop.permute.xlu0 %4854
  %4856 = vrot.lane.b32.xlu0 %v4823, 48
  %v4857 = vpop.permute.xlu0 %4856
  %4858 = vrot.lane.b32.xlu0 %v4824, 48
  %v4859 = vpop.permute.xlu0 %4858
  %4860 = vrot.lane.b32.xlu0 %v4825, 48
  %v4861 = vpop.permute.xlu0 %4860
  %4862 = vrot.lane.b32.xlu0 %v4826, 48
  %v4863 = vpop.permute.xlu0 %4862
  %4864 = vrot.lane.b32.xlu0 %v4827, 48
  %v4865 = vpop.permute.xlu0 %4864
  %4866 = vrot.lane.b32.xlu0 %v4828, 48
  %v4867 = vpop.permute.xlu0 %4866
  %4868 = vrot.lane.b32.xlu0 %v4829, 48
  %v4869 = vpop.permute.xlu0 %4868
  %4870 = vrot.lane.b32.xlu0 %v4830, 48
  %v4871 = vpop.permute.xlu0 %4870
  %4872 = vrot.lane.b32.xlu0 %v4831, 48
  %v4873 = vpop.permute.xlu0 %4872
  %4874 = vrot.lane.b32.xlu0 %v4832, 48
  %v4875 = vpop.permute.xlu0 %4874
  %4876 = vrot.lane.b32.xlu0 %v4833, 48
  %v4877 = vpop.permute.xlu0 %4876
  %4878 = vrot.lane.b32.xlu0 %v4834, 48
  %v4879 = vpop.permute.xlu0 %4878
  %4880 = vrot.lane.b32.xlu0 %v4835, 48
  %v4881 = vpop.permute.xlu0 %4880
  %4882 = vrot.lane.b32.xlu0 %v4836, 48
  %v4883 = vpop.permute.xlu0 %4882
  %4884 = vrot.lane.b32.xlu0 %v4837, 48
  %v4885 = vpop.permute.xlu0 %4884
  %4886 = vrot.lane.b32.xlu0 %v4838, 48
  %v4887 = vpop.permute.xlu0 %4886
  %4888 = vrot.lane.b32.xlu0 %v4839, 48
  %v4889 = vpop.permute.xlu0 %4888
  %4890 = vrot.lane.b32.xlu0 %v4840, 48
  %v4891 = vpop.permute.xlu0 %4890
  %4892 = vrot.lane.b32.xlu0 %v4841, 48
  %v4893 = vpop.permute.xlu0 %4892
  %4894 = vrot.lane.b32.xlu0 %v4842, 48
  %v4895 = vpop.permute.xlu0 %4894
  %4896 = vrot.lane.b32.xlu0 %v4843, 48
  %v4897 = vpop.permute.xlu0 %4896
  %4898 = vrot.lane.b32.xlu0 %v4844, 48
  %v4899 = vpop.permute.xlu0 %4898
  %4900 = vrot.lane.b32.xlu0 %v4845, 48
  %v4901 = vpop.permute.xlu0 %4900
  %4902 = vrot.lane.b32.xlu0 %v4846, 48
  %v4903 = vpop.permute.xlu0 %4902
  %4904 = vrot.lane.b32.xlu0 %v4847, 48
  %v4905 = vpop.permute.xlu0 %4904
  %4906 = vrot.lane.b32.xlu0 %v4848, 48
  %v4907 = vpop.permute.xlu0 %4906
  %4908 = vrot.lane.b32.xlu0 %v4849, 48
  %v4909 = vpop.permute.xlu0 %4908
  %4910 = vrot.lane.b32.xlu0 %v4850, 48
  %v4911 = vpop.permute.xlu0 %4910
  %4912 = vrot.lane.b32.xlu0 %v4851, 48
  %v4913 = vpop.permute.xlu0 %4912
  %4914 = vrot.lane.b32.xlu0 %v4852, 48
  %v4915 = vpop.permute.xlu0 %4914
  %4916 = vrot.lane.b32.xlu0 %v4853, 48
  %v4917 = vpop.permute.xlu0 %4916
  %v4950 = vunpack.c.l.b16 %v2644
  %v4951 = vunpack.c.l.b16 %v2645
  %v4952 = vunpack.c.l.b16 %v2646
  %v4953 = vunpack.c.l.b16 %v2647
  %v4954 = vunpack.c.l.b16 %v2648
  %v4955 = vunpack.c.l.b16 %v2649
  %v4956 = vunpack.c.l.b16 %v2650
  %v4957 = vunpack.c.l.b16 %v2651
  %v4958 = vunpack.c.l.b16 %v2652
  %v4959 = vunpack.c.l.b16 %v2653
  %v4960 = vunpack.c.l.b16 %v2654
  %v4961 = vunpack.c.l.b16 %v2655
  %v4962 = vunpack.c.l.b16 %v2656
  %v4963 = vunpack.c.l.b16 %v2657
  %v4964 = vunpack.c.l.b16 %v2658
  %v4965 = vunpack.c.l.b16 %v2659
  %v4966 = vunpack.c.l.b16 %v2660
  %v4967 = vunpack.c.l.b16 %v2661
  %v4968 = vunpack.c.l.b16 %v2662
  %v4969 = vunpack.c.l.b16 %v2663
  %v4970 = vunpack.c.l.b16 %v2664
  %v4971 = vunpack.c.l.b16 %v2665
  %v4972 = vunpack.c.l.b16 %v2666
  %v4973 = vunpack.c.l.b16 %v2667
  %v4974 = vunpack.c.l.b16 %v2668
  %v4975 = vunpack.c.l.b16 %v2669
  %v4976 = vunpack.c.l.b16 %v2670
  %v4977 = vunpack.c.l.b16 %v2671
  %v4978 = vunpack.c.l.b16 %v2672
  %v4979 = vunpack.c.l.b16 %v2673
  %v4980 = vunpack.c.l.b16 %v2674
  %v4981 = vunpack.c.l.b16 %v2675
  %v4982 = vpack.c.b16 %v4950, %v4950
  %v4983 = vpack.c.b16 %v4951, %v4951
  %v4984 = vpack.c.b16 %v4952, %v4952
  %v4985 = vpack.c.b16 %v4953, %v4953
  %v4986 = vpack.c.b16 %v4954, %v4954
  %v4987 = vpack.c.b16 %v4955, %v4955
  %v4988 = vpack.c.b16 %v4956, %v4956
  %v4989 = vpack.c.b16 %v4957, %v4957
  %v4990 = vpack.c.b16 %v4958, %v4958
  %v4991 = vpack.c.b16 %v4959, %v4959
  %v4992 = vpack.c.b16 %v4960, %v4960
  %v4993 = vpack.c.b16 %v4961, %v4961
  %v4994 = vpack.c.b16 %v4962, %v4962
  %v4995 = vpack.c.b16 %v4963, %v4963
  %v4996 = vpack.c.b16 %v4964, %v4964
  %v4997 = vpack.c.b16 %v4965, %v4965
  %v4998 = vpack.c.b16 %v4966, %v4966
  %v4999 = vpack.c.b16 %v4967, %v4967
  %v5000 = vpack.c.b16 %v4968, %v4968
  %v5001 = vpack.c.b16 %v4969, %v4969
  %v5002 = vpack.c.b16 %v4970, %v4970
  %v5003 = vpack.c.b16 %v4971, %v4971
  %v5004 = vpack.c.b16 %v4972, %v4972
  %v5005 = vpack.c.b16 %v4973, %v4973
  %v5006 = vpack.c.b16 %v4974, %v4974
  %v5007 = vpack.c.b16 %v4975, %v4975
  %v5008 = vpack.c.b16 %v4976, %v4976
  %v5009 = vpack.c.b16 %v4977, %v4977
  %v5010 = vpack.c.b16 %v4978, %v4978
  %v5011 = vpack.c.b16 %v4979, %v4979
  %v5012 = vpack.c.b16 %v4980, %v4980
  %v5013 = vpack.c.b16 %v4981, %v4981
  %v5015 = vshrl.u32 %v4822, 16
  %v5017 = vshll.u32 %v4822, 16
  %v5019 = vrot.slane %v5017, 1
  %v5020 = vor.u32 %v5015, %v5019
  %v5022 = vshll.u32 %v4982, 16
  %v5024 = vrot.slane %v5022, 1
  %v5025 = vsel %vm2964, %v5020, %v5024
  %v5027 = vshrl.u32 %v4823, 16
  %v5029 = vshll.u32 %v4823, 16
  %v5031 = vrot.slane %v5029, 1
  %v5032 = vor.u32 %v5027, %v5031
  %v5034 = vshll.u32 %v4983, 16
  %v5036 = vrot.slane %v5034, 1
  %v5037 = vsel %vm2964, %v5032, %v5036
  %v5039 = vshrl.u32 %v4824, 16
  %v5041 = vshll.u32 %v4824, 16
  %v5043 = vrot.slane %v5041, 1
  %v5044 = vor.u32 %v5039, %v5043
  %v5046 = vshll.u32 %v4984, 16
  %v5048 = vrot.slane %v5046, 1
  %v5049 = vsel %vm2964, %v5044, %v5048
  %v5051 = vshrl.u32 %v4825, 16
  %v5053 = vshll.u32 %v4825, 16
  %v5055 = vrot.slane %v5053, 1
  %v5056 = vor.u32 %v5051, %v5055
  %v5058 = vshll.u32 %v4985, 16
  %v5060 = vrot.slane %v5058, 1
  %v5061 = vsel %vm2964, %v5056, %v5060
  %v5063 = vshrl.u32 %v4826, 16
  %v5065 = vshll.u32 %v4826, 16
  %v5067 = vrot.slane %v5065, 1
  %v5068 = vor.u32 %v5063, %v5067
  %v5070 = vshll.u32 %v4986, 16
  %v5072 = vrot.slane %v5070, 1
  %v5073 = vsel %vm2964, %v5068, %v5072
  %v5075 = vshrl.u32 %v4827, 16
  %v5077 = vshll.u32 %v4827, 16
  %v5079 = vrot.slane %v5077, 1
  %v5080 = vor.u32 %v5075, %v5079
  %v5082 = vshll.u32 %v4987, 16
  %v5084 = vrot.slane %v5082, 1
  %v5085 = vsel %vm2964, %v5080, %v5084
  %v5087 = vshrl.u32 %v4828, 16
  %v5089 = vshll.u32 %v4828, 16
  %v5091 = vrot.slane %v5089, 1
  %v5092 = vor.u32 %v5087, %v5091
  %v5094 = vshll.u32 %v4988, 16
  %v5096 = vrot.slane %v5094, 1
  %v5097 = vsel %vm2964, %v5092, %v5096
  %v5099 = vshrl.u32 %v4829, 16
  %v5101 = vshll.u32 %v4829, 16
  %v5103 = vrot.slane %v5101, 1
  %v5104 = vor.u32 %v5099, %v5103
  %v5106 = vshll.u32 %v4989, 16
  %v5108 = vrot.slane %v5106, 1
  %v5109 = vsel %vm2964, %v5104, %v5108
  %v5111 = vshrl.u32 %v4830, 16
  %v5113 = vshll.u32 %v4830, 16
  %v5115 = vrot.slane %v5113, 1
  %v5116 = vor.u32 %v5111, %v5115
  %v5118 = vshll.u32 %v4990, 16
  %v5120 = vrot.slane %v5118, 1
  %v5121 = vsel %vm2964, %v5116, %v5120
  %v5123 = vshrl.u32 %v4831, 16
  %v5125 = vshll.u32 %v4831, 16
  %v5127 = vrot.slane %v5125, 1
  %v5128 = vor.u32 %v5123, %v5127
  %v5130 = vshll.u32 %v4991, 16
  %v5132 = vrot.slane %v5130, 1
  %v5133 = vsel %vm2964, %v5128, %v5132
  %v5135 = vshrl.u32 %v4832, 16
  %v5137 = vshll.u32 %v4832, 16
  %v5139 = vrot.slane %v5137, 1
  %v5140 = vor.u32 %v5135, %v5139
  %v5142 = vshll.u32 %v4992, 16
  %v5144 = vrot.slane %v5142, 1
  %v5145 = vsel %vm2964, %v5140, %v5144
  %v5147 = vshrl.u32 %v4833, 16
  %v5149 = vshll.u32 %v4833, 16
  %v5151 = vrot.slane %v5149, 1
  %v5152 = vor.u32 %v5147, %v5151
  %v5154 = vshll.u32 %v4993, 16
  %v5156 = vrot.slane %v5154, 1
  %v5157 = vsel %vm2964, %v5152, %v5156
  %v5159 = vshrl.u32 %v4834, 16
  %v5161 = vshll.u32 %v4834, 16
  %v5163 = vrot.slane %v5161, 1
  %v5164 = vor.u32 %v5159, %v5163
  %v5166 = vshll.u32 %v4994, 16
  %v5168 = vrot.slane %v5166, 1
  %v5169 = vsel %vm2964, %v5164, %v5168
  %v5171 = vshrl.u32 %v4835, 16
  %v5173 = vshll.u32 %v4835, 16
  %v5175 = vrot.slane %v5173, 1
  %v5176 = vor.u32 %v5171, %v5175
  %v5178 = vshll.u32 %v4995, 16
  %v5180 = vrot.slane %v5178, 1
  %v5181 = vsel %vm2964, %v5176, %v5180
  %v5183 = vshrl.u32 %v4836, 16
  %v5185 = vshll.u32 %v4836, 16
  %v5187 = vrot.slane %v5185, 1
  %v5188 = vor.u32 %v5183, %v5187
  %v5190 = vshll.u32 %v4996, 16
  %v5192 = vrot.slane %v5190, 1
  %v5193 = vsel %vm2964, %v5188, %v5192
  %v5195 = vshrl.u32 %v4837, 16
  %v5197 = vshll.u32 %v4837, 16
  %v5199 = vrot.slane %v5197, 1
  %v5200 = vor.u32 %v5195, %v5199
  %v5202 = vshll.u32 %v4997, 16
  %v5204 = vrot.slane %v5202, 1
  %v5205 = vsel %vm2964, %v5200, %v5204
  %v5207 = vshrl.u32 %v4838, 16
  %v5209 = vshll.u32 %v4838, 16
  %v5211 = vrot.slane %v5209, 1
  %v5212 = vor.u32 %v5207, %v5211
  %v5214 = vshll.u32 %v4998, 16
  %v5216 = vrot.slane %v5214, 1
  %v5217 = vsel %vm2964, %v5212, %v5216
  %v5219 = vshrl.u32 %v4839, 16
  %v5221 = vshll.u32 %v4839, 16
  %v5223 = vrot.slane %v5221, 1
  %v5224 = vor.u32 %v5219, %v5223
  %v5226 = vshll.u32 %v4999, 16
  %v5228 = vrot.slane %v5226, 1
  %v5229 = vsel %vm2964, %v5224, %v5228
  %v5231 = vshrl.u32 %v4840, 16
  %v5233 = vshll.u32 %v4840, 16
  %v5235 = vrot.slane %v5233, 1
  %v5236 = vor.u32 %v5231, %v5235
  %v5238 = vshll.u32 %v5000, 16
  %v5240 = vrot.slane %v5238, 1
  %v5241 = vsel %vm2964, %v5236, %v5240
  %v5243 = vshrl.u32 %v4841, 16
  %v5245 = vshll.u32 %v4841, 16
  %v5247 = vrot.slane %v5245, 1
  %v5248 = vor.u32 %v5243, %v5247
  %v5250 = vshll.u32 %v5001, 16
  %v5252 = vrot.slane %v5250, 1
  %v5253 = vsel %vm2964, %v5248, %v5252
  %v5255 = vshrl.u32 %v4842, 16
  %v5257 = vshll.u32 %v4842, 16
  %v5259 = vrot.slane %v5257, 1
  %v5260 = vor.u32 %v5255, %v5259
  %v5262 = vshll.u32 %v5002, 16
  %v5264 = vrot.slane %v5262, 1
  %v5265 = vsel %vm2964, %v5260, %v5264
  %v5267 = vshrl.u32 %v4843, 16
  %v5269 = vshll.u32 %v4843, 16
  %v5271 = vrot.slane %v5269, 1
  %v5272 = vor.u32 %v5267, %v5271
  %v5274 = vshll.u32 %v5003, 16
  %v5276 = vrot.slane %v5274, 1
  %v5277 = vsel %vm2964, %v5272, %v5276
  %v5279 = vshrl.u32 %v4844, 16
  %v5281 = vshll.u32 %v4844, 16
  %v5283 = vrot.slane %v5281, 1
  %v5284 = vor.u32 %v5279, %v5283
  %v5286 = vshll.u32 %v5004, 16
  %v5288 = vrot.slane %v5286, 1
  %v5289 = vsel %vm2964, %v5284, %v5288
  %v5291 = vshrl.u32 %v4845, 16
  %v5293 = vshll.u32 %v4845, 16
  %v5295 = vrot.slane %v5293, 1
  %v5296 = vor.u32 %v5291, %v5295
  %v5298 = vshll.u32 %v5005, 16
  %v5300 = vrot.slane %v5298, 1
  %v5301 = vsel %vm2964, %v5296, %v5300
  %v5303 = vshrl.u32 %v4846, 16
  %v5305 = vshll.u32 %v4846, 16
  %v5307 = vrot.slane %v5305, 1
  %v5308 = vor.u32 %v5303, %v5307
  %v5310 = vshll.u32 %v5006, 16
  %v5312 = vrot.slane %v5310, 1
  %v5313 = vsel %vm2964, %v5308, %v5312
  %v5315 = vshrl.u32 %v4847, 16
  %v5317 = vshll.u32 %v4847, 16
  %v5319 = vrot.slane %v5317, 1
  %v5320 = vor.u32 %v5315, %v5319
  %v5322 = vshll.u32 %v5007, 16
  %v5324 = vrot.slane %v5322, 1
  %v5325 = vsel %vm2964, %v5320, %v5324
  %v5327 = vshrl.u32 %v4848, 16
  %v5329 = vshll.u32 %v4848, 16
  %v5331 = vrot.slane %v5329, 1
  %v5332 = vor.u32 %v5327, %v5331
  %v5334 = vshll.u32 %v5008, 16
  %v5336 = vrot.slane %v5334, 1
  %v5337 = vsel %vm2964, %v5332, %v5336
  %v5339 = vshrl.u32 %v4849, 16
  %v5341 = vshll.u32 %v4849, 16
  %v5343 = vrot.slane %v5341, 1
  %v5344 = vor.u32 %v5339, %v5343
  %v5346 = vshll.u32 %v5009, 16
  %v5348 = vrot.slane %v5346, 1
  %v5349 = vsel %vm2964, %v5344, %v5348
  %v5351 = vshrl.u32 %v4850, 16
  %v5353 = vshll.u32 %v4850, 16
  %v5355 = vrot.slane %v5353, 1
  %v5356 = vor.u32 %v5351, %v5355
  %v5358 = vshll.u32 %v5010, 16
  %v5360 = vrot.slane %v5358, 1
  %v5361 = vsel %vm2964, %v5356, %v5360
  %v5363 = vshrl.u32 %v4851, 16
  %v5365 = vshll.u32 %v4851, 16
  %v5367 = vrot.slane %v5365, 1
  %v5368 = vor.u32 %v5363, %v5367
  %v5370 = vshll.u32 %v5011, 16
  %v5372 = vrot.slane %v5370, 1
  %v5373 = vsel %vm2964, %v5368, %v5372
  %v5375 = vshrl.u32 %v4852, 16
  %v5377 = vshll.u32 %v4852, 16
  %v5379 = vrot.slane %v5377, 1
  %v5380 = vor.u32 %v5375, %v5379
  %v5382 = vshll.u32 %v5012, 16
  %v5384 = vrot.slane %v5382, 1
  %v5385 = vsel %vm2964, %v5380, %v5384
  %v5387 = vshrl.u32 %v4853, 16
  %v5389 = vshll.u32 %v4853, 16
  %v5391 = vrot.slane %v5389, 1
  %v5392 = vor.u32 %v5387, %v5391
  %v5394 = vshll.u32 %v5013, 16
  %v5396 = vrot.slane %v5394, 1
  %v5397 = vsel %vm2964, %v5392, %v5396
  %5398 = vrot.lane.b32.xlu0 %v5025, 56
  %v5399 = vpop.permute.xlu0 %5398
  %5400 = vrot.lane.b32.xlu0 %v5037, 56
  %v5401 = vpop.permute.xlu0 %5400
  %5402 = vrot.lane.b32.xlu0 %v5049, 56
  %v5403 = vpop.permute.xlu0 %5402
  %5404 = vrot.lane.b32.xlu0 %v5061, 56
  %v5405 = vpop.permute.xlu0 %5404
  %5406 = vrot.lane.b32.xlu0 %v5073, 56
  %v5407 = vpop.permute.xlu0 %5406
  %5408 = vrot.lane.b32.xlu0 %v5085, 56
  %v5409 = vpop.permute.xlu0 %5408
  %5410 = vrot.lane.b32.xlu0 %v5097, 56
  %v5411 = vpop.permute.xlu0 %5410
  %5412 = vrot.lane.b32.xlu0 %v5109, 56
  %v5413 = vpop.permute.xlu0 %5412
  %5414 = vrot.lane.b32.xlu0 %v5121, 56
  %v5415 = vpop.permute.xlu0 %5414
  %5416 = vrot.lane.b32.xlu0 %v5133, 56
  %v5417 = vpop.permute.xlu0 %5416
  %5418 = vrot.lane.b32.xlu0 %v5145, 56
  %v5419 = vpop.permute.xlu0 %5418
  %5420 = vrot.lane.b32.xlu0 %v5157, 56
  %v5421 = vpop.permute.xlu0 %5420
  %5422 = vrot.lane.b32.xlu0 %v5169, 56
  %v5423 = vpop.permute.xlu0 %5422
  %5424 = vrot.lane.b32.xlu0 %v5181, 56
  %v5425 = vpop.permute.xlu0 %5424
  %5426 = vrot.lane.b32.xlu0 %v5193, 56
  %v5427 = vpop.permute.xlu0 %5426
  %5428 = vrot.lane.b32.xlu0 %v5205, 56
  %v5429 = vpop.permute.xlu0 %5428
  %5430 = vrot.lane.b32.xlu0 %v5217, 56
  %v5431 = vpop.permute.xlu0 %5430
  %5432 = vrot.lane.b32.xlu0 %v5229, 56
  %v5433 = vpop.permute.xlu0 %5432
  %5434 = vrot.lane.b32.xlu0 %v5241, 56
  %v5435 = vpop.permute.xlu0 %5434
  %5436 = vrot.lane.b32.xlu0 %v5253, 56
  %v5437 = vpop.permute.xlu0 %5436
  %5438 = vrot.lane.b32.xlu0 %v5265, 56
  %v5439 = vpop.permute.xlu0 %5438
  %5440 = vrot.lane.b32.xlu0 %v5277, 56
  %v5441 = vpop.permute.xlu0 %5440
  %5442 = vrot.lane.b32.xlu0 %v5289, 56
  %v5443 = vpop.permute.xlu0 %5442
  %5444 = vrot.lane.b32.xlu0 %v5301, 56
  %v5445 = vpop.permute.xlu0 %5444
  %5446 = vrot.lane.b32.xlu0 %v5313, 56
  %v5447 = vpop.permute.xlu0 %5446
  %5448 = vrot.lane.b32.xlu0 %v5325, 56
  %v5449 = vpop.permute.xlu0 %5448
  %5450 = vrot.lane.b32.xlu0 %v5337, 56
  %v5451 = vpop.permute.xlu0 %5450
  %5452 = vrot.lane.b32.xlu0 %v5349, 56
  %v5453 = vpop.permute.xlu0 %5452
  %5454 = vrot.lane.b32.xlu0 %v5361, 56
  %v5455 = vpop.permute.xlu0 %5454
  %5456 = vrot.lane.b32.xlu0 %v5373, 56
  %v5457 = vpop.permute.xlu0 %5456
  %5458 = vrot.lane.b32.xlu0 %v5385, 56
  %v5459 = vpop.permute.xlu0 %5458
  %5460 = vrot.lane.b32.xlu0 %v5397, 56
  %v5461 = vpop.permute.xlu0 %5460
  %v5494 = vunpack.c.l.b16 %v2676
  %v5495 = vunpack.c.l.b16 %v2677
  %v5496 = vunpack.c.l.b16 %v2678
  %v5497 = vunpack.c.l.b16 %v2679
  %v5498 = vunpack.c.l.b16 %v2680
  %v5499 = vunpack.c.l.b16 %v2681
  %v5500 = vunpack.c.l.b16 %v2682
  %v5501 = vunpack.c.l.b16 %v2683
  %v5502 = vunpack.c.l.b16 %v2684
  %v5503 = vunpack.c.l.b16 %v2685
  %v5504 = vunpack.c.l.b16 %v2686
  %v5505 = vunpack.c.l.b16 %v2687
  %v5506 = vunpack.c.l.b16 %v2688
  %v5507 = vunpack.c.l.b16 %v2689
  %v5508 = vunpack.c.l.b16 %v2690
  %v5509 = vunpack.c.l.b16 %v2691
  %v5510 = vunpack.c.l.b16 %v2692
  %v5511 = vunpack.c.l.b16 %v2693
  %v5512 = vunpack.c.l.b16 %v2694
  %v5513 = vunpack.c.l.b16 %v2695
  %v5514 = vunpack.c.l.b16 %v2696
  %v5515 = vunpack.c.l.b16 %v2697
  %v5516 = vunpack.c.l.b16 %v2698
  %v5517 = vunpack.c.l.b16 %v2699
  %v5518 = vunpack.c.l.b16 %v2700
  %v5519 = vunpack.c.l.b16 %v2701
  %v5520 = vunpack.c.l.b16 %v2702
  %v5521 = vunpack.c.l.b16 %v2703
  %v5522 = vunpack.c.l.b16 %v2704
  %v5523 = vunpack.c.l.b16 %v2705
  %v5524 = vunpack.c.l.b16 %v2706
  %v5525 = vunpack.c.l.b16 %v2707
  %v5526 = vpack.c.b16 %v4759, %v5494
  %v5527 = vpack.c.b16 %v4761, %v5495
  %v5528 = vpack.c.b16 %v4763, %v5496
  %v5529 = vpack.c.b16 %v4765, %v5497
  %v5530 = vpack.c.b16 %v4767, %v5498
  %v5531 = vpack.c.b16 %v4769, %v5499
  %v5532 = vpack.c.b16 %v4771, %v5500
  %v5533 = vpack.c.b16 %v4773, %v5501
  %v5534 = vpack.c.b16 %v4775, %v5502
  %v5535 = vpack.c.b16 %v4777, %v5503
  %v5536 = vpack.c.b16 %v4779, %v5504
  %v5537 = vpack.c.b16 %v4781, %v5505
  %v5538 = vpack.c.b16 %v4783, %v5506
  %v5539 = vpack.c.b16 %v4785, %v5507
  %v5540 = vpack.c.b16 %v4787, %v5508
  %v5541 = vpack.c.b16 %v4789, %v5509
  %v5542 = vpack.c.b16 %v4791, %v5510
  %v5543 = vpack.c.b16 %v4793, %v5511
  %v5544 = vpack.c.b16 %v4795, %v5512
  %v5545 = vpack.c.b16 %v4797, %v5513
  %v5546 = vpack.c.b16 %v4799, %v5514
  %v5547 = vpack.c.b16 %v4801, %v5515
  %v5548 = vpack.c.b16 %v4803, %v5516
  %v5549 = vpack.c.b16 %v4805, %v5517
  %v5550 = vpack.c.b16 %v4807, %v5518
  %v5551 = vpack.c.b16 %v4809, %v5519
  %v5552 = vpack.c.b16 %v4811, %v5520
  %v5553 = vpack.c.b16 %v4813, %v5521
  %v5554 = vpack.c.b16 %v4815, %v5522
  %v5555 = vpack.c.b16 %v4817, %v5523
  %v5556 = vpack.c.b16 %v4819, %v5524
  %v5557 = vpack.c.b16 %v4821, %v5525
  %v5558 = vrot.slane %v5526, 1
  %v5559 = vrot.slane %v4982, 1
  %v5560 = vsel %vm3509, %v5558, %v5559
  %v5561 = vrot.slane %v5527, 1
  %v5562 = vrot.slane %v4983, 1
  %v5563 = vsel %vm3509, %v5561, %v5562
  %v5564 = vrot.slane %v5528, 1
  %v5565 = vrot.slane %v4984, 1
  %v5566 = vsel %vm3509, %v5564, %v5565
  %v5567 = vrot.slane %v5529, 1
  %v5568 = vrot.slane %v4985, 1
  %v5569 = vsel %vm3509, %v5567, %v5568
  %v5570 = vrot.slane %v5530, 1
  %v5571 = vrot.slane %v4986, 1
  %v5572 = vsel %vm3509, %v5570, %v5571
  %v5573 = vrot.slane %v5531, 1
  %v5574 = vrot.slane %v4987, 1
  %v5575 = vsel %vm3509, %v5573, %v5574
  %v5576 = vrot.slane %v5532, 1
  %v5577 = vrot.slane %v4988, 1
  %v5578 = vsel %vm3509, %v5576, %v5577
  %v5579 = vrot.slane %v5533, 1
  %v5580 = vrot.slane %v4989, 1
  %v5581 = vsel %vm3509, %v5579, %v5580
  %v5582 = vrot.slane %v5534, 1
  %v5583 = vrot.slane %v4990, 1
  %v5584 = vsel %vm3509, %v5582, %v5583
  %v5585 = vrot.slane %v5535, 1
  %v5586 = vrot.slane %v4991, 1
  %v5587 = vsel %vm3509, %v5585, %v5586
  %v5588 = vrot.slane %v5536, 1
  %v5589 = vrot.slane %v4992, 1
  %v5590 = vsel %vm3509, %v5588, %v5589
  %v5591 = vrot.slane %v5537, 1
  %v5592 = vrot.slane %v4993, 1
  %v5593 = vsel %vm3509, %v5591, %v5592
  %v5594 = vrot.slane %v5538, 1
  %v5595 = vrot.slane %v4994, 1
  %v5596 = vsel %vm3509, %v5594, %v5595
  %v5597 = vrot.slane %v5539, 1
  %v5598 = vrot.slane %v4995, 1
  %v5599 = vsel %vm3509, %v5597, %v5598
  %v5600 = vrot.slane %v5540, 1
  %v5601 = vrot.slane %v4996, 1
  %v5602 = vsel %vm3509, %v5600, %v5601
  %v5603 = vrot.slane %v5541, 1
  %v5604 = vrot.slane %v4997, 1
  %v5605 = vsel %vm3509, %v5603, %v5604
  %v5606 = vrot.slane %v5542, 1
  %v5607 = vrot.slane %v4998, 1
  %v5608 = vsel %vm3509, %v5606, %v5607
  %v5609 = vrot.slane %v5543, 1
  %v5610 = vrot.slane %v4999, 1
  %v5611 = vsel %vm3509, %v5609, %v5610
  %v5612 = vrot.slane %v5544, 1
  %v5613 = vrot.slane %v5000, 1
  %v5614 = vsel %vm3509, %v5612, %v5613
  %v5615 = vrot.slane %v5545, 1
  %v5616 = vrot.slane %v5001, 1
  %v5617 = vsel %vm3509, %v5615, %v5616
  %v5618 = vrot.slane %v5546, 1
  %v5619 = vrot.slane %v5002, 1
  %v5620 = vsel %vm3509, %v5618, %v5619
  %v5621 = vrot.slane %v5547, 1
  %v5622 = vrot.slane %v5003, 1
  %v5623 = vsel %vm3509, %v5621, %v5622
  %v5624 = vrot.slane %v5548, 1
  %v5625 = vrot.slane %v5004, 1
  %v5626 = vsel %vm3509, %v5624, %v5625
  %v5627 = vrot.slane %v5549, 1
  %v5628 = vrot.slane %v5005, 1
  %v5629 = vsel %vm3509, %v5627, %v5628
  %v5630 = vrot.slane %v5550, 1
  %v5631 = vrot.slane %v5006, 1
  %v5632 = vsel %vm3509, %v5630, %v5631
  %v5633 = vrot.slane %v5551, 1
  %v5634 = vrot.slane %v5007, 1
  %v5635 = vsel %vm3509, %v5633, %v5634
  %v5636 = vrot.slane %v5552, 1
  %v5637 = vrot.slane %v5008, 1
  %v5638 = vsel %vm3509, %v5636, %v5637
  %v5639 = vrot.slane %v5553, 1
  %v5640 = vrot.slane %v5009, 1
  %v5641 = vsel %vm3509, %v5639, %v5640
  %v5642 = vrot.slane %v5554, 1
  %v5643 = vrot.slane %v5010, 1
  %v5644 = vsel %vm3509, %v5642, %v5643
  %v5645 = vrot.slane %v5555, 1
  %v5646 = vrot.slane %v5011, 1
  %v5647 = vsel %vm3509, %v5645, %v5646
  %v5648 = vrot.slane %v5556, 1
  %v5649 = vrot.slane %v5012, 1
  %v5650 = vsel %vm3509, %v5648, %v5649
  %v5651 = vrot.slane %v5557, 1
  %v5652 = vrot.slane %v5013, 1
  %v5653 = vsel %vm3509, %v5651, %v5652
  %5654 = vrot.lane.b32.xlu0 %v5560, 64
  %v5655 = vpop.permute.xlu0 %5654
  %5656 = vrot.lane.b32.xlu0 %v5563, 64
  %v5657 = vpop.permute.xlu0 %5656
  %5658 = vrot.lane.b32.xlu0 %v5566, 64
  %v5659 = vpop.permute.xlu0 %5658
  %5660 = vrot.lane.b32.xlu0 %v5569, 64
  %v5661 = vpop.permute.xlu0 %5660
  %5662 = vrot.lane.b32.xlu0 %v5572, 64
  %v5663 = vpop.permute.xlu0 %5662
  %5664 = vrot.lane.b32.xlu0 %v5575, 64
  %v5665 = vpop.permute.xlu0 %5664
  %5666 = vrot.lane.b32.xlu0 %v5578, 64
  %v5667 = vpop.permute.xlu0 %5666
  %5668 = vrot.lane.b32.xlu0 %v5581, 64
  %v5669 = vpop.permute.xlu0 %5668
  %5670 = vrot.lane.b32.xlu0 %v5584, 64
  %v5671 = vpop.permute.xlu0 %5670
  %5672 = vrot.lane.b32.xlu0 %v5587, 64
  %v5673 = vpop.permute.xlu0 %5672
  %5674 = vrot.lane.b32.xlu0 %v5590, 64
  %v5675 = vpop.permute.xlu0 %5674
  %5676 = vrot.lane.b32.xlu0 %v5593, 64
  %v5677 = vpop.permute.xlu0 %5676
  %5678 = vrot.lane.b32.xlu0 %v5596, 64
  %v5679 = vpop.permute.xlu0 %5678
  %5680 = vrot.lane.b32.xlu0 %v5599, 64
  %v5681 = vpop.permute.xlu0 %5680
  %5682 = vrot.lane.b32.xlu0 %v5602, 64
  %v5683 = vpop.permute.xlu0 %5682
  %5684 = vrot.lane.b32.xlu0 %v5605, 64
  %v5685 = vpop.permute.xlu0 %5684
  %5686 = vrot.lane.b32.xlu0 %v5608, 64
  %v5687 = vpop.permute.xlu0 %5686
  %5688 = vrot.lane.b32.xlu0 %v5611, 64
  %v5689 = vpop.permute.xlu0 %5688
  %5690 = vrot.lane.b32.xlu0 %v5614, 64
  %v5691 = vpop.permute.xlu0 %5690
  %5692 = vrot.lane.b32.xlu0 %v5617, 64
  %v5693 = vpop.permute.xlu0 %5692
  %5694 = vrot.lane.b32.xlu0 %v5620, 64
  %v5695 = vpop.permute.xlu0 %5694
  %5696 = vrot.lane.b32.xlu0 %v5623, 64
  %v5697 = vpop.permute.xlu0 %5696
  %5698 = vrot.lane.b32.xlu0 %v5626, 64
  %v5699 = vpop.permute.xlu0 %5698
  %5700 = vrot.lane.b32.xlu0 %v5629, 64
  %v5701 = vpop.permute.xlu0 %5700
  %5702 = vrot.lane.b32.xlu0 %v5632, 64
  %v5703 = vpop.permute.xlu0 %5702
  %5704 = vrot.lane.b32.xlu0 %v5635, 64
  %v5705 = vpop.permute.xlu0 %5704
  %5706 = vrot.lane.b32.xlu0 %v5638, 64
  %v5707 = vpop.permute.xlu0 %5706
  %5708 = vrot.lane.b32.xlu0 %v5641, 64
  %v5709 = vpop.permute.xlu0 %5708
  %5710 = vrot.lane.b32.xlu0 %v5644, 64
  %v5711 = vpop.permute.xlu0 %5710
  %5712 = vrot.lane.b32.xlu0 %v5647, 64
  %v5713 = vpop.permute.xlu0 %5712
  %5714 = vrot.lane.b32.xlu0 %v5650, 64
  %v5715 = vpop.permute.xlu0 %5714
  %5716 = vrot.lane.b32.xlu0 %v5653, 64
  %v5717 = vpop.permute.xlu0 %5716
  %vm5718 = vcmask 64512
  %v5720 = vsel %vm5718, %v2836, %v3350
  %v5722 = vsel %vm5718, %v2837, %v3352
  %v5724 = vsel %vm5718, %v2838, %v3354
  %v5726 = vsel %vm5718, %v2839, %v3356
  %v5728 = vsel %vm5718, %v2840, %v3358
  %v5730 = vsel %vm5718, %v2841, %v3360
  %v5732 = vsel %vm5718, %v2842, %v3362
  %v5734 = vsel %vm5718, %v2843, %v3364
  %v5736 = vsel %vm5718, %v2844, %v3366
  %v5738 = vsel %vm5718, %v2845, %v3368
  %v5740 = vsel %vm5718, %v2846, %v3370
  %v5742 = vsel %vm5718, %v2847, %v3372
  %v5744 = vsel %vm5718, %v2848, %v3374
  %v5746 = vsel %vm5718, %v2849, %v3376
  %v5748 = vsel %vm5718, %v2850, %v3378
  %v5750 = vsel %vm5718, %v2851, %v3380
  %v5752 = vsel %vm5718, %v2852, %v3382
  %v5754 = vsel %vm5718, %v2853, %v3384
  %v5756 = vsel %vm5718, %v2854, %v3386
  %v5758 = vsel %vm5718, %v2855, %v3388
  %v5760 = vsel %vm5718, %v2856, %v3390
  %v5762 = vsel %vm5718, %v2857, %v3392
  %v5764 = vsel %vm5718, %v2858, %v3394
  %v5766 = vsel %vm5718, %v2859, %v3396
  %v5768 = vsel %vm5718, %v2860, %v3398
  %v5770 = vsel %vm5718, %v2861, %v3400
  %v5772 = vsel %vm5718, %v2862, %v3402
  %v5774 = vsel %vm5718, %v2863, %v3404
  %v5776 = vsel %vm5718, %v2864, %v3406
  %v5778 = vsel %vm5718, %v2865, %v3408
  %v5780 = vsel %vm5718, %v2866, %v3410
  %v5782 = vsel %vm5718, %v2867, %v3412
  %vm5783 = vcmask 130048
  %v5785 = vsel %vm5783, %v5720, %v3607
  %v5787 = vsel %vm5783, %v5722, %v3609
  %v5789 = vsel %vm5783, %v5724, %v3611
  %v5791 = vsel %vm5783, %v5726, %v3613
  %v5793 = vsel %vm5783, %v5728, %v3615
  %v5795 = vsel %vm5783, %v5730, %v3617
  %v5797 = vsel %vm5783, %v5732, %v3619
  %v5799 = vsel %vm5783, %v5734, %v3621
  %v5801 = vsel %vm5783, %v5736, %v3623
  %v5803 = vsel %vm5783, %v5738, %v3625
  %v5805 = vsel %vm5783, %v5740, %v3627
  %v5807 = vsel %vm5783, %v5742, %v3629
  %v5809 = vsel %vm5783, %v5744, %v3631
  %v5811 = vsel %vm5783, %v5746, %v3633
  %v5813 = vsel %vm5783, %v5748, %v3635
  %v5815 = vsel %vm5783, %v5750, %v3637
  %v5817 = vsel %vm5783, %v5752, %v3639
  %v5819 = vsel %vm5783, %v5754, %v3641
  %v5821 = vsel %vm5783, %v5756, %v3643
  %v5823 = vsel %vm5783, %v5758, %v3645
  %v5825 = vsel %vm5783, %v5760, %v3647
  %v5827 = vsel %vm5783, %v5762, %v3649
  %v5829 = vsel %vm5783, %v5764, %v3651
  %v5831 = vsel %vm5783, %v5766, %v3653
  %v5833 = vsel %vm5783, %v5768, %v3655
  %v5835 = vsel %vm5783, %v5770, %v3657
  %v5837 = vsel %vm5783, %v5772, %v3659
  %v5839 = vsel %vm5783, %v5774, %v3661
  %v5841 = vsel %vm5783, %v5776, %v3663
  %v5843 = vsel %vm5783, %v5778, %v3665
  %v5845 = vsel %vm5783, %v5780, %v3667
  %v5847 = vsel %vm5783, %v5782, %v3669
  %vm5848 = vcmask 195584
  %v5850 = vsel %vm5848, %v5785, %v3831
  %v5852 = vsel %vm5848, %v5787, %v3833
  %v5854 = vsel %vm5848, %v5789, %v3835
  %v5856 = vsel %vm5848, %v5791, %v3837
  %v5858 = vsel %vm5848, %v5793, %v3839
  %v5860 = vsel %vm5848, %v5795, %v3841
  %v5862 = vsel %vm5848, %v5797, %v3843
  %v5864 = vsel %vm5848, %v5799, %v3845
  %v5866 = vsel %vm5848, %v5801, %v3847
  %v5868 = vsel %vm5848, %v5803, %v3849
  %v5870 = vsel %vm5848, %v5805, %v3851
  %v5872 = vsel %vm5848, %v5807, %v3853
  %v5874 = vsel %vm5848, %v5809, %v3855
  %v5876 = vsel %vm5848, %v5811, %v3857
  %v5878 = vsel %vm5848, %v5813, %v3859
  %v5880 = vsel %vm5848, %v5815, %v3861
  %v5882 = vsel %vm5848, %v5817, %v3863
  %v5884 = vsel %vm5848, %v5819, %v3865
  %v5886 = vsel %vm5848, %v5821, %v3867
  %v5888 = vsel %vm5848, %v5823, %v3869
  %v5890 = vsel %vm5848, %v5825, %v3871
  %v5892 = vsel %vm5848, %v5827, %v3873
  %v5894 = vsel %vm5848, %v5829, %v3875
  %v5896 = vsel %vm5848, %v5831, %v3877
  %v5898 = vsel %vm5848, %v5833, %v3879
  %v5900 = vsel %vm5848, %v5835, %v3881
  %v5902 = vsel %vm5848, %v5837, %v3883
  %v5904 = vsel %vm5848, %v5839, %v3885
  %v5906 = vsel %vm5848, %v5841, %v3887
  %v5908 = vsel %vm5848, %v5843, %v3889
  %v5910 = vsel %vm5848, %v5845, %v3891
  %v5912 = vsel %vm5848, %v5847, %v3893
  %vm5913 = vcmask 261120
  %v5915 = vsel %vm5913, %v5850, %v4375
  %v5917 = vsel %vm5913, %v5852, %v4377
  %v5919 = vsel %vm5913, %v5854, %v4379
  %v5921 = vsel %vm5913, %v5856, %v4381
  %v5923 = vsel %vm5913, %v5858, %v4383
  %v5925 = vsel %vm5913, %v5860, %v4385
  %v5927 = vsel %vm5913, %v5862, %v4387
  %v5929 = vsel %vm5913, %v5864, %v4389
  %v5931 = vsel %vm5913, %v5866, %v4391
  %v5933 = vsel %vm5913, %v5868, %v4393
  %v5935 = vsel %vm5913, %v5870, %v4395
  %v5937 = vsel %vm5913, %v5872, %v4397
  %v5939 = vsel %vm5913, %v5874, %v4399
  %v5941 = vsel %vm5913, %v5876, %v4401
  %v5943 = vsel %vm5913, %v5878, %v4403
  %v5945 = vsel %vm5913, %v5880, %v4405
  %v5947 = vsel %vm5913, %v5882, %v4407
  %v5949 = vsel %vm5913, %v5884, %v4409
  %v5951 = vsel %vm5913, %v5886, %v4411
  %v5953 = vsel %vm5913, %v5888, %v4413
  %v5955 = vsel %vm5913, %v5890, %v4415
  %v5957 = vsel %vm5913, %v5892, %v4417
  %v5959 = vsel %vm5913, %v5894, %v4419
  %v5961 = vsel %vm5913, %v5896, %v4421
  %v5963 = vsel %vm5913, %v5898, %v4423
  %v5965 = vsel %vm5913, %v5900, %v4425
  %v5967 = vsel %vm5913, %v5902, %v4427
  %v5969 = vsel %vm5913, %v5904, %v4429
  %v5971 = vsel %vm5913, %v5906, %v4431
  %v5973 = vsel %vm5913, %v5908, %v4433
  %v5975 = vsel %vm5913, %v5910, %v4435
  %v5977 = vsel %vm5913, %v5912, %v4437
  %vm5978 = vcmask 326656
  %v5980 = vsel %vm5978, %v5915, %v4631
  %v5982 = vsel %vm5978, %v5917, %v4633
  %v5984 = vsel %vm5978, %v5919, %v4635
  %v5986 = vsel %vm5978, %v5921, %v4637
  %v5988 = vsel %vm5978, %v5923, %v4639
  %v5990 = vsel %vm5978, %v5925, %v4641
  %v5992 = vsel %vm5978, %v5927, %v4643
  %v5994 = vsel %vm5978, %v5929, %v4645
  %v5996 = vsel %vm5978, %v5931, %v4647
  %v5998 = vsel %vm5978, %v5933, %v4649
  %v6000 = vsel %vm5978, %v5935, %v4651
  %v6002 = vsel %vm5978, %v5937, %v4653
  %v6004 = vsel %vm5978, %v5939, %v4655
  %v6006 = vsel %vm5978, %v5941, %v4657
  %v6008 = vsel %vm5978, %v5943, %v4659
  %v6010 = vsel %vm5978, %v5945, %v4661
  %v6012 = vsel %vm5978, %v5947, %v4663
  %v6014 = vsel %vm5978, %v5949, %v4665
  %v6016 = vsel %vm5978, %v5951, %v4667
  %v6018 = vsel %vm5978, %v5953, %v4669
  %v6020 = vsel %vm5978, %v5955, %v4671
  %v6022 = vsel %vm5978, %v5957, %v4673
  %v6024 = vsel %vm5978, %v5959, %v4675
  %v6026 = vsel %vm5978, %v5961, %v4677
  %v6028 = vsel %vm5978, %v5963, %v4679
  %v6030 = vsel %vm5978, %v5965, %v4681
  %v6032 = vsel %vm5978, %v5967, %v4683
  %v6034 = vsel %vm5978, %v5969, %v4685
  %v6036 = vsel %vm5978, %v5971, %v4687
  %v6038 = vsel %vm5978, %v5973, %v4689
  %v6040 = vsel %vm5978, %v5975, %v4691
  %v6042 = vsel %vm5978, %v5977, %v4693
  %vm6043 = vcmask 392192
  %v6045 = vsel %vm6043, %v5980, %v4855
  %v6047 = vsel %vm6043, %v5982, %v4857
  %v6049 = vsel %vm6043, %v5984, %v4859
  %v6051 = vsel %vm6043, %v5986, %v4861
  %v6053 = vsel %vm6043, %v5988, %v4863
  %v6055 = vsel %vm6043, %v5990, %v4865
  %v6057 = vsel %vm6043, %v5992, %v4867
  %v6059 = vsel %vm6043, %v5994, %v4869
  %v6061 = vsel %vm6043, %v5996, %v4871
  %v6063 = vsel %vm6043, %v5998, %v4873
  %v6065 = vsel %vm6043, %v6000, %v4875
  %v6067 = vsel %vm6043, %v6002, %v4877
  %v6069 = vsel %vm6043, %v6004, %v4879
  %v6071 = vsel %vm6043, %v6006, %v4881
  %v6073 = vsel %vm6043, %v6008, %v4883
  %v6075 = vsel %vm6043, %v6010, %v4885
  %v6077 = vsel %vm6043, %v6012, %v4887
  %v6079 = vsel %vm6043, %v6014, %v4889
  %v6081 = vsel %vm6043, %v6016, %v4891
  %v6083 = vsel %vm6043, %v6018, %v4893
  %v6085 = vsel %vm6043, %v6020, %v4895
  %v6087 = vsel %vm6043, %v6022, %v4897
  %v6089 = vsel %vm6043, %v6024, %v4899
  %v6091 = vsel %vm6043, %v6026, %v4901
  %v6093 = vsel %vm6043, %v6028, %v4903
  %v6095 = vsel %vm6043, %v6030, %v4905
  %v6097 = vsel %vm6043, %v6032, %v4907
  %v6099 = vsel %vm6043, %v6034, %v4909
  %v6101 = vsel %vm6043, %v6036, %v4911
  %v6103 = vsel %vm6043, %v6038, %v4913
  %v6105 = vsel %vm6043, %v6040, %v4915
  %v6107 = vsel %vm6043, %v6042, %v4917
  %vm6108 = vcmask 457728
  %v6110 = vsel %vm6108, %v6045, %v5399
  %v6112 = vsel %vm6108, %v6047, %v5401
  %v6114 = vsel %vm6108, %v6049, %v5403
  %v6116 = vsel %vm6108, %v6051, %v5405
  %v6118 = vsel %vm6108, %v6053, %v5407
  %v6120 = vsel %vm6108, %v6055, %v5409
  %v6122 = vsel %vm6108, %v6057, %v5411
  %v6124 = vsel %vm6108, %v6059, %v5413
  %v6126 = vsel %vm6108, %v6061, %v5415
  %v6128 = vsel %vm6108, %v6063, %v5417
  %v6130 = vsel %vm6108, %v6065, %v5419
  %v6132 = vsel %vm6108, %v6067, %v5421
  %v6134 = vsel %vm6108, %v6069, %v5423
  %v6136 = vsel %vm6108, %v6071, %v5425
  %v6138 = vsel %vm6108, %v6073, %v5427
  %v6140 = vsel %vm6108, %v6075, %v5429
  %v6142 = vsel %vm6108, %v6077, %v5431
  %v6144 = vsel %vm6108, %v6079, %v5433
  %v6146 = vsel %vm6108, %v6081, %v5435
  %v6148 = vsel %vm6108, %v6083, %v5437
  %v6150 = vsel %vm6108, %v6085, %v5439
  %v6152 = vsel %vm6108, %v6087, %v5441
  %v6154 = vsel %vm6108, %v6089, %v5443
  %v6156 = vsel %vm6108, %v6091, %v5445
  %v6158 = vsel %vm6108, %v6093, %v5447
  %v6160 = vsel %vm6108, %v6095, %v5449
  %v6162 = vsel %vm6108, %v6097, %v5451
  %v6164 = vsel %vm6108, %v6099, %v5453
  %v6166 = vsel %vm6108, %v6101, %v5455
  %v6168 = vsel %vm6108, %v6103, %v5457
  %v6170 = vsel %vm6108, %v6105, %v5459
  %v6172 = vsel %vm6108, %v6107, %v5461
  %vm6173 = vcmask 523264
  %v6175 = vsel %vm6173, %v6110, %v5655
  %v6177 = vsel %vm6173, %v6112, %v5657
  %v6179 = vsel %vm6173, %v6114, %v5659
  %v6181 = vsel %vm6173, %v6116, %v5661
  %v6183 = vsel %vm6173, %v6118, %v5663
  %v6185 = vsel %vm6173, %v6120, %v5665
  %v6187 = vsel %vm6173, %v6122, %v5667
  %v6189 = vsel %vm6173, %v6124, %v5669
  %v6191 = vsel %vm6173, %v6126, %v5671
  %v6193 = vsel %vm6173, %v6128, %v5673
  %v6195 = vsel %vm6173, %v6130, %v5675
  %v6197 = vsel %vm6173, %v6132, %v5677
  %v6199 = vsel %vm6173, %v6134, %v5679
  %v6201 = vsel %vm6173, %v6136, %v5681
  %v6203 = vsel %vm6173, %v6138, %v5683
  %v6205 = vsel %vm6173, %v6140, %v5685
  %v6207 = vsel %vm6173, %v6142, %v5687
  %v6209 = vsel %vm6173, %v6144, %v5689
  %v6211 = vsel %vm6173, %v6146, %v5691
  %v6213 = vsel %vm6173, %v6148, %v5693
  %v6215 = vsel %vm6173, %v6150, %v5695
  %v6217 = vsel %vm6173, %v6152, %v5697
  %v6219 = vsel %vm6173, %v6154, %v5699
  %v6221 = vsel %vm6173, %v6156, %v5701
  %v6223 = vsel %vm6173, %v6158, %v5703
  %v6225 = vsel %vm6173, %v6160, %v5705
  %v6227 = vsel %vm6173, %v6162, %v5707
  %v6229 = vsel %vm6173, %v6164, %v5709
  %v6231 = vsel %vm6173, %v6166, %v5711
  %v6233 = vsel %vm6173, %v6168, %v5713
  %v6235 = vsel %vm6173, %v6170, %v5715
  %v6237 = vsel %vm6173, %v6172, %v5717
  %v6238 = vld [vmem:[%s2] sm:$0xf]
  %v6239 = vld [vmem:[%s2 + $0x4] sm:$0xf]
  %v6240 = vld [vmem:[%s2 + $0x8] sm:$0xf]
  %v6241 = vld [vmem:[%s2 + $0xc] sm:$0xf]
  %v6242 = vld [vmem:[%s2 + $0x10] sm:$0xf]
  %v6243 = vld [vmem:[%s2 + $0x14] sm:$0xf]
  %v6244 = vld [vmem:[%s2 + $0x18] sm:$0xf]
  %v6245 = vld [vmem:[%s2 + $0x1c] sm:$0xf]
  %v6246 = vld [vmem:[%s2 + $0x20] sm:$0xf]
  %v6256 = vunpack.c.l.b16 %v6238
  %v6257 = vunpack.c.l.b16 %v6239
  %v6258 = vunpack.c.l.b16 %v6240
  %v6259 = vunpack.c.l.b16 %v6241
  %v6260 = vunpack.c.l.b16 %v6242
  %v6261 = vunpack.c.l.b16 %v6243
  %v6262 = vunpack.c.l.b16 %v6244
  %v6263 = vunpack.c.l.b16 %v6245
  %v6264 = vunpack.c.l.b16 %v6246
  %v6265 = vpack.c.b16 %v6257, %v6256
  %v6266 = vpack.c.b16 %v6259, %v6258
  %v6267 = vpack.c.b16 %v6261, %v6260
  %v6268 = vpack.c.b16 %v6263, %v6262
  %v6269 = vpack.c.b16 %v6264, %v6264
  %vm6274 = vcmask 588800
  %v6275 = vsel %vm6274, %v6175, 0
  %v6277 = vsel %vm6274, %v6177, 0
  %v6279 = vsel %vm6274, %v6179, 0
  %v6281 = vsel %vm6274, %v6181, 0
  %v6283 = vsel %vm6274, %v6183, 0
  %v6285 = vsel %vm6274, %v6185, 0
  %v6287 = vsel %vm6274, %v6187, 0
  %v6289 = vsel %vm6274, %v6189, 0
  %v6291 = vsel %vm6274, %v6191, 0
  %v6293 = vsel %vm6274, %v6193, 0
  %v6295 = vsel %vm6274, %v6195, 0
  %v6297 = vsel %vm6274, %v6197, 0
  %v6299 = vsel %vm6274, %v6199, 0
  %v6301 = vsel %vm6274, %v6201, 0
  %v6303 = vsel %vm6274, %v6203, 0
  %v6305 = vsel %vm6274, %v6205, 0
  %v6307 = vsel %vm6274, %v6207, 0
  %v6309 = vsel %vm6274, %v6209, 0
  %v6311 = vsel %vm6274, %v6211, 0
  %v6313 = vsel %vm6274, %v6213, 0
  %v6315 = vsel %vm6274, %v6215, 0
  %v6317 = vsel %vm6274, %v6217, 0
  %v6319 = vsel %vm6274, %v6219, 0
  %v6321 = vsel %vm6274, %v6221, 0
  %v6323 = vsel %vm6274, %v6223, 0
  %v6325 = vsel %vm6274, %v6225, 0
  %v6327 = vsel %vm6274, %v6227, 0
  %v6329 = vsel %vm6274, %v6229, 0
  %v6331 = vsel %vm6274, %v6231, 0
  %v6333 = vsel %vm6274, %v6233, 0
  %v6335 = vsel %vm6274, %v6235, 0
  %v6337 = vsel %vm6274, %v6237, 0
  %vm6339 = vcmask 1043456
  %v6341 = vsel %vm6339, %v6269, 0
  %6343 = vmatprep.subr.bf16.mxu0 0
  %6344 = vmatpush1.bf16.msra.mxu0 %v6265
  %6345 = vmatprep.subr.bf16.mxu0 0
  %6346 = vmatpush1.bf16.msra.mxu0 %v6266
  %6347 = vmatprep.subr.bf16.mxu0 0
  %6348 = vmatpush1.bf16.msra.mxu0 %v6267
  %6349 = vmatprep.subr.bf16.mxu0 0
  %6350 = vmatpush1.bf16.msra.mxu0 %v6268
  %6351 = vmatprep.subr.bf16.mxu0 0
  %6352 = vmatpush1.bf16.msra.mxu0 %v6341
  %6353 = vmatprep.subr.bf16.mxu0 0
  %6354 = vmatpush1.bf16.msra.mxu0 0
  %6355 = vmatprep.subr.bf16.mxu0 0
  %6356 = vmatpush1.bf16.msra.mxu0 0
  %6357 = vmatprep.subr.bf16.mxu0 0
  %6358 = vmatpush1.bf16.msra.mxu0 0
  %6359 = vmatprep.subr.bf16.mxu0 0
  %6360 = vmatpush1.bf16.msra.mxu0 0
  %6361 = vmatprep.subr.bf16.mxu0 0
  %6362 = vmatpush1.bf16.msra.mxu0 0
  %6363 = vmatprep.subr.bf16.mxu0 0
  %6364 = vmatpush1.bf16.msra.mxu0 0
  %6365 = vmatprep.subr.bf16.mxu0 0
  %6366 = vmatpush1.bf16.msra.mxu0 0
  %6367 = vmatprep.subr.bf16.mxu0 0
  %6368 = vmatpush1.bf16.msra.mxu0 0
  %6369 = vmatprep.subr.bf16.mxu0 0
  %6370 = vmatpush1.bf16.msra.mxu0 0
  %6371 = vmatprep.subr.bf16.mxu0 0
  %6372 = vmatpush1.bf16.msra.mxu0 0
  %6373 = vmatprep.subr.bf16.mxu0 0
  %6374 = vmatpush1.bf16.msra.mxu0 0
  %6375 = vmatprep.mubr.bf16.mxu0 0
  %6376 = vmatmul.mubr.bf16.gmra.mrb[0].mxu0 %v6275
  %v6377 = vpop.f32.mrb[0].mxu0
  %v6378 = vadd.f32 0.0, %v6377
  %v6379 = vpop.f32.mrb[0].mxu0
  %v6380 = vpop.f32.mrb[0].mxu0
  %v6381 = vadd.f32 0.0, %v6380
  %v6382 = vpop.f32.mrb[0].mxu0
  %6383 = vmatprep.mubr.bf16.mxu0 0
  %6384 = vmatmul.mubr.bf16.gmra.mrb[0].mxu0 %v6277
  %v6385 = vpop.f32.mrb[0].mxu0
  %v6386 = vadd.f32 0.0, %v6385
  %v6387 = vpop.f32.mrb[0].mxu0
  %v6388 = vpop.f32.mrb[0].mxu0
  %v6389 = vadd.f32 0.0, %v6388
  %v6390 = vpop.f32.mrb[0].mxu0
  %6391 = vmatprep.mubr.bf16.mxu0 0
  %6392 = vmatmul.mubr.bf16.gmra.mrb[0].mxu0 %v6279
  %v6393 = vpop.f32.mrb[0].mxu0
  %v6394 = vadd.f32 0.0, %v6393
  %v6395 = vpop.f32.mrb[0].mxu0
  %v6396 = vpop.f32.mrb[0].mxu0
  %v6397 = vadd.f32 0.0, %v6396
  %v6398 = vpop.f32.mrb[0].mxu0
  %6399 = vmatprep.mubr.bf16.mxu0 0
  %6400 = vmatmul.mubr.bf16.gmra.mrb[0].mxu0 %v6281
  %v6401 = vpop.f32.mrb[0].mxu0
  %v6402 = vadd.f32 0.0, %v6401
  %v6403 = vpop.f32.mrb[0].mxu0
  %v6404 = vpop.f32.mrb[0].mxu0
  %v6405 = vadd.f32 0.0, %v6404
  %v6406 = vpop.f32.mrb[0].mxu0
  %6407 = vmatprep.mubr.bf16.mxu0 0
  %6408 = vmatmul.mubr.bf16.gmra.mrb[0].mxu0 %v6283
  %v6409 = vpop.f32.mrb[0].mxu0
  %v6410 = vadd.f32 0.0, %v6409
  %v6411 = vpop.f32.mrb[0].mxu0
  %v6412 = vpop.f32.mrb[0].mxu0
  %v6413 = vadd.f32 0.0, %v6412
  %v6414 = vpop.f32.mrb[0].mxu0
  %6415 = vmatprep.mubr.bf16.mxu0 0
  %6416 = vmatmul.mubr.bf16.gmra.mrb[0].mxu0 %v6285
  %v6417 = vpop.f32.mrb[0].mxu0
  %v6418 = vadd.f32 0.0, %v6417
  %v6419 = vpop.f32.mrb[0].mxu0
  %v6420 = vpop.f32.mrb[0].mxu0
  %v6421 = vadd.f32 0.0, %v6420
  %v6422 = vpop.f32.mrb[0].mxu0
  %6423 = vmatprep.mubr.bf16.mxu0 0
  %6424 = vmatmul.mubr.bf16.gmra.mrb[0].mxu0 %v6287
  %v6425 = vpop.f32.mrb[0].mxu0
  %v6426 = vadd.f32 0.0, %v6425
  %v6427 = vpop.f32.mrb[0].mxu0
  %v6428 = vpop.f32.mrb[0].mxu0
  %v6429 = vadd.f32 0.0, %v6428
  %v6430 = vpop.f32.mrb[0].mxu0
  %6431 = vmatprep.mubr.bf16.mxu0 0
  %6432 = vmatmul.mubr.bf16.gmra.mrb[0].mxu0 %v6289
  %v6433 = vpop.f32.mrb[0].mxu0
  %v6434 = vadd.f32 0.0, %v6433
  %v6435 = vpop.f32.mrb[0].mxu0
  %v6436 = vpop.f32.mrb[0].mxu0
  %v6437 = vadd.f32 0.0, %v6436
  %v6438 = vpop.f32.mrb[0].mxu0
  %6439 = vmatprep.mubr.bf16.mxu0 0
  %6440 = vmatmul.mubr.bf16.gmra.mrb[0].mxu0 %v6291
  %v6441 = vpop.f32.mrb[0].mxu0
  %v6442 = vadd.f32 0.0, %v6441
  %v6443 = vpop.f32.mrb[0].mxu0
  %v6444 = vpop.f32.mrb[0].mxu0
  %v6445 = vadd.f32 0.0, %v6444
  %v6446 = vpop.f32.mrb[0].mxu0
  %6447 = vmatprep.mubr.bf16.mxu0 0
  %6448 = vmatmul.mubr.bf16.gmra.mrb[0].mxu0 %v6293
  %v6449 = vpop.f32.mrb[0].mxu0
  %v6450 = vadd.f32 0.0, %v6449
  %v6451 = vpop.f32.mrb[0].mxu0
  %v6452 = vpop.f32.mrb[0].mxu0
  %v6453 = vadd.f32 0.0, %v6452
  %v6454 = vpop.f32.mrb[0].mxu0
  %6455 = vmatprep.mubr.bf16.mxu0 0
  %6456 = vmatmul.mubr.bf16.gmra.mrb[0].mxu0 %v6295
  %v6457 = vpop.f32.mrb[0].mxu0
  %v6458 = vadd.f32 0.0, %v6457
  %v6459 = vpop.f32.mrb[0].mxu0
  %v6460 = vpop.f32.mrb[0].mxu0
  %v6461 = vadd.f32 0.0, %v6460
  %v6462 = vpop.f32.mrb[0].mxu0
  %6463 = vmatprep.mubr.bf16.mxu0 0
  %6464 = vmatmul.mubr.bf16.gmra.mrb[0].mxu0 %v6297
  %v6465 = vpop.f32.mrb[0].mxu0
  %v6466 = vadd.f32 0.0, %v6465
  %v6467 = vpop.f32.mrb[0].mxu0
  %v6468 = vpop.f32.mrb[0].mxu0
  %v6469 = vadd.f32 0.0, %v6468
  %v6470 = vpop.f32.mrb[0].mxu0
  %6471 = vmatprep.mubr.bf16.mxu0 0
  %6472 = vmatmul.mubr.bf16.gmra.mrb[0].mxu0 %v6299
  %v6473 = vpop.f32.mrb[0].mxu0
  %v6474 = vadd.f32 0.0, %v6473
  %v6475 = vpop.f32.mrb[0].mxu0
  %v6476 = vpop.f32.mrb[0].mxu0
  %v6477 = vadd.f32 0.0, %v6476
  %v6478 = vpop.f32.mrb[0].mxu0
  %6479 = vmatprep.mubr.bf16.mxu0 0
  %6480 = vmatmul.mubr.bf16.gmra.mrb[0].mxu0 %v6301
  %v6481 = vpop.f32.mrb[0].mxu0
  %v6482 = vadd.f32 0.0, %v6481
  %v6483 = vpop.f32.mrb[0].mxu0
  %v6484 = vpop.f32.mrb[0].mxu0
  %v6485 = vadd.f32 0.0, %v6484
  %v6486 = vpop.f32.mrb[0].mxu0
  %6487 = vmatprep.mubr.bf16.mxu0 0
  %6488 = vmatmul.mubr.bf16.gmra.mrb[0].mxu0 %v6303
  %v6489 = vpop.f32.mrb[0].mxu0
  %v6490 = vadd.f32 0.0, %v6489
  %v6491 = vpop.f32.mrb[0].mxu0
  %v6492 = vpop.f32.mrb[0].mxu0
  %v6493 = vadd.f32 0.0, %v6492
  %v6494 = vpop.f32.mrb[0].mxu0
  %6495 = vmatprep.mubr.bf16.mxu0 0
  %6496 = vmatmul.mubr.bf16.gmra.mrb[0].mxu0 %v6305
  %v6497 = vpop.f32.mrb[0].mxu0
  %v6498 = vadd.f32 0.0, %v6497
  %v6499 = vpop.f32.mrb[0].mxu0
  %v6500 = vpop.f32.mrb[0].mxu0
  %v6501 = vadd.f32 0.0, %v6500
  %v6502 = vpop.f32.mrb[0].mxu0
  %6503 = vmatprep.mubr.bf16.mxu0 0
  %6504 = vmatmul.mubr.bf16.gmra.mrb[0].mxu0 %v6307
  %v6505 = vpop.f32.mrb[0].mxu0
  %v6506 = vadd.f32 0.0, %v6505
  %v6507 = vpop.f32.mrb[0].mxu0
  %v6508 = vpop.f32.mrb[0].mxu0
  %v6509 = vadd.f32 0.0, %v6508
  %v6510 = vpop.f32.mrb[0].mxu0
  %6511 = vmatprep.mubr.bf16.mxu0 0
  %6512 = vmatmul.mubr.bf16.gmra.mrb[0].mxu0 %v6309
  %v6513 = vpop.f32.mrb[0].mxu0
  %v6514 = vadd.f32 0.0, %v6513
  %v6515 = vpop.f32.mrb[0].mxu0
  %v6516 = vpop.f32.mrb[0].mxu0
  %v6517 = vadd.f32 0.0, %v6516
  %v6518 = vpop.f32.mrb[0].mxu0
  %6519 = vmatprep.mubr.bf16.mxu0 0
  %6520 = vmatmul.mubr.bf16.gmra.mrb[0].mxu0 %v6311
  %v6521 = vpop.f32.mrb[0].mxu0
  %v6522 = vadd.f32 0.0, %v6521
  %v6523 = vpop.f32.mrb[0].mxu0
  %v6524 = vpop.f32.mrb[0].mxu0
  %v6525 = vadd.f32 0.0, %v6524
  %v6526 = vpop.f32.mrb[0].mxu0
  %6527 = vmatprep.mubr.bf16.mxu0 0
  %6528 = vmatmul.mubr.bf16.gmra.mrb[0].mxu0 %v6313
  %v6529 = vpop.f32.mrb[0].mxu0
  %v6530 = vadd.f32 0.0, %v6529
  %v6531 = vpop.f32.mrb[0].mxu0
  %v6532 = vpop.f32.mrb[0].mxu0
  %v6533 = vadd.f32 0.0, %v6532
  %v6534 = vpop.f32.mrb[0].mxu0
  %6535 = vmatprep.mubr.bf16.mxu0 0
  %6536 = vmatmul.mubr.bf16.gmra.mrb[0].mxu0 %v6315
  %v6537 = vpop.f32.mrb[0].mxu0
  %v6538 = vadd.f32 0.0, %v6537
  %v6539 = vpop.f32.mrb[0].mxu0
  %v6540 = vpop.f32.mrb[0].mxu0
  %v6541 = vadd.f32 0.0, %v6540
  %v6542 = vpop.f32.mrb[0].mxu0
  %6543 = vmatprep.mubr.bf16.mxu0 0
  %6544 = vmatmul.mubr.bf16.gmra.mrb[0].mxu0 %v6317
  %v6545 = vpop.f32.mrb[0].mxu0
  %v6546 = vadd.f32 0.0, %v6545
  %v6547 = vpop.f32.mrb[0].mxu0
  %v6548 = vpop.f32.mrb[0].mxu0
  %v6549 = vadd.f32 0.0, %v6548
  %v6550 = vpop.f32.mrb[0].mxu0
  %6551 = vmatprep.mubr.bf16.mxu0 0
  %6552 = vmatmul.mubr.bf16.gmra.mrb[0].mxu0 %v6319
  %v6553 = vpop.f32.mrb[0].mxu0
  %v6554 = vadd.f32 0.0, %v6553
  %v6555 = vpop.f32.mrb[0].mxu0
  %v6556 = vpop.f32.mrb[0].mxu0
  %v6557 = vadd.f32 0.0, %v6556
  %v6558 = vpop.f32.mrb[0].mxu0
  %6559 = vmatprep.mubr.bf16.mxu0 0
  %6560 = vmatmul.mubr.bf16.gmra.mrb[0].mxu0 %v6321
  %v6561 = vpop.f32.mrb[0].mxu0
  %v6562 = vadd.f32 0.0, %v6561
  %v6563 = vpop.f32.mrb[0].mxu0
  %v6564 = vpop.f32.mrb[0].mxu0
  %v6565 = vadd.f32 0.0, %v6564
  %v6566 = vpop.f32.mrb[0].mxu0
  %6567 = vmatprep.mubr.bf16.mxu0 0
  %6568 = vmatmul.mubr.bf16.gmra.mrb[0].mxu0 %v6323
  %v6569 = vpop.f32.mrb[0].mxu0
  %v6570 = vadd.f32 0.0, %v6569
  %v6571 = vpop.f32.mrb[0].mxu0
  %v6572 = vpop.f32.mrb[0].mxu0
  %v6573 = vadd.f32 0.0, %v6572
  %v6574 = vpop.f32.mrb[0].mxu0
  %6575 = vmatprep.mubr.bf16.mxu0 0
  %6576 = vmatmul.mubr.bf16.gmra.mrb[0].mxu0 %v6325
  %v6577 = vpop.f32.mrb[0].mxu0
  %v6578 = vadd.f32 0.0, %v6577
  %v6579 = vpop.f32.mrb[0].mxu0
  %v6580 = vpop.f32.mrb[0].mxu0
  %v6581 = vadd.f32 0.0, %v6580
  %v6582 = vpop.f32.mrb[0].mxu0
  %6583 = vmatprep.mubr.bf16.mxu0 0
  %6584 = vmatmul.mubr.bf16.gmra.mrb[0].mxu0 %v6327
  %v6585 = vpop.f32.mrb[0].mxu0
  %v6586 = vadd.f32 0.0, %v6585
  %v6587 = vpop.f32.mrb[0].mxu0
  %v6588 = vpop.f32.mrb[0].mxu0
  %v6589 = vadd.f32 0.0, %v6588
  %v6590 = vpop.f32.mrb[0].mxu0
  %6591 = vmatprep.mubr.bf16.mxu0 0
  %6592 = vmatmul.mubr.bf16.gmra.mrb[0].mxu0 %v6329
  %v6593 = vpop.f32.mrb[0].mxu0
  %v6594 = vadd.f32 0.0, %v6593
  %v6595 = vpop.f32.mrb[0].mxu0
  %v6596 = vpop.f32.mrb[0].mxu0
  %v6597 = vadd.f32 0.0, %v6596
  %v6598 = vpop.f32.mrb[0].mxu0
  %6599 = vmatprep.mubr.bf16.mxu0 0
  %6600 = vmatmul.mubr.bf16.gmra.mrb[0].mxu0 %v6331
  %v6601 = vpop.f32.mrb[0].mxu0
  %v6602 = vadd.f32 0.0, %v6601
  %v6603 = vpop.f32.mrb[0].mxu0
  %v6604 = vpop.f32.mrb[0].mxu0
  %v6605 = vadd.f32 0.0, %v6604
  %v6606 = vpop.f32.mrb[0].mxu0
  %6607 = vmatprep.mubr.bf16.mxu0 0
  %6608 = vmatmul.mubr.bf16.gmra.mrb[0].mxu0 %v6333
  %v6609 = vpop.f32.mrb[0].mxu0
  %v6610 = vadd.f32 0.0, %v6609
  %v6611 = vpop.f32.mrb[0].mxu0
  %v6612 = vpop.f32.mrb[0].mxu0
  %v6613 = vadd.f32 0.0, %v6612
  %v6614 = vpop.f32.mrb[0].mxu0
  %6615 = vmatprep.mubr.bf16.mxu0 0
  %6616 = vmatmul.mubr.bf16.gmra.mrb[0].mxu0 %v6335
  %v6617 = vpop.f32.mrb[0].mxu0
  %v6618 = vadd.f32 0.0, %v6617
  %v6619 = vpop.f32.mrb[0].mxu0
  %v6620 = vpop.f32.mrb[0].mxu0
  %v6621 = vadd.f32 0.0, %v6620
  %v6622 = vpop.f32.mrb[0].mxu0
  %6623 = vmatprep.mubr.bf16.mxu0 0
  %6624 = vmatmul.mubr.bf16.gmra.mrb[0].mxu0 %v6337
  %v6625 = vpop.f32.mrb[0].mxu0
  %v6626 = vadd.f32 0.0, %v6625
  %v6627 = vpop.f32.mrb[0].mxu0
  %v6628 = vpop.f32.mrb[0].mxu0
  %v6629 = vadd.f32 0.0, %v6628
  %v6630 = vpop.f32.mrb[0].mxu0
  %6631 = vdwg.mxu0
  %v6632 = vld [vmem:[%s3] sm:$0x1]
  %v6634 = vlaneseq
  %v6635 = vshrl.u32 %v6634, 7
  %v6636 = vsub.s32 0, %v6635
  %v6637 = vrot.slane %v6632, %v6636
  %v6639 = vmul.f32 %v6378, %v6637
  %v6640 = vmul.f32 %v6381, %v6637
  %v6641 = vmul.f32 %v6386, %v6637
  %v6642 = vmul.f32 %v6389, %v6637
  %v6643 = vmul.f32 %v6394, %v6637
  %v6644 = vmul.f32 %v6397, %v6637
  %v6645 = vmul.f32 %v6402, %v6637
  %v6646 = vmul.f32 %v6405, %v6637
  %v6647 = vmul.f32 %v6410, %v6637
  %v6648 = vmul.f32 %v6413, %v6637
  %v6649 = vmul.f32 %v6418, %v6637
  %v6650 = vmul.f32 %v6421, %v6637
  %v6651 = vmul.f32 %v6426, %v6637
  %v6652 = vmul.f32 %v6429, %v6637
  %v6653 = vmul.f32 %v6434, %v6637
  %v6654 = vmul.f32 %v6437, %v6637
  %v6655 = vmul.f32 %v6442, %v6637
  %v6656 = vmul.f32 %v6445, %v6637
  %v6657 = vmul.f32 %v6450, %v6637
  %v6658 = vmul.f32 %v6453, %v6637
  %v6659 = vmul.f32 %v6458, %v6637
  %v6660 = vmul.f32 %v6461, %v6637
  %v6661 = vmul.f32 %v6466, %v6637
  %v6662 = vmul.f32 %v6469, %v6637
  %v6663 = vmul.f32 %v6474, %v6637
  %v6664 = vmul.f32 %v6477, %v6637
  %v6665 = vmul.f32 %v6482, %v6637
  %v6666 = vmul.f32 %v6485, %v6637
  %v6667 = vmul.f32 %v6490, %v6637
  %v6668 = vmul.f32 %v6493, %v6637
  %v6669 = vmul.f32 %v6498, %v6637
  %v6670 = vmul.f32 %v6501, %v6637
  %v6671 = vmul.f32 %v6506, %v6637
  %v6672 = vmul.f32 %v6509, %v6637
  %v6673 = vmul.f32 %v6514, %v6637
  %v6674 = vmul.f32 %v6517, %v6637
  %v6675 = vmul.f32 %v6522, %v6637
  %v6676 = vmul.f32 %v6525, %v6637
  %v6677 = vmul.f32 %v6530, %v6637
  %v6678 = vmul.f32 %v6533, %v6637
  %v6679 = vmul.f32 %v6538, %v6637
  %v6680 = vmul.f32 %v6541, %v6637
  %v6681 = vmul.f32 %v6546, %v6637
  %v6682 = vmul.f32 %v6549, %v6637
  %v6683 = vmul.f32 %v6554, %v6637
  %v6684 = vmul.f32 %v6557, %v6637
  %v6685 = vmul.f32 %v6562, %v6637
  %v6686 = vmul.f32 %v6565, %v6637
  %v6687 = vmul.f32 %v6570, %v6637
  %v6688 = vmul.f32 %v6573, %v6637
  %v6689 = vmul.f32 %v6578, %v6637
  %v6690 = vmul.f32 %v6581, %v6637
  %v6691 = vmul.f32 %v6586, %v6637
  %v6692 = vmul.f32 %v6589, %v6637
  %v6693 = vmul.f32 %v6594, %v6637
  %v6694 = vmul.f32 %v6597, %v6637
  %v6695 = vmul.f32 %v6602, %v6637
  %v6696 = vmul.f32 %v6605, %v6637
  %v6697 = vmul.f32 %v6610, %v6637
  %v6698 = vmul.f32 %v6613, %v6637
  %v6699 = vmul.f32 %v6618, %v6637
  %v6700 = vmul.f32 %v6621, %v6637
  %v6701 = vmul.f32 %v6626, %v6637
  %v6702 = vmul.f32 %v6629, %v6637
  %v6703 = vld [vmem:[%s4] sm:$0x1]
  %v6705 = vlaneseq
  %v6706 = vshrl.u32 %v6705, 7
  %v6707 = vsub.s32 0, %v6706
  %v6708 = vrot.slane %v6703, %v6707
  %v6710 = vadd.f32 %v6639, %v6708
  %v6711 = vadd.f32 %v6640, %v6708
  %v6712 = vadd.f32 %v6641, %v6708
  %v6713 = vadd.f32 %v6642, %v6708
  %v6714 = vadd.f32 %v6643, %v6708
  %v6715 = vadd.f32 %v6644, %v6708
  %v6716 = vadd.f32 %v6645, %v6708
  %v6717 = vadd.f32 %v6646, %v6708
  %v6718 = vadd.f32 %v6647, %v6708
  %v6719 = vadd.f32 %v6648, %v6708
  %v6720 = vadd.f32 %v6649, %v6708
  %v6721 = vadd.f32 %v6650, %v6708
  %v6722 = vadd.f32 %v6651, %v6708
  %v6723 = vadd.f32 %v6652, %v6708
  %v6724 = vadd.f32 %v6653, %v6708
  %v6725 = vadd.f32 %v6654, %v6708
  %v6726 = vadd.f32 %v6655, %v6708
  %v6727 = vadd.f32 %v6656, %v6708
  %v6728 = vadd.f32 %v6657, %v6708
  %v6729 = vadd.f32 %v6658, %v6708
  %v6730 = vadd.f32 %v6659, %v6708
  %v6731 = vadd.f32 %v6660, %v6708
  %v6732 = vadd.f32 %v6661, %v6708
  %v6733 = vadd.f32 %v6662, %v6708
  %v6734 = vadd.f32 %v6663, %v6708
  %v6735 = vadd.f32 %v6664, %v6708
  %v6736 = vadd.f32 %v6665, %v6708
  %v6737 = vadd.f32 %v6666, %v6708
  %v6738 = vadd.f32 %v6667, %v6708
  %v6739 = vadd.f32 %v6668, %v6708
  %v6740 = vadd.f32 %v6669, %v6708
  %v6741 = vadd.f32 %v6670, %v6708
  %v6742 = vadd.f32 %v6671, %v6708
  %v6743 = vadd.f32 %v6672, %v6708
  %v6744 = vadd.f32 %v6673, %v6708
  %v6745 = vadd.f32 %v6674, %v6708
  %v6746 = vadd.f32 %v6675, %v6708
  %v6747 = vadd.f32 %v6676, %v6708
  %v6748 = vadd.f32 %v6677, %v6708
  %v6749 = vadd.f32 %v6678, %v6708
  %v6750 = vadd.f32 %v6679, %v6708
  %v6751 = vadd.f32 %v6680, %v6708
  %v6752 = vadd.f32 %v6681, %v6708
  %v6753 = vadd.f32 %v6682, %v6708
  %v6754 = vadd.f32 %v6683, %v6708
  %v6755 = vadd.f32 %v6684, %v6708
  %v6756 = vadd.f32 %v6685, %v6708
  %v6757 = vadd.f32 %v6686, %v6708
  %v6758 = vadd.f32 %v6687, %v6708
  %v6759 = vadd.f32 %v6688, %v6708
  %v6760 = vadd.f32 %v6689, %v6708
  %v6761 = vadd.f32 %v6690, %v6708
  %v6762 = vadd.f32 %v6691, %v6708
  %v6763 = vadd.f32 %v6692, %v6708
  %v6764 = vadd.f32 %v6693, %v6708
  %v6765 = vadd.f32 %v6694, %v6708
  %v6766 = vadd.f32 %v6695, %v6708
  %v6767 = vadd.f32 %v6696, %v6708
  %v6768 = vadd.f32 %v6697, %v6708
  %v6769 = vadd.f32 %v6698, %v6708
  %v6770 = vadd.f32 %v6699, %v6708
  %v6771 = vadd.f32 %v6700, %v6708
  %v6772 = vadd.f32 %v6701, %v6708
  %v6773 = vadd.f32 %v6702, %v6708
  %v6774 = vmax.f32 %v6710, 0.0
  %v6775 = vmax.f32 %v6711, 0.0
  %v6776 = vmax.f32 %v6712, 0.0
  %v6777 = vmax.f32 %v6713, 0.0
  %v6778 = vmax.f32 %v6714, 0.0
  %v6779 = vmax.f32 %v6715, 0.0
  %v6780 = vmax.f32 %v6716, 0.0
  %v6781 = vmax.f32 %v6717, 0.0
  %v6782 = vmax.f32 %v6718, 0.0
  %v6783 = vmax.f32 %v6719, 0.0
  %v6784 = vmax.f32 %v6720, 0.0
  %v6785 = vmax.f32 %v6721, 0.0
  %v6786 = vmax.f32 %v6722, 0.0
  %v6787 = vmax.f32 %v6723, 0.0
  %v6788 = vmax.f32 %v6724, 0.0
  %v6789 = vmax.f32 %v6725, 0.0
  %v6790 = vmax.f32 %v6726, 0.0
  %v6791 = vmax.f32 %v6727, 0.0
  %v6792 = vmax.f32 %v6728, 0.0
  %v6793 = vmax.f32 %v6729, 0.0
  %v6794 = vmax.f32 %v6730, 0.0
  %v6795 = vmax.f32 %v6731, 0.0
  %v6796 = vmax.f32 %v6732, 0.0
  %v6797 = vmax.f32 %v6733, 0.0
  %v6798 = vmax.f32 %v6734, 0.0
  %v6799 = vmax.f32 %v6735, 0.0
  %v6800 = vmax.f32 %v6736, 0.0
  %v6801 = vmax.f32 %v6737, 0.0
  %v6802 = vmax.f32 %v6738, 0.0
  %v6803 = vmax.f32 %v6739, 0.0
  %v6804 = vmax.f32 %v6740, 0.0
  %v6805 = vmax.f32 %v6741, 0.0
  %v6806 = vmax.f32 %v6742, 0.0
  %v6807 = vmax.f32 %v6743, 0.0
  %v6808 = vmax.f32 %v6744, 0.0
  %v6809 = vmax.f32 %v6745, 0.0
  %v6810 = vmax.f32 %v6746, 0.0
  %v6811 = vmax.f32 %v6747, 0.0
  %v6812 = vmax.f32 %v6748, 0.0
  %v6813 = vmax.f32 %v6749, 0.0
  %v6814 = vmax.f32 %v6750, 0.0
  %v6815 = vmax.f32 %v6751, 0.0
  %v6816 = vmax.f32 %v6752, 0.0
  %v6817 = vmax.f32 %v6753, 0.0
  %v6818 = vmax.f32 %v6754, 0.0
  %v6819 = vmax.f32 %v6755, 0.0
  %v6820 = vmax.f32 %v6756, 0.0
  %v6821 = vmax.f32 %v6757, 0.0
  %v6822 = vmax.f32 %v6758, 0.0
  %v6823 = vmax.f32 %v6759, 0.0
  %v6824 = vmax.f32 %v6760, 0.0
  %v6825 = vmax.f32 %v6761, 0.0
  %v6826 = vmax.f32 %v6762, 0.0
  %v6827 = vmax.f32 %v6763, 0.0
  %v6828 = vmax.f32 %v6764, 0.0
  %v6829 = vmax.f32 %v6765, 0.0
  %v6830 = vmax.f32 %v6766, 0.0
  %v6831 = vmax.f32 %v6767, 0.0
  %v6832 = vmax.f32 %v6768, 0.0
  %v6833 = vmax.f32 %v6769, 0.0
  %v6834 = vmax.f32 %v6770, 0.0
  %v6835 = vmax.f32 %v6771, 0.0
  %v6836 = vmax.f32 %v6772, 0.0
  %v6837 = vmax.f32 %v6773, 0.0
  %6838 = vst.msk [vmem:[#allocation3] sm:$0xf] %vm50, 0
  %6839 = vst.msk [vmem:[#allocation3 + $0x4] sm:$0xf] %vm50, 0
  %6840 = vst.msk [vmem:[#allocation3 + $0x8] sm:$0x1] %vm53, 0
  %6841 = vst.msk [vmem:[#allocation3 + $0xd8] sm:$0xf] %vm50, 0
  %6842 = vst.msk [vmem:[#allocation3 + $0xdc] sm:$0xf] %vm50, 0
  %6843 = vst.msk [vmem:[#allocation3 + $0xe0] sm:$0x1] %vm53, 0
  %s6844 = scalar_lea.vmem [#allocation3], 204
  %6845 = vst.msk [vmem:[%s6844] sm:$0xf] %vm50, 0
  %6846 = vst.msk [vmem:[%s6844 + $0x4] sm:$0xf] %vm50, 0
  %6847 = vst.msk [vmem:[%s6844 + $0x8] sm:$0x1] %vm53, 0
  %6848 = vst.msk [vmem:[%s6844 + $0xd8] sm:$0xf] %vm50, 0
  %6849 = vst.msk [vmem:[%s6844 + $0xdc] sm:$0xf] %vm50, 0
  %6850 = vst.msk [vmem:[%s6844 + $0xe0] sm:$0x1] %vm53, 0
  %s6851 = scalar_lea.vmem [#allocation3], 12
  %v6852 = vld [vmem:[%s6851] sm:$0x1]
  %v6853 = vsel %vm68, 0, %v6852
  %6854 = vst [vmem:[%s6851] sm:$0x1] %v6853
  %v6855 = vld [vmem:[%s6851 + $0xc] sm:$0x1]
  %v6856 = vsel %vm68, 0, %v6855
  %6857 = vst [vmem:[%s6851 + $0xc] sm:$0x1] %v6856
  %v6858 = vld [vmem:[%s6851 + $0x18] sm:$0x1]
  %v6859 = vsel %vm68, 0, %v6858
  %6860 = vst [vmem:[%s6851 + $0x18] sm:$0x1] %v6859
  %v6861 = vld [vmem:[%s6851 + $0x24] sm:$0x1]
  %v6862 = vsel %vm68, 0, %v6861
  %6863 = vst [vmem:[%s6851 + $0x24] sm:$0x1] %v6862
  %v6864 = vld [vmem:[%s6851 + $0x30] sm:$0x1]
  %v6865 = vsel %vm68, 0, %v6864
  %6866 = vst [vmem:[%s6851 + $0x30] sm:$0x1] %v6865
  %v6867 = vld [vmem:[%s6851 + $0x3c] sm:$0x1]
  %v6868 = vsel %vm68, 0, %v6867
  %6869 = vst [vmem:[%s6851 + $0x3c] sm:$0x1] %v6868
  %v6870 = vld [vmem:[%s6851 + $0x48] sm:$0x1]
  %v6871 = vsel %vm68, 0, %v6870
  %6872 = vst [vmem:[%s6851 + $0x48] sm:$0x1] %v6871
  %v6873 = vld [vmem:[%s6851 + $0x54] sm:$0x1]
  %v6874 = vsel %vm68, 0, %v6873
  %6875 = vst [vmem:[%s6851 + $0x54] sm:$0x1] %v6874
  %v6876 = vld [vmem:[%s6851 + $0x60] sm:$0x1]
  %v6877 = vsel %vm68, 0, %v6876
  %6878 = vst [vmem:[%s6851 + $0x60] sm:$0x1] %v6877
  %v6879 = vld [vmem:[%s6851 + $0x6c] sm:$0x1]
  %v6880 = vsel %vm68, 0, %v6879
  %6881 = vst [vmem:[%s6851 + $0x6c] sm:$0x1] %v6880
  %v6882 = vld [vmem:[%s6851 + $0x78] sm:$0x1]
  %v6883 = vsel %vm68, 0, %v6882
  %6884 = vst [vmem:[%s6851 + $0x78] sm:$0x1] %v6883
  %v6885 = vld [vmem:[%s6851 + $0x84] sm:$0x1]
  %v6886 = vsel %vm68, 0, %v6885
  %6887 = vst [vmem:[%s6851 + $0x84] sm:$0x1] %v6886
  %v6888 = vld [vmem:[%s6851 + $0x90] sm:$0x1]
  %v6889 = vsel %vm68, 0, %v6888
  %6890 = vst [vmem:[%s6851 + $0x90] sm:$0x1] %v6889
  %v6891 = vld [vmem:[%s6851 + $0x9c] sm:$0x1]
  %v6892 = vsel %vm68, 0, %v6891
  %6893 = vst [vmem:[%s6851 + $0x9c] sm:$0x1] %v6892
  %v6894 = vld [vmem:[%s6851 + $0xa8] sm:$0x1]
  %v6895 = vsel %vm68, 0, %v6894
  %6896 = vst [vmem:[%s6851 + $0xa8] sm:$0x1] %v6895
  %v6897 = vld [vmem:[%s6851 + $0xb4] sm:$0x1]
  %v6898 = vsel %vm68, 0, %v6897
  %6899 = vst [vmem:[%s6851 + $0xb4] sm:$0x1] %v6898
  %v6900 = vld [vmem:[%s6851 + $0xd8] sm:$0x1]
  %v6901 = vsel %vm68, 0, %v6900
  %6902 = vst [vmem:[%s6851 + $0xd8] sm:$0x1] %v6901
  %v6903 = vld [vmem:[%s6851 + $0xe4] sm:$0x1]
  %v6904 = vsel %vm68, 0, %v6903
  %6905 = vst [vmem:[%s6851 + $0xe4] sm:$0x1] %v6904
  %v6906 = vld [vmem:[%s6851 + $0xf0] sm:$0x1]
  %v6907 = vsel %vm68, 0, %v6906
  %6908 = vst [vmem:[%s6851 + $0xf0] sm:$0x1] %v6907
  %v6909 = vld [vmem:[%s6851 + $0xfc] sm:$0x1]
  %v6910 = vsel %vm68, 0, %v6909
  %6911 = vst [vmem:[%s6851 + $0xfc] sm:$0x1] %v6910
  %v6912 = vld [vmem:[%s6851 + $0x108] sm:$0x1]
  %v6913 = vsel %vm68, 0, %v6912
  %6914 = vst [vmem:[%s6851 + $0x108] sm:$0x1] %v6913
  %v6915 = vld [vmem:[%s6851 + $0x114] sm:$0x1]
  %v6916 = vsel %vm68, 0, %v6915
  %6917 = vst [vmem:[%s6851 + $0x114] sm:$0x1] %v6916
  %v6918 = vld [vmem:[%s6851 + $0x120] sm:$0x1]
  %v6919 = vsel %vm68, 0, %v6918
  %6920 = vst [vmem:[%s6851 + $0x120] sm:$0x1] %v6919
  %v6921 = vld [vmem:[%s6851 + $0x12c] sm:$0x1]
  %v6922 = vsel %vm68, 0, %v6921
  %6923 = vst [vmem:[%s6851 + $0x12c] sm:$0x1] %v6922
  %v6924 = vld [vmem:[%s6851 + $0x138] sm:$0x1]
  %v6925 = vsel %vm68, 0, %v6924
  %6926 = vst [vmem:[%s6851 + $0x138] sm:$0x1] %v6925
  %v6927 = vld [vmem:[%s6851 + $0x144] sm:$0x1]
  %v6928 = vsel %vm68, 0, %v6927
  %6929 = vst [vmem:[%s6851 + $0x144] sm:$0x1] %v6928
  %v6930 = vld [vmem:[%s6851 + $0x150] sm:$0x1]
  %v6931 = vsel %vm68, 0, %v6930
  %6932 = vst [vmem:[%s6851 + $0x150] sm:$0x1] %v6931
  %v6933 = vld [vmem:[%s6851 + $0x15c] sm:$0x1]
  %v6934 = vsel %vm68, 0, %v6933
  %6935 = vst [vmem:[%s6851 + $0x15c] sm:$0x1] %v6934
  %v6936 = vld [vmem:[%s6851 + $0x168] sm:$0x1]
  %v6937 = vsel %vm68, 0, %v6936
  %6938 = vst [vmem:[%s6851 + $0x168] sm:$0x1] %v6937
  %v6939 = vld [vmem:[%s6851 + $0x174] sm:$0x1]
  %v6940 = vsel %vm68, 0, %v6939
  %6941 = vst [vmem:[%s6851 + $0x174] sm:$0x1] %v6940
  %v6942 = vld [vmem:[%s6851 + $0x180] sm:$0x1]
  %v6943 = vsel %vm68, 0, %v6942
  %6944 = vst [vmem:[%s6851 + $0x180] sm:$0x1] %v6943
  %v6945 = vld [vmem:[%s6851 + $0x18c] sm:$0x1]
  %v6946 = vsel %vm68, 0, %v6945
  %6947 = vst [vmem:[%s6851 + $0x18c] sm:$0x1] %v6946
  %v6948 = vld [vmem:[%s6851 + $0x8] sm:$0x1]
  %v6949 = vsel %vm166, 0, %v6948
  %6950 = vst [vmem:[%s6851 + $0x8] sm:$0x1] %v6949
  %v6951 = vld [vmem:[%s6851 + $0x14] sm:$0x1]
  %v6952 = vsel %vm166, 0, %v6951
  %6953 = vst [vmem:[%s6851 + $0x14] sm:$0x1] %v6952
  %v6954 = vld [vmem:[%s6851 + $0x20] sm:$0x1]
  %v6955 = vsel %vm166, 0, %v6954
  %6956 = vst [vmem:[%s6851 + $0x20] sm:$0x1] %v6955
  %v6957 = vld [vmem:[%s6851 + $0x2c] sm:$0x1]
  %v6958 = vsel %vm166, 0, %v6957
  %6959 = vst [vmem:[%s6851 + $0x2c] sm:$0x1] %v6958
  %v6960 = vld [vmem:[%s6851 + $0x38] sm:$0x1]
  %v6961 = vsel %vm166, 0, %v6960
  %6962 = vst [vmem:[%s6851 + $0x38] sm:$0x1] %v6961
  %v6963 = vld [vmem:[%s6851 + $0x44] sm:$0x1]
  %v6964 = vsel %vm166, 0, %v6963
  %6965 = vst [vmem:[%s6851 + $0x44] sm:$0x1] %v6964
  %v6966 = vld [vmem:[%s6851 + $0x50] sm:$0x1]
  %v6967 = vsel %vm166, 0, %v6966
  %6968 = vst [vmem:[%s6851 + $0x50] sm:$0x1] %v6967
  %v6969 = vld [vmem:[%s6851 + $0x5c] sm:$0x1]
  %v6970 = vsel %vm166, 0, %v6969
  %6971 = vst [vmem:[%s6851 + $0x5c] sm:$0x1] %v6970
  %v6972 = vld [vmem:[%s6851 + $0x68] sm:$0x1]
  %v6973 = vsel %vm166, 0, %v6972
  %6974 = vst [vmem:[%s6851 + $0x68] sm:$0x1] %v6973
  %v6975 = vld [vmem:[%s6851 + $0x74] sm:$0x1]
  %v6976 = vsel %vm166, 0, %v6975
  %6977 = vst [vmem:[%s6851 + $0x74] sm:$0x1] %v6976
  %v6978 = vld [vmem:[%s6851 + $0x80] sm:$0x1]
  %v6979 = vsel %vm166, 0, %v6978
  %6980 = vst [vmem:[%s6851 + $0x80] sm:$0x1] %v6979
  %v6981 = vld [vmem:[%s6851 + $0x8c] sm:$0x1]
  %v6982 = vsel %vm166, 0, %v6981
  %6983 = vst [vmem:[%s6851 + $0x8c] sm:$0x1] %v6982
  %v6984 = vld [vmem:[%s6851 + $0x98] sm:$0x1]
  %v6985 = vsel %vm166, 0, %v6984
  %6986 = vst [vmem:[%s6851 + $0x98] sm:$0x1] %v6985
  %v6987 = vld [vmem:[%s6851 + $0xa4] sm:$0x1]
  %v6988 = vsel %vm166, 0, %v6987
  %6989 = vst [vmem:[%s6851 + $0xa4] sm:$0x1] %v6988
  %v6990 = vld [vmem:[%s6851 + $0xb0] sm:$0x1]
  %v6991 = vsel %vm166, 0, %v6990
  %6992 = vst [vmem:[%s6851 + $0xb0] sm:$0x1] %v6991
  %v6993 = vld [vmem:[%s6851 + $0xbc] sm:$0x1]
  %v6994 = vsel %vm166, 0, %v6993
  %6995 = vst [vmem:[%s6851 + $0xbc] sm:$0x1] %v6994
  %v6996 = vld [vmem:[%s6851 + $0xe0] sm:$0x1]
  %v6997 = vsel %vm166, 0, %v6996
  %6998 = vst [vmem:[%s6851 + $0xe0] sm:$0x1] %v6997
  %v6999 = vld [vmem:[%s6851 + $0xec] sm:$0x1]
  %v7000 = vsel %vm166, 0, %v6999
  %7001 = vst [vmem:[%s6851 + $0xec] sm:$0x1] %v7000
  %v7002 = vld [vmem:[%s6851 + $0xf8] sm:$0x1]
  %v7003 = vsel %vm166, 0, %v7002
  %7004 = vst [vmem:[%s6851 + $0xf8] sm:$0x1] %v7003
  %v7005 = vld [vmem:[%s6851 + $0x104] sm:$0x1]
  %v7006 = vsel %vm166, 0, %v7005
  %7007 = vst [vmem:[%s6851 + $0x104] sm:$0x1] %v7006
  %v7008 = vld [vmem:[%s6851 + $0x110] sm:$0x1]
  %v7009 = vsel %vm166, 0, %v7008
  %7010 = vst [vmem:[%s6851 + $0x110] sm:$0x1] %v7009
  %v7011 = vld [vmem:[%s6851 + $0x11c] sm:$0x1]
  %v7012 = vsel %vm166, 0, %v7011
  %7013 = vst [vmem:[%s6851 + $0x11c] sm:$0x1] %v7012
  %v7014 = vld [vmem:[%s6851 + $0x128] sm:$0x1]
  %v7015 = vsel %vm166, 0, %v7014
  %7016 = vst [vmem:[%s6851 + $0x128] sm:$0x1] %v7015
  %v7017 = vld [vmem:[%s6851 + $0x134] sm:$0x1]
  %v7018 = vsel %vm166, 0, %v7017
  %7019 = vst [vmem:[%s6851 + $0x134] sm:$0x1] %v7018
  %v7020 = vld [vmem:[%s6851 + $0x140] sm:$0x1]
  %v7021 = vsel %vm166, 0, %v7020
  %7022 = vst [vmem:[%s6851 + $0x140] sm:$0x1] %v7021
  %v7023 = vld [vmem:[%s6851 + $0x14c] sm:$0x1]
  %v7024 = vsel %vm166, 0, %v7023
  %7025 = vst [vmem:[%s6851 + $0x14c] sm:$0x1] %v7024
  %v7026 = vld [vmem:[%s6851 + $0x158] sm:$0x1]
  %v7027 = vsel %vm166, 0, %v7026
  %7028 = vst [vmem:[%s6851 + $0x158] sm:$0x1] %v7027
  %v7029 = vld [vmem:[%s6851 + $0x164] sm:$0x1]
  %v7030 = vsel %vm166, 0, %v7029
  %7031 = vst [vmem:[%s6851 + $0x164] sm:$0x1] %v7030
  %v7032 = vld [vmem:[%s6851 + $0x170] sm:$0x1]
  %v7033 = vsel %vm166, 0, %v7032
  %7034 = vst [vmem:[%s6851 + $0x170] sm:$0x1] %v7033
  %v7035 = vld [vmem:[%s6851 + $0x17c] sm:$0x1]
  %v7036 = vsel %vm166, 0, %v7035
  %7037 = vst [vmem:[%s6851 + $0x17c] sm:$0x1] %v7036
  %v7038 = vld [vmem:[%s6851 + $0x188] sm:$0x1]
  %v7039 = vsel %vm166, 0, %v7038
  %7040 = vst [vmem:[%s6851 + $0x188] sm:$0x1] %v7039
  %v7041 = vld [vmem:[%s6851 + $0x194] sm:$0x1]
  %v7042 = vsel %vm166, 0, %v7041
  %7043 = vst [vmem:[%s6851 + $0x194] sm:$0x1] %v7042
  %v7044 = vpack.c.bf16 %v6775, %v6774
  %v7045 = vpack.c.bf16 %v6777, %v6776
  %v7046 = vpack.c.bf16 %v6779, %v6778
  %v7047 = vpack.c.bf16 %v6781, %v6780
  %v7048 = vpack.c.bf16 %v6783, %v6782
  %v7049 = vpack.c.bf16 %v6785, %v6784
  %v7050 = vpack.c.bf16 %v6787, %v6786
  %v7051 = vpack.c.bf16 %v6789, %v6788
  %v7052 = vpack.c.bf16 %v6791, %v6790
  %v7053 = vpack.c.bf16 %v6793, %v6792
  %v7054 = vpack.c.bf16 %v6795, %v6794
  %v7055 = vpack.c.bf16 %v6797, %v6796
  %v7056 = vpack.c.bf16 %v6799, %v6798
  %v7057 = vpack.c.bf16 %v6801, %v6800
  %v7058 = vpack.c.bf16 %v6803, %v6802
  %v7059 = vpack.c.bf16 %v6805, %v6804
  %v7060 = vpack.c.bf16 %v6807, %v6806
  %v7061 = vpack.c.bf16 %v6809, %v6808
  %v7062 = vpack.c.bf16 %v6811, %v6810
  %v7063 = vpack.c.bf16 %v6813, %v6812
  %v7064 = vpack.c.bf16 %v6815, %v6814
  %v7065 = vpack.c.bf16 %v6817, %v6816
  %v7066 = vpack.c.bf16 %v6819, %v6818
  %v7067 = vpack.c.bf16 %v6821, %v6820
  %v7068 = vpack.c.bf16 %v6823, %v6822
  %v7069 = vpack.c.bf16 %v6825, %v6824
  %v7070 = vpack.c.bf16 %v6827, %v6826
  %v7071 = vpack.c.bf16 %v6829, %v6828
  %v7072 = vpack.c.bf16 %v6831, %v6830
  %v7073 = vpack.c.bf16 %v6833, %v6832
  %v7074 = vpack.c.bf16 %v6835, %v6834
  %v7075 = vpack.c.bf16 %v6837, %v6836
  %v7108 = vunpack.c.l.b16 %v7044
  %v7109 = vunpack.c.h.b16 %v7044
  %v7110 = vunpack.c.l.b16 %v7045
  %v7111 = vunpack.c.h.b16 %v7045
  %v7112 = vunpack.c.l.b16 %v7046
  %v7113 = vunpack.c.h.b16 %v7046
  %v7114 = vunpack.c.l.b16 %v7047
  %v7115 = vunpack.c.h.b16 %v7047
  %v7116 = vunpack.c.l.b16 %v7048
  %v7117 = vunpack.c.h.b16 %v7048
  %v7118 = vunpack.c.l.b16 %v7049
  %v7119 = vunpack.c.h.b16 %v7049
  %v7120 = vunpack.c.l.b16 %v7050
  %v7121 = vunpack.c.h.b16 %v7050
  %v7122 = vunpack.c.l.b16 %v7051
  %v7123 = vunpack.c.h.b16 %v7051
  %v7124 = vunpack.c.l.b16 %v7052
  %v7125 = vunpack.c.h.b16 %v7052
  %v7126 = vunpack.c.l.b16 %v7053
  %v7127 = vunpack.c.h.b16 %v7053
  %v7128 = vunpack.c.l.b16 %v7054
  %v7129 = vunpack.c.h.b16 %v7054
  %v7130 = vunpack.c.l.b16 %v7055
  %v7131 = vunpack.c.h.b16 %v7055
  %v7132 = vunpack.c.l.b16 %v7056
  %v7133 = vunpack.c.h.b16 %v7056
  %v7134 = vunpack.c.l.b16 %v7057
  %v7135 = vunpack.c.h.b16 %v7057
  %v7136 = vunpack.c.l.b16 %v7058
  %v7137 = vunpack.c.h.b16 %v7058
  %v7138 = vunpack.c.l.b16 %v7059
  %v7139 = vunpack.c.h.b16 %v7059
  %v7140 = vunpack.c.l.b16 %v7060
  %v7141 = vunpack.c.h.b16 %v7060
  %v7142 = vunpack.c.l.b16 %v7061
  %v7143 = vunpack.c.h.b16 %v7061
  %v7144 = vunpack.c.l.b16 %v7062
  %v7145 = vunpack.c.h.b16 %v7062
  %v7146 = vunpack.c.l.b16 %v7063
  %v7147 = vunpack.c.h.b16 %v7063
  %v7148 = vunpack.c.l.b16 %v7064
  %v7149 = vunpack.c.h.b16 %v7064
  %v7150 = vunpack.c.l.b16 %v7065
  %v7151 = vunpack.c.h.b16 %v7065
  %v7152 = vunpack.c.l.b16 %v7066
  %v7153 = vunpack.c.h.b16 %v7066
  %v7154 = vunpack.c.l.b16 %v7067
  %v7155 = vunpack.c.h.b16 %v7067
  %v7156 = vunpack.c.l.b16 %v7068
  %v7157 = vunpack.c.h.b16 %v7068
  %v7158 = vunpack.c.l.b16 %v7069
  %v7159 = vunpack.c.h.b16 %v7069
  %v7160 = vunpack.c.l.b16 %v7070
  %v7161 = vunpack.c.h.b16 %v7070
  %v7162 = vunpack.c.l.b16 %v7071
  %v7163 = vunpack.c.h.b16 %v7071
  %v7164 = vunpack.c.l.b16 %v7072
  %v7165 = vunpack.c.h.b16 %v7072
  %v7166 = vunpack.c.l.b16 %v7073
  %v7167 = vunpack.c.h.b16 %v7073
  %v7168 = vunpack.c.l.b16 %v7074
  %v7169 = vunpack.c.h.b16 %v7074
  %v7170 = vunpack.c.l.b16 %v7075
  %v7171 = vunpack.c.h.b16 %v7075
  %v7172 = vpack.c.b16 %v7108, %v7108
  %v7173 = vpack.c.b16 %v7109, %v7109
  %v7174 = vpack.c.b16 %v7110, %v7110
  %v7175 = vpack.c.b16 %v7111, %v7111
  %v7176 = vpack.c.b16 %v7112, %v7112
  %v7177 = vpack.c.b16 %v7113, %v7113
  %v7178 = vpack.c.b16 %v7114, %v7114
  %v7179 = vpack.c.b16 %v7115, %v7115
  %v7180 = vpack.c.b16 %v7116, %v7116
  %v7181 = vpack.c.b16 %v7117, %v7117
  %v7182 = vpack.c.b16 %v7118, %v7118
  %v7183 = vpack.c.b16 %v7119, %v7119
  %v7184 = vpack.c.b16 %v7120, %v7120
  %v7185 = vpack.c.b16 %v7121, %v7121
  %v7186 = vpack.c.b16 %v7122, %v7122
  %v7187 = vpack.c.b16 %v7123, %v7123
  %v7188 = vpack.c.b16 %v7124, %v7124
  %v7189 = vpack.c.b16 %v7125, %v7125
  %v7190 = vpack.c.b16 %v7126, %v7126
  %v7191 = vpack.c.b16 %v7127, %v7127
  %v7192 = vpack.c.b16 %v7128, %v7128
  %v7193 = vpack.c.b16 %v7129, %v7129
  %v7194 = vpack.c.b16 %v7130, %v7130
  %v7195 = vpack.c.b16 %v7131, %v7131
  %v7196 = vpack.c.b16 %v7132, %v7132
  %v7197 = vpack.c.b16 %v7133, %v7133
  %v7198 = vpack.c.b16 %v7134, %v7134
  %v7199 = vpack.c.b16 %v7135, %v7135
  %v7200 = vpack.c.b16 %v7136, %v7136
  %v7201 = vpack.c.b16 %v7137, %v7137
  %v7202 = vpack.c.b16 %v7138, %v7138
  %v7203 = vpack.c.b16 %v7139, %v7139
  %v7204 = vpack.c.b16 %v7140, %v7140
  %v7205 = vpack.c.b16 %v7141, %v7141
  %v7206 = vpack.c.b16 %v7142, %v7142
  %v7207 = vpack.c.b16 %v7143, %v7143
  %v7208 = vpack.c.b16 %v7144, %v7144
  %v7209 = vpack.c.b16 %v7145, %v7145
  %v7210 = vpack.c.b16 %v7146, %v7146
  %v7211 = vpack.c.b16 %v7147, %v7147
  %v7212 = vpack.c.b16 %v7148, %v7148
  %v7213 = vpack.c.b16 %v7149, %v7149
  %v7214 = vpack.c.b16 %v7150, %v7150
  %v7215 = vpack.c.b16 %v7151, %v7151
  %v7216 = vpack.c.b16 %v7152, %v7152
  %v7217 = vpack.c.b16 %v7153, %v7153
  %v7218 = vpack.c.b16 %v7154, %v7154
  %v7219 = vpack.c.b16 %v7155, %v7155
  %v7220 = vpack.c.b16 %v7156, %v7156
  %v7221 = vpack.c.b16 %v7157, %v7157
  %v7222 = vpack.c.b16 %v7158, %v7158
  %v7223 = vpack.c.b16 %v7159, %v7159
  %v7224 = vpack.c.b16 %v7160, %v7160
  %v7225 = vpack.c.b16 %v7161, %v7161
  %v7226 = vpack.c.b16 %v7162, %v7162
  %v7227 = vpack.c.b16 %v7163, %v7163
  %v7228 = vpack.c.b16 %v7164, %v7164
  %v7229 = vpack.c.b16 %v7165, %v7165
  %v7230 = vpack.c.b16 %v7166, %v7166
  %v7231 = vpack.c.b16 %v7167, %v7167
  %v7232 = vpack.c.b16 %v7168, %v7168
  %v7233 = vpack.c.b16 %v7169, %v7169
  %v7234 = vpack.c.b16 %v7170, %v7170
  %v7235 = vpack.c.b16 %v7171, %v7171
  %v7237 = vshrl.u32 %v7172, 16
  %v7239 = vrot.slane %v7237, 7
  %v7240 = vshll.u32 %v7172, 16
  %v7242 = vor.u32 %v7239, %v7240
  %v7243 = vrot.slane %v7239, 4
  %v7245 = vshrl.u32 %v7173, 16
  %v7247 = vrot.slane %v7245, 7
  %v7248 = vshll.u32 %v7173, 16
  %v7250 = vor.u32 %v7247, %v7248
  %v7251 = vsel %vm328, %v7243, %v7250
  %v7252 = vrot.slane %v7247, 4
  %v7254 = vshrl.u32 %v7174, 16
  %v7256 = vrot.slane %v7254, 7
  %v7257 = vshll.u32 %v7174, 16
  %v7259 = vor.u32 %v7256, %v7257
  %v7260 = vrot.slane %v7256, 4
  %v7262 = vshrl.u32 %v7175, 16
  %v7264 = vrot.slane %v7262, 7
  %v7265 = vshll.u32 %v7175, 16
  %v7267 = vor.u32 %v7264, %v7265
  %v7268 = vsel %vm328, %v7260, %v7267
  %v7269 = vrot.slane %v7264, 4
  %v7271 = vshrl.u32 %v7176, 16
  %v7273 = vrot.slane %v7271, 7
  %v7274 = vshll.u32 %v7176, 16
  %v7276 = vor.u32 %v7273, %v7274
  %v7277 = vrot.slane %v7273, 4
  %v7279 = vshrl.u32 %v7177, 16
  %v7281 = vrot.slane %v7279, 7
  %v7282 = vshll.u32 %v7177, 16
  %v7284 = vor.u32 %v7281, %v7282
  %v7285 = vsel %vm328, %v7277, %v7284
  %v7286 = vrot.slane %v7281, 4
  %v7288 = vshrl.u32 %v7178, 16
  %v7290 = vrot.slane %v7288, 7
  %v7291 = vshll.u32 %v7178, 16
  %v7293 = vor.u32 %v7290, %v7291
  %v7294 = vrot.slane %v7290, 4
  %v7296 = vshrl.u32 %v7179, 16
  %v7298 = vrot.slane %v7296, 7
  %v7299 = vshll.u32 %v7179, 16
  %v7301 = vor.u32 %v7298, %v7299
  %v7302 = vsel %vm328, %v7294, %v7301
  %v7303 = vrot.slane %v7298, 4
  %v7305 = vshrl.u32 %v7180, 16
  %v7307 = vrot.slane %v7305, 7
  %v7308 = vshll.u32 %v7180, 16
  %v7310 = vor.u32 %v7307, %v7308
  %v7311 = vrot.slane %v7307, 4
  %v7313 = vshrl.u32 %v7181, 16
  %v7315 = vrot.slane %v7313, 7
  %v7316 = vshll.u32 %v7181, 16
  %v7318 = vor.u32 %v7315, %v7316
  %v7319 = vsel %vm328, %v7311, %v7318
  %v7320 = vrot.slane %v7315, 4
  %v7322 = vshrl.u32 %v7182, 16
  %v7324 = vrot.slane %v7322, 7
  %v7325 = vshll.u32 %v7182, 16
  %v7327 = vor.u32 %v7324, %v7325
  %v7328 = vrot.slane %v7324, 4
  %v7330 = vshrl.u32 %v7183, 16
  %v7332 = vrot.slane %v7330, 7
  %v7333 = vshll.u32 %v7183, 16
  %v7335 = vor.u32 %v7332, %v7333
  %v7336 = vsel %vm328, %v7328, %v7335
  %v7337 = vrot.slane %v7332, 4
  %v7339 = vshrl.u32 %v7184, 16
  %v7341 = vrot.slane %v7339, 7
  %v7342 = vshll.u32 %v7184, 16
  %v7344 = vor.u32 %v7341, %v7342
  %v7345 = vrot.slane %v7341, 4
  %v7347 = vshrl.u32 %v7185, 16
  %v7349 = vrot.slane %v7347, 7
  %v7350 = vshll.u32 %v7185, 16
  %v7352 = vor.u32 %v7349, %v7350
  %v7353 = vsel %vm328, %v7345, %v7352
  %v7354 = vrot.slane %v7349, 4
  %v7356 = vshrl.u32 %v7186, 16
  %v7358 = vrot.slane %v7356, 7
  %v7359 = vshll.u32 %v7186, 16
  %v7361 = vor.u32 %v7358, %v7359
  %v7362 = vrot.slane %v7358, 4
  %v7364 = vshrl.u32 %v7187, 16
  %v7366 = vrot.slane %v7364, 7
  %v7367 = vshll.u32 %v7187, 16
  %v7369 = vor.u32 %v7366, %v7367
  %v7370 = vsel %vm328, %v7362, %v7369
  %v7371 = vrot.slane %v7366, 4
  %v7373 = vshrl.u32 %v7188, 16
  %v7375 = vrot.slane %v7373, 7
  %v7376 = vshll.u32 %v7188, 16
  %v7378 = vor.u32 %v7375, %v7376
  %v7379 = vrot.slane %v7375, 4
  %v7381 = vshrl.u32 %v7189, 16
  %v7383 = vrot.slane %v7381, 7
  %v7384 = vshll.u32 %v7189, 16
  %v7386 = vor.u32 %v7383, %v7384
  %v7387 = vsel %vm328, %v7379, %v7386
  %v7388 = vrot.slane %v7383, 4
  %v7390 = vshrl.u32 %v7190, 16
  %v7392 = vrot.slane %v7390, 7
  %v7393 = vshll.u32 %v7190, 16
  %v7395 = vor.u32 %v7392, %v7393
  %v7396 = vrot.slane %v7392, 4
  %v7398 = vshrl.u32 %v7191, 16
  %v7400 = vrot.slane %v7398, 7
  %v7401 = vshll.u32 %v7191, 16
  %v7403 = vor.u32 %v7400, %v7401
  %v7404 = vsel %vm328, %v7396, %v7403
  %v7405 = vrot.slane %v7400, 4
  %v7407 = vshrl.u32 %v7192, 16
  %v7409 = vrot.slane %v7407, 7
  %v7410 = vshll.u32 %v7192, 16
  %v7412 = vor.u32 %v7409, %v7410
  %v7413 = vrot.slane %v7409, 4
  %v7415 = vshrl.u32 %v7193, 16
  %v7417 = vrot.slane %v7415, 7
  %v7418 = vshll.u32 %v7193, 16
  %v7420 = vor.u32 %v7417, %v7418
  %v7421 = vsel %vm328, %v7413, %v7420
  %v7422 = vrot.slane %v7417, 4
  %v7424 = vshrl.u32 %v7194, 16
  %v7426 = vrot.slane %v7424, 7
  %v7427 = vshll.u32 %v7194, 16
  %v7429 = vor.u32 %v7426, %v7427
  %v7430 = vrot.slane %v7426, 4
  %v7432 = vshrl.u32 %v7195, 16
  %v7434 = vrot.slane %v7432, 7
  %v7435 = vshll.u32 %v7195, 16
  %v7437 = vor.u32 %v7434, %v7435
  %v7438 = vsel %vm328, %v7430, %v7437
  %v7439 = vrot.slane %v7434, 4
  %v7441 = vshrl.u32 %v7196, 16
  %v7443 = vrot.slane %v7441, 7
  %v7444 = vshll.u32 %v7196, 16
  %v7446 = vor.u32 %v7443, %v7444
  %v7447 = vrot.slane %v7443, 4
  %v7449 = vshrl.u32 %v7197, 16
  %v7451 = vrot.slane %v7449, 7
  %v7452 = vshll.u32 %v7197, 16
  %v7454 = vor.u32 %v7451, %v7452
  %v7455 = vsel %vm328, %v7447, %v7454
  %v7456 = vrot.slane %v7451, 4
  %v7458 = vshrl.u32 %v7198, 16
  %v7460 = vrot.slane %v7458, 7
  %v7461 = vshll.u32 %v7198, 16
  %v7463 = vor.u32 %v7460, %v7461
  %v7464 = vrot.slane %v7460, 4
  %v7466 = vshrl.u32 %v7199, 16
  %v7468 = vrot.slane %v7466, 7
  %v7469 = vshll.u32 %v7199, 16
  %v7471 = vor.u32 %v7468, %v7469
  %v7472 = vsel %vm328, %v7464, %v7471
  %v7473 = vrot.slane %v7468, 4
  %v7475 = vshrl.u32 %v7200, 16
  %v7477 = vrot.slane %v7475, 7
  %v7478 = vshll.u32 %v7200, 16
  %v7480 = vor.u32 %v7477, %v7478
  %v7481 = vrot.slane %v7477, 4
  %v7483 = vshrl.u32 %v7201, 16
  %v7485 = vrot.slane %v7483, 7
  %v7486 = vshll.u32 %v7201, 16
  %v7488 = vor.u32 %v7485, %v7486
  %v7489 = vsel %vm328, %v7481, %v7488
  %v7490 = vrot.slane %v7485, 4
  %v7492 = vshrl.u32 %v7202, 16
  %v7494 = vrot.slane %v7492, 7
  %v7495 = vshll.u32 %v7202, 16
  %v7497 = vor.u32 %v7494, %v7495
  %v7498 = vrot.slane %v7494, 4
  %v7500 = vshrl.u32 %v7203, 16
  %v7502 = vrot.slane %v7500, 7
  %v7503 = vshll.u32 %v7203, 16
  %v7505 = vor.u32 %v7502, %v7503
  %v7506 = vsel %vm328, %v7498, %v7505
  %v7507 = vrot.slane %v7502, 4
  %v7509 = vshrl.u32 %v7204, 16
  %v7511 = vrot.slane %v7509, 7
  %v7512 = vshll.u32 %v7204, 16
  %v7514 = vor.u32 %v7511, %v7512
  %v7515 = vrot.slane %v7511, 4
  %v7517 = vshrl.u32 %v7205, 16
  %v7519 = vrot.slane %v7517, 7
  %v7520 = vshll.u32 %v7205, 16
  %v7522 = vor.u32 %v7519, %v7520
  %v7523 = vsel %vm328, %v7515, %v7522
  %v7524 = vrot.slane %v7519, 4
  %v7526 = vshrl.u32 %v7206, 16
  %v7528 = vrot.slane %v7526, 7
  %v7529 = vshll.u32 %v7206, 16
  %v7531 = vor.u32 %v7528, %v7529
  %v7532 = vrot.slane %v7528, 4
  %v7534 = vshrl.u32 %v7207, 16
  %v7536 = vrot.slane %v7534, 7
  %v7537 = vshll.u32 %v7207, 16
  %v7539 = vor.u32 %v7536, %v7537
  %v7540 = vsel %vm328, %v7532, %v7539
  %v7541 = vrot.slane %v7536, 4
  %v7543 = vshrl.u32 %v7208, 16
  %v7545 = vrot.slane %v7543, 7
  %v7546 = vshll.u32 %v7208, 16
  %v7548 = vor.u32 %v7545, %v7546
  %v7549 = vrot.slane %v7545, 4
  %v7551 = vshrl.u32 %v7209, 16
  %v7553 = vrot.slane %v7551, 7
  %v7554 = vshll.u32 %v7209, 16
  %v7556 = vor.u32 %v7553, %v7554
  %v7557 = vsel %vm328, %v7549, %v7556
  %v7558 = vrot.slane %v7553, 4
  %v7560 = vshrl.u32 %v7210, 16
  %v7562 = vrot.slane %v7560, 7
  %v7563 = vshll.u32 %v7210, 16
  %v7565 = vor.u32 %v7562, %v7563
  %v7566 = vrot.slane %v7562, 4
  %v7568 = vshrl.u32 %v7211, 16
  %v7570 = vrot.slane %v7568, 7
  %v7571 = vshll.u32 %v7211, 16
  %v7573 = vor.u32 %v7570, %v7571
  %v7574 = vsel %vm328, %v7566, %v7573
  %v7575 = vrot.slane %v7570, 4
  %v7577 = vshrl.u32 %v7212, 16
  %v7579 = vrot.slane %v7577, 7
  %v7580 = vshll.u32 %v7212, 16
  %v7582 = vor.u32 %v7579, %v7580
  %v7583 = vrot.slane %v7579, 4
  %v7585 = vshrl.u32 %v7213, 16
  %v7587 = vrot.slane %v7585, 7
  %v7588 = vshll.u32 %v7213, 16
  %v7590 = vor.u32 %v7587, %v7588
  %v7591 = vsel %vm328, %v7583, %v7590
  %v7592 = vrot.slane %v7587, 4
  %v7594 = vshrl.u32 %v7214, 16
  %v7596 = vrot.slane %v7594, 7
  %v7597 = vshll.u32 %v7214, 16
  %v7599 = vor.u32 %v7596, %v7597
  %v7600 = vrot.slane %v7596, 4
  %v7602 = vshrl.u32 %v7215, 16
  %v7604 = vrot.slane %v7602, 7
  %v7605 = vshll.u32 %v7215, 16
  %v7607 = vor.u32 %v7604, %v7605
  %v7608 = vsel %vm328, %v7600, %v7607
  %v7609 = vrot.slane %v7604, 4
  %v7611 = vshrl.u32 %v7216, 16
  %v7613 = vrot.slane %v7611, 7
  %v7614 = vshll.u32 %v7216, 16
  %v7616 = vor.u32 %v7613, %v7614
  %v7617 = vrot.slane %v7613, 4
  %v7619 = vshrl.u32 %v7217, 16
  %v7621 = vrot.slane %v7619, 7
  %v7622 = vshll.u32 %v7217, 16
  %v7624 = vor.u32 %v7621, %v7622
  %v7625 = vsel %vm328, %v7617, %v7624
  %v7626 = vrot.slane %v7621, 4
  %v7628 = vshrl.u32 %v7218, 16
  %v7630 = vrot.slane %v7628, 7
  %v7631 = vshll.u32 %v7218, 16
  %v7633 = vor.u32 %v7630, %v7631
  %v7634 = vrot.slane %v7630, 4
  %v7636 = vshrl.u32 %v7219, 16
  %v7638 = vrot.slane %v7636, 7
  %v7639 = vshll.u32 %v7219, 16
  %v7641 = vor.u32 %v7638, %v7639
  %v7642 = vsel %vm328, %v7634, %v7641
  %v7643 = vrot.slane %v7638, 4
  %v7645 = vshrl.u32 %v7220, 16
  %v7647 = vrot.slane %v7645, 7
  %v7648 = vshll.u32 %v7220, 16
  %v7650 = vor.u32 %v7647, %v7648
  %v7651 = vrot.slane %v7647, 4
  %v7653 = vshrl.u32 %v7221, 16
  %v7655 = vrot.slane %v7653, 7
  %v7656 = vshll.u32 %v7221, 16
  %v7658 = vor.u32 %v7655, %v7656
  %v7659 = vsel %vm328, %v7651, %v7658
  %v7660 = vrot.slane %v7655, 4
  %v7662 = vshrl.u32 %v7222, 16
  %v7664 = vrot.slane %v7662, 7
  %v7665 = vshll.u32 %v7222, 16
  %v7667 = vor.u32 %v7664, %v7665
  %v7668 = vrot.slane %v7664, 4
  %v7670 = vshrl.u32 %v7223, 16
  %v7672 = vrot.slane %v7670, 7
  %v7673 = vshll.u32 %v7223, 16
  %v7675 = vor.u32 %v7672, %v7673
  %v7676 = vsel %vm328, %v7668, %v7675
  %v7677 = vrot.slane %v7672, 4
  %v7679 = vshrl.u32 %v7224, 16
  %v7681 = vrot.slane %v7679, 7
  %v7682 = vshll.u32 %v7224, 16
  %v7684 = vor.u32 %v7681, %v7682
  %v7685 = vrot.slane %v7681, 4
  %v7687 = vshrl.u32 %v7225, 16
  %v7689 = vrot.slane %v7687, 7
  %v7690 = vshll.u32 %v7225, 16
  %v7692 = vor.u32 %v7689, %v7690
  %v7693 = vsel %vm328, %v7685, %v7692
  %v7694 = vrot.slane %v7689, 4
  %v7696 = vshrl.u32 %v7226, 16
  %v7698 = vrot.slane %v7696, 7
  %v7699 = vshll.u32 %v7226, 16
  %v7701 = vor.u32 %v7698, %v7699
  %v7702 = vrot.slane %v7698, 4
  %v7704 = vshrl.u32 %v7227, 16
  %v7706 = vrot.slane %v7704, 7
  %v7707 = vshll.u32 %v7227, 16
  %v7709 = vor.u32 %v7706, %v7707
  %v7710 = vsel %vm328, %v7702, %v7709
  %v7711 = vrot.slane %v7706, 4
  %v7713 = vshrl.u32 %v7228, 16
  %v7715 = vrot.slane %v7713, 7
  %v7716 = vshll.u32 %v7228, 16
  %v7718 = vor.u32 %v7715, %v7716
  %v7719 = vrot.slane %v7715, 4
  %v7721 = vshrl.u32 %v7229, 16
  %v7723 = vrot.slane %v7721, 7
  %v7724 = vshll.u32 %v7229, 16
  %v7726 = vor.u32 %v7723, %v7724
  %v7727 = vsel %vm328, %v7719, %v7726
  %v7728 = vrot.slane %v7723, 4
  %v7730 = vshrl.u32 %v7230, 16
  %v7732 = vrot.slane %v7730, 7
  %v7733 = vshll.u32 %v7230, 16
  %v7735 = vor.u32 %v7732, %v7733
  %v7736 = vrot.slane %v7732, 4
  %v7738 = vshrl.u32 %v7231, 16
  %v7740 = vrot.slane %v7738, 7
  %v7741 = vshll.u32 %v7231, 16
  %v7743 = vor.u32 %v7740, %v7741
  %v7744 = vsel %vm328, %v7736, %v7743
  %v7745 = vrot.slane %v7740, 4
  %v7747 = vshrl.u32 %v7232, 16
  %v7749 = vrot.slane %v7747, 7
  %v7750 = vshll.u32 %v7232, 16
  %v7752 = vor.u32 %v7749, %v7750
  %v7753 = vrot.slane %v7749, 4
  %v7755 = vshrl.u32 %v7233, 16
  %v7757 = vrot.slane %v7755, 7
  %v7758 = vshll.u32 %v7233, 16
  %v7760 = vor.u32 %v7757, %v7758
  %v7761 = vsel %vm328, %v7753, %v7760
  %v7762 = vrot.slane %v7757, 4
  %v7764 = vshrl.u32 %v7234, 16
  %v7766 = vrot.slane %v7764, 7
  %v7767 = vshll.u32 %v7234, 16
  %v7769 = vor.u32 %v7766, %v7767
  %v7770 = vrot.slane %v7766, 4
  %v7772 = vshrl.u32 %v7235, 16
  %v7774 = vrot.slane %v7772, 7
  %v7775 = vshll.u32 %v7235, 16
  %v7777 = vor.u32 %v7774, %v7775
  %v7778 = vsel %vm328, %v7770, %v7777
  %v7779 = vrot.slane %v7774, 4
  %vm7876 = vcmask 60416
  %vm7877 = vmand %vm7876, %vm165
  %v7878 = vld [vmem:[%s6851] sm:$0xf]
  %v7879 = vsel %vm7877, %v7242, %v7878
  %7880 = vst [vmem:[%s6851] sm:$0xf] %v7879
  %7881 = vst.msk [vmem:[%s6851 + $0x4] sm:$0xf] %vm50, %v7251
  %v7882 = vld [vmem:[%s6851 + $0x8] sm:$0x1]
  %v7883 = vsel %vm68, %v7252, %v7882
  %7884 = vst [vmem:[%s6851 + $0x8] sm:$0x1] %v7883
  %v7885 = vld [vmem:[%s6851 + $0xc] sm:$0xf]
  %v7886 = vsel %vm7877, %v7259, %v7885
  %7887 = vst [vmem:[%s6851 + $0xc] sm:$0xf] %v7886
  %7888 = vst.msk [vmem:[%s6851 + $0x10] sm:$0xf] %vm50, %v7268
  %v7889 = vld [vmem:[%s6851 + $0x14] sm:$0x1]
  %v7890 = vsel %vm68, %v7269, %v7889
  %7891 = vst [vmem:[%s6851 + $0x14] sm:$0x1] %v7890
  %v7892 = vld [vmem:[%s6851 + $0x18] sm:$0xf]
  %v7893 = vsel %vm7877, %v7276, %v7892
  %7894 = vst [vmem:[%s6851 + $0x18] sm:$0xf] %v7893
  %7895 = vst.msk [vmem:[%s6851 + $0x1c] sm:$0xf] %vm50, %v7285
  %v7896 = vld [vmem:[%s6851 + $0x20] sm:$0x1]
  %v7897 = vsel %vm68, %v7286, %v7896
  %7898 = vst [vmem:[%s6851 + $0x20] sm:$0x1] %v7897
  %v7899 = vld [vmem:[%s6851 + $0x24] sm:$0xf]
  %v7900 = vsel %vm7877, %v7293, %v7899
  %7901 = vst [vmem:[%s6851 + $0x24] sm:$0xf] %v7900
  %7902 = vst.msk [vmem:[%s6851 + $0x28] sm:$0xf] %vm50, %v7302
  %v7903 = vld [vmem:[%s6851 + $0x2c] sm:$0x1]
  %v7904 = vsel %vm68, %v7303, %v7903
  %7905 = vst [vmem:[%s6851 + $0x2c] sm:$0x1] %v7904
  %v7906 = vld [vmem:[%s6851 + $0x30] sm:$0xf]
  %v7907 = vsel %vm7877, %v7310, %v7906
  %7908 = vst [vmem:[%s6851 + $0x30] sm:$0xf] %v7907
  %7909 = vst.msk [vmem:[%s6851 + $0x34] sm:$0xf] %vm50, %v7319
  %v7910 = vld [vmem:[%s6851 + $0x38] sm:$0x1]
  %v7911 = vsel %vm68, %v7320, %v7910
  %7912 = vst [vmem:[%s6851 + $0x38] sm:$0x1] %v7911
  %v7913 = vld [vmem:[%s6851 + $0x3c] sm:$0xf]
  %v7914 = vsel %vm7877, %v7327, %v7913
  %7915 = vst [vmem:[%s6851 + $0x3c] sm:$0xf] %v7914
  %7916 = vst.msk [vmem:[%s6851 + $0x40] sm:$0xf] %vm50, %v7336
  %v7917 = vld [vmem:[%s6851 + $0x44] sm:$0x1]
  %v7918 = vsel %vm68, %v7337, %v7917
  %7919 = vst [vmem:[%s6851 + $0x44] sm:$0x1] %v7918
  %v7920 = vld [vmem:[%s6851 + $0x48] sm:$0xf]
  %v7921 = vsel %vm7877, %v7344, %v7920
  %7922 = vst [vmem:[%s6851 + $0x48] sm:$0xf] %v7921
  %7923 = vst.msk [vmem:[%s6851 + $0x4c] sm:$0xf] %vm50, %v7353
  %v7924 = vld [vmem:[%s6851 + $0x50] sm:$0x1]
  %v7925 = vsel %vm68, %v7354, %v7924
  %7926 = vst [vmem:[%s6851 + $0x50] sm:$0x1] %v7925
  %v7927 = vld [vmem:[%s6851 + $0x54] sm:$0xf]
  %v7928 = vsel %vm7877, %v7361, %v7927
  %7929 = vst [vmem:[%s6851 + $0x54] sm:$0xf] %v7928
  %7930 = vst.msk [vmem:[%s6851 + $0x58] sm:$0xf] %vm50, %v7370
  %v7931 = vld [vmem:[%s6851 + $0x5c] sm:$0x1]
  %v7932 = vsel %vm68, %v7371, %v7931
  %7933 = vst [vmem:[%s6851 + $0x5c] sm:$0x1] %v7932
  %v7934 = vld [vmem:[%s6851 + $0x60] sm:$0xf]
  %v7935 = vsel %vm7877, %v7378, %v7934
  %7936 = vst [vmem:[%s6851 + $0x60] sm:$0xf] %v7935
  %7937 = vst.msk [vmem:[%s6851 + $0x64] sm:$0xf] %vm50, %v7387
  %v7938 = vld [vmem:[%s6851 + $0x68] sm:$0x1]
  %v7939 = vsel %vm68, %v7388, %v7938
  %7940 = vst [vmem:[%s6851 + $0x68] sm:$0x1] %v7939
  %v7941 = vld [vmem:[%s6851 + $0x6c] sm:$0xf]
  %v7942 = vsel %vm7877, %v7395, %v7941
  %7943 = vst [vmem:[%s6851 + $0x6c] sm:$0xf] %v7942
  %7944 = vst.msk [vmem:[%s6851 + $0x70] sm:$0xf] %vm50, %v7404
  %v7945 = vld [vmem:[%s6851 + $0x74] sm:$0x1]
  %v7946 = vsel %vm68, %v7405, %v7945
  %7947 = vst [vmem:[%s6851 + $0x74] sm:$0x1] %v7946
  %v7948 = vld [vmem:[%s6851 + $0x78] sm:$0xf]
  %v7949 = vsel %vm7877, %v7412, %v7948
  %7950 = vst [vmem:[%s6851 + $0x78] sm:$0xf] %v7949
  %7951 = vst.msk [vmem:[%s6851 + $0x7c] sm:$0xf] %vm50, %v7421
  %v7952 = vld [vmem:[%s6851 + $0x80] sm:$0x1]
  %v7953 = vsel %vm68, %v7422, %v7952
  %7954 = vst [vmem:[%s6851 + $0x80] sm:$0x1] %v7953
  %v7955 = vld [vmem:[%s6851 + $0x84] sm:$0xf]
  %v7956 = vsel %vm7877, %v7429, %v7955
  %7957 = vst [vmem:[%s6851 + $0x84] sm:$0xf] %v7956
  %7958 = vst.msk [vmem:[%s6851 + $0x88] sm:$0xf] %vm50, %v7438
  %v7959 = vld [vmem:[%s6851 + $0x8c] sm:$0x1]
  %v7960 = vsel %vm68, %v7439, %v7959
  %7961 = vst [vmem:[%s6851 + $0x8c] sm:$0x1] %v7960
  %v7962 = vld [vmem:[%s6851 + $0x90] sm:$0xf]
  %v7963 = vsel %vm7877, %v7446, %v7962
  %7964 = vst [vmem:[%s6851 + $0x90] sm:$0xf] %v7963
  %7965 = vst.msk [vmem:[%s6851 + $0x94] sm:$0xf] %vm50, %v7455
  %v7966 = vld [vmem:[%s6851 + $0x98] sm:$0x1]
  %v7967 = vsel %vm68, %v7456, %v7966
  %7968 = vst [vmem:[%s6851 + $0x98] sm:$0x1] %v7967
  %v7969 = vld [vmem:[%s6851 + $0x9c] sm:$0xf]
  %v7970 = vsel %vm7877, %v7463, %v7969
  %7971 = vst [vmem:[%s6851 + $0x9c] sm:$0xf] %v7970
  %7972 = vst.msk [vmem:[%s6851 + $0xa0] sm:$0xf] %vm50, %v7472
  %v7973 = vld [vmem:[%s6851 + $0xa4] sm:$0x1]
  %v7974 = vsel %vm68, %v7473, %v7973
  %7975 = vst [vmem:[%s6851 + $0xa4] sm:$0x1] %v7974
  %v7976 = vld [vmem:[%s6851 + $0xa8] sm:$0xf]
  %v7977 = vsel %vm7877, %v7480, %v7976
  %7978 = vst [vmem:[%s6851 + $0xa8] sm:$0xf] %v7977
  %7979 = vst.msk [vmem:[%s6851 + $0xac] sm:$0xf] %vm50, %v7489
  %v7980 = vld [vmem:[%s6851 + $0xb0] sm:$0x1]
  %v7981 = vsel %vm68, %v7490, %v7980
  %7982 = vst [vmem:[%s6851 + $0xb0] sm:$0x1] %v7981
  %v7983 = vld [vmem:[%s6851 + $0xb4] sm:$0xf]
  %v7984 = vsel %vm7877, %v7497, %v7983
  %7985 = vst [vmem:[%s6851 + $0xb4] sm:$0xf] %v7984
  %7986 = vst.msk [vmem:[%s6851 + $0xb8] sm:$0xf] %vm50, %v7506
  %v7987 = vld [vmem:[%s6851 + $0xbc] sm:$0x1]
  %v7988 = vsel %vm68, %v7507, %v7987
  %7989 = vst [vmem:[%s6851 + $0xbc] sm:$0x1] %v7988
  %v7990 = vld [vmem:[%s6851 + $0xd8] sm:$0xf]
  %v7991 = vsel %vm7877, %v7514, %v7990
  %7992 = vst [vmem:[%s6851 + $0xd8] sm:$0xf] %v7991
  %7993 = vst.msk [vmem:[%s6851 + $0xdc] sm:$0xf] %vm50, %v7523
  %v7994 = vld [vmem:[%s6851 + $0xe0] sm:$0x1]
  %v7995 = vsel %vm68, %v7524, %v7994
  %7996 = vst [vmem:[%s6851 + $0xe0] sm:$0x1] %v7995
  %v7997 = vld [vmem:[%s6851 + $0xe4] sm:$0xf]
  %v7998 = vsel %vm7877, %v7531, %v7997
  %7999 = vst [vmem:[%s6851 + $0xe4] sm:$0xf] %v7998
  %8000 = vst.msk [vmem:[%s6851 + $0xe8] sm:$0xf] %vm50, %v7540
  %v8001 = vld [vmem:[%s6851 + $0xec] sm:$0x1]
  %v8002 = vsel %vm68, %v7541, %v8001
  %8003 = vst [vmem:[%s6851 + $0xec] sm:$0x1] %v8002
  %v8004 = vld [vmem:[%s6851 + $0xf0] sm:$0xf]
  %v8005 = vsel %vm7877, %v7548, %v8004
  %8006 = vst [vmem:[%s6851 + $0xf0] sm:$0xf] %v8005
  %8007 = vst.msk [vmem:[%s6851 + $0xf4] sm:$0xf] %vm50, %v7557
  %v8008 = vld [vmem:[%s6851 + $0xf8] sm:$0x1]
  %v8009 = vsel %vm68, %v7558, %v8008
  %8010 = vst [vmem:[%s6851 + $0xf8] sm:$0x1] %v8009
  %v8011 = vld [vmem:[%s6851 + $0xfc] sm:$0xf]
  %v8012 = vsel %vm7877, %v7565, %v8011
  %8013 = vst [vmem:[%s6851 + $0xfc] sm:$0xf] %v8012
  %8014 = vst.msk [vmem:[%s6851 + $0x100] sm:$0xf] %vm50, %v7574
  %v8015 = vld [vmem:[%s6851 + $0x104] sm:$0x1]
  %v8016 = vsel %vm68, %v7575, %v8015
  %8017 = vst [vmem:[%s6851 + $0x104] sm:$0x1] %v8016
  %v8018 = vld [vmem:[%s6851 + $0x108] sm:$0xf]
  %v8019 = vsel %vm7877, %v7582, %v8018
  %8020 = vst [vmem:[%s6851 + $0x108] sm:$0xf] %v8019
  %8021 = vst.msk [vmem:[%s6851 + $0x10c] sm:$0xf] %vm50, %v7591
  %v8022 = vld [vmem:[%s6851 + $0x110] sm:$0x1]
  %v8023 = vsel %vm68, %v7592, %v8022
  %8024 = vst [vmem:[%s6851 + $0x110] sm:$0x1] %v8023
  %v8025 = vld [vmem:[%s6851 + $0x114] sm:$0xf]
  %v8026 = vsel %vm7877, %v7599, %v8025
  %8027 = vst [vmem:[%s6851 + $0x114] sm:$0xf] %v8026
  %8028 = vst.msk [vmem:[%s6851 + $0x118] sm:$0xf] %vm50, %v7608
  %v8029 = vld [vmem:[%s6851 + $0x11c] sm:$0x1]
  %v8030 = vsel %vm68, %v7609, %v8029
  %8031 = vst [vmem:[%s6851 + $0x11c] sm:$0x1] %v8030
  %v8032 = vld [vmem:[%s6851 + $0x120] sm:$0xf]
  %v8033 = vsel %vm7877, %v7616, %v8032
  %8034 = vst [vmem:[%s6851 + $0x120] sm:$0xf] %v8033
  %8035 = vst.msk [vmem:[%s6851 + $0x124] sm:$0xf] %vm50, %v7625
  %v8036 = vld [vmem:[%s6851 + $0x128] sm:$0x1]
  %v8037 = vsel %vm68, %v7626, %v8036
  %8038 = vst [vmem:[%s6851 + $0x128] sm:$0x1] %v8037
  %v8039 = vld [vmem:[%s6851 + $0x12c] sm:$0xf]
  %v8040 = vsel %vm7877, %v7633, %v8039
  %8041 = vst [vmem:[%s6851 + $0x12c] sm:$0xf] %v8040
  %8042 = vst.msk [vmem:[%s6851 + $0x130] sm:$0xf] %vm50, %v7642
  %v8043 = vld [vmem:[%s6851 + $0x134] sm:$0x1]
  %v8044 = vsel %vm68, %v7643, %v8043
  %8045 = vst [vmem:[%s6851 + $0x134] sm:$0x1] %v8044
  %v8046 = vld [vmem:[%s6851 + $0x138] sm:$0xf]
  %v8047 = vsel %vm7877, %v7650, %v8046
  %8048 = vst [vmem:[%s6851 + $0x138] sm:$0xf] %v8047
  %8049 = vst.msk [vmem:[%s6851 + $0x13c] sm:$0xf] %vm50, %v7659
  %v8050 = vld [vmem:[%s6851 + $0x140] sm:$0x1]
  %v8051 = vsel %vm68, %v7660, %v8050
  %8052 = vst [vmem:[%s6851 + $0x140] sm:$0x1] %v8051
  %v8053 = vld [vmem:[%s6851 + $0x144] sm:$0xf]
  %v8054 = vsel %vm7877, %v7667, %v8053
  %8055 = vst [vmem:[%s6851 + $0x144] sm:$0xf] %v8054
  %8056 = vst.msk [vmem:[%s6851 + $0x148] sm:$0xf] %vm50, %v7676
  %v8057 = vld [vmem:[%s6851 + $0x14c] sm:$0x1]
  %v8058 = vsel %vm68, %v7677, %v8057
  %8059 = vst [vmem:[%s6851 + $0x14c] sm:$0x1] %v8058
  %v8060 = vld [vmem:[%s6851 + $0x150] sm:$0xf]
  %v8061 = vsel %vm7877, %v7684, %v8060
  %8062 = vst [vmem:[%s6851 + $0x150] sm:$0xf] %v8061
  %8063 = vst.msk [vmem:[%s6851 + $0x154] sm:$0xf] %vm50, %v7693
  %v8064 = vld [vmem:[%s6851 + $0x158] sm:$0x1]
  %v8065 = vsel %vm68, %v7694, %v8064
  %8066 = vst [vmem:[%s6851 + $0x158] sm:$0x1] %v8065
  %v8067 = vld [vmem:[%s6851 + $0x15c] sm:$0xf]
  %v8068 = vsel %vm7877, %v7701, %v8067
  %8069 = vst [vmem:[%s6851 + $0x15c] sm:$0xf] %v8068
  %8070 = vst.msk [vmem:[%s6851 + $0x160] sm:$0xf] %vm50, %v7710
  %v8071 = vld [vmem:[%s6851 + $0x164] sm:$0x1]
  %v8072 = vsel %vm68, %v7711, %v8071
  %8073 = vst [vmem:[%s6851 + $0x164] sm:$0x1] %v8072
  %v8074 = vld [vmem:[%s6851 + $0x168] sm:$0xf]
  %v8075 = vsel %vm7877, %v7718, %v8074
  %8076 = vst [vmem:[%s6851 + $0x168] sm:$0xf] %v8075
  %8077 = vst.msk [vmem:[%s6851 + $0x16c] sm:$0xf] %vm50, %v7727
  %v8078 = vld [vmem:[%s6851 + $0x170] sm:$0x1]
  %v8079 = vsel %vm68, %v7728, %v8078
  %8080 = vst [vmem:[%s6851 + $0x170] sm:$0x1] %v8079
  %v8081 = vld [vmem:[%s6851 + $0x174] sm:$0xf]
  %v8082 = vsel %vm7877, %v7735, %v8081
  %8083 = vst [vmem:[%s6851 + $0x174] sm:$0xf] %v8082
  %8084 = vst.msk [vmem:[%s6851 + $0x178] sm:$0xf] %vm50, %v7744
  %v8085 = vld [vmem:[%s6851 + $0x17c] sm:$0x1]
  %v8086 = vsel %vm68, %v7745, %v8085
  %8087 = vst [vmem:[%s6851 + $0x17c] sm:$0x1] %v8086
  %v8088 = vld [vmem:[%s6851 + $0x180] sm:$0xf]
  %v8089 = vsel %vm7877, %v7752, %v8088
  %8090 = vst [vmem:[%s6851 + $0x180] sm:$0xf] %v8089
  %8091 = vst.msk [vmem:[%s6851 + $0x184] sm:$0xf] %vm50, %v7761
  %v8092 = vld [vmem:[%s6851 + $0x188] sm:$0x1]
  %v8093 = vsel %vm68, %v7762, %v8092
  %8094 = vst [vmem:[%s6851 + $0x188] sm:$0x1] %v8093
  %v8095 = vld [vmem:[%s6851 + $0x18c] sm:$0xf]
  %v8096 = vsel %vm7877, %v7769, %v8095
  %8097 = vst [vmem:[%s6851 + $0x18c] sm:$0xf] %v8096
  %8098 = vst.msk [vmem:[%s6851 + $0x190] sm:$0xf] %vm50, %v7778
  %v8099 = vld [vmem:[%s6851 + $0x194] sm:$0x1]
  %v8100 = vsel %vm68, %v7779, %v8099
  %8101 = vst [vmem:[%s6851 + $0x194] sm:$0x1] %v8100
  %v8102 = vld [vmem:[#allocation3] sm:$0xf]
  %v8103 = vld [vmem:[#allocation3 + $0x4] sm:$0xf]
  %v8104 = vld [vmem:[#allocation3 + $0xc] sm:$0xf]
  %v8105 = vld [vmem:[#allocation3 + $0x10] sm:$0xf]
  %v8106 = vld [vmem:[#allocation3 + $0x18] sm:$0xf]
  %v8107 = vld [vmem:[#allocation3 + $0x1c] sm:$0xf]
  %v8108 = vld [vmem:[#allocation3 + $0x24] sm:$0xf]
  %v8109 = vld [vmem:[#allocation3 + $0x28] sm:$0xf]
  %v8110 = vld [vmem:[#allocation3 + $0x30] sm:$0xf]
  %v8111 = vld [vmem:[#allocation3 + $0x34] sm:$0xf]
  %v8112 = vld [vmem:[#allocation3 + $0x3c] sm:$0xf]
  %v8113 = vld [vmem:[#allocation3 + $0x40] sm:$0xf]
  %v8114 = vld [vmem:[#allocation3 + $0x48] sm:$0xf]
  %v8115 = vld [vmem:[#allocation3 + $0x4c] sm:$0xf]
  %v8116 = vld [vmem:[#allocation3 + $0x54] sm:$0xf]
  %v8117 = vld [vmem:[#allocation3 + $0x58] sm:$0xf]
  %v8118 = vld [vmem:[#allocation3 + $0x60] sm:$0xf]
  %v8119 = vld [vmem:[#allocation3 + $0x64] sm:$0xf]
  %v8120 = vld [vmem:[#allocation3 + $0x6c] sm:$0xf]
  %v8121 = vld [vmem:[#allocation3 + $0x70] sm:$0xf]
  %v8122 = vld [vmem:[#allocation3 + $0x78] sm:$0xf]
  %v8123 = vld [vmem:[#allocation3 + $0x7c] sm:$0xf]
  %v8124 = vld [vmem:[#allocation3 + $0x84] sm:$0xf]
  %v8125 = vld [vmem:[#allocation3 + $0x88] sm:$0xf]
  %v8126 = vld [vmem:[#allocation3 + $0x90] sm:$0xf]
  %v8127 = vld [vmem:[#allocation3 + $0x94] sm:$0xf]
  %v8128 = vld [vmem:[#allocation3 + $0x9c] sm:$0xf]
  %v8129 = vld [vmem:[#allocation3 + $0xa0] sm:$0xf]
  %v8130 = vld [vmem:[#allocation3 + $0xa8] sm:$0xf]
  %v8131 = vld [vmem:[#allocation3 + $0xac] sm:$0xf]
  %v8132 = vld [vmem:[#allocation3 + $0xb4] sm:$0xf]
  %v8133 = vld [vmem:[#allocation3 + $0xb8] sm:$0xf]
  %v8134 = vld [vmem:[#allocation3 + $0xd8] sm:$0xf]
  %v8135 = vld [vmem:[#allocation3 + $0xdc] sm:$0xf]
  %v8136 = vld [vmem:[#allocation3 + $0xe4] sm:$0xf]
  %v8137 = vld [vmem:[#allocation3 + $0xe8] sm:$0xf]
  %v8138 = vld [vmem:[#allocation3 + $0xf0] sm:$0xf]
  %v8139 = vld [vmem:[#allocation3 + $0xf4] sm:$0xf]
  %v8140 = vld [vmem:[#allocation3 + $0xfc] sm:$0xf]
  %v8141 = vld [vmem:[#allocation3 + $0x100] sm:$0xf]
  %v8142 = vld [vmem:[#allocation3 + $0x108] sm:$0xf]
  %v8143 = vld [vmem:[#allocation3 + $0x10c] sm:$0xf]
  %v8144 = vld [vmem:[#allocation3 + $0x114] sm:$0xf]
  %v8145 = vld [vmem:[#allocation3 + $0x118] sm:$0xf]
  %v8146 = vld [vmem:[#allocation3 + $0x120] sm:$0xf]
  %v8147 = vld [vmem:[#allocation3 + $0x124] sm:$0xf]
  %v8148 = vld [vmem:[#allocation3 + $0x12c] sm:$0xf]
  %v8149 = vld [vmem:[#allocation3 + $0x130] sm:$0xf]
  %v8150 = vld [vmem:[#allocation3 + $0x138] sm:$0xf]
  %v8151 = vld [vmem:[#allocation3 + $0x13c] sm:$0xf]
  %v8152 = vld [vmem:[#allocation3 + $0x144] sm:$0xf]
  %v8153 = vld [vmem:[#allocation3 + $0x148] sm:$0xf]
  %v8154 = vld [vmem:[#allocation3 + $0x150] sm:$0xf]
  %v8155 = vld [vmem:[#allocation3 + $0x154] sm:$0xf]
  %v8156 = vld [vmem:[#allocation3 + $0x15c] sm:$0xf]
  %v8157 = vld [vmem:[#allocation3 + $0x160] sm:$0xf]
  %v8158 = vld [vmem:[#allocation3 + $0x168] sm:$0xf]
  %v8159 = vld [vmem:[#allocation3 + $0x16c] sm:$0xf]
  %v8160 = vld [vmem:[#allocation3 + $0x174] sm:$0xf]
  %v8161 = vld [vmem:[#allocation3 + $0x178] sm:$0xf]
  %v8162 = vld [vmem:[#allocation3 + $0x180] sm:$0xf]
  %v8163 = vld [vmem:[#allocation3 + $0x184] sm:$0xf]
  %v8164 = vld [vmem:[#allocation3 + $0x18c] sm:$0xf]
  %v8165 = vld [vmem:[#allocation3 + $0x190] sm:$0xf]
  %v8166 = vld [vmem:[#allocation3 + $0x8] sm:$0x1]
  %v8167 = vld [vmem:[#allocation3 + $0x14] sm:$0x1]
  %v8168 = vld [vmem:[#allocation3 + $0x20] sm:$0x1]
  %v8169 = vld [vmem:[#allocation3 + $0x2c] sm:$0x1]
  %v8170 = vld [vmem:[#allocation3 + $0x38] sm:$0x1]
  %v8171 = vld [vmem:[#allocation3 + $0x44] sm:$0x1]
  %v8172 = vld [vmem:[#allocation3 + $0x50] sm:$0x1]
  %v8173 = vld [vmem:[#allocation3 + $0x5c] sm:$0x1]
  %v8174 = vld [vmem:[#allocation3 + $0x68] sm:$0x1]
  %v8175 = vld [vmem:[#allocation3 + $0x74] sm:$0x1]
  %v8176 = vld [vmem:[#allocation3 + $0x80] sm:$0x1]
  %v8177 = vld [vmem:[#allocation3 + $0x8c] sm:$0x1]
  %v8178 = vld [vmem:[#allocation3 + $0x98] sm:$0x1]
  %v8179 = vld [vmem:[#allocation3 + $0xa4] sm:$0x1]
  %v8180 = vld [vmem:[#allocation3 + $0xb0] sm:$0x1]
  %v8181 = vld [vmem:[#allocation3 + $0xbc] sm:$0x1]
  %v8182 = vld [vmem:[#allocation3 + $0xe0] sm:$0x1]
  %v8183 = vld [vmem:[#allocation3 + $0xec] sm:$0x1]
  %v8184 = vld [vmem:[#allocation3 + $0xf8] sm:$0x1]
  %v8185 = vld [vmem:[#allocation3 + $0x104] sm:$0x1]
  %v8186 = vld [vmem:[#allocation3 + $0x110] sm:$0x1]
  %v8187 = vld [vmem:[#allocation3 + $0x11c] sm:$0x1]
  %v8188 = vld [vmem:[#allocation3 + $0x128] sm:$0x1]
  %v8189 = vld [vmem:[#allocation3 + $0x134] sm:$0x1]
  %v8190 = vld [vmem:[#allocation3 + $0x140] sm:$0x1]
  %v8191 = vld [vmem:[#allocation3 + $0x14c] sm:$0x1]
  %v8192 = vld [vmem:[#allocation3 + $0x158] sm:$0x1]
  %v8193 = vld [vmem:[#allocation3 + $0x164] sm:$0x1]
  %v8194 = vld [vmem:[#allocation3 + $0x170] sm:$0x1]
  %v8195 = vld [vmem:[#allocation3 + $0x17c] sm:$0x1]
  %v8196 = vld [vmem:[#allocation3 + $0x188] sm:$0x1]
  %v8197 = vld [vmem:[#allocation3 + $0x194] sm:$0x1]
  %v8198 = vld [vmem:[#allocation3] sm:$0xe]
  %v8199 = vld [vmem:[#allocation3 + $0xc] sm:$0xe]
  %v8200 = vld [vmem:[#allocation3 + $0x18] sm:$0xe]
  %v8201 = vld [vmem:[#allocation3 + $0x24] sm:$0xe]
  %v8202 = vld [vmem:[#allocation3 + $0x30] sm:$0xe]
  %v8203 = vld [vmem:[#allocation3 + $0x3c] sm:$0xe]
  %v8204 = vld [vmem:[#allocation3 + $0x48] sm:$0xe]
  %v8205 = vld [vmem:[#allocation3 + $0x54] sm:$0xe]
  %v8206 = vld [vmem:[#allocation3 + $0x60] sm:$0xe]
  %v8207 = vld [vmem:[#allocation3 + $0x6c] sm:$0xe]
  %v8208 = vld [vmem:[#allocation3 + $0x78] sm:$0xe]
  %v8209 = vld [vmem:[#allocation3 + $0x84] sm:$0xe]
  %v8210 = vld [vmem:[#allocation3 + $0x90] sm:$0xe]
  %v8211 = vld [vmem:[#allocation3 + $0x9c] sm:$0xe]
  %v8212 = vld [vmem:[#allocation3 + $0xa8] sm:$0xe]
  %v8213 = vld [vmem:[#allocation3 + $0xb4] sm:$0xe]
  %v8214 = vld [vmem:[#allocation3 + $0xd8] sm:$0xe]
  %v8215 = vld [vmem:[#allocation3 + $0xe4] sm:$0xe]
  %v8216 = vld [vmem:[#allocation3 + $0xf0] sm:$0xe]
  %v8217 = vld [vmem:[#allocation3 + $0xfc] sm:$0xe]
  %v8218 = vld [vmem:[#allocation3 + $0x108] sm:$0xe]
  %v8219 = vld [vmem:[#allocation3 + $0x114] sm:$0xe]
  %v8220 = vld [vmem:[#allocation3 + $0x120] sm:$0xe]
  %v8221 = vld [vmem:[#allocation3 + $0x12c] sm:$0xe]
  %v8222 = vld [vmem:[#allocation3 + $0x138] sm:$0xe]
  %v8223 = vld [vmem:[#allocation3 + $0x144] sm:$0xe]
  %v8224 = vld [vmem:[#allocation3 + $0x150] sm:$0xe]
  %v8225 = vld [vmem:[#allocation3 + $0x15c] sm:$0xe]
  %v8226 = vld [vmem:[#allocation3 + $0x168] sm:$0xe]
  %v8227 = vld [vmem:[#allocation3 + $0x174] sm:$0xe]
  %v8228 = vld [vmem:[#allocation3 + $0x180] sm:$0xe]
  %v8229 = vld [vmem:[#allocation3 + $0x18c] sm:$0xe]
  %v8230 = vld [vmem:[%s6851] sm:$0xf]
  %v8231 = vld [vmem:[%s6851 + $0x4] sm:$0xf]
  %v8232 = vld [vmem:[%s6851 + $0xc] sm:$0xf]
  %v8233 = vld [vmem:[%s6851 + $0x10] sm:$0xf]
  %v8234 = vld [vmem:[%s6851 + $0x18] sm:$0xf]
  %v8235 = vld [vmem:[%s6851 + $0x1c] sm:$0xf]
  %v8236 = vld [vmem:[%s6851 + $0x24] sm:$0xf]
  %v8237 = vld [vmem:[%s6851 + $0x28] sm:$0xf]
  %v8238 = vld [vmem:[%s6851 + $0x30] sm:$0xf]
  %v8239 = vld [vmem:[%s6851 + $0x34] sm:$0xf]
  %v8240 = vld [vmem:[%s6851 + $0x3c] sm:$0xf]
  %v8241 = vld [vmem:[%s6851 + $0x40] sm:$0xf]
  %v8242 = vld [vmem:[%s6851 + $0x48] sm:$0xf]
  %v8243 = vld [vmem:[%s6851 + $0x4c] sm:$0xf]
  %v8244 = vld [vmem:[%s6851 + $0x54] sm:$0xf]
  %v8245 = vld [vmem:[%s6851 + $0x58] sm:$0xf]
  %v8246 = vld [vmem:[%s6851 + $0x60] sm:$0xf]
  %v8247 = vld [vmem:[%s6851 + $0x64] sm:$0xf]
  %v8248 = vld [vmem:[%s6851 + $0x6c] sm:$0xf]
  %v8249 = vld [vmem:[%s6851 + $0x70] sm:$0xf]
  %v8250 = vld [vmem:[%s6851 + $0x78] sm:$0xf]
  %v8251 = vld [vmem:[%s6851 + $0x7c] sm:$0xf]
  %v8252 = vld [vmem:[%s6851 + $0x84] sm:$0xf]
  %v8253 = vld [vmem:[%s6851 + $0x88] sm:$0xf]
  %v8254 = vld [vmem:[%s6851 + $0x90] sm:$0xf]
  %v8255 = vld [vmem:[%s6851 + $0x94] sm:$0xf]
  %v8256 = vld [vmem:[%s6851 + $0x9c] sm:$0xf]
  %v8257 = vld [vmem:[%s6851 + $0xa0] sm:$0xf]
  %v8258 = vld [vmem:[%s6851 + $0xa8] sm:$0xf]
  %v8259 = vld [vmem:[%s6851 + $0xac] sm:$0xf]
  %v8260 = vld [vmem:[%s6851 + $0xb4] sm:$0xf]
  %v8261 = vld [vmem:[%s6851 + $0xb8] sm:$0xf]
  %v8262 = vld [vmem:[%s6851 + $0xd8] sm:$0xf]
  %v8263 = vld [vmem:[%s6851 + $0xdc] sm:$0xf]
  %v8264 = vld [vmem:[%s6851 + $0xe4] sm:$0xf]
  %v8265 = vld [vmem:[%s6851 + $0xe8] sm:$0xf]
  %v8266 = vld [vmem:[%s6851 + $0xf0] sm:$0xf]
  %v8267 = vld [vmem:[%s6851 + $0xf4] sm:$0xf]
  %v8268 = vld [vmem:[%s6851 + $0xfc] sm:$0xf]
  %v8269 = vld [vmem:[%s6851 + $0x100] sm:$0xf]
  %v8270 = vld [vmem:[%s6851 + $0x108] sm:$0xf]
  %v8271 = vld [vmem:[%s6851 + $0x10c] sm:$0xf]
  %v8272 = vld [vmem:[%s6851 + $0x114] sm:$0xf]
  %v8273 = vld [vmem:[%s6851 + $0x118] sm:$0xf]
  %v8274 = vld [vmem:[%s6851 + $0x120] sm:$0xf]
  %v8275 = vld [vmem:[%s6851 + $0x124] sm:$0xf]
  %v8276 = vld [vmem:[%s6851 + $0x12c] sm:$0xf]
  %v8277 = vld [vmem:[%s6851 + $0x130] sm:$0xf]
  %v8278 = vld [vmem:[%s6851 + $0x138] sm:$0xf]
  %v8279 = vld [vmem:[%s6851 + $0x13c] sm:$0xf]
  %v8280 = vld [vmem:[%s6851 + $0x144] sm:$0xf]
  %v8281 = vld [vmem:[%s6851 + $0x148] sm:$0xf]
  %v8282 = vld [vmem:[%s6851 + $0x150] sm:$0xf]
  %v8283 = vld [vmem:[%s6851 + $0x154] sm:$0xf]
  %v8284 = vld [vmem:[%s6851 + $0x15c] sm:$0xf]
  %v8285 = vld [vmem:[%s6851 + $0x160] sm:$0xf]
  %v8286 = vld [vmem:[%s6851 + $0x168] sm:$0xf]
  %v8287 = vld [vmem:[%s6851 + $0x16c] sm:$0xf]
  %v8288 = vld [vmem:[%s6851 + $0x174] sm:$0xf]
  %v8289 = vld [vmem:[%s6851 + $0x178] sm:$0xf]
  %v8290 = vld [vmem:[%s6851 + $0x180] sm:$0xf]
  %v8291 = vld [vmem:[%s6851 + $0x184] sm:$0xf]
  %v8292 = vld [vmem:[%s6851 + $0x18c] sm:$0xf]
  %v8293 = vld [vmem:[%s6851 + $0x190] sm:$0xf]
  %v8294 = vld [vmem:[%s6851 + $0x8] sm:$0x1]
  %v8295 = vld [vmem:[%s6851 + $0x14] sm:$0x1]
  %v8296 = vld [vmem:[%s6851 + $0x20] sm:$0x1]
  %v8297 = vld [vmem:[%s6851 + $0x2c] sm:$0x1]
  %v8298 = vld [vmem:[%s6851 + $0x38] sm:$0x1]
  %v8299 = vld [vmem:[%s6851 + $0x44] sm:$0x1]
  %v8300 = vld [vmem:[%s6851 + $0x50] sm:$0x1]
  %v8301 = vld [vmem:[%s6851 + $0x5c] sm:$0x1]
  %v8302 = vld [vmem:[%s6851 + $0x68] sm:$0x1]
  %v8303 = vld [vmem:[%s6851 + $0x74] sm:$0x1]
  %v8304 = vld [vmem:[%s6851 + $0x80] sm:$0x1]
  %v8305 = vld [vmem:[%s6851 + $0x8c] sm:$0x1]
  %v8306 = vld [vmem:[%s6851 + $0x98] sm:$0x1]
  %v8307 = vld [vmem:[%s6851 + $0xa4] sm:$0x1]
  %v8308 = vld [vmem:[%s6851 + $0xb0] sm:$0x1]
  %v8309 = vld [vmem:[%s6851 + $0xbc] sm:$0x1]
  %v8310 = vld [vmem:[%s6851 + $0xe0] sm:$0x1]
  %v8311 = vld [vmem:[%s6851 + $0xec] sm:$0x1]
  %v8312 = vld [vmem:[%s6851 + $0xf8] sm:$0x1]
  %v8313 = vld [vmem:[%s6851 + $0x104] sm:$0x1]
  %v8314 = vld [vmem:[%s6851 + $0x110] sm:$0x1]
  %v8315 = vld [vmem:[%s6851 + $0x11c] sm:$0x1]
  %v8316 = vld [vmem:[%s6851 + $0x128] sm:$0x1]
  %v8317 = vld [vmem:[%s6851 + $0x134] sm:$0x1]
  %v8318 = vld [vmem:[%s6851 + $0x140] sm:$0x1]
  %v8319 = vld [vmem:[%s6851 + $0x14c] sm:$0x1]
  %v8320 = vld [vmem:[%s6851 + $0x158] sm:$0x1]
  %v8321 = vld [vmem:[%s6851 + $0x164] sm:$0x1]
  %v8322 = vld [vmem:[%s6851 + $0x170] sm:$0x1]
  %v8323 = vld [vmem:[%s6851 + $0x17c] sm:$0x1]
  %v8324 = vld [vmem:[%s6851 + $0x188] sm:$0x1]
  %v8325 = vld [vmem:[%s6851 + $0x194] sm:$0x1]
  %v8326 = vld [vmem:[%s6851] sm:$0xe]
  %v8327 = vld [vmem:[%s6851 + $0xc] sm:$0xe]
  %v8328 = vld [vmem:[%s6851 + $0x18] sm:$0xe]
  %v8329 = vld [vmem:[%s6851 + $0x24] sm:$0xe]
  %v8330 = vld [vmem:[%s6851 + $0x30] sm:$0xe]
  %v8331 = vld [vmem:[%s6851 + $0x3c] sm:$0xe]
  %v8332 = vld [vmem:[%s6851 + $0x48] sm:$0xe]
  %v8333 = vld [vmem:[%s6851 + $0x54] sm:$0xe]
  %v8334 = vld [vmem:[%s6851 + $0x60] sm:$0xe]
  %v8335 = vld [vmem:[%s6851 + $0x6c] sm:$0xe]
  %v8336 = vld [vmem:[%s6851 + $0x78] sm:$0xe]
  %v8337 = vld [vmem:[%s6851 + $0x84] sm:$0xe]
  %v8338 = vld [vmem:[%s6851 + $0x90] sm:$0xe]
  %v8339 = vld [vmem:[%s6851 + $0x9c] sm:$0xe]
  %v8340 = vld [vmem:[%s6851 + $0xa8] sm:$0xe]
  %v8341 = vld [vmem:[%s6851 + $0xb4] sm:$0xe]
  %v8342 = vld [vmem:[%s6851 + $0xd8] sm:$0xe]
  %v8343 = vld [vmem:[%s6851 + $0xe4] sm:$0xe]
  %v8344 = vld [vmem:[%s6851 + $0xf0] sm:$0xe]
  %v8345 = vld [vmem:[%s6851 + $0xfc] sm:$0xe]
  %v8346 = vld [vmem:[%s6851 + $0x108] sm:$0xe]
  %v8347 = vld [vmem:[%s6851 + $0x114] sm:$0xe]
  %v8348 = vld [vmem:[%s6851 + $0x120] sm:$0xe]
  %v8349 = vld [vmem:[%s6851 + $0x12c] sm:$0xe]
  %v8350 = vld [vmem:[%s6851 + $0x138] sm:$0xe]
  %v8351 = vld [vmem:[%s6851 + $0x144] sm:$0xe]
  %v8352 = vld [vmem:[%s6851 + $0x150] sm:$0xe]
  %v8353 = vld [vmem:[%s6851 + $0x15c] sm:$0xe]
  %v8354 = vld [vmem:[%s6851 + $0x168] sm:$0xe]
  %v8355 = vld [vmem:[%s6851 + $0x174] sm:$0xe]
  %v8356 = vld [vmem:[%s6851 + $0x180] sm:$0xe]
  %v8357 = vld [vmem:[%s6851 + $0x18c] sm:$0xe]
  %s8358 = scalar_lea.vmem [#allocation3], 24
  %v8359 = vld [vmem:[%s8358] sm:$0xf]
  %v8360 = vld [vmem:[%s8358 + $0x4] sm:$0xf]
  %v8361 = vld [vmem:[%s8358 + $0xc] sm:$0xf]
  %v8362 = vld [vmem:[%s8358 + $0x10] sm:$0xf]
  %v8363 = vld [vmem:[%s8358 + $0x18] sm:$0xf]
  %v8364 = vld [vmem:[%s8358 + $0x1c] sm:$0xf]
  %v8365 = vld [vmem:[%s8358 + $0x24] sm:$0xf]
  %v8366 = vld [vmem:[%s8358 + $0x28] sm:$0xf]
  %v8367 = vld [vmem:[%s8358 + $0x30] sm:$0xf]
  %v8368 = vld [vmem:[%s8358 + $0x34] sm:$0xf]
  %v8369 = vld [vmem:[%s8358 + $0x3c] sm:$0xf]
  %v8370 = vld [vmem:[%s8358 + $0x40] sm:$0xf]
  %v8371 = vld [vmem:[%s8358 + $0x48] sm:$0xf]
  %v8372 = vld [vmem:[%s8358 + $0x4c] sm:$0xf]
  %v8373 = vld [vmem:[%s8358 + $0x54] sm:$0xf]
  %v8374 = vld [vmem:[%s8358 + $0x58] sm:$0xf]
  %v8375 = vld [vmem:[%s8358 + $0x60] sm:$0xf]
  %v8376 = vld [vmem:[%s8358 + $0x64] sm:$0xf]
  %v8377 = vld [vmem:[%s8358 + $0x6c] sm:$0xf]
  %v8378 = vld [vmem:[%s8358 + $0x70] sm:$0xf]
  %v8379 = vld [vmem:[%s8358 + $0x78] sm:$0xf]
  %v8380 = vld [vmem:[%s8358 + $0x7c] sm:$0xf]
  %v8381 = vld [vmem:[%s8358 + $0x84] sm:$0xf]
  %v8382 = vld [vmem:[%s8358 + $0x88] sm:$0xf]
  %v8383 = vld [vmem:[%s8358 + $0x90] sm:$0xf]
  %v8384 = vld [vmem:[%s8358 + $0x94] sm:$0xf]
  %v8385 = vld [vmem:[%s8358 + $0x9c] sm:$0xf]
  %v8386 = vld [vmem:[%s8358 + $0xa0] sm:$0xf]
  %v8387 = vld [vmem:[%s8358 + $0xa8] sm:$0xf]
  %v8388 = vld [vmem:[%s8358 + $0xac] sm:$0xf]
  %v8389 = vld [vmem:[%s8358 + $0xb4] sm:$0xf]
  %v8390 = vld [vmem:[%s8358 + $0xb8] sm:$0xf]
  %v8391 = vld [vmem:[%s8358 + $0xd8] sm:$0xf]
  %v8392 = vld [vmem:[%s8358 + $0xdc] sm:$0xf]
  %v8393 = vld [vmem:[%s8358 + $0xe4] sm:$0xf]
  %v8394 = vld [vmem:[%s8358 + $0xe8] sm:$0xf]
  %v8395 = vld [vmem:[%s8358 + $0xf0] sm:$0xf]
  %v8396 = vld [vmem:[%s8358 + $0xf4] sm:$0xf]
  %v8397 = vld [vmem:[%s8358 + $0xfc] sm:$0xf]
  %v8398 = vld [vmem:[%s8358 + $0x100] sm:$0xf]
  %v8399 = vld [vmem:[%s8358 + $0x108] sm:$0xf]
  %v8400 = vld [vmem:[%s8358 + $0x10c] sm:$0xf]
  %v8401 = vld [vmem:[%s8358 + $0x114] sm:$0xf]
  %v8402 = vld [vmem:[%s8358 + $0x118] sm:$0xf]
  %v8403 = vld [vmem:[%s8358 + $0x120] sm:$0xf]
  %v8404 = vld [vmem:[%s8358 + $0x124] sm:$0xf]
  %v8405 = vld [vmem:[%s8358 + $0x12c] sm:$0xf]
  %v8406 = vld [vmem:[%s8358 + $0x130] sm:$0xf]
  %v8407 = vld [vmem:[%s8358 + $0x138] sm:$0xf]
  %v8408 = vld [vmem:[%s8358 + $0x13c] sm:$0xf]
  %v8409 = vld [vmem:[%s8358 + $0x144] sm:$0xf]
  %v8410 = vld [vmem:[%s8358 + $0x148] sm:$0xf]
  %v8411 = vld [vmem:[%s8358 + $0x150] sm:$0xf]
  %v8412 = vld [vmem:[%s8358 + $0x154] sm:$0xf]
  %v8413 = vld [vmem:[%s8358 + $0x15c] sm:$0xf]
  %v8414 = vld [vmem:[%s8358 + $0x160] sm:$0xf]
  %v8415 = vld [vmem:[%s8358 + $0x168] sm:$0xf]
  %v8416 = vld [vmem:[%s8358 + $0x16c] sm:$0xf]
  %v8417 = vld [vmem:[%s8358 + $0x174] sm:$0xf]
  %v8418 = vld [vmem:[%s8358 + $0x178] sm:$0xf]
  %v8419 = vld [vmem:[%s8358 + $0x180] sm:$0xf]
  %v8420 = vld [vmem:[%s8358 + $0x184] sm:$0xf]
  %v8421 = vld [vmem:[%s8358 + $0x18c] sm:$0xf]
  %v8422 = vld [vmem:[%s8358 + $0x190] sm:$0xf]
  %v8423 = vld [vmem:[%s8358 + $0x8] sm:$0x1]
  %v8424 = vld [vmem:[%s8358 + $0x14] sm:$0x1]
  %v8425 = vld [vmem:[%s8358 + $0x20] sm:$0x1]
  %v8426 = vld [vmem:[%s8358 + $0x2c] sm:$0x1]
  %v8427 = vld [vmem:[%s8358 + $0x38] sm:$0x1]
  %v8428 = vld [vmem:[%s8358 + $0x44] sm:$0x1]
  %v8429 = vld [vmem:[%s8358 + $0x50] sm:$0x1]
  %v8430 = vld [vmem:[%s8358 + $0x5c] sm:$0x1]
  %v8431 = vld [vmem:[%s8358 + $0x68] sm:$0x1]
  %v8432 = vld [vmem:[%s8358 + $0x74] sm:$0x1]
  %v8433 = vld [vmem:[%s8358 + $0x80] sm:$0x1]
  %v8434 = vld [vmem:[%s8358 + $0x8c] sm:$0x1]
  %v8435 = vld [vmem:[%s8358 + $0x98] sm:$0x1]
  %v8436 = vld [vmem:[%s8358 + $0xa4] sm:$0x1]
  %v8437 = vld [vmem:[%s8358 + $0xb0] sm:$0x1]
  %v8438 = vld [vmem:[%s8358 + $0xbc] sm:$0x1]
  %v8439 = vld [vmem:[%s8358 + $0xe0] sm:$0x1]
  %v8440 = vld [vmem:[%s8358 + $0xec] sm:$0x1]
  %v8441 = vld [vmem:[%s8358 + $0xf8] sm:$0x1]
  %v8442 = vld [vmem:[%s8358 + $0x104] sm:$0x1]
  %v8443 = vld [vmem:[%s8358 + $0x110] sm:$0x1]
  %v8444 = vld [vmem:[%s8358 + $0x11c] sm:$0x1]
  %v8445 = vld [vmem:[%s8358 + $0x128] sm:$0x1]
  %v8446 = vld [vmem:[%s8358 + $0x134] sm:$0x1]
  %v8447 = vld [vmem:[%s8358 + $0x140] sm:$0x1]
  %v8448 = vld [vmem:[%s8358 + $0x14c] sm:$0x1]
  %v8449 = vld [vmem:[%s8358 + $0x158] sm:$0x1]
  %v8450 = vld [vmem:[%s8358 + $0x164] sm:$0x1]
  %v8451 = vld [vmem:[%s8358 + $0x170] sm:$0x1]
  %v8452 = vld [vmem:[%s8358 + $0x17c] sm:$0x1]
  %v8453 = vld [vmem:[%s8358 + $0x188] sm:$0x1]
  %v8454 = vld [vmem:[%s8358 + $0x194] sm:$0x1]
  %v8455 = vld [vmem:[%s8358] sm:$0xe]
  %v8456 = vld [vmem:[%s8358 + $0xc] sm:$0xe]
  %v8457 = vld [vmem:[%s8358 + $0x18] sm:$0xe]
  %v8458 = vld [vmem:[%s8358 + $0x24] sm:$0xe]
  %v8459 = vld [vmem:[%s8358 + $0x30] sm:$0xe]
  %v8460 = vld [vmem:[%s8358 + $0x3c] sm:$0xe]
  %v8461 = vld [vmem:[%s8358 + $0x48] sm:$0xe]
  %v8462 = vld [vmem:[%s8358 + $0x54] sm:$0xe]
  %v8463 = vld [vmem:[%s8358 + $0x60] sm:$0xe]
  %v8464 = vld [vmem:[%s8358 + $0x6c] sm:$0xe]
  %v8465 = vld [vmem:[%s8358 + $0x78] sm:$0xe]
  %v8466 = vld [vmem:[%s8358 + $0x84] sm:$0xe]
  %v8467 = vld [vmem:[%s8358 + $0x90] sm:$0xe]
  %v8468 = vld [vmem:[%s8358 + $0x9c] sm:$0xe]
  %v8469 = vld [vmem:[%s8358 + $0xa8] sm:$0xe]
  %v8470 = vld [vmem:[%s8358 + $0xb4] sm:$0xe]
  %v8471 = vld [vmem:[%s8358 + $0xd8] sm:$0xe]
  %v8472 = vld [vmem:[%s8358 + $0xe4] sm:$0xe]
  %v8473 = vld [vmem:[%s8358 + $0xf0] sm:$0xe]
  %v8474 = vld [vmem:[%s8358 + $0xfc] sm:$0xe]
  %v8475 = vld [vmem:[%s8358 + $0x108] sm:$0xe]
  %v8476 = vld [vmem:[%s8358 + $0x114] sm:$0xe]
  %v8477 = vld [vmem:[%s8358 + $0x120] sm:$0xe]
  %v8478 = vld [vmem:[%s8358 + $0x12c] sm:$0xe]
  %v8479 = vld [vmem:[%s8358 + $0x138] sm:$0xe]
  %v8480 = vld [vmem:[%s8358 + $0x144] sm:$0xe]
  %v8481 = vld [vmem:[%s8358 + $0x150] sm:$0xe]
  %v8482 = vld [vmem:[%s8358 + $0x15c] sm:$0xe]
  %v8483 = vld [vmem:[%s8358 + $0x168] sm:$0xe]
  %v8484 = vld [vmem:[%s8358 + $0x174] sm:$0xe]
  %v8485 = vld [vmem:[%s8358 + $0x180] sm:$0xe]
  %v8486 = vld [vmem:[%s8358 + $0x18c] sm:$0xe]
  %v8551 = vunpack.c.l.b16 %v8102
  %v8552 = vunpack.c.l.b16 %v8103
  %v8553 = vunpack.c.l.b16 %v8104
  %v8554 = vunpack.c.l.b16 %v8105
  %v8555 = vunpack.c.l.b16 %v8106
  %v8556 = vunpack.c.l.b16 %v8107
  %v8557 = vunpack.c.l.b16 %v8108
  %v8558 = vunpack.c.l.b16 %v8109
  %v8559 = vunpack.c.l.b16 %v8110
  %v8560 = vunpack.c.l.b16 %v8111
  %v8561 = vunpack.c.l.b16 %v8112
  %v8562 = vunpack.c.l.b16 %v8113
  %v8563 = vunpack.c.l.b16 %v8114
  %v8564 = vunpack.c.l.b16 %v8115
  %v8565 = vunpack.c.l.b16 %v8116
  %v8566 = vunpack.c.l.b16 %v8117
  %v8567 = vunpack.c.l.b16 %v8118
  %v8568 = vunpack.c.l.b16 %v8119
  %v8569 = vunpack.c.l.b16 %v8120
  %v8570 = vunpack.c.l.b16 %v8121
  %v8571 = vunpack.c.l.b16 %v8122
  %v8572 = vunpack.c.l.b16 %v8123
  %v8573 = vunpack.c.l.b16 %v8124
  %v8574 = vunpack.c.l.b16 %v8125
  %v8575 = vunpack.c.l.b16 %v8126
  %v8576 = vunpack.c.l.b16 %v8127
  %v8577 = vunpack.c.l.b16 %v8128
  %v8578 = vunpack.c.l.b16 %v8129
  %v8579 = vunpack.c.l.b16 %v8130
  %v8580 = vunpack.c.l.b16 %v8131
  %v8581 = vunpack.c.l.b16 %v8132
  %v8582 = vunpack.c.l.b16 %v8133
  %v8583 = vunpack.c.l.b16 %v8134
  %v8584 = vunpack.c.l.b16 %v8135
  %v8585 = vunpack.c.l.b16 %v8136
  %v8586 = vunpack.c.l.b16 %v8137
  %v8587 = vunpack.c.l.b16 %v8138
  %v8588 = vunpack.c.l.b16 %v8139
  %v8589 = vunpack.c.l.b16 %v8140
  %v8590 = vunpack.c.l.b16 %v8141
  %v8591 = vunpack.c.l.b16 %v8142
  %v8592 = vunpack.c.l.b16 %v8143
  %v8593 = vunpack.c.l.b16 %v8144
  %v8594 = vunpack.c.l.b16 %v8145
  %v8595 = vunpack.c.l.b16 %v8146
  %v8596 = vunpack.c.l.b16 %v8147
  %v8597 = vunpack.c.l.b16 %v8148
  %v8598 = vunpack.c.l.b16 %v8149
  %v8599 = vunpack.c.l.b16 %v8150
  %v8600 = vunpack.c.l.b16 %v8151
  %v8601 = vunpack.c.l.b16 %v8152
  %v8602 = vunpack.c.l.b16 %v8153
  %v8603 = vunpack.c.l.b16 %v8154
  %v8604 = vunpack.c.l.b16 %v8155
  %v8605 = vunpack.c.l.b16 %v8156
  %v8606 = vunpack.c.l.b16 %v8157
  %v8607 = vunpack.c.l.b16 %v8158
  %v8608 = vunpack.c.l.b16 %v8159
  %v8609 = vunpack.c.l.b16 %v8160
  %v8610 = vunpack.c.l.b16 %v8161
  %v8611 = vunpack.c.l.b16 %v8162
  %v8612 = vunpack.c.l.b16 %v8163
  %v8613 = vunpack.c.l.b16 %v8164
  %v8614 = vunpack.c.l.b16 %v8165
  %v8615 = vpack.c.b16 %v8552, %v8551
  %v8616 = vpack.c.b16 %v8554, %v8553
  %v8617 = vpack.c.b16 %v8556, %v8555
  %v8618 = vpack.c.b16 %v8558, %v8557
  %v8619 = vpack.c.b16 %v8560, %v8559
  %v8620 = vpack.c.b16 %v8562, %v8561
  %v8621 = vpack.c.b16 %v8564, %v8563
  %v8622 = vpack.c.b16 %v8566, %v8565
  %v8623 = vpack.c.b16 %v8568, %v8567
  %v8624 = vpack.c.b16 %v8570, %v8569
  %v8625 = vpack.c.b16 %v8572, %v8571
  %v8626 = vpack.c.b16 %v8574, %v8573
  %v8627 = vpack.c.b16 %v8576, %v8575
  %v8628 = vpack.c.b16 %v8578, %v8577
  %v8629 = vpack.c.b16 %v8580, %v8579
  %v8630 = vpack.c.b16 %v8582, %v8581
  %v8631 = vpack.c.b16 %v8584, %v8583
  %v8632 = vpack.c.b16 %v8586, %v8585
  %v8633 = vpack.c.b16 %v8588, %v8587
  %v8634 = vpack.c.b16 %v8590, %v8589
  %v8635 = vpack.c.b16 %v8592, %v8591
  %v8636 = vpack.c.b16 %v8594, %v8593
  %v8637 = vpack.c.b16 %v8596, %v8595
  %v8638 = vpack.c.b16 %v8598, %v8597
  %v8639 = vpack.c.b16 %v8600, %v8599
  %v8640 = vpack.c.b16 %v8602, %v8601
  %v8641 = vpack.c.b16 %v8604, %v8603
  %v8642 = vpack.c.b16 %v8606, %v8605
  %v8643 = vpack.c.b16 %v8608, %v8607
  %v8644 = vpack.c.b16 %v8610, %v8609
  %v8645 = vpack.c.b16 %v8612, %v8611
  %v8646 = vpack.c.b16 %v8614, %v8613
  %v8679 = vunpack.c.l.b16 %v8166
  %v8680 = vunpack.c.l.b16 %v8167
  %v8681 = vunpack.c.l.b16 %v8168
  %v8682 = vunpack.c.l.b16 %v8169
  %v8683 = vunpack.c.l.b16 %v8170
  %v8684 = vunpack.c.l.b16 %v8171
  %v8685 = vunpack.c.l.b16 %v8172
  %v8686 = vunpack.c.l.b16 %v8173
  %v8687 = vunpack.c.l.b16 %v8174
  %v8688 = vunpack.c.l.b16 %v8175
  %v8689 = vunpack.c.l.b16 %v8176
  %v8690 = vunpack.c.l.b16 %v8177
  %v8691 = vunpack.c.l.b16 %v8178
  %v8692 = vunpack.c.l.b16 %v8179
  %v8693 = vunpack.c.l.b16 %v8180
  %v8694 = vunpack.c.l.b16 %v8181
  %v8695 = vunpack.c.l.b16 %v8182
  %v8696 = vunpack.c.l.b16 %v8183
  %v8697 = vunpack.c.l.b16 %v8184
  %v8698 = vunpack.c.l.b16 %v8185
  %v8699 = vunpack.c.l.b16 %v8186
  %v8700 = vunpack.c.l.b16 %v8187
  %v8701 = vunpack.c.l.b16 %v8188
  %v8702 = vunpack.c.l.b16 %v8189
  %v8703 = vunpack.c.l.b16 %v8190
  %v8704 = vunpack.c.l.b16 %v8191
  %v8705 = vunpack.c.l.b16 %v8192
  %v8706 = vunpack.c.l.b16 %v8193
  %v8707 = vunpack.c.l.b16 %v8194
  %v8708 = vunpack.c.l.b16 %v8195
  %v8709 = vunpack.c.l.b16 %v8196
  %v8710 = vunpack.c.l.b16 %v8197
  %v8711 = vpack.c.b16 %v8679, %v8679
  %v8712 = vpack.c.b16 %v8680, %v8680
  %v8713 = vpack.c.b16 %v8681, %v8681
  %v8714 = vpack.c.b16 %v8682, %v8682
  %v8715 = vpack.c.b16 %v8683, %v8683
  %v8716 = vpack.c.b16 %v8684, %v8684
  %v8717 = vpack.c.b16 %v8685, %v8685
  %v8718 = vpack.c.b16 %v8686, %v8686
  %v8719 = vpack.c.b16 %v8687, %v8687
  %v8720 = vpack.c.b16 %v8688, %v8688
  %v8721 = vpack.c.b16 %v8689, %v8689
  %v8722 = vpack.c.b16 %v8690, %v8690
  %v8723 = vpack.c.b16 %v8691, %v8691
  %v8724 = vpack.c.b16 %v8692, %v8692
  %v8725 = vpack.c.b16 %v8693, %v8693
  %v8726 = vpack.c.b16 %v8694, %v8694
  %v8727 = vpack.c.b16 %v8695, %v8695
  %v8728 = vpack.c.b16 %v8696, %v8696
  %v8729 = vpack.c.b16 %v8697, %v8697
  %v8730 = vpack.c.b16 %v8698, %v8698
  %v8731 = vpack.c.b16 %v8699, %v8699
  %v8732 = vpack.c.b16 %v8700, %v8700
  %v8733 = vpack.c.b16 %v8701, %v8701
  %v8734 = vpack.c.b16 %v8702, %v8702
  %v8735 = vpack.c.b16 %v8703, %v8703
  %v8736 = vpack.c.b16 %v8704, %v8704
  %v8737 = vpack.c.b16 %v8705, %v8705
  %v8738 = vpack.c.b16 %v8706, %v8706
  %v8739 = vpack.c.b16 %v8707, %v8707
  %v8740 = vpack.c.b16 %v8708, %v8708
  %v8741 = vpack.c.b16 %v8709, %v8709
  %v8742 = vpack.c.b16 %v8710, %v8710
  %v8744 = vshrl.u32 %v8615, 16
  %v8746 = vshll.u32 %v8615, 16
  %v8748 = vrot.slane %v8746, 1
  %v8749 = vor.u32 %v8744, %v8748
  %v8751 = vshll.u32 %v8711, 16
  %v8753 = vrot.slane %v8751, 1
  %v8754 = vsel %vm2964, %v8749, %v8753
  %v8756 = vshrl.u32 %v8616, 16
  %v8758 = vshll.u32 %v8616, 16
  %v8760 = vrot.slane %v8758, 1
  %v8761 = vor.u32 %v8756, %v8760
  %v8763 = vshll.u32 %v8712, 16
  %v8765 = vrot.slane %v8763, 1
  %v8766 = vsel %vm2964, %v8761, %v8765
  %v8768 = vshrl.u32 %v8617, 16
  %v8770 = vshll.u32 %v8617, 16
  %v8772 = vrot.slane %v8770, 1
  %v8773 = vor.u32 %v8768, %v8772
  %v8775 = vshll.u32 %v8713, 16
  %v8777 = vrot.slane %v8775, 1
  %v8778 = vsel %vm2964, %v8773, %v8777
  %v8780 = vshrl.u32 %v8618, 16
  %v8782 = vshll.u32 %v8618, 16
  %v8784 = vrot.slane %v8782, 1
  %v8785 = vor.u32 %v8780, %v8784
  %v8787 = vshll.u32 %v8714, 16
  %v8789 = vrot.slane %v8787, 1
  %v8790 = vsel %vm2964, %v8785, %v8789
  %v8792 = vshrl.u32 %v8619, 16
  %v8794 = vshll.u32 %v8619, 16
  %v8796 = vrot.slane %v8794, 1
  %v8797 = vor.u32 %v8792, %v8796
  %v8799 = vshll.u32 %v8715, 16
  %v8801 = vrot.slane %v8799, 1
  %v8802 = vsel %vm2964, %v8797, %v8801
  %v8804 = vshrl.u32 %v8620, 16
  %v8806 = vshll.u32 %v8620, 16
  %v8808 = vrot.slane %v8806, 1
  %v8809 = vor.u32 %v8804, %v8808
  %v8811 = vshll.u32 %v8716, 16
  %v8813 = vrot.slane %v8811, 1
  %v8814 = vsel %vm2964, %v8809, %v8813
  %v8816 = vshrl.u32 %v8621, 16
  %v8818 = vshll.u32 %v8621, 16
  %v8820 = vrot.slane %v8818, 1
  %v8821 = vor.u32 %v8816, %v8820
  %v8823 = vshll.u32 %v8717, 16
  %v8825 = vrot.slane %v8823, 1
  %v8826 = vsel %vm2964, %v8821, %v8825
  %v8828 = vshrl.u32 %v8622, 16
  %v8830 = vshll.u32 %v8622, 16
  %v8832 = vrot.slane %v8830, 1
  %v8833 = vor.u32 %v8828, %v8832
  %v8835 = vshll.u32 %v8718, 16
  %v8837 = vrot.slane %v8835, 1
  %v8838 = vsel %vm2964, %v8833, %v8837
  %v8840 = vshrl.u32 %v8623, 16
  %v8842 = vshll.u32 %v8623, 16
  %v8844 = vrot.slane %v8842, 1
  %v8845 = vor.u32 %v8840, %v8844
  %v8847 = vshll.u32 %v8719, 16
  %v8849 = vrot.slane %v8847, 1
  %v8850 = vsel %vm2964, %v8845, %v8849
  %v8852 = vshrl.u32 %v8624, 16
  %v8854 = vshll.u32 %v8624, 16
  %v8856 = vrot.slane %v8854, 1
  %v8857 = vor.u32 %v8852, %v8856
  %v8859 = vshll.u32 %v8720, 16
  %v8861 = vrot.slane %v8859, 1
  %v8862 = vsel %vm2964, %v8857, %v8861
  %v8864 = vshrl.u32 %v8625, 16
  %v8866 = vshll.u32 %v8625, 16
  %v8868 = vrot.slane %v8866, 1
  %v8869 = vor.u32 %v8864, %v8868
  %v8871 = vshll.u32 %v8721, 16
  %v8873 = vrot.slane %v8871, 1
  %v8874 = vsel %vm2964, %v8869, %v8873
  %v8876 = vshrl.u32 %v8626, 16
  %v8878 = vshll.u32 %v8626, 16
  %v8880 = vrot.slane %v8878, 1
  %v8881 = vor.u32 %v8876, %v8880
  %v8883 = vshll.u32 %v8722, 16
  %v8885 = vrot.slane %v8883, 1
  %v8886 = vsel %vm2964, %v8881, %v8885
  %v8888 = vshrl.u32 %v8627, 16
  %v8890 = vshll.u32 %v8627, 16
  %v8892 = vrot.slane %v8890, 1
  %v8893 = vor.u32 %v8888, %v8892
  %v8895 = vshll.u32 %v8723, 16
  %v8897 = vrot.slane %v8895, 1
  %v8898 = vsel %vm2964, %v8893, %v8897
  %v8900 = vshrl.u32 %v8628, 16
  %v8902 = vshll.u32 %v8628, 16
  %v8904 = vrot.slane %v8902, 1
  %v8905 = vor.u32 %v8900, %v8904
  %v8907 = vshll.u32 %v8724, 16
  %v8909 = vrot.slane %v8907, 1
  %v8910 = vsel %vm2964, %v8905, %v8909
  %v8912 = vshrl.u32 %v8629, 16
  %v8914 = vshll.u32 %v8629, 16
  %v8916 = vrot.slane %v8914, 1
  %v8917 = vor.u32 %v8912, %v8916
  %v8919 = vshll.u32 %v8725, 16
  %v8921 = vrot.slane %v8919, 1
  %v8922 = vsel %vm2964, %v8917, %v8921
  %v8924 = vshrl.u32 %v8630, 16
  %v8926 = vshll.u32 %v8630, 16
  %v8928 = vrot.slane %v8926, 1
  %v8929 = vor.u32 %v8924, %v8928
  %v8931 = vshll.u32 %v8726, 16
  %v8933 = vrot.slane %v8931, 1
  %v8934 = vsel %vm2964, %v8929, %v8933
  %v8936 = vshrl.u32 %v8631, 16
  %v8938 = vshll.u32 %v8631, 16
  %v8940 = vrot.slane %v8938, 1
  %v8941 = vor.u32 %v8936, %v8940
  %v8943 = vshll.u32 %v8727, 16
  %v8945 = vrot.slane %v8943, 1
  %v8946 = vsel %vm2964, %v8941, %v8945
  %v8948 = vshrl.u32 %v8632, 16
  %v8950 = vshll.u32 %v8632, 16
  %v8952 = vrot.slane %v8950, 1
  %v8953 = vor.u32 %v8948, %v8952
  %v8955 = vshll.u32 %v8728, 16
  %v8957 = vrot.slane %v8955, 1
  %v8958 = vsel %vm2964, %v8953, %v8957
  %v8960 = vshrl.u32 %v8633, 16
  %v8962 = vshll.u32 %v8633, 16
  %v8964 = vrot.slane %v8962, 1
  %v8965 = vor.u32 %v8960, %v8964
  %v8967 = vshll.u32 %v8729, 16
  %v8969 = vrot.slane %v8967, 1
  %v8970 = vsel %vm2964, %v8965, %v8969
  %v8972 = vshrl.u32 %v8634, 16
  %v8974 = vshll.u32 %v8634, 16
  %v8976 = vrot.slane %v8974, 1
  %v8977 = vor.u32 %v8972, %v8976
  %v8979 = vshll.u32 %v8730, 16
  %v8981 = vrot.slane %v8979, 1
  %v8982 = vsel %vm2964, %v8977, %v8981
  %v8984 = vshrl.u32 %v8635, 16
  %v8986 = vshll.u32 %v8635, 16
  %v8988 = vrot.slane %v8986, 1
  %v8989 = vor.u32 %v8984, %v8988
  %v8991 = vshll.u32 %v8731, 16
  %v8993 = vrot.slane %v8991, 1
  %v8994 = vsel %vm2964, %v8989, %v8993
  %v8996 = vshrl.u32 %v8636, 16
  %v8998 = vshll.u32 %v8636, 16
  %v9000 = vrot.slane %v8998, 1
  %v9001 = vor.u32 %v8996, %v9000
  %v9003 = vshll.u32 %v8732, 16
  %v9005 = vrot.slane %v9003, 1
  %v9006 = vsel %vm2964, %v9001, %v9005
  %v9008 = vshrl.u32 %v8637, 16
  %v9010 = vshll.u32 %v8637, 16
  %v9012 = vrot.slane %v9010, 1
  %v9013 = vor.u32 %v9008, %v9012
  %v9015 = vshll.u32 %v8733, 16
  %v9017 = vrot.slane %v9015, 1
  %v9018 = vsel %vm2964, %v9013, %v9017
  %v9020 = vshrl.u32 %v8638, 16
  %v9022 = vshll.u32 %v8638, 16
  %v9024 = vrot.slane %v9022, 1
  %v9025 = vor.u32 %v9020, %v9024
  %v9027 = vshll.u32 %v8734, 16
  %v9029 = vrot.slane %v9027, 1
  %v9030 = vsel %vm2964, %v9025, %v9029
  %v9032 = vshrl.u32 %v8639, 16
  %v9034 = vshll.u32 %v8639, 16
  %v9036 = vrot.slane %v9034, 1
  %v9037 = vor.u32 %v9032, %v9036
  %v9039 = vshll.u32 %v8735, 16
  %v9041 = vrot.slane %v9039, 1
  %v9042 = vsel %vm2964, %v9037, %v9041
  %v9044 = vshrl.u32 %v8640, 16
  %v9046 = vshll.u32 %v8640, 16
  %v9048 = vrot.slane %v9046, 1
  %v9049 = vor.u32 %v9044, %v9048
  %v9051 = vshll.u32 %v8736, 16
  %v9053 = vrot.slane %v9051, 1
  %v9054 = vsel %vm2964, %v9049, %v9053
  %v9056 = vshrl.u32 %v8641, 16
  %v9058 = vshll.u32 %v8641, 16
  %v9060 = vrot.slane %v9058, 1
  %v9061 = vor.u32 %v9056, %v9060
  %v9063 = vshll.u32 %v8737, 16
  %v9065 = vrot.slane %v9063, 1
  %v9066 = vsel %vm2964, %v9061, %v9065
  %v9068 = vshrl.u32 %v8642, 16
  %v9070 = vshll.u32 %v8642, 16
  %v9072 = vrot.slane %v9070, 1
  %v9073 = vor.u32 %v9068, %v9072
  %v9075 = vshll.u32 %v8738, 16
  %v9077 = vrot.slane %v9075, 1
  %v9078 = vsel %vm2964, %v9073, %v9077
  %v9080 = vshrl.u32 %v8643, 16
  %v9082 = vshll.u32 %v8643, 16
  %v9084 = vrot.slane %v9082, 1
  %v9085 = vor.u32 %v9080, %v9084
  %v9087 = vshll.u32 %v8739, 16
  %v9089 = vrot.slane %v9087, 1
  %v9090 = vsel %vm2964, %v9085, %v9089
  %v9092 = vshrl.u32 %v8644, 16
  %v9094 = vshll.u32 %v8644, 16
  %v9096 = vrot.slane %v9094, 1
  %v9097 = vor.u32 %v9092, %v9096
  %v9099 = vshll.u32 %v8740, 16
  %v9101 = vrot.slane %v9099, 1
  %v9102 = vsel %vm2964, %v9097, %v9101
  %v9104 = vshrl.u32 %v8645, 16
  %v9106 = vshll.u32 %v8645, 16
  %v9108 = vrot.slane %v9106, 1
  %v9109 = vor.u32 %v9104, %v9108
  %v9111 = vshll.u32 %v8741, 16
  %v9113 = vrot.slane %v9111, 1
  %v9114 = vsel %vm2964, %v9109, %v9113
  %v9116 = vshrl.u32 %v8646, 16
  %v9118 = vshll.u32 %v8646, 16
  %v9120 = vrot.slane %v9118, 1
  %v9121 = vor.u32 %v9116, %v9120
  %v9123 = vshll.u32 %v8742, 16
  %v9125 = vrot.slane %v9123, 1
  %v9126 = vsel %vm2964, %v9121, %v9125
  %9127 = vrot.lane.b32.xlu0 %v8754, 8
  %v9128 = vpop.permute.xlu0 %9127
  %9129 = vrot.lane.b32.xlu0 %v8766, 8
  %v9130 = vpop.permute.xlu0 %9129
  %9131 = vrot.lane.b32.xlu0 %v8778, 8
  %v9132 = vpop.permute.xlu0 %9131
  %9133 = vrot.lane.b32.xlu0 %v8790, 8
  %v9134 = vpop.permute.xlu0 %9133
  %9135 = vrot.lane.b32.xlu0 %v8802, 8
  %v9136 = vpop.permute.xlu0 %9135
  %9137 = vrot.lane.b32.xlu0 %v8814, 8
  %v9138 = vpop.permute.xlu0 %9137
  %9139 = vrot.lane.b32.xlu0 %v8826, 8
  %v9140 = vpop.permute.xlu0 %9139
  %9141 = vrot.lane.b32.xlu0 %v8838, 8
  %v9142 = vpop.permute.xlu0 %9141
  %9143 = vrot.lane.b32.xlu0 %v8850, 8
  %v9144 = vpop.permute.xlu0 %9143
  %9145 = vrot.lane.b32.xlu0 %v8862, 8
  %v9146 = vpop.permute.xlu0 %9145
  %9147 = vrot.lane.b32.xlu0 %v8874, 8
  %v9148 = vpop.permute.xlu0 %9147
  %9149 = vrot.lane.b32.xlu0 %v8886, 8
  %v9150 = vpop.permute.xlu0 %9149
  %9151 = vrot.lane.b32.xlu0 %v8898, 8
  %v9152 = vpop.permute.xlu0 %9151
  %9153 = vrot.lane.b32.xlu0 %v8910, 8
  %v9154 = vpop.permute.xlu0 %9153
  %9155 = vrot.lane.b32.xlu0 %v8922, 8
  %v9156 = vpop.permute.xlu0 %9155
  %9157 = vrot.lane.b32.xlu0 %v8934, 8
  %v9158 = vpop.permute.xlu0 %9157
  %9159 = vrot.lane.b32.xlu0 %v8946, 8
  %v9160 = vpop.permute.xlu0 %9159
  %9161 = vrot.lane.b32.xlu0 %v8958, 8
  %v9162 = vpop.permute.xlu0 %9161
  %9163 = vrot.lane.b32.xlu0 %v8970, 8
  %v9164 = vpop.permute.xlu0 %9163
  %9165 = vrot.lane.b32.xlu0 %v8982, 8
  %v9166 = vpop.permute.xlu0 %9165
  %9167 = vrot.lane.b32.xlu0 %v8994, 8
  %v9168 = vpop.permute.xlu0 %9167
  %9169 = vrot.lane.b32.xlu0 %v9006, 8
  %v9170 = vpop.permute.xlu0 %9169
  %9171 = vrot.lane.b32.xlu0 %v9018, 8
  %v9172 = vpop.permute.xlu0 %9171
  %9173 = vrot.lane.b32.xlu0 %v9030, 8
  %v9174 = vpop.permute.xlu0 %9173
  %9175 = vrot.lane.b32.xlu0 %v9042, 8
  %v9176 = vpop.permute.xlu0 %9175
  %9177 = vrot.lane.b32.xlu0 %v9054, 8
  %v9178 = vpop.permute.xlu0 %9177
  %9179 = vrot.lane.b32.xlu0 %v9066, 8
  %v9180 = vpop.permute.xlu0 %9179
  %9181 = vrot.lane.b32.xlu0 %v9078, 8
  %v9182 = vpop.permute.xlu0 %9181
  %9183 = vrot.lane.b32.xlu0 %v9090, 8
  %v9184 = vpop.permute.xlu0 %9183
  %9185 = vrot.lane.b32.xlu0 %v9102, 8
  %v9186 = vpop.permute.xlu0 %9185
  %9187 = vrot.lane.b32.xlu0 %v9114, 8
  %v9188 = vpop.permute.xlu0 %9187
  %9189 = vrot.lane.b32.xlu0 %v9126, 8
  %v9190 = vpop.permute.xlu0 %9189
  %v9223 = vunpack.c.l.b16 %v8198
  %v9224 = vunpack.c.l.b16 %v8199
  %v9225 = vunpack.c.l.b16 %v8200
  %v9226 = vunpack.c.l.b16 %v8201
  %v9227 = vunpack.c.l.b16 %v8202
  %v9228 = vunpack.c.l.b16 %v8203
  %v9229 = vunpack.c.l.b16 %v8204
  %v9230 = vunpack.c.l.b16 %v8205
  %v9231 = vunpack.c.l.b16 %v8206
  %v9232 = vunpack.c.l.b16 %v8207
  %v9233 = vunpack.c.l.b16 %v8208
  %v9234 = vunpack.c.l.b16 %v8209
  %v9235 = vunpack.c.l.b16 %v8210
  %v9236 = vunpack.c.l.b16 %v8211
  %v9237 = vunpack.c.l.b16 %v8212
  %v9238 = vunpack.c.l.b16 %v8213
  %v9239 = vunpack.c.l.b16 %v8214
  %v9240 = vunpack.c.l.b16 %v8215
  %v9241 = vunpack.c.l.b16 %v8216
  %v9242 = vunpack.c.l.b16 %v8217
  %v9243 = vunpack.c.l.b16 %v8218
  %v9244 = vunpack.c.l.b16 %v8219
  %v9245 = vunpack.c.l.b16 %v8220
  %v9246 = vunpack.c.l.b16 %v8221
  %v9247 = vunpack.c.l.b16 %v8222
  %v9248 = vunpack.c.l.b16 %v8223
  %v9249 = vunpack.c.l.b16 %v8224
  %v9250 = vunpack.c.l.b16 %v8225
  %v9251 = vunpack.c.l.b16 %v8226
  %v9252 = vunpack.c.l.b16 %v8227
  %v9253 = vunpack.c.l.b16 %v8228
  %v9254 = vunpack.c.l.b16 %v8229
  %v9255 = vpack.c.b16 %v8552, %v9223
  %v9256 = vpack.c.b16 %v8554, %v9224
  %v9257 = vpack.c.b16 %v8556, %v9225
  %v9258 = vpack.c.b16 %v8558, %v9226
  %v9259 = vpack.c.b16 %v8560, %v9227
  %v9260 = vpack.c.b16 %v8562, %v9228
  %v9261 = vpack.c.b16 %v8564, %v9229
  %v9262 = vpack.c.b16 %v8566, %v9230
  %v9263 = vpack.c.b16 %v8568, %v9231
  %v9264 = vpack.c.b16 %v8570, %v9232
  %v9265 = vpack.c.b16 %v8572, %v9233
  %v9266 = vpack.c.b16 %v8574, %v9234
  %v9267 = vpack.c.b16 %v8576, %v9235
  %v9268 = vpack.c.b16 %v8578, %v9236
  %v9269 = vpack.c.b16 %v8580, %v9237
  %v9270 = vpack.c.b16 %v8582, %v9238
  %v9271 = vpack.c.b16 %v8584, %v9239
  %v9272 = vpack.c.b16 %v8586, %v9240
  %v9273 = vpack.c.b16 %v8588, %v9241
  %v9274 = vpack.c.b16 %v8590, %v9242
  %v9275 = vpack.c.b16 %v8592, %v9243
  %v9276 = vpack.c.b16 %v8594, %v9244
  %v9277 = vpack.c.b16 %v8596, %v9245
  %v9278 = vpack.c.b16 %v8598, %v9246
  %v9279 = vpack.c.b16 %v8600, %v9247
  %v9280 = vpack.c.b16 %v8602, %v9248
  %v9281 = vpack.c.b16 %v8604, %v9249
  %v9282 = vpack.c.b16 %v8606, %v9250
  %v9283 = vpack.c.b16 %v8608, %v9251
  %v9284 = vpack.c.b16 %v8610, %v9252
  %v9285 = vpack.c.b16 %v8612, %v9253
  %v9286 = vpack.c.b16 %v8614, %v9254
  %v9287 = vrot.slane %v9255, 1
  %v9288 = vrot.slane %v8711, 1
  %v9289 = vsel %vm3509, %v9287, %v9288
  %v9290 = vrot.slane %v9256, 1
  %v9291 = vrot.slane %v8712, 1
  %v9292 = vsel %vm3509, %v9290, %v9291
  %v9293 = vrot.slane %v9257, 1
  %v9294 = vrot.slane %v8713, 1
  %v9295 = vsel %vm3509, %v9293, %v9294
  %v9296 = vrot.slane %v9258, 1
  %v9297 = vrot.slane %v8714, 1
  %v9298 = vsel %vm3509, %v9296, %v9297
  %v9299 = vrot.slane %v9259, 1
  %v9300 = vrot.slane %v8715, 1
  %v9301 = vsel %vm3509, %v9299, %v9300
  %v9302 = vrot.slane %v9260, 1
  %v9303 = vrot.slane %v8716, 1
  %v9304 = vsel %vm3509, %v9302, %v9303
  %v9305 = vrot.slane %v9261, 1
  %v9306 = vrot.slane %v8717, 1
  %v9307 = vsel %vm3509, %v9305, %v9306
  %v9308 = vrot.slane %v9262, 1
  %v9309 = vrot.slane %v8718, 1
  %v9310 = vsel %vm3509, %v9308, %v9309
  %v9311 = vrot.slane %v9263, 1
  %v9312 = vrot.slane %v8719, 1
  %v9313 = vsel %vm3509, %v9311, %v9312
  %v9314 = vrot.slane %v9264, 1
  %v9315 = vrot.slane %v8720, 1
  %v9316 = vsel %vm3509, %v9314, %v9315
  %v9317 = vrot.slane %v9265, 1
  %v9318 = vrot.slane %v8721, 1
  %v9319 = vsel %vm3509, %v9317, %v9318
  %v9320 = vrot.slane %v9266, 1
  %v9321 = vrot.slane %v8722, 1
  %v9322 = vsel %vm3509, %v9320, %v9321
  %v9323 = vrot.slane %v9267, 1
  %v9324 = vrot.slane %v8723, 1
  %v9325 = vsel %vm3509, %v9323, %v9324
  %v9326 = vrot.slane %v9268, 1
  %v9327 = vrot.slane %v8724, 1
  %v9328 = vsel %vm3509, %v9326, %v9327
  %v9329 = vrot.slane %v9269, 1
  %v9330 = vrot.slane %v8725, 1
  %v9331 = vsel %vm3509, %v9329, %v9330
  %v9332 = vrot.slane %v9270, 1
  %v9333 = vrot.slane %v8726, 1
  %v9334 = vsel %vm3509, %v9332, %v9333
  %v9335 = vrot.slane %v9271, 1
  %v9336 = vrot.slane %v8727, 1
  %v9337 = vsel %vm3509, %v9335, %v9336
  %v9338 = vrot.slane %v9272, 1
  %v9339 = vrot.slane %v8728, 1
  %v9340 = vsel %vm3509, %v9338, %v9339
  %v9341 = vrot.slane %v9273, 1
  %v9342 = vrot.slane %v8729, 1
  %v9343 = vsel %vm3509, %v9341, %v9342
  %v9344 = vrot.slane %v9274, 1
  %v9345 = vrot.slane %v8730, 1
  %v9346 = vsel %vm3509, %v9344, %v9345
  %v9347 = vrot.slane %v9275, 1
  %v9348 = vrot.slane %v8731, 1
  %v9349 = vsel %vm3509, %v9347, %v9348
  %v9350 = vrot.slane %v9276, 1
  %v9351 = vrot.slane %v8732, 1
  %v9352 = vsel %vm3509, %v9350, %v9351
  %v9353 = vrot.slane %v9277, 1
  %v9354 = vrot.slane %v8733, 1
  %v9355 = vsel %vm3509, %v9353, %v9354
  %v9356 = vrot.slane %v9278, 1
  %v9357 = vrot.slane %v8734, 1
  %v9358 = vsel %vm3509, %v9356, %v9357
  %v9359 = vrot.slane %v9279, 1
  %v9360 = vrot.slane %v8735, 1
  %v9361 = vsel %vm3509, %v9359, %v9360
  %v9362 = vrot.slane %v9280, 1
  %v9363 = vrot.slane %v8736, 1
  %v9364 = vsel %vm3509, %v9362, %v9363
  %v9365 = vrot.slane %v9281, 1
  %v9366 = vrot.slane %v8737, 1
  %v9367 = vsel %vm3509, %v9365, %v9366
  %v9368 = vrot.slane %v9282, 1
  %v9369 = vrot.slane %v8738, 1
  %v9370 = vsel %vm3509, %v9368, %v9369
  %v9371 = vrot.slane %v9283, 1
  %v9372 = vrot.slane %v8739, 1
  %v9373 = vsel %vm3509, %v9371, %v9372
  %v9374 = vrot.slane %v9284, 1
  %v9375 = vrot.slane %v8740, 1
  %v9376 = vsel %vm3509, %v9374, %v9375
  %v9377 = vrot.slane %v9285, 1
  %v9378 = vrot.slane %v8741, 1
  %v9379 = vsel %vm3509, %v9377, %v9378
  %v9380 = vrot.slane %v9286, 1
  %v9381 = vrot.slane %v8742, 1
  %v9382 = vsel %vm3509, %v9380, %v9381
  %9383 = vrot.lane.b32.xlu0 %v9289, 16
  %v9384 = vpop.permute.xlu0 %9383
  %9385 = vrot.lane.b32.xlu0 %v9292, 16
  %v9386 = vpop.permute.xlu0 %9385
  %9387 = vrot.lane.b32.xlu0 %v9295, 16
  %v9388 = vpop.permute.xlu0 %9387
  %9389 = vrot.lane.b32.xlu0 %v9298, 16
  %v9390 = vpop.permute.xlu0 %9389
  %9391 = vrot.lane.b32.xlu0 %v9301, 16
  %v9392 = vpop.permute.xlu0 %9391
  %9393 = vrot.lane.b32.xlu0 %v9304, 16
  %v9394 = vpop.permute.xlu0 %9393
  %9395 = vrot.lane.b32.xlu0 %v9307, 16
  %v9396 = vpop.permute.xlu0 %9395
  %9397 = vrot.lane.b32.xlu0 %v9310, 16
  %v9398 = vpop.permute.xlu0 %9397
  %9399 = vrot.lane.b32.xlu0 %v9313, 16
  %v9400 = vpop.permute.xlu0 %9399
  %9401 = vrot.lane.b32.xlu0 %v9316, 16
  %v9402 = vpop.permute.xlu0 %9401
  %9403 = vrot.lane.b32.xlu0 %v9319, 16
  %v9404 = vpop.permute.xlu0 %9403
  %9405 = vrot.lane.b32.xlu0 %v9322, 16
  %v9406 = vpop.permute.xlu0 %9405
  %9407 = vrot.lane.b32.xlu0 %v9325, 16
  %v9408 = vpop.permute.xlu0 %9407
  %9409 = vrot.lane.b32.xlu0 %v9328, 16
  %v9410 = vpop.permute.xlu0 %9409
  %9411 = vrot.lane.b32.xlu0 %v9331, 16
  %v9412 = vpop.permute.xlu0 %9411
  %9413 = vrot.lane.b32.xlu0 %v9334, 16
  %v9414 = vpop.permute.xlu0 %9413
  %9415 = vrot.lane.b32.xlu0 %v9337, 16
  %v9416 = vpop.permute.xlu0 %9415
  %9417 = vrot.lane.b32.xlu0 %v9340, 16
  %v9418 = vpop.permute.xlu0 %9417
  %9419 = vrot.lane.b32.xlu0 %v9343, 16
  %v9420 = vpop.permute.xlu0 %9419
  %9421 = vrot.lane.b32.xlu0 %v9346, 16
  %v9422 = vpop.permute.xlu0 %9421
  %9423 = vrot.lane.b32.xlu0 %v9349, 16
  %v9424 = vpop.permute.xlu0 %9423
  %9425 = vrot.lane.b32.xlu0 %v9352, 16
  %v9426 = vpop.permute.xlu0 %9425
  %9427 = vrot.lane.b32.xlu0 %v9355, 16
  %v9428 = vpop.permute.xlu0 %9427
  %9429 = vrot.lane.b32.xlu0 %v9358, 16
  %v9430 = vpop.permute.xlu0 %9429
  %9431 = vrot.lane.b32.xlu0 %v9361, 16
  %v9432 = vpop.permute.xlu0 %9431
  %9433 = vrot.lane.b32.xlu0 %v9364, 16
  %v9434 = vpop.permute.xlu0 %9433
  %9435 = vrot.lane.b32.xlu0 %v9367, 16
  %v9436 = vpop.permute.xlu0 %9435
  %9437 = vrot.lane.b32.xlu0 %v9370, 16
  %v9438 = vpop.permute.xlu0 %9437
  %9439 = vrot.lane.b32.xlu0 %v9373, 16
  %v9440 = vpop.permute.xlu0 %9439
  %9441 = vrot.lane.b32.xlu0 %v9376, 16
  %v9442 = vpop.permute.xlu0 %9441
  %9443 = vrot.lane.b32.xlu0 %v9379, 16
  %v9444 = vpop.permute.xlu0 %9443
  %9445 = vrot.lane.b32.xlu0 %v9382, 16
  %v9446 = vpop.permute.xlu0 %9445
  %v9511 = vunpack.c.l.b16 %v8230
  %v9512 = vunpack.c.l.b16 %v8231
  %v9513 = vunpack.c.l.b16 %v8232
  %v9514 = vunpack.c.l.b16 %v8233
  %v9515 = vunpack.c.l.b16 %v8234
  %v9516 = vunpack.c.l.b16 %v8235
  %v9517 = vunpack.c.l.b16 %v8236
  %v9518 = vunpack.c.l.b16 %v8237
  %v9519 = vunpack.c.l.b16 %v8238
  %v9520 = vunpack.c.l.b16 %v8239
  %v9521 = vunpack.c.l.b16 %v8240
  %v9522 = vunpack.c.l.b16 %v8241
  %v9523 = vunpack.c.l.b16 %v8242
  %v9524 = vunpack.c.l.b16 %v8243
  %v9525 = vunpack.c.l.b16 %v8244
  %v9526 = vunpack.c.l.b16 %v8245
  %v9527 = vunpack.c.l.b16 %v8246
  %v9528 = vunpack.c.l.b16 %v8247
  %v9529 = vunpack.c.l.b16 %v8248
  %v9530 = vunpack.c.l.b16 %v8249
  %v9531 = vunpack.c.l.b16 %v8250
  %v9532 = vunpack.c.l.b16 %v8251
  %v9533 = vunpack.c.l.b16 %v8252
  %v9534 = vunpack.c.l.b16 %v8253
  %v9535 = vunpack.c.l.b16 %v8254
  %v9536 = vunpack.c.l.b16 %v8255
  %v9537 = vunpack.c.l.b16 %v8256
  %v9538 = vunpack.c.l.b16 %v8257
  %v9539 = vunpack.c.l.b16 %v8258
  %v9540 = vunpack.c.l.b16 %v8259
  %v9541 = vunpack.c.l.b16 %v8260
  %v9542 = vunpack.c.l.b16 %v8261
  %v9543 = vunpack.c.l.b16 %v8262
  %v9544 = vunpack.c.l.b16 %v8263
  %v9545 = vunpack.c.l.b16 %v8264
  %v9546 = vunpack.c.l.b16 %v8265
  %v9547 = vunpack.c.l.b16 %v8266
  %v9548 = vunpack.c.l.b16 %v8267
  %v9549 = vunpack.c.l.b16 %v8268
  %v9550 = vunpack.c.l.b16 %v8269
  %v9551 = vunpack.c.l.b16 %v8270
  %v9552 = vunpack.c.l.b16 %v8271
  %v9553 = vunpack.c.l.b16 %v8272
  %v9554 = vunpack.c.l.b16 %v8273
  %v9555 = vunpack.c.l.b16 %v8274
  %v9556 = vunpack.c.l.b16 %v8275
  %v9557 = vunpack.c.l.b16 %v8276
  %v9558 = vunpack.c.l.b16 %v8277
  %v9559 = vunpack.c.l.b16 %v8278
  %v9560 = vunpack.c.l.b16 %v8279
  %v9561 = vunpack.c.l.b16 %v8280
  %v9562 = vunpack.c.l.b16 %v8281
  %v9563 = vunpack.c.l.b16 %v8282
  %v9564 = vunpack.c.l.b16 %v8283
  %v9565 = vunpack.c.l.b16 %v8284
  %v9566 = vunpack.c.l.b16 %v8285
  %v9567 = vunpack.c.l.b16 %v8286
  %v9568 = vunpack.c.l.b16 %v8287
  %v9569 = vunpack.c.l.b16 %v8288
  %v9570 = vunpack.c.l.b16 %v8289
  %v9571 = vunpack.c.l.b16 %v8290
  %v9572 = vunpack.c.l.b16 %v8291
  %v9573 = vunpack.c.l.b16 %v8292
  %v9574 = vunpack.c.l.b16 %v8293
  %v9575 = vpack.c.b16 %v9512, %v9511
  %v9576 = vpack.c.b16 %v9514, %v9513
  %v9577 = vpack.c.b16 %v9516, %v9515
  %v9578 = vpack.c.b16 %v9518, %v9517
  %v9579 = vpack.c.b16 %v9520, %v9519
  %v9580 = vpack.c.b16 %v9522, %v9521
  %v9581 = vpack.c.b16 %v9524, %v9523
  %v9582 = vpack.c.b16 %v9526, %v9525
  %v9583 = vpack.c.b16 %v9528, %v9527
  %v9584 = vpack.c.b16 %v9530, %v9529
  %v9585 = vpack.c.b16 %v9532, %v9531
  %v9586 = vpack.c.b16 %v9534, %v9533
  %v9587 = vpack.c.b16 %v9536, %v9535
  %v9588 = vpack.c.b16 %v9538, %v9537
  %v9589 = vpack.c.b16 %v9540, %v9539
  %v9590 = vpack.c.b16 %v9542, %v9541
  %v9591 = vpack.c.b16 %v9544, %v9543
  %v9592 = vpack.c.b16 %v9546, %v9545
  %v9593 = vpack.c.b16 %v9548, %v9547
  %v9594 = vpack.c.b16 %v9550, %v9549
  %v9595 = vpack.c.b16 %v9552, %v9551
  %v9596 = vpack.c.b16 %v9554, %v9553
  %v9597 = vpack.c.b16 %v9556, %v9555
  %v9598 = vpack.c.b16 %v9558, %v9557
  %v9599 = vpack.c.b16 %v9560, %v9559
  %v9600 = vpack.c.b16 %v9562, %v9561
  %v9601 = vpack.c.b16 %v9564, %v9563
  %v9602 = vpack.c.b16 %v9566, %v9565
  %v9603 = vpack.c.b16 %v9568, %v9567
  %v9604 = vpack.c.b16 %v9570, %v9569
  %v9605 = vpack.c.b16 %v9572, %v9571
  %v9606 = vpack.c.b16 %v9574, %v9573
  %9607 = vrot.lane.b32.xlu0 %v9575, 24
  %v9608 = vpop.permute.xlu0 %9607
  %9609 = vrot.lane.b32.xlu0 %v9576, 24
  %v9610 = vpop.permute.xlu0 %9609
  %9611 = vrot.lane.b32.xlu0 %v9577, 24
  %v9612 = vpop.permute.xlu0 %9611
  %9613 = vrot.lane.b32.xlu0 %v9578, 24
  %v9614 = vpop.permute.xlu0 %9613
  %9615 = vrot.lane.b32.xlu0 %v9579, 24
  %v9616 = vpop.permute.xlu0 %9615
  %9617 = vrot.lane.b32.xlu0 %v9580, 24
  %v9618 = vpop.permute.xlu0 %9617
  %9619 = vrot.lane.b32.xlu0 %v9581, 24
  %v9620 = vpop.permute.xlu0 %9619
  %9621 = vrot.lane.b32.xlu0 %v9582, 24
  %v9622 = vpop.permute.xlu0 %9621
  %9623 = vrot.lane.b32.xlu0 %v9583, 24
  %v9624 = vpop.permute.xlu0 %9623
  %9625 = vrot.lane.b32.xlu0 %v9584, 24
  %v9626 = vpop.permute.xlu0 %9625
  %9627 = vrot.lane.b32.xlu0 %v9585, 24
  %v9628 = vpop.permute.xlu0 %9627
  %9629 = vrot.lane.b32.xlu0 %v9586, 24
  %v9630 = vpop.permute.xlu0 %9629
  %9631 = vrot.lane.b32.xlu0 %v9587, 24
  %v9632 = vpop.permute.xlu0 %9631
  %9633 = vrot.lane.b32.xlu0 %v9588, 24
  %v9634 = vpop.permute.xlu0 %9633
  %9635 = vrot.lane.b32.xlu0 %v9589, 24
  %v9636 = vpop.permute.xlu0 %9635
  %9637 = vrot.lane.b32.xlu0 %v9590, 24
  %v9638 = vpop.permute.xlu0 %9637
  %9639 = vrot.lane.b32.xlu0 %v9591, 24
  %v9640 = vpop.permute.xlu0 %9639
  %9641 = vrot.lane.b32.xlu0 %v9592, 24
  %v9642 = vpop.permute.xlu0 %9641
  %9643 = vrot.lane.b32.xlu0 %v9593, 24
  %v9644 = vpop.permute.xlu0 %9643
  %9645 = vrot.lane.b32.xlu0 %v9594, 24
  %v9646 = vpop.permute.xlu0 %9645
  %9647 = vrot.lane.b32.xlu0 %v9595, 24
  %v9648 = vpop.permute.xlu0 %9647
  %9649 = vrot.lane.b32.xlu0 %v9596, 24
  %v9650 = vpop.permute.xlu0 %9649
  %9651 = vrot.lane.b32.xlu0 %v9597, 24
  %v9652 = vpop.permute.xlu0 %9651
  %9653 = vrot.lane.b32.xlu0 %v9598, 24
  %v9654 = vpop.permute.xlu0 %9653
  %9655 = vrot.lane.b32.xlu0 %v9599, 24
  %v9656 = vpop.permute.xlu0 %9655
  %9657 = vrot.lane.b32.xlu0 %v9600, 24
  %v9658 = vpop.permute.xlu0 %9657
  %9659 = vrot.lane.b32.xlu0 %v9601, 24
  %v9660 = vpop.permute.xlu0 %9659
  %9661 = vrot.lane.b32.xlu0 %v9602, 24
  %v9662 = vpop.permute.xlu0 %9661
  %9663 = vrot.lane.b32.xlu0 %v9603, 24
  %v9664 = vpop.permute.xlu0 %9663
  %9665 = vrot.lane.b32.xlu0 %v9604, 24
  %v9666 = vpop.permute.xlu0 %9665
  %9667 = vrot.lane.b32.xlu0 %v9605, 24
  %v9668 = vpop.permute.xlu0 %9667
  %9669 = vrot.lane.b32.xlu0 %v9606, 24
  %v9670 = vpop.permute.xlu0 %9669
  %v9703 = vunpack.c.l.b16 %v8294
  %v9704 = vunpack.c.l.b16 %v8295
  %v9705 = vunpack.c.l.b16 %v8296
  %v9706 = vunpack.c.l.b16 %v8297
  %v9707 = vunpack.c.l.b16 %v8298
  %v9708 = vunpack.c.l.b16 %v8299
  %v9709 = vunpack.c.l.b16 %v8300
  %v9710 = vunpack.c.l.b16 %v8301
  %v9711 = vunpack.c.l.b16 %v8302
  %v9712 = vunpack.c.l.b16 %v8303
  %v9713 = vunpack.c.l.b16 %v8304
  %v9714 = vunpack.c.l.b16 %v8305
  %v9715 = vunpack.c.l.b16 %v8306
  %v9716 = vunpack.c.l.b16 %v8307
  %v9717 = vunpack.c.l.b16 %v8308
  %v9718 = vunpack.c.l.b16 %v8309
  %v9719 = vunpack.c.l.b16 %v8310
  %v9720 = vunpack.c.l.b16 %v8311
  %v9721 = vunpack.c.l.b16 %v8312
  %v9722 = vunpack.c.l.b16 %v8313
  %v9723 = vunpack.c.l.b16 %v8314
  %v9724 = vunpack.c.l.b16 %v8315
  %v9725 = vunpack.c.l.b16 %v8316
  %v9726 = vunpack.c.l.b16 %v8317
  %v9727 = vunpack.c.l.b16 %v8318
  %v9728 = vunpack.c.l.b16 %v8319
  %v9729 = vunpack.c.l.b16 %v8320
  %v9730 = vunpack.c.l.b16 %v8321
  %v9731 = vunpack.c.l.b16 %v8322
  %v9732 = vunpack.c.l.b16 %v8323
  %v9733 = vunpack.c.l.b16 %v8324
  %v9734 = vunpack.c.l.b16 %v8325
  %v9735 = vpack.c.b16 %v9703, %v9703
  %v9736 = vpack.c.b16 %v9704, %v9704
  %v9737 = vpack.c.b16 %v9705, %v9705
  %v9738 = vpack.c.b16 %v9706, %v9706
  %v9739 = vpack.c.b16 %v9707, %v9707
  %v9740 = vpack.c.b16 %v9708, %v9708
  %v9741 = vpack.c.b16 %v9709, %v9709
  %v9742 = vpack.c.b16 %v9710, %v9710
  %v9743 = vpack.c.b16 %v9711, %v9711
  %v9744 = vpack.c.b16 %v9712, %v9712
  %v9745 = vpack.c.b16 %v9713, %v9713
  %v9746 = vpack.c.b16 %v9714, %v9714
  %v9747 = vpack.c.b16 %v9715, %v9715
  %v9748 = vpack.c.b16 %v9716, %v9716
  %v9749 = vpack.c.b16 %v9717, %v9717
  %v9750 = vpack.c.b16 %v9718, %v9718
  %v9751 = vpack.c.b16 %v9719, %v9719
  %v9752 = vpack.c.b16 %v9720, %v9720
  %v9753 = vpack.c.b16 %v9721, %v9721
  %v9754 = vpack.c.b16 %v9722, %v9722
  %v9755 = vpack.c.b16 %v9723, %v9723
  %v9756 = vpack.c.b16 %v9724, %v9724
  %v9757 = vpack.c.b16 %v9725, %v9725
  %v9758 = vpack.c.b16 %v9726, %v9726
  %v9759 = vpack.c.b16 %v9727, %v9727
  %v9760 = vpack.c.b16 %v9728, %v9728
  %v9761 = vpack.c.b16 %v9729, %v9729
  %v9762 = vpack.c.b16 %v9730, %v9730
  %v9763 = vpack.c.b16 %v9731, %v9731
  %v9764 = vpack.c.b16 %v9732, %v9732
  %v9765 = vpack.c.b16 %v9733, %v9733
  %v9766 = vpack.c.b16 %v9734, %v9734
  %v9768 = vshrl.u32 %v9575, 16
  %v9770 = vshll.u32 %v9575, 16
  %v9772 = vrot.slane %v9770, 1
  %v9773 = vor.u32 %v9768, %v9772
  %v9775 = vshll.u32 %v9735, 16
  %v9777 = vrot.slane %v9775, 1
  %v9778 = vsel %vm2964, %v9773, %v9777
  %v9780 = vshrl.u32 %v9576, 16
  %v9782 = vshll.u32 %v9576, 16
  %v9784 = vrot.slane %v9782, 1
  %v9785 = vor.u32 %v9780, %v9784
  %v9787 = vshll.u32 %v9736, 16
  %v9789 = vrot.slane %v9787, 1
  %v9790 = vsel %vm2964, %v9785, %v9789
  %v9792 = vshrl.u32 %v9577, 16
  %v9794 = vshll.u32 %v9577, 16
  %v9796 = vrot.slane %v9794, 1
  %v9797 = vor.u32 %v9792, %v9796
  %v9799 = vshll.u32 %v9737, 16
  %v9801 = vrot.slane %v9799, 1
  %v9802 = vsel %vm2964, %v9797, %v9801
  %v9804 = vshrl.u32 %v9578, 16
  %v9806 = vshll.u32 %v9578, 16
  %v9808 = vrot.slane %v9806, 1
  %v9809 = vor.u32 %v9804, %v9808
  %v9811 = vshll.u32 %v9738, 16
  %v9813 = vrot.slane %v9811, 1
  %v9814 = vsel %vm2964, %v9809, %v9813
  %v9816 = vshrl.u32 %v9579, 16
  %v9818 = vshll.u32 %v9579, 16
  %v9820 = vrot.slane %v9818, 1
  %v9821 = vor.u32 %v9816, %v9820
  %v9823 = vshll.u32 %v9739, 16
  %v9825 = vrot.slane %v9823, 1
  %v9826 = vsel %vm2964, %v9821, %v9825
  %v9828 = vshrl.u32 %v9580, 16
  %v9830 = vshll.u32 %v9580, 16
  %v9832 = vrot.slane %v9830, 1
  %v9833 = vor.u32 %v9828, %v9832
  %v9835 = vshll.u32 %v9740, 16
  %v9837 = vrot.slane %v9835, 1
  %v9838 = vsel %vm2964, %v9833, %v9837
  %v9840 = vshrl.u32 %v9581, 16
  %v9842 = vshll.u32 %v9581, 16
  %v9844 = vrot.slane %v9842, 1
  %v9845 = vor.u32 %v9840, %v9844
  %v9847 = vshll.u32 %v9741, 16
  %v9849 = vrot.slane %v9847, 1
  %v9850 = vsel %vm2964, %v9845, %v9849
  %v9852 = vshrl.u32 %v9582, 16
  %v9854 = vshll.u32 %v9582, 16
  %v9856 = vrot.slane %v9854, 1
  %v9857 = vor.u32 %v9852, %v9856
  %v9859 = vshll.u32 %v9742, 16
  %v9861 = vrot.slane %v9859, 1
  %v9862 = vsel %vm2964, %v9857, %v9861
  %v9864 = vshrl.u32 %v9583, 16
  %v9866 = vshll.u32 %v9583, 16
  %v9868 = vrot.slane %v9866, 1
  %v9869 = vor.u32 %v9864, %v9868
  %v9871 = vshll.u32 %v9743, 16
  %v9873 = vrot.slane %v9871, 1
  %v9874 = vsel %vm2964, %v9869, %v9873
  %v9876 = vshrl.u32 %v9584, 16
  %v9878 = vshll.u32 %v9584, 16
  %v9880 = vrot.slane %v9878, 1
  %v9881 = vor.u32 %v9876, %v9880
  %v9883 = vshll.u32 %v9744, 16
  %v9885 = vrot.slane %v9883, 1
  %v9886 = vsel %vm2964, %v9881, %v9885
  %v9888 = vshrl.u32 %v9585, 16
  %v9890 = vshll.u32 %v9585, 16
  %v9892 = vrot.slane %v9890, 1
  %v9893 = vor.u32 %v9888, %v9892
  %v9895 = vshll.u32 %v9745, 16
  %v9897 = vrot.slane %v9895, 1
  %v9898 = vsel %vm2964, %v9893, %v9897
  %v9900 = vshrl.u32 %v9586, 16
  %v9902 = vshll.u32 %v9586, 16
  %v9904 = vrot.slane %v9902, 1
  %v9905 = vor.u32 %v9900, %v9904
  %v9907 = vshll.u32 %v9746, 16
  %v9909 = vrot.slane %v9907, 1
  %v9910 = vsel %vm2964, %v9905, %v9909
  %v9912 = vshrl.u32 %v9587, 16
  %v9914 = vshll.u32 %v9587, 16
  %v9916 = vrot.slane %v9914, 1
  %v9917 = vor.u32 %v9912, %v9916
  %v9919 = vshll.u32 %v9747, 16
  %v9921 = vrot.slane %v9919, 1
  %v9922 = vsel %vm2964, %v9917, %v9921
  %v9924 = vshrl.u32 %v9588, 16
  %v9926 = vshll.u32 %v9588, 16
  %v9928 = vrot.slane %v9926, 1
  %v9929 = vor.u32 %v9924, %v9928
  %v9931 = vshll.u32 %v9748, 16
  %v9933 = vrot.slane %v9931, 1
  %v9934 = vsel %vm2964, %v9929, %v9933
  %v9936 = vshrl.u32 %v9589, 16
  %v9938 = vshll.u32 %v9589, 16
  %v9940 = vrot.slane %v9938, 1
  %v9941 = vor.u32 %v9936, %v9940
  %v9943 = vshll.u32 %v9749, 16
  %v9945 = vrot.slane %v9943, 1
  %v9946 = vsel %vm2964, %v9941, %v9945
  %v9948 = vshrl.u32 %v9590, 16
  %v9950 = vshll.u32 %v9590, 16
  %v9952 = vrot.slane %v9950, 1
  %v9953 = vor.u32 %v9948, %v9952
  %v9955 = vshll.u32 %v9750, 16
  %v9957 = vrot.slane %v9955, 1
  %v9958 = vsel %vm2964, %v9953, %v9957
  %v9960 = vshrl.u32 %v9591, 16
  %v9962 = vshll.u32 %v9591, 16
  %v9964 = vrot.slane %v9962, 1
  %v9965 = vor.u32 %v9960, %v9964
  %v9967 = vshll.u32 %v9751, 16
  %v9969 = vrot.slane %v9967, 1
  %v9970 = vsel %vm2964, %v9965, %v9969
  %v9972 = vshrl.u32 %v9592, 16
  %v9974 = vshll.u32 %v9592, 16
  %v9976 = vrot.slane %v9974, 1
  %v9977 = vor.u32 %v9972, %v9976
  %v9979 = vshll.u32 %v9752, 16
  %v9981 = vrot.slane %v9979, 1
  %v9982 = vsel %vm2964, %v9977, %v9981
  %v9984 = vshrl.u32 %v9593, 16
  %v9986 = vshll.u32 %v9593, 16
  %v9988 = vrot.slane %v9986, 1
  %v9989 = vor.u32 %v9984, %v9988
  %v9991 = vshll.u32 %v9753, 16
  %v9993 = vrot.slane %v9991, 1
  %v9994 = vsel %vm2964, %v9989, %v9993
  %v9996 = vshrl.u32 %v9594, 16
  %v9998 = vshll.u32 %v9594, 16
  %v10000 = vrot.slane %v9998, 1
  %v10001 = vor.u32 %v9996, %v10000
  %v10003 = vshll.u32 %v9754, 16
  %v10005 = vrot.slane %v10003, 1
  %v10006 = vsel %vm2964, %v10001, %v10005
  %v10008 = vshrl.u32 %v9595, 16
  %v10010 = vshll.u32 %v9595, 16
  %v10012 = vrot.slane %v10010, 1
  %v10013 = vor.u32 %v10008, %v10012
  %v10015 = vshll.u32 %v9755, 16
  %v10017 = vrot.slane %v10015, 1
  %v10018 = vsel %vm2964, %v10013, %v10017
  %v10020 = vshrl.u32 %v9596, 16
  %v10022 = vshll.u32 %v9596, 16
  %v10024 = vrot.slane %v10022, 1
  %v10025 = vor.u32 %v10020, %v10024
  %v10027 = vshll.u32 %v9756, 16
  %v10029 = vrot.slane %v10027, 1
  %v10030 = vsel %vm2964, %v10025, %v10029
  %v10032 = vshrl.u32 %v9597, 16
  %v10034 = vshll.u32 %v9597, 16
  %v10036 = vrot.slane %v10034, 1
  %v10037 = vor.u32 %v10032, %v10036
  %v10039 = vshll.u32 %v9757, 16
  %v10041 = vrot.slane %v10039, 1
  %v10042 = vsel %vm2964, %v10037, %v10041
  %v10044 = vshrl.u32 %v9598, 16
  %v10046 = vshll.u32 %v9598, 16
  %v10048 = vrot.slane %v10046, 1
  %v10049 = vor.u32 %v10044, %v10048
  %v10051 = vshll.u32 %v9758, 16
  %v10053 = vrot.slane %v10051, 1
  %v10054 = vsel %vm2964, %v10049, %v10053
  %v10056 = vshrl.u32 %v9599, 16
  %v10058 = vshll.u32 %v9599, 16
  %v10060 = vrot.slane %v10058, 1
  %v10061 = vor.u32 %v10056, %v10060
  %v10063 = vshll.u32 %v9759, 16
  %v10065 = vrot.slane %v10063, 1
  %v10066 = vsel %vm2964, %v10061, %v10065
  %v10068 = vshrl.u32 %v9600, 16
  %v10070 = vshll.u32 %v9600, 16
  %v10072 = vrot.slane %v10070, 1
  %v10073 = vor.u32 %v10068, %v10072
  %v10075 = vshll.u32 %v9760, 16
  %v10077 = vrot.slane %v10075, 1
  %v10078 = vsel %vm2964, %v10073, %v10077
  %v10080 = vshrl.u32 %v9601, 16
  %v10082 = vshll.u32 %v9601, 16
  %v10084 = vrot.slane %v10082, 1
  %v10085 = vor.u32 %v10080, %v10084
  %v10087 = vshll.u32 %v9761, 16
  %v10089 = vrot.slane %v10087, 1
  %v10090 = vsel %vm2964, %v10085, %v10089
  %v10092 = vshrl.u32 %v9602, 16
  %v10094 = vshll.u32 %v9602, 16
  %v10096 = vrot.slane %v10094, 1
  %v10097 = vor.u32 %v10092, %v10096
  %v10099 = vshll.u32 %v9762, 16
  %v10101 = vrot.slane %v10099, 1
  %v10102 = vsel %vm2964, %v10097, %v10101
  %v10104 = vshrl.u32 %v9603, 16
  %v10106 = vshll.u32 %v9603, 16
  %v10108 = vrot.slane %v10106, 1
  %v10109 = vor.u32 %v10104, %v10108
  %v10111 = vshll.u32 %v9763, 16
  %v10113 = vrot.slane %v10111, 1
  %v10114 = vsel %vm2964, %v10109, %v10113
  %v10116 = vshrl.u32 %v9604, 16
  %v10118 = vshll.u32 %v9604, 16
  %v10120 = vrot.slane %v10118, 1
  %v10121 = vor.u32 %v10116, %v10120
  %v10123 = vshll.u32 %v9764, 16
  %v10125 = vrot.slane %v10123, 1
  %v10126 = vsel %vm2964, %v10121, %v10125
  %v10128 = vshrl.u32 %v9605, 16
  %v10130 = vshll.u32 %v9605, 16
  %v10132 = vrot.slane %v10130, 1
  %v10133 = vor.u32 %v10128, %v10132
  %v10135 = vshll.u32 %v9765, 16
  %v10137 = vrot.slane %v10135, 1
  %v10138 = vsel %vm2964, %v10133, %v10137
  %v10140 = vshrl.u32 %v9606, 16
  %v10142 = vshll.u32 %v9606, 16
  %v10144 = vrot.slane %v10142, 1
  %v10145 = vor.u32 %v10140, %v10144
  %v10147 = vshll.u32 %v9766, 16
  %v10149 = vrot.slane %v10147, 1
  %v10150 = vsel %vm2964, %v10145, %v10149
  %10151 = vrot.lane.b32.xlu0 %v9778, 32
  %v10152 = vpop.permute.xlu0 %10151
  %10153 = vrot.lane.b32.xlu0 %v9790, 32
  %v10154 = vpop.permute.xlu0 %10153
  %10155 = vrot.lane.b32.xlu0 %v9802, 32
  %v10156 = vpop.permute.xlu0 %10155
  %10157 = vrot.lane.b32.xlu0 %v9814, 32
  %v10158 = vpop.permute.xlu0 %10157
  %10159 = vrot.lane.b32.xlu0 %v9826, 32
  %v10160 = vpop.permute.xlu0 %10159
  %10161 = vrot.lane.b32.xlu0 %v9838, 32
  %v10162 = vpop.permute.xlu0 %10161
  %10163 = vrot.lane.b32.xlu0 %v9850, 32
  %v10164 = vpop.permute.xlu0 %10163
  %10165 = vrot.lane.b32.xlu0 %v9862, 32
  %v10166 = vpop.permute.xlu0 %10165
  %10167 = vrot.lane.b32.xlu0 %v9874, 32
  %v10168 = vpop.permute.xlu0 %10167
  %10169 = vrot.lane.b32.xlu0 %v9886, 32
  %v10170 = vpop.permute.xlu0 %10169
  %10171 = vrot.lane.b32.xlu0 %v9898, 32
  %v10172 = vpop.permute.xlu0 %10171
  %10173 = vrot.lane.b32.xlu0 %v9910, 32
  %v10174 = vpop.permute.xlu0 %10173
  %10175 = vrot.lane.b32.xlu0 %v9922, 32
  %v10176 = vpop.permute.xlu0 %10175
  %10177 = vrot.lane.b32.xlu0 %v9934, 32
  %v10178 = vpop.permute.xlu0 %10177
  %10179 = vrot.lane.b32.xlu0 %v9946, 32
  %v10180 = vpop.permute.xlu0 %10179
  %10181 = vrot.lane.b32.xlu0 %v9958, 32
  %v10182 = vpop.permute.xlu0 %10181
  %10183 = vrot.lane.b32.xlu0 %v9970, 32
  %v10184 = vpop.permute.xlu0 %10183
  %10185 = vrot.lane.b32.xlu0 %v9982, 32
  %v10186 = vpop.permute.xlu0 %10185
  %10187 = vrot.lane.b32.xlu0 %v9994, 32
  %v10188 = vpop.permute.xlu0 %10187
  %10189 = vrot.lane.b32.xlu0 %v10006, 32
  %v10190 = vpop.permute.xlu0 %10189
  %10191 = vrot.lane.b32.xlu0 %v10018, 32
  %v10192 = vpop.permute.xlu0 %10191
  %10193 = vrot.lane.b32.xlu0 %v10030, 32
  %v10194 = vpop.permute.xlu0 %10193
  %10195 = vrot.lane.b32.xlu0 %v10042, 32
  %v10196 = vpop.permute.xlu0 %10195
  %10197 = vrot.lane.b32.xlu0 %v10054, 32
  %v10198 = vpop.permute.xlu0 %10197
  %10199 = vrot.lane.b32.xlu0 %v10066, 32
  %v10200 = vpop.permute.xlu0 %10199
  %10201 = vrot.lane.b32.xlu0 %v10078, 32
  %v10202 = vpop.permute.xlu0 %10201
  %10203 = vrot.lane.b32.xlu0 %v10090, 32
  %v10204 = vpop.permute.xlu0 %10203
  %10205 = vrot.lane.b32.xlu0 %v10102, 32
  %v10206 = vpop.permute.xlu0 %10205
  %10207 = vrot.lane.b32.xlu0 %v10114, 32
  %v10208 = vpop.permute.xlu0 %10207
  %10209 = vrot.lane.b32.xlu0 %v10126, 32
  %v10210 = vpop.permute.xlu0 %10209
  %10211 = vrot.lane.b32.xlu0 %v10138, 32
  %v10212 = vpop.permute.xlu0 %10211
  %10213 = vrot.lane.b32.xlu0 %v10150, 32
  %v10214 = vpop.permute.xlu0 %10213
  %v10247 = vunpack.c.l.b16 %v8326
  %v10248 = vunpack.c.l.b16 %v8327
  %v10249 = vunpack.c.l.b16 %v8328
  %v10250 = vunpack.c.l.b16 %v8329
  %v10251 = vunpack.c.l.b16 %v8330
  %v10252 = vunpack.c.l.b16 %v8331
  %v10253 = vunpack.c.l.b16 %v8332
  %v10254 = vunpack.c.l.b16 %v8333
  %v10255 = vunpack.c.l.b16 %v8334
  %v10256 = vunpack.c.l.b16 %v8335
  %v10257 = vunpack.c.l.b16 %v8336
  %v10258 = vunpack.c.l.b16 %v8337
  %v10259 = vunpack.c.l.b16 %v8338
  %v10260 = vunpack.c.l.b16 %v8339
  %v10261 = vunpack.c.l.b16 %v8340
  %v10262 = vunpack.c.l.b16 %v8341
  %v10263 = vunpack.c.l.b16 %v8342
  %v10264 = vunpack.c.l.b16 %v8343
  %v10265 = vunpack.c.l.b16 %v8344
  %v10266 = vunpack.c.l.b16 %v8345
  %v10267 = vunpack.c.l.b16 %v8346
  %v10268 = vunpack.c.l.b16 %v8347
  %v10269 = vunpack.c.l.b16 %v8348
  %v10270 = vunpack.c.l.b16 %v8349
  %v10271 = vunpack.c.l.b16 %v8350
  %v10272 = vunpack.c.l.b16 %v8351
  %v10273 = vunpack.c.l.b16 %v8352
  %v10274 = vunpack.c.l.b16 %v8353
  %v10275 = vunpack.c.l.b16 %v8354
  %v10276 = vunpack.c.l.b16 %v8355
  %v10277 = vunpack.c.l.b16 %v8356
  %v10278 = vunpack.c.l.b16 %v8357
  %v10279 = vpack.c.b16 %v9512, %v10247
  %v10280 = vpack.c.b16 %v9514, %v10248
  %v10281 = vpack.c.b16 %v9516, %v10249
  %v10282 = vpack.c.b16 %v9518, %v10250
  %v10283 = vpack.c.b16 %v9520, %v10251
  %v10284 = vpack.c.b16 %v9522, %v10252
  %v10285 = vpack.c.b16 %v9524, %v10253
  %v10286 = vpack.c.b16 %v9526, %v10254
  %v10287 = vpack.c.b16 %v9528, %v10255
  %v10288 = vpack.c.b16 %v9530, %v10256
  %v10289 = vpack.c.b16 %v9532, %v10257
  %v10290 = vpack.c.b16 %v9534, %v10258
  %v10291 = vpack.c.b16 %v9536, %v10259
  %v10292 = vpack.c.b16 %v9538, %v10260
  %v10293 = vpack.c.b16 %v9540, %v10261
  %v10294 = vpack.c.b16 %v9542, %v10262
  %v10295 = vpack.c.b16 %v9544, %v10263
  %v10296 = vpack.c.b16 %v9546, %v10264
  %v10297 = vpack.c.b16 %v9548, %v10265
  %v10298 = vpack.c.b16 %v9550, %v10266
  %v10299 = vpack.c.b16 %v9552, %v10267
  %v10300 = vpack.c.b16 %v9554, %v10268
  %v10301 = vpack.c.b16 %v9556, %v10269
  %v10302 = vpack.c.b16 %v9558, %v10270
  %v10303 = vpack.c.b16 %v9560, %v10271
  %v10304 = vpack.c.b16 %v9562, %v10272
  %v10305 = vpack.c.b16 %v9564, %v10273
  %v10306 = vpack.c.b16 %v9566, %v10274
  %v10307 = vpack.c.b16 %v9568, %v10275
  %v10308 = vpack.c.b16 %v9570, %v10276
  %v10309 = vpack.c.b16 %v9572, %v10277
  %v10310 = vpack.c.b16 %v9574, %v10278
  %v10311 = vrot.slane %v10279, 1
  %v10312 = vrot.slane %v9735, 1
  %v10313 = vsel %vm3509, %v10311, %v10312
  %v10314 = vrot.slane %v10280, 1
  %v10315 = vrot.slane %v9736, 1
  %v10316 = vsel %vm3509, %v10314, %v10315
  %v10317 = vrot.slane %v10281, 1
  %v10318 = vrot.slane %v9737, 1
  %v10319 = vsel %vm3509, %v10317, %v10318
  %v10320 = vrot.slane %v10282, 1
  %v10321 = vrot.slane %v9738, 1
  %v10322 = vsel %vm3509, %v10320, %v10321
  %v10323 = vrot.slane %v10283, 1
  %v10324 = vrot.slane %v9739, 1
  %v10325 = vsel %vm3509, %v10323, %v10324
  %v10326 = vrot.slane %v10284, 1
  %v10327 = vrot.slane %v9740, 1
  %v10328 = vsel %vm3509, %v10326, %v10327
  %v10329 = vrot.slane %v10285, 1
  %v10330 = vrot.slane %v9741, 1
  %v10331 = vsel %vm3509, %v10329, %v10330
  %v10332 = vrot.slane %v10286, 1
  %v10333 = vrot.slane %v9742, 1
  %v10334 = vsel %vm3509, %v10332, %v10333
  %v10335 = vrot.slane %v10287, 1
  %v10336 = vrot.slane %v9743, 1
  %v10337 = vsel %vm3509, %v10335, %v10336
  %v10338 = vrot.slane %v10288, 1
  %v10339 = vrot.slane %v9744, 1
  %v10340 = vsel %vm3509, %v10338, %v10339
  %v10341 = vrot.slane %v10289, 1
  %v10342 = vrot.slane %v9745, 1
  %v10343 = vsel %vm3509, %v10341, %v10342
  %v10344 = vrot.slane %v10290, 1
  %v10345 = vrot.slane %v9746, 1
  %v10346 = vsel %vm3509, %v10344, %v10345
  %v10347 = vrot.slane %v10291, 1
  %v10348 = vrot.slane %v9747, 1
  %v10349 = vsel %vm3509, %v10347, %v10348
  %v10350 = vrot.slane %v10292, 1
  %v10351 = vrot.slane %v9748, 1
  %v10352 = vsel %vm3509, %v10350, %v10351
  %v10353 = vrot.slane %v10293, 1
  %v10354 = vrot.slane %v9749, 1
  %v10355 = vsel %vm3509, %v10353, %v10354
  %v10356 = vrot.slane %v10294, 1
  %v10357 = vrot.slane %v9750, 1
  %v10358 = vsel %vm3509, %v10356, %v10357
  %v10359 = vrot.slane %v10295, 1
  %v10360 = vrot.slane %v9751, 1
  %v10361 = vsel %vm3509, %v10359, %v10360
  %v10362 = vrot.slane %v10296, 1
  %v10363 = vrot.slane %v9752, 1
  %v10364 = vsel %vm3509, %v10362, %v10363
  %v10365 = vrot.slane %v10297, 1
  %v10366 = vrot.slane %v9753, 1
  %v10367 = vsel %vm3509, %v10365, %v10366
  %v10368 = vrot.slane %v10298, 1
  %v10369 = vrot.slane %v9754, 1
  %v10370 = vsel %vm3509, %v10368, %v10369
  %v10371 = vrot.slane %v10299, 1
  %v10372 = vrot.slane %v9755, 1
  %v10373 = vsel %vm3509, %v10371, %v10372
  %v10374 = vrot.slane %v10300, 1
  %v10375 = vrot.slane %v9756, 1
  %v10376 = vsel %vm3509, %v10374, %v10375
  %v10377 = vrot.slane %v10301, 1
  %v10378 = vrot.slane %v9757, 1
  %v10379 = vsel %vm3509, %v10377, %v10378
  %v10380 = vrot.slane %v10302, 1
  %v10381 = vrot.slane %v9758, 1
  %v10382 = vsel %vm3509, %v10380, %v10381
  %v10383 = vrot.slane %v10303, 1
  %v10384 = vrot.slane %v9759, 1
  %v10385 = vsel %vm3509, %v10383, %v10384
  %v10386 = vrot.slane %v10304, 1
  %v10387 = vrot.slane %v9760, 1
  %v10388 = vsel %vm3509, %v10386, %v10387
  %v10389 = vrot.slane %v10305, 1
  %v10390 = vrot.slane %v9761, 1
  %v10391 = vsel %vm3509, %v10389, %v10390
  %v10392 = vrot.slane %v10306, 1
  %v10393 = vrot.slane %v9762, 1
  %v10394 = vsel %vm3509, %v10392, %v10393
  %v10395 = vrot.slane %v10307, 1
  %v10396 = vrot.slane %v9763, 1
  %v10397 = vsel %vm3509, %v10395, %v10396
  %v10398 = vrot.slane %v10308, 1
  %v10399 = vrot.slane %v9764, 1
  %v10400 = vsel %vm3509, %v10398, %v10399
  %v10401 = vrot.slane %v10309, 1
  %v10402 = vrot.slane %v9765, 1
  %v10403 = vsel %vm3509, %v10401, %v10402
  %v10404 = vrot.slane %v10310, 1
  %v10405 = vrot.slane %v9766, 1
  %v10406 = vsel %vm3509, %v10404, %v10405
  %10407 = vrot.lane.b32.xlu0 %v10313, 40
  %v10408 = vpop.permute.xlu0 %10407
  %10409 = vrot.lane.b32.xlu0 %v10316, 40
  %v10410 = vpop.permute.xlu0 %10409
  %10411 = vrot.lane.b32.xlu0 %v10319, 40
  %v10412 = vpop.permute.xlu0 %10411
  %10413 = vrot.lane.b32.xlu0 %v10322, 40
  %v10414 = vpop.permute.xlu0 %10413
  %10415 = vrot.lane.b32.xlu0 %v10325, 40
  %v10416 = vpop.permute.xlu0 %10415
  %10417 = vrot.lane.b32.xlu0 %v10328, 40
  %v10418 = vpop.permute.xlu0 %10417
  %10419 = vrot.lane.b32.xlu0 %v10331, 40
  %v10420 = vpop.permute.xlu0 %10419
  %10421 = vrot.lane.b32.xlu0 %v10334, 40
  %v10422 = vpop.permute.xlu0 %10421
  %10423 = vrot.lane.b32.xlu0 %v10337, 40
  %v10424 = vpop.permute.xlu0 %10423
  %10425 = vrot.lane.b32.xlu0 %v10340, 40
  %v10426 = vpop.permute.xlu0 %10425
  %10427 = vrot.lane.b32.xlu0 %v10343, 40
  %v10428 = vpop.permute.xlu0 %10427
  %10429 = vrot.lane.b32.xlu0 %v10346, 40
  %v10430 = vpop.permute.xlu0 %10429
  %10431 = vrot.lane.b32.xlu0 %v10349, 40
  %v10432 = vpop.permute.xlu0 %10431
  %10433 = vrot.lane.b32.xlu0 %v10352, 40
  %v10434 = vpop.permute.xlu0 %10433
  %10435 = vrot.lane.b32.xlu0 %v10355, 40
  %v10436 = vpop.permute.xlu0 %10435
  %10437 = vrot.lane.b32.xlu0 %v10358, 40
  %v10438 = vpop.permute.xlu0 %10437
  %10439 = vrot.lane.b32.xlu0 %v10361, 40
  %v10440 = vpop.permute.xlu0 %10439
  %10441 = vrot.lane.b32.xlu0 %v10364, 40
  %v10442 = vpop.permute.xlu0 %10441
  %10443 = vrot.lane.b32.xlu0 %v10367, 40
  %v10444 = vpop.permute.xlu0 %10443
  %10445 = vrot.lane.b32.xlu0 %v10370, 40
  %v10446 = vpop.permute.xlu0 %10445
  %10447 = vrot.lane.b32.xlu0 %v10373, 40
  %v10448 = vpop.permute.xlu0 %10447
  %10449 = vrot.lane.b32.xlu0 %v10376, 40
  %v10450 = vpop.permute.xlu0 %10449
  %10451 = vrot.lane.b32.xlu0 %v10379, 40
  %v10452 = vpop.permute.xlu0 %10451
  %10453 = vrot.lane.b32.xlu0 %v10382, 40
  %v10454 = vpop.permute.xlu0 %10453
  %10455 = vrot.lane.b32.xlu0 %v10385, 40
  %v10456 = vpop.permute.xlu0 %10455
  %10457 = vrot.lane.b32.xlu0 %v10388, 40
  %v10458 = vpop.permute.xlu0 %10457
  %10459 = vrot.lane.b32.xlu0 %v10391, 40
  %v10460 = vpop.permute.xlu0 %10459
  %10461 = vrot.lane.b32.xlu0 %v10394, 40
  %v10462 = vpop.permute.xlu0 %10461
  %10463 = vrot.lane.b32.xlu0 %v10397, 40
  %v10464 = vpop.permute.xlu0 %10463
  %10465 = vrot.lane.b32.xlu0 %v10400, 40
  %v10466 = vpop.permute.xlu0 %10465
  %10467 = vrot.lane.b32.xlu0 %v10403, 40
  %v10468 = vpop.permute.xlu0 %10467
  %10469 = vrot.lane.b32.xlu0 %v10406, 40
  %v10470 = vpop.permute.xlu0 %10469
  %v10535 = vunpack.c.l.b16 %v8359
  %v10536 = vunpack.c.l.b16 %v8360
  %v10537 = vunpack.c.l.b16 %v8361
  %v10538 = vunpack.c.l.b16 %v8362
  %v10539 = vunpack.c.l.b16 %v8363
  %v10540 = vunpack.c.l.b16 %v8364
  %v10541 = vunpack.c.l.b16 %v8365
  %v10542 = vunpack.c.l.b16 %v8366
  %v10543 = vunpack.c.l.b16 %v8367
  %v10544 = vunpack.c.l.b16 %v8368
  %v10545 = vunpack.c.l.b16 %v8369
  %v10546 = vunpack.c.l.b16 %v8370
  %v10547 = vunpack.c.l.b16 %v8371
  %v10548 = vunpack.c.l.b16 %v8372
  %v10549 = vunpack.c.l.b16 %v8373
  %v10550 = vunpack.c.l.b16 %v8374
  %v10551 = vunpack.c.l.b16 %v8375
  %v10552 = vunpack.c.l.b16 %v8376
  %v10553 = vunpack.c.l.b16 %v8377
  %v10554 = vunpack.c.l.b16 %v8378
  %v10555 = vunpack.c.l.b16 %v8379
  %v10556 = vunpack.c.l.b16 %v8380
  %v10557 = vunpack.c.l.b16 %v8381
  %v10558 = vunpack.c.l.b16 %v8382
  %v10559 = vunpack.c.l.b16 %v8383
  %v10560 = vunpack.c.l.b16 %v8384
  %v10561 = vunpack.c.l.b16 %v8385
  %v10562 = vunpack.c.l.b16 %v8386
  %v10563 = vunpack.c.l.b16 %v8387
  %v10564 = vunpack.c.l.b16 %v8388
  %v10565 = vunpack.c.l.b16 %v8389
  %v10566 = vunpack.c.l.b16 %v8390
  %v10567 = vunpack.c.l.b16 %v8391
  %v10568 = vunpack.c.l.b16 %v8392
  %v10569 = vunpack.c.l.b16 %v8393
  %v10570 = vunpack.c.l.b16 %v8394
  %v10571 = vunpack.c.l.b16 %v8395
  %v10572 = vunpack.c.l.b16 %v8396
  %v10573 = vunpack.c.l.b16 %v8397
  %v10574 = vunpack.c.l.b16 %v8398
  %v10575 = vunpack.c.l.b16 %v8399
  %v10576 = vunpack.c.l.b16 %v8400
  %v10577 = vunpack.c.l.b16 %v8401
  %v10578 = vunpack.c.l.b16 %v8402
  %v10579 = vunpack.c.l.b16 %v8403
  %v10580 = vunpack.c.l.b16 %v8404
  %v10581 = vunpack.c.l.b16 %v8405
  %v10582 = vunpack.c.l.b16 %v8406
  %v10583 = vunpack.c.l.b16 %v8407
  %v10584 = vunpack.c.l.b16 %v8408
  %v10585 = vunpack.c.l.b16 %v8409
  %v10586 = vunpack.c.l.b16 %v8410
  %v10587 = vunpack.c.l.b16 %v8411
  %v10588 = vunpack.c.l.b16 %v8412
  %v10589 = vunpack.c.l.b16 %v8413
  %v10590 = vunpack.c.l.b16 %v8414
  %v10591 = vunpack.c.l.b16 %v8415
  %v10592 = vunpack.c.l.b16 %v8416
  %v10593 = vunpack.c.l.b16 %v8417
  %v10594 = vunpack.c.l.b16 %v8418
  %v10595 = vunpack.c.l.b16 %v8419
  %v10596 = vunpack.c.l.b16 %v8420
  %v10597 = vunpack.c.l.b16 %v8421
  %v10598 = vunpack.c.l.b16 %v8422
  %v10599 = vpack.c.b16 %v10536, %v10535
  %v10600 = vpack.c.b16 %v10538, %v10537
  %v10601 = vpack.c.b16 %v10540, %v10539
  %v10602 = vpack.c.b16 %v10542, %v10541
  %v10603 = vpack.c.b16 %v10544, %v10543
  %v10604 = vpack.c.b16 %v10546, %v10545
  %v10605 = vpack.c.b16 %v10548, %v10547
  %v10606 = vpack.c.b16 %v10550, %v10549
  %v10607 = vpack.c.b16 %v10552, %v10551
  %v10608 = vpack.c.b16 %v10554, %v10553
  %v10609 = vpack.c.b16 %v10556, %v10555
  %v10610 = vpack.c.b16 %v10558, %v10557
  %v10611 = vpack.c.b16 %v10560, %v10559
  %v10612 = vpack.c.b16 %v10562, %v10561
  %v10613 = vpack.c.b16 %v10564, %v10563
  %v10614 = vpack.c.b16 %v10566, %v10565
  %v10615 = vpack.c.b16 %v10568, %v10567
  %v10616 = vpack.c.b16 %v10570, %v10569
  %v10617 = vpack.c.b16 %v10572, %v10571
  %v10618 = vpack.c.b16 %v10574, %v10573
  %v10619 = vpack.c.b16 %v10576, %v10575
  %v10620 = vpack.c.b16 %v10578, %v10577
  %v10621 = vpack.c.b16 %v10580, %v10579
  %v10622 = vpack.c.b16 %v10582, %v10581
  %v10623 = vpack.c.b16 %v10584, %v10583
  %v10624 = vpack.c.b16 %v10586, %v10585
  %v10625 = vpack.c.b16 %v10588, %v10587
  %v10626 = vpack.c.b16 %v10590, %v10589
  %v10627 = vpack.c.b16 %v10592, %v10591
  %v10628 = vpack.c.b16 %v10594, %v10593
  %v10629 = vpack.c.b16 %v10596, %v10595
  %v10630 = vpack.c.b16 %v10598, %v10597
  %10631 = vrot.lane.b32.xlu0 %v10599, 48
  %v10632 = vpop.permute.xlu0 %10631
  %10633 = vrot.lane.b32.xlu0 %v10600, 48
  %v10634 = vpop.permute.xlu0 %10633
  %10635 = vrot.lane.b32.xlu0 %v10601, 48
  %v10636 = vpop.permute.xlu0 %10635
  %10637 = vrot.lane.b32.xlu0 %v10602, 48
  %v10638 = vpop.permute.xlu0 %10637
  %10639 = vrot.lane.b32.xlu0 %v10603, 48
  %v10640 = vpop.permute.xlu0 %10639
  %10641 = vrot.lane.b32.xlu0 %v10604, 48
  %v10642 = vpop.permute.xlu0 %10641
  %10643 = vrot.lane.b32.xlu0 %v10605, 48
  %v10644 = vpop.permute.xlu0 %10643
  %10645 = vrot.lane.b32.xlu0 %v10606, 48
  %v10646 = vpop.permute.xlu0 %10645
  %10647 = vrot.lane.b32.xlu0 %v10607, 48
  %v10648 = vpop.permute.xlu0 %10647
  %10649 = vrot.lane.b32.xlu0 %v10608, 48
  %v10650 = vpop.permute.xlu0 %10649
  %10651 = vrot.lane.b32.xlu0 %v10609, 48
  %v10652 = vpop.permute.xlu0 %10651
  %10653 = vrot.lane.b32.xlu0 %v10610, 48
  %v10654 = vpop.permute.xlu0 %10653
  %10655 = vrot.lane.b32.xlu0 %v10611, 48
  %v10656 = vpop.permute.xlu0 %10655
  %10657 = vrot.lane.b32.xlu0 %v10612, 48
  %v10658 = vpop.permute.xlu0 %10657
  %10659 = vrot.lane.b32.xlu0 %v10613, 48
  %v10660 = vpop.permute.xlu0 %10659
  %10661 = vrot.lane.b32.xlu0 %v10614, 48
  %v10662 = vpop.permute.xlu0 %10661
  %10663 = vrot.lane.b32.xlu0 %v10615, 48
  %v10664 = vpop.permute.xlu0 %10663
  %10665 = vrot.lane.b32.xlu0 %v10616, 48
  %v10666 = vpop.permute.xlu0 %10665
  %10667 = vrot.lane.b32.xlu0 %v10617, 48
  %v10668 = vpop.permute.xlu0 %10667
  %10669 = vrot.lane.b32.xlu0 %v10618, 48
  %v10670 = vpop.permute.xlu0 %10669
  %10671 = vrot.lane.b32.xlu0 %v10619, 48
  %v10672 = vpop.permute.xlu0 %10671
  %10673 = vrot.lane.b32.xlu0 %v10620, 48
  %v10674 = vpop.permute.xlu0 %10673
  %10675 = vrot.lane.b32.xlu0 %v10621, 48
  %v10676 = vpop.permute.xlu0 %10675
  %10677 = vrot.lane.b32.xlu0 %v10622, 48
  %v10678 = vpop.permute.xlu0 %10677
  %10679 = vrot.lane.b32.xlu0 %v10623, 48
  %v10680 = vpop.permute.xlu0 %10679
  %10681 = vrot.lane.b32.xlu0 %v10624, 48
  %v10682 = vpop.permute.xlu0 %10681
  %10683 = vrot.lane.b32.xlu0 %v10625, 48
  %v10684 = vpop.permute.xlu0 %10683
  %10685 = vrot.lane.b32.xlu0 %v10626, 48
  %v10686 = vpop.permute.xlu0 %10685
  %10687 = vrot.lane.b32.xlu0 %v10627, 48
  %v10688 = vpop.permute.xlu0 %10687
  %10689 = vrot.lane.b32.xlu0 %v10628, 48
  %v10690 = vpop.permute.xlu0 %10689
  %10691 = vrot.lane.b32.xlu0 %v10629, 48
  %v10692 = vpop.permute.xlu0 %10691
  %10693 = vrot.lane.b32.xlu0 %v10630, 48
  %v10694 = vpop.permute.xlu0 %10693
  %v10727 = vunpack.c.l.b16 %v8423
  %v10728 = vunpack.c.l.b16 %v8424
  %v10729 = vunpack.c.l.b16 %v8425
  %v10730 = vunpack.c.l.b16 %v8426
  %v10731 = vunpack.c.l.b16 %v8427
  %v10732 = vunpack.c.l.b16 %v8428
  %v10733 = vunpack.c.l.b16 %v8429
  %v10734 = vunpack.c.l.b16 %v8430
  %v10735 = vunpack.c.l.b16 %v8431
  %v10736 = vunpack.c.l.b16 %v8432
  %v10737 = vunpack.c.l.b16 %v8433
  %v10738 = vunpack.c.l.b16 %v8434
  %v10739 = vunpack.c.l.b16 %v8435
  %v10740 = vunpack.c.l.b16 %v8436
  %v10741 = vunpack.c.l.b16 %v8437
  %v10742 = vunpack.c.l.b16 %v8438
  %v10743 = vunpack.c.l.b16 %v8439
  %v10744 = vunpack.c.l.b16 %v8440
  %v10745 = vunpack.c.l.b16 %v8441
  %v10746 = vunpack.c.l.b16 %v8442
  %v10747 = vunpack.c.l.b16 %v8443
  %v10748 = vunpack.c.l.b16 %v8444
  %v10749 = vunpack.c.l.b16 %v8445
  %v10750 = vunpack.c.l.b16 %v8446
  %v10751 = vunpack.c.l.b16 %v8447
  %v10752 = vunpack.c.l.b16 %v8448
  %v10753 = vunpack.c.l.b16 %v8449
  %v10754 = vunpack.c.l.b16 %v8450
  %v10755 = vunpack.c.l.b16 %v8451
  %v10756 = vunpack.c.l.b16 %v8452
  %v10757 = vunpack.c.l.b16 %v8453
  %v10758 = vunpack.c.l.b16 %v8454
  %v10759 = vpack.c.b16 %v10727, %v10727
  %v10760 = vpack.c.b16 %v10728, %v10728
  %v10761 = vpack.c.b16 %v10729, %v10729
  %v10762 = vpack.c.b16 %v10730, %v10730
  %v10763 = vpack.c.b16 %v10731, %v10731
  %v10764 = vpack.c.b16 %v10732, %v10732
  %v10765 = vpack.c.b16 %v10733, %v10733
  %v10766 = vpack.c.b16 %v10734, %v10734
  %v10767 = vpack.c.b16 %v10735, %v10735
  %v10768 = vpack.c.b16 %v10736, %v10736
  %v10769 = vpack.c.b16 %v10737, %v10737
  %v10770 = vpack.c.b16 %v10738, %v10738
  %v10771 = vpack.c.b16 %v10739, %v10739
  %v10772 = vpack.c.b16 %v10740, %v10740
  %v10773 = vpack.c.b16 %v10741, %v10741
  %v10774 = vpack.c.b16 %v10742, %v10742
  %v10775 = vpack.c.b16 %v10743, %v10743
  %v10776 = vpack.c.b16 %v10744, %v10744
  %v10777 = vpack.c.b16 %v10745, %v10745
  %v10778 = vpack.c.b16 %v10746, %v10746
  %v10779 = vpack.c.b16 %v10747, %v10747
  %v10780 = vpack.c.b16 %v10748, %v10748
  %v10781 = vpack.c.b16 %v10749, %v10749
  %v10782 = vpack.c.b16 %v10750, %v10750
  %v10783 = vpack.c.b16 %v10751, %v10751
  %v10784 = vpack.c.b16 %v10752, %v10752
  %v10785 = vpack.c.b16 %v10753, %v10753
  %v10786 = vpack.c.b16 %v10754, %v10754
  %v10787 = vpack.c.b16 %v10755, %v10755
  %v10788 = vpack.c.b16 %v10756, %v10756
  %v10789 = vpack.c.b16 %v10757, %v10757
  %v10790 = vpack.c.b16 %v10758, %v10758
  %v10792 = vshrl.u32 %v10599, 16
  %v10794 = vshll.u32 %v10599, 16
  %v10796 = vrot.slane %v10794, 1
  %v10797 = vor.u32 %v10792, %v10796
  %v10799 = vshll.u32 %v10759, 16
  %v10801 = vrot.slane %v10799, 1
  %v10802 = vsel %vm2964, %v10797, %v10801
  %v10804 = vshrl.u32 %v10600, 16
  %v10806 = vshll.u32 %v10600, 16
  %v10808 = vrot.slane %v10806, 1
  %v10809 = vor.u32 %v10804, %v10808
  %v10811 = vshll.u32 %v10760, 16
  %v10813 = vrot.slane %v10811, 1
  %v10814 = vsel %vm2964, %v10809, %v10813
  %v10816 = vshrl.u32 %v10601, 16
  %v10818 = vshll.u32 %v10601, 16
  %v10820 = vrot.slane %v10818, 1
  %v10821 = vor.u32 %v10816, %v10820
  %v10823 = vshll.u32 %v10761, 16
  %v10825 = vrot.slane %v10823, 1
  %v10826 = vsel %vm2964, %v10821, %v10825
  %v10828 = vshrl.u32 %v10602, 16
  %v10830 = vshll.u32 %v10602, 16
  %v10832 = vrot.slane %v10830, 1
  %v10833 = vor.u32 %v10828, %v10832
  %v10835 = vshll.u32 %v10762, 16
  %v10837 = vrot.slane %v10835, 1
  %v10838 = vsel %vm2964, %v10833, %v10837
  %v10840 = vshrl.u32 %v10603, 16
  %v10842 = vshll.u32 %v10603, 16
  %v10844 = vrot.slane %v10842, 1
  %v10845 = vor.u32 %v10840, %v10844
  %v10847 = vshll.u32 %v10763, 16
  %v10849 = vrot.slane %v10847, 1
  %v10850 = vsel %vm2964, %v10845, %v10849
  %v10852 = vshrl.u32 %v10604, 16
  %v10854 = vshll.u32 %v10604, 16
  %v10856 = vrot.slane %v10854, 1
  %v10857 = vor.u32 %v10852, %v10856
  %v10859 = vshll.u32 %v10764, 16
  %v10861 = vrot.slane %v10859, 1
  %v10862 = vsel %vm2964, %v10857, %v10861
  %v10864 = vshrl.u32 %v10605, 16
  %v10866 = vshll.u32 %v10605, 16
  %v10868 = vrot.slane %v10866, 1
  %v10869 = vor.u32 %v10864, %v10868
  %v10871 = vshll.u32 %v10765, 16
  %v10873 = vrot.slane %v10871, 1
  %v10874 = vsel %vm2964, %v10869, %v10873
  %v10876 = vshrl.u32 %v10606, 16
  %v10878 = vshll.u32 %v10606, 16
  %v10880 = vrot.slane %v10878, 1
  %v10881 = vor.u32 %v10876, %v10880
  %v10883 = vshll.u32 %v10766, 16
  %v10885 = vrot.slane %v10883, 1
  %v10886 = vsel %vm2964, %v10881, %v10885
  %v10888 = vshrl.u32 %v10607, 16
  %v10890 = vshll.u32 %v10607, 16
  %v10892 = vrot.slane %v10890, 1
  %v10893 = vor.u32 %v10888, %v10892
  %v10895 = vshll.u32 %v10767, 16
  %v10897 = vrot.slane %v10895, 1
  %v10898 = vsel %vm2964, %v10893, %v10897
  %v10900 = vshrl.u32 %v10608, 16
  %v10902 = vshll.u32 %v10608, 16
  %v10904 = vrot.slane %v10902, 1
  %v10905 = vor.u32 %v10900, %v10904
  %v10907 = vshll.u32 %v10768, 16
  %v10909 = vrot.slane %v10907, 1
  %v10910 = vsel %vm2964, %v10905, %v10909
  %v10912 = vshrl.u32 %v10609, 16
  %v10914 = vshll.u32 %v10609, 16
  %v10916 = vrot.slane %v10914, 1
  %v10917 = vor.u32 %v10912, %v10916
  %v10919 = vshll.u32 %v10769, 16
  %v10921 = vrot.slane %v10919, 1
  %v10922 = vsel %vm2964, %v10917, %v10921
  %v10924 = vshrl.u32 %v10610, 16
  %v10926 = vshll.u32 %v10610, 16
  %v10928 = vrot.slane %v10926, 1
  %v10929 = vor.u32 %v10924, %v10928
  %v10931 = vshll.u32 %v10770, 16
  %v10933 = vrot.slane %v10931, 1
  %v10934 = vsel %vm2964, %v10929, %v10933
  %v10936 = vshrl.u32 %v10611, 16
  %v10938 = vshll.u32 %v10611, 16
  %v10940 = vrot.slane %v10938, 1
  %v10941 = vor.u32 %v10936, %v10940
  %v10943 = vshll.u32 %v10771, 16
  %v10945 = vrot.slane %v10943, 1
  %v10946 = vsel %vm2964, %v10941, %v10945
  %v10948 = vshrl.u32 %v10612, 16
  %v10950 = vshll.u32 %v10612, 16
  %v10952 = vrot.slane %v10950, 1
  %v10953 = vor.u32 %v10948, %v10952
  %v10955 = vshll.u32 %v10772, 16
  %v10957 = vrot.slane %v10955, 1
  %v10958 = vsel %vm2964, %v10953, %v10957
  %v10960 = vshrl.u32 %v10613, 16
  %v10962 = vshll.u32 %v10613, 16
  %v10964 = vrot.slane %v10962, 1
  %v10965 = vor.u32 %v10960, %v10964
  %v10967 = vshll.u32 %v10773, 16
  %v10969 = vrot.slane %v10967, 1
  %v10970 = vsel %vm2964, %v10965, %v10969
  %v10972 = vshrl.u32 %v10614, 16
  %v10974 = vshll.u32 %v10614, 16
  %v10976 = vrot.slane %v10974, 1
  %v10977 = vor.u32 %v10972, %v10976
  %v10979 = vshll.u32 %v10774, 16
  %v10981 = vrot.slane %v10979, 1
  %v10982 = vsel %vm2964, %v10977, %v10981
  %v10984 = vshrl.u32 %v10615, 16
  %v10986 = vshll.u32 %v10615, 16
  %v10988 = vrot.slane %v10986, 1
  %v10989 = vor.u32 %v10984, %v10988
  %v10991 = vshll.u32 %v10775, 16
  %v10993 = vrot.slane %v10991, 1
  %v10994 = vsel %vm2964, %v10989, %v10993
  %v10996 = vshrl.u32 %v10616, 16
  %v10998 = vshll.u32 %v10616, 16
  %v11000 = vrot.slane %v10998, 1
  %v11001 = vor.u32 %v10996, %v11000
  %v11003 = vshll.u32 %v10776, 16
  %v11005 = vrot.slane %v11003, 1
  %v11006 = vsel %vm2964, %v11001, %v11005
  %v11008 = vshrl.u32 %v10617, 16
  %v11010 = vshll.u32 %v10617, 16
  %v11012 = vrot.slane %v11010, 1
  %v11013 = vor.u32 %v11008, %v11012
  %v11015 = vshll.u32 %v10777, 16
  %v11017 = vrot.slane %v11015, 1
  %v11018 = vsel %vm2964, %v11013, %v11017
  %v11020 = vshrl.u32 %v10618, 16
  %v11022 = vshll.u32 %v10618, 16
  %v11024 = vrot.slane %v11022, 1
  %v11025 = vor.u32 %v11020, %v11024
  %v11027 = vshll.u32 %v10778, 16
  %v11029 = vrot.slane %v11027, 1
  %v11030 = vsel %vm2964, %v11025, %v11029
  %v11032 = vshrl.u32 %v10619, 16
  %v11034 = vshll.u32 %v10619, 16
  %v11036 = vrot.slane %v11034, 1
  %v11037 = vor.u32 %v11032, %v11036
  %v11039 = vshll.u32 %v10779, 16
  %v11041 = vrot.slane %v11039, 1
  %v11042 = vsel %vm2964, %v11037, %v11041
  %v11044 = vshrl.u32 %v10620, 16
  %v11046 = vshll.u32 %v10620, 16
  %v11048 = vrot.slane %v11046, 1
  %v11049 = vor.u32 %v11044, %v11048
  %v11051 = vshll.u32 %v10780, 16
  %v11053 = vrot.slane %v11051, 1
  %v11054 = vsel %vm2964, %v11049, %v11053
  %v11056 = vshrl.u32 %v10621, 16
  %v11058 = vshll.u32 %v10621, 16
  %v11060 = vrot.slane %v11058, 1
  %v11061 = vor.u32 %v11056, %v11060
  %v11063 = vshll.u32 %v10781, 16
  %v11065 = vrot.slane %v11063, 1
  %v11066 = vsel %vm2964, %v11061, %v11065
  %v11068 = vshrl.u32 %v10622, 16
  %v11070 = vshll.u32 %v10622, 16
  %v11072 = vrot.slane %v11070, 1
  %v11073 = vor.u32 %v11068, %v11072
  %v11075 = vshll.u32 %v10782, 16
  %v11077 = vrot.slane %v11075, 1
  %v11078 = vsel %vm2964, %v11073, %v11077
  %v11080 = vshrl.u32 %v10623, 16
  %v11082 = vshll.u32 %v10623, 16
  %v11084 = vrot.slane %v11082, 1
  %v11085 = vor.u32 %v11080, %v11084
  %v11087 = vshll.u32 %v10783, 16
  %v11089 = vrot.slane %v11087, 1
  %v11090 = vsel %vm2964, %v11085, %v11089
  %v11092 = vshrl.u32 %v10624, 16
  %v11094 = vshll.u32 %v10624, 16
  %v11096 = vrot.slane %v11094, 1
  %v11097 = vor.u32 %v11092, %v11096
  %v11099 = vshll.u32 %v10784, 16
  %v11101 = vrot.slane %v11099, 1
  %v11102 = vsel %vm2964, %v11097, %v11101
  %v11104 = vshrl.u32 %v10625, 16
  %v11106 = vshll.u32 %v10625, 16
  %v11108 = vrot.slane %v11106, 1
  %v11109 = vor.u32 %v11104, %v11108
  %v11111 = vshll.u32 %v10785, 16
  %v11113 = vrot.slane %v11111, 1
  %v11114 = vsel %vm2964, %v11109, %v11113
  %v11116 = vshrl.u32 %v10626, 16
  %v11118 = vshll.u32 %v10626, 16
  %v11120 = vrot.slane %v11118, 1
  %v11121 = vor.u32 %v11116, %v11120
  %v11123 = vshll.u32 %v10786, 16
  %v11125 = vrot.slane %v11123, 1
  %v11126 = vsel %vm2964, %v11121, %v11125
  %v11128 = vshrl.u32 %v10627, 16
  %v11130 = vshll.u32 %v10627, 16
  %v11132 = vrot.slane %v11130, 1
  %v11133 = vor.u32 %v11128, %v11132
  %v11135 = vshll.u32 %v10787, 16
  %v11137 = vrot.slane %v11135, 1
  %v11138 = vsel %vm2964, %v11133, %v11137
  %v11140 = vshrl.u32 %v10628, 16
  %v11142 = vshll.u32 %v10628, 16
  %v11144 = vrot.slane %v11142, 1
  %v11145 = vor.u32 %v11140, %v11144
  %v11147 = vshll.u32 %v10788, 16
  %v11149 = vrot.slane %v11147, 1
  %v11150 = vsel %vm2964, %v11145, %v11149
  %v11152 = vshrl.u32 %v10629, 16
  %v11154 = vshll.u32 %v10629, 16
  %v11156 = vrot.slane %v11154, 1
  %v11157 = vor.u32 %v11152, %v11156
  %v11159 = vshll.u32 %v10789, 16
  %v11161 = vrot.slane %v11159, 1
  %v11162 = vsel %vm2964, %v11157, %v11161
  %v11164 = vshrl.u32 %v10630, 16
  %v11166 = vshll.u32 %v10630, 16
  %v11168 = vrot.slane %v11166, 1
  %v11169 = vor.u32 %v11164, %v11168
  %v11171 = vshll.u32 %v10790, 16
  %v11173 = vrot.slane %v11171, 1
  %v11174 = vsel %vm2964, %v11169, %v11173
  %11175 = vrot.lane.b32.xlu0 %v10802, 56
  %v11176 = vpop.permute.xlu0 %11175
  %11177 = vrot.lane.b32.xlu0 %v10814, 56
  %v11178 = vpop.permute.xlu0 %11177
  %11179 = vrot.lane.b32.xlu0 %v10826, 56
  %v11180 = vpop.permute.xlu0 %11179
  %11181 = vrot.lane.b32.xlu0 %v10838, 56
  %v11182 = vpop.permute.xlu0 %11181
  %11183 = vrot.lane.b32.xlu0 %v10850, 56
  %v11184 = vpop.permute.xlu0 %11183
  %11185 = vrot.lane.b32.xlu0 %v10862, 56
  %v11186 = vpop.permute.xlu0 %11185
  %11187 = vrot.lane.b32.xlu0 %v10874, 56
  %v11188 = vpop.permute.xlu0 %11187
  %11189 = vrot.lane.b32.xlu0 %v10886, 56
  %v11190 = vpop.permute.xlu0 %11189
  %11191 = vrot.lane.b32.xlu0 %v10898, 56
  %v11192 = vpop.permute.xlu0 %11191
  %11193 = vrot.lane.b32.xlu0 %v10910, 56
  %v11194 = vpop.permute.xlu0 %11193
  %11195 = vrot.lane.b32.xlu0 %v10922, 56
  %v11196 = vpop.permute.xlu0 %11195
  %11197 = vrot.lane.b32.xlu0 %v10934, 56
  %v11198 = vpop.permute.xlu0 %11197
  %11199 = vrot.lane.b32.xlu0 %v10946, 56
  %v11200 = vpop.permute.xlu0 %11199
  %11201 = vrot.lane.b32.xlu0 %v10958, 56
  %v11202 = vpop.permute.xlu0 %11201
  %11203 = vrot.lane.b32.xlu0 %v10970, 56
  %v11204 = vpop.permute.xlu0 %11203
  %11205 = vrot.lane.b32.xlu0 %v10982, 56
  %v11206 = vpop.permute.xlu0 %11205
  %11207 = vrot.lane.b32.xlu0 %v10994, 56
  %v11208 = vpop.permute.xlu0 %11207
  %11209 = vrot.lane.b32.xlu0 %v11006, 56
  %v11210 = vpop.permute.xlu0 %11209
  %11211 = vrot.lane.b32.xlu0 %v11018, 56
  %v11212 = vpop.permute.xlu0 %11211
  %11213 = vrot.lane.b32.xlu0 %v11030, 56
  %v11214 = vpop.permute.xlu0 %11213
  %11215 = vrot.lane.b32.xlu0 %v11042, 56
  %v11216 = vpop.permute.xlu0 %11215
  %11217 = vrot.lane.b32.xlu0 %v11054, 56
  %v11218 = vpop.permute.xlu0 %11217
  %11219 = vrot.lane.b32.xlu0 %v11066, 56
  %v11220 = vpop.permute.xlu0 %11219
  %11221 = vrot.lane.b32.xlu0 %v11078, 56
  %v11222 = vpop.permute.xlu0 %11221
  %11223 = vrot.lane.b32.xlu0 %v11090, 56
  %v11224 = vpop.permute.xlu0 %11223
  %11225 = vrot.lane.b32.xlu0 %v11102, 56
  %v11226 = vpop.permute.xlu0 %11225
  %11227 = vrot.lane.b32.xlu0 %v11114, 56
  %v11228 = vpop.permute.xlu0 %11227
  %11229 = vrot.lane.b32.xlu0 %v11126, 56
  %v11230 = vpop.permute.xlu0 %11229
  %11231 = vrot.lane.b32.xlu0 %v11138, 56
  %v11232 = vpop.permute.xlu0 %11231
  %11233 = vrot.lane.b32.xlu0 %v11150, 56
  %v11234 = vpop.permute.xlu0 %11233
  %11235 = vrot.lane.b32.xlu0 %v11162, 56
  %v11236 = vpop.permute.xlu0 %11235
  %11237 = vrot.lane.b32.xlu0 %v11174, 56
  %v11238 = vpop.permute.xlu0 %11237
  %v11271 = vunpack.c.l.b16 %v8455
  %v11272 = vunpack.c.l.b16 %v8456
  %v11273 = vunpack.c.l.b16 %v8457
  %v11274 = vunpack.c.l.b16 %v8458
  %v11275 = vunpack.c.l.b16 %v8459
  %v11276 = vunpack.c.l.b16 %v8460
  %v11277 = vunpack.c.l.b16 %v8461
  %v11278 = vunpack.c.l.b16 %v8462
  %v11279 = vunpack.c.l.b16 %v8463
  %v11280 = vunpack.c.l.b16 %v8464
  %v11281 = vunpack.c.l.b16 %v8465
  %v11282 = vunpack.c.l.b16 %v8466
  %v11283 = vunpack.c.l.b16 %v8467
  %v11284 = vunpack.c.l.b16 %v8468
  %v11285 = vunpack.c.l.b16 %v8469
  %v11286 = vunpack.c.l.b16 %v8470
  %v11287 = vunpack.c.l.b16 %v8471
  %v11288 = vunpack.c.l.b16 %v8472
  %v11289 = vunpack.c.l.b16 %v8473
  %v11290 = vunpack.c.l.b16 %v8474
  %v11291 = vunpack.c.l.b16 %v8475
  %v11292 = vunpack.c.l.b16 %v8476
  %v11293 = vunpack.c.l.b16 %v8477
  %v11294 = vunpack.c.l.b16 %v8478
  %v11295 = vunpack.c.l.b16 %v8479
  %v11296 = vunpack.c.l.b16 %v8480
  %v11297 = vunpack.c.l.b16 %v8481
  %v11298 = vunpack.c.l.b16 %v8482
  %v11299 = vunpack.c.l.b16 %v8483
  %v11300 = vunpack.c.l.b16 %v8484
  %v11301 = vunpack.c.l.b16 %v8485
  %v11302 = vunpack.c.l.b16 %v8486
  %v11303 = vpack.c.b16 %v10536, %v11271
  %v11304 = vpack.c.b16 %v10538, %v11272
  %v11305 = vpack.c.b16 %v10540, %v11273
  %v11306 = vpack.c.b16 %v10542, %v11274
  %v11307 = vpack.c.b16 %v10544, %v11275
  %v11308 = vpack.c.b16 %v10546, %v11276
  %v11309 = vpack.c.b16 %v10548, %v11277
  %v11310 = vpack.c.b16 %v10550, %v11278
  %v11311 = vpack.c.b16 %v10552, %v11279
  %v11312 = vpack.c.b16 %v10554, %v11280
  %v11313 = vpack.c.b16 %v10556, %v11281
  %v11314 = vpack.c.b16 %v10558, %v11282
  %v11315 = vpack.c.b16 %v10560, %v11283
  %v11316 = vpack.c.b16 %v10562, %v11284
  %v11317 = vpack.c.b16 %v10564, %v11285
  %v11318 = vpack.c.b16 %v10566, %v11286
  %v11319 = vpack.c.b16 %v10568, %v11287
  %v11320 = vpack.c.b16 %v10570, %v11288
  %v11321 = vpack.c.b16 %v10572, %v11289
  %v11322 = vpack.c.b16 %v10574, %v11290
  %v11323 = vpack.c.b16 %v10576, %v11291
  %v11324 = vpack.c.b16 %v10578, %v11292
  %v11325 = vpack.c.b16 %v10580, %v11293
  %v11326 = vpack.c.b16 %v10582, %v11294
  %v11327 = vpack.c.b16 %v10584, %v11295
  %v11328 = vpack.c.b16 %v10586, %v11296
  %v11329 = vpack.c.b16 %v10588, %v11297
  %v11330 = vpack.c.b16 %v10590, %v11298
  %v11331 = vpack.c.b16 %v10592, %v11299
  %v11332 = vpack.c.b16 %v10594, %v11300
  %v11333 = vpack.c.b16 %v10596, %v11301
  %v11334 = vpack.c.b16 %v10598, %v11302
  %v11335 = vrot.slane %v11303, 1
  %v11336 = vrot.slane %v10759, 1
  %v11337 = vsel %vm3509, %v11335, %v11336
  %v11338 = vrot.slane %v11304, 1
  %v11339 = vrot.slane %v10760, 1
  %v11340 = vsel %vm3509, %v11338, %v11339
  %v11341 = vrot.slane %v11305, 1
  %v11342 = vrot.slane %v10761, 1
  %v11343 = vsel %vm3509, %v11341, %v11342
  %v11344 = vrot.slane %v11306, 1
  %v11345 = vrot.slane %v10762, 1
  %v11346 = vsel %vm3509, %v11344, %v11345
  %v11347 = vrot.slane %v11307, 1
  %v11348 = vrot.slane %v10763, 1
  %v11349 = vsel %vm3509, %v11347, %v11348
  %v11350 = vrot.slane %v11308, 1
  %v11351 = vrot.slane %v10764, 1
  %v11352 = vsel %vm3509, %v11350, %v11351
  %v11353 = vrot.slane %v11309, 1
  %v11354 = vrot.slane %v10765, 1
  %v11355 = vsel %vm3509, %v11353, %v11354
  %v11356 = vrot.slane %v11310, 1
  %v11357 = vrot.slane %v10766, 1
  %v11358 = vsel %vm3509, %v11356, %v11357
  %v11359 = vrot.slane %v11311, 1
  %v11360 = vrot.slane %v10767, 1
  %v11361 = vsel %vm3509, %v11359, %v11360
  %v11362 = vrot.slane %v11312, 1
  %v11363 = vrot.slane %v10768, 1
  %v11364 = vsel %vm3509, %v11362, %v11363
  %v11365 = vrot.slane %v11313, 1
  %v11366 = vrot.slane %v10769, 1
  %v11367 = vsel %vm3509, %v11365, %v11366
  %v11368 = vrot.slane %v11314, 1
  %v11369 = vrot.slane %v10770, 1
  %v11370 = vsel %vm3509, %v11368, %v11369
  %v11371 = vrot.slane %v11315, 1
  %v11372 = vrot.slane %v10771, 1
  %v11373 = vsel %vm3509, %v11371, %v11372
  %v11374 = vrot.slane %v11316, 1
  %v11375 = vrot.slane %v10772, 1
  %v11376 = vsel %vm3509, %v11374, %v11375
  %v11377 = vrot.slane %v11317, 1
  %v11378 = vrot.slane %v10773, 1
  %v11379 = vsel %vm3509, %v11377, %v11378
  %v11380 = vrot.slane %v11318, 1
  %v11381 = vrot.slane %v10774, 1
  %v11382 = vsel %vm3509, %v11380, %v11381
  %v11383 = vrot.slane %v11319, 1
  %v11384 = vrot.slane %v10775, 1
  %v11385 = vsel %vm3509, %v11383, %v11384
  %v11386 = vrot.slane %v11320, 1
  %v11387 = vrot.slane %v10776, 1
  %v11388 = vsel %vm3509, %v11386, %v11387
  %v11389 = vrot.slane %v11321, 1
  %v11390 = vrot.slane %v10777, 1
  %v11391 = vsel %vm3509, %v11389, %v11390
  %v11392 = vrot.slane %v11322, 1
  %v11393 = vrot.slane %v10778, 1
  %v11394 = vsel %vm3509, %v11392, %v11393
  %v11395 = vrot.slane %v11323, 1
  %v11396 = vrot.slane %v10779, 1
  %v11397 = vsel %vm3509, %v11395, %v11396
  %v11398 = vrot.slane %v11324, 1
  %v11399 = vrot.slane %v10780, 1
  %v11400 = vsel %vm3509, %v11398, %v11399
  %v11401 = vrot.slane %v11325, 1
  %v11402 = vrot.slane %v10781, 1
  %v11403 = vsel %vm3509, %v11401, %v11402
  %v11404 = vrot.slane %v11326, 1
  %v11405 = vrot.slane %v10782, 1
  %v11406 = vsel %vm3509, %v11404, %v11405
  %v11407 = vrot.slane %v11327, 1
  %v11408 = vrot.slane %v10783, 1
  %v11409 = vsel %vm3509, %v11407, %v11408
  %v11410 = vrot.slane %v11328, 1
  %v11411 = vrot.slane %v10784, 1
  %v11412 = vsel %vm3509, %v11410, %v11411
  %v11413 = vrot.slane %v11329, 1
  %v11414 = vrot.slane %v10785, 1
  %v11415 = vsel %vm3509, %v11413, %v11414
  %v11416 = vrot.slane %v11330, 1
  %v11417 = vrot.slane %v10786, 1
  %v11418 = vsel %vm3509, %v11416, %v11417
  %v11419 = vrot.slane %v11331, 1
  %v11420 = vrot.slane %v10787, 1
  %v11421 = vsel %vm3509, %v11419, %v11420
  %v11422 = vrot.slane %v11332, 1
  %v11423 = vrot.slane %v10788, 1
  %v11424 = vsel %vm3509, %v11422, %v11423
  %v11425 = vrot.slane %v11333, 1
  %v11426 = vrot.slane %v10789, 1
  %v11427 = vsel %vm3509, %v11425, %v11426
  %v11428 = vrot.slane %v11334, 1
  %v11429 = vrot.slane %v10790, 1
  %v11430 = vsel %vm3509, %v11428, %v11429
  %11431 = vrot.lane.b32.xlu0 %v11337, 64
  %v11432 = vpop.permute.xlu0 %11431
  %11433 = vrot.lane.b32.xlu0 %v11340, 64
  %v11434 = vpop.permute.xlu0 %11433
  %11435 = vrot.lane.b32.xlu0 %v11343, 64
  %v11436 = vpop.permute.xlu0 %11435
  %11437 = vrot.lane.b32.xlu0 %v11346, 64
  %v11438 = vpop.permute.xlu0 %11437
  %11439 = vrot.lane.b32.xlu0 %v11349, 64
  %v11440 = vpop.permute.xlu0 %11439
  %11441 = vrot.lane.b32.xlu0 %v11352, 64
  %v11442 = vpop.permute.xlu0 %11441
  %11443 = vrot.lane.b32.xlu0 %v11355, 64
  %v11444 = vpop.permute.xlu0 %11443
  %11445 = vrot.lane.b32.xlu0 %v11358, 64
  %v11446 = vpop.permute.xlu0 %11445
  %11447 = vrot.lane.b32.xlu0 %v11361, 64
  %v11448 = vpop.permute.xlu0 %11447
  %11449 = vrot.lane.b32.xlu0 %v11364, 64
  %v11450 = vpop.permute.xlu0 %11449
  %11451 = vrot.lane.b32.xlu0 %v11367, 64
  %v11452 = vpop.permute.xlu0 %11451
  %11453 = vrot.lane.b32.xlu0 %v11370, 64
  %v11454 = vpop.permute.xlu0 %11453
  %11455 = vrot.lane.b32.xlu0 %v11373, 64
  %v11456 = vpop.permute.xlu0 %11455
  %11457 = vrot.lane.b32.xlu0 %v11376, 64
  %v11458 = vpop.permute.xlu0 %11457
  %11459 = vrot.lane.b32.xlu0 %v11379, 64
  %v11460 = vpop.permute.xlu0 %11459
  %11461 = vrot.lane.b32.xlu0 %v11382, 64
  %v11462 = vpop.permute.xlu0 %11461
  %11463 = vrot.lane.b32.xlu0 %v11385, 64
  %v11464 = vpop.permute.xlu0 %11463
  %11465 = vrot.lane.b32.xlu0 %v11388, 64
  %v11466 = vpop.permute.xlu0 %11465
  %11467 = vrot.lane.b32.xlu0 %v11391, 64
  %v11468 = vpop.permute.xlu0 %11467
  %11469 = vrot.lane.b32.xlu0 %v11394, 64
  %v11470 = vpop.permute.xlu0 %11469
  %11471 = vrot.lane.b32.xlu0 %v11397, 64
  %v11472 = vpop.permute.xlu0 %11471
  %11473 = vrot.lane.b32.xlu0 %v11400, 64
  %v11474 = vpop.permute.xlu0 %11473
  %11475 = vrot.lane.b32.xlu0 %v11403, 64
  %v11476 = vpop.permute.xlu0 %11475
  %11477 = vrot.lane.b32.xlu0 %v11406, 64
  %v11478 = vpop.permute.xlu0 %11477
  %11479 = vrot.lane.b32.xlu0 %v11409, 64
  %v11480 = vpop.permute.xlu0 %11479
  %11481 = vrot.lane.b32.xlu0 %v11412, 64
  %v11482 = vpop.permute.xlu0 %11481
  %11483 = vrot.lane.b32.xlu0 %v11415, 64
  %v11484 = vpop.permute.xlu0 %11483
  %11485 = vrot.lane.b32.xlu0 %v11418, 64
  %v11486 = vpop.permute.xlu0 %11485
  %11487 = vrot.lane.b32.xlu0 %v11421, 64
  %v11488 = vpop.permute.xlu0 %11487
  %11489 = vrot.lane.b32.xlu0 %v11424, 64
  %v11490 = vpop.permute.xlu0 %11489
  %11491 = vrot.lane.b32.xlu0 %v11427, 64
  %v11492 = vpop.permute.xlu0 %11491
  %11493 = vrot.lane.b32.xlu0 %v11430, 64
  %v11494 = vpop.permute.xlu0 %11493
  %v11496 = vsel %vm5718, %v8615, %v9128
  %v11498 = vsel %vm5718, %v8616, %v9130
  %v11500 = vsel %vm5718, %v8617, %v9132
  %v11502 = vsel %vm5718, %v8618, %v9134
  %v11504 = vsel %vm5718, %v8619, %v9136
  %v11506 = vsel %vm5718, %v8620, %v9138
  %v11508 = vsel %vm5718, %v8621, %v9140
  %v11510 = vsel %vm5718, %v8622, %v9142
  %v11512 = vsel %vm5718, %v8623, %v9144
  %v11514 = vsel %vm5718, %v8624, %v9146
  %v11516 = vsel %vm5718, %v8625, %v9148
  %v11518 = vsel %vm5718, %v8626, %v9150
  %v11520 = vsel %vm5718, %v8627, %v9152
  %v11522 = vsel %vm5718, %v8628, %v9154
  %v11524 = vsel %vm5718, %v8629, %v9156
  %v11526 = vsel %vm5718, %v8630, %v9158
  %v11528 = vsel %vm5718, %v8631, %v9160
  %v11530 = vsel %vm5718, %v8632, %v9162
  %v11532 = vsel %vm5718, %v8633, %v9164
  %v11534 = vsel %vm5718, %v8634, %v9166
  %v11536 = vsel %vm5718, %v8635, %v9168
  %v11538 = vsel %vm5718, %v8636, %v9170
  %v11540 = vsel %vm5718, %v8637, %v9172
  %v11542 = vsel %vm5718, %v8638, %v9174
  %v11544 = vsel %vm5718, %v8639, %v9176
  %v11546 = vsel %vm5718, %v8640, %v9178
  %v11548 = vsel %vm5718, %v8641, %v9180
  %v11550 = vsel %vm5718, %v8642, %v9182
  %v11552 = vsel %vm5718, %v8643, %v9184
  %v11554 = vsel %vm5718, %v8644, %v9186
  %v11556 = vsel %vm5718, %v8645, %v9188
  %v11558 = vsel %vm5718, %v8646, %v9190
  %v11560 = vsel %vm5783, %v11496, %v9384
  %v11562 = vsel %vm5783, %v11498, %v9386
  %v11564 = vsel %vm5783, %v11500, %v9388
  %v11566 = vsel %vm5783, %v11502, %v9390
  %v11568 = vsel %vm5783, %v11504, %v9392
  %v11570 = vsel %vm5783, %v11506, %v9394
  %v11572 = vsel %vm5783, %v11508, %v9396
  %v11574 = vsel %vm5783, %v11510, %v9398
  %v11576 = vsel %vm5783, %v11512, %v9400
  %v11578 = vsel %vm5783, %v11514, %v9402
  %v11580 = vsel %vm5783, %v11516, %v9404
  %v11582 = vsel %vm5783, %v11518, %v9406
  %v11584 = vsel %vm5783, %v11520, %v9408
  %v11586 = vsel %vm5783, %v11522, %v9410
  %v11588 = vsel %vm5783, %v11524, %v9412
  %v11590 = vsel %vm5783, %v11526, %v9414
  %v11592 = vsel %vm5783, %v11528, %v9416
  %v11594 = vsel %vm5783, %v11530, %v9418
  %v11596 = vsel %vm5783, %v11532, %v9420
  %v11598 = vsel %vm5783, %v11534, %v9422
  %v11600 = vsel %vm5783, %v11536, %v9424
  %v11602 = vsel %vm5783, %v11538, %v9426
  %v11604 = vsel %vm5783, %v11540, %v9428
  %v11606 = vsel %vm5783, %v11542, %v9430
  %v11608 = vsel %vm5783, %v11544, %v9432
  %v11610 = vsel %vm5783, %v11546, %v9434
  %v11612 = vsel %vm5783, %v11548, %v9436
  %v11614 = vsel %vm5783, %v11550, %v9438
  %v11616 = vsel %vm5783, %v11552, %v9440
  %v11618 = vsel %vm5783, %v11554, %v9442
  %v11620 = vsel %vm5783, %v11556, %v9444
  %v11622 = vsel %vm5783, %v11558, %v9446
  %v11624 = vsel %vm5848, %v11560, %v9608
  %v11626 = vsel %vm5848, %v11562, %v9610
  %v11628 = vsel %vm5848, %v11564, %v9612
  %v11630 = vsel %vm5848, %v11566, %v9614
  %v11632 = vsel %vm5848, %v11568, %v9616
  %v11634 = vsel %vm5848, %v11570, %v9618
  %v11636 = vsel %vm5848, %v11572, %v9620
  %v11638 = vsel %vm5848, %v11574, %v9622
  %v11640 = vsel %vm5848, %v11576, %v9624
  %v11642 = vsel %vm5848, %v11578, %v9626
  %v11644 = vsel %vm5848, %v11580, %v9628
  %v11646 = vsel %vm5848, %v11582, %v9630
  %v11648 = vsel %vm5848, %v11584, %v9632
  %v11650 = vsel %vm5848, %v11586, %v9634
  %v11652 = vsel %vm5848, %v11588, %v9636
  %v11654 = vsel %vm5848, %v11590, %v9638
  %v11656 = vsel %vm5848, %v11592, %v9640
  %v11658 = vsel %vm5848, %v11594, %v9642
  %v11660 = vsel %vm5848, %v11596, %v9644
  %v11662 = vsel %vm5848, %v11598, %v9646
  %v11664 = vsel %vm5848, %v11600, %v9648
  %v11666 = vsel %vm5848, %v11602, %v9650
  %v11668 = vsel %vm5848, %v11604, %v9652
  %v11670 = vsel %vm5848, %v11606, %v9654
  %v11672 = vsel %vm5848, %v11608, %v9656
  %v11674 = vsel %vm5848, %v11610, %v9658
  %v11676 = vsel %vm5848, %v11612, %v9660
  %v11678 = vsel %vm5848, %v11614, %v9662
  %v11680 = vsel %vm5848, %v11616, %v9664
  %v11682 = vsel %vm5848, %v11618, %v9666
  %v11684 = vsel %vm5848, %v11620, %v9668
  %v11686 = vsel %vm5848, %v11622, %v9670
  %v11688 = vsel %vm5913, %v11624, %v10152
  %v11690 = vsel %vm5913, %v11626, %v10154
  %v11692 = vsel %vm5913, %v11628, %v10156
  %v11694 = vsel %vm5913, %v11630, %v10158
  %v11696 = vsel %vm5913, %v11632, %v10160
  %v11698 = vsel %vm5913, %v11634, %v10162
  %v11700 = vsel %vm5913, %v11636, %v10164
  %v11702 = vsel %vm5913, %v11638, %v10166
  %v11704 = vsel %vm5913, %v11640, %v10168
  %v11706 = vsel %vm5913, %v11642, %v10170
  %v11708 = vsel %vm5913, %v11644, %v10172
  %v11710 = vsel %vm5913, %v11646, %v10174
  %v11712 = vsel %vm5913, %v11648, %v10176
  %v11714 = vsel %vm5913, %v11650, %v10178
  %v11716 = vsel %vm5913, %v11652, %v10180
  %v11718 = vsel %vm5913, %v11654, %v10182
  %v11720 = vsel %vm5913, %v11656, %v10184
  %v11722 = vsel %vm5913, %v11658, %v10186
  %v11724 = vsel %vm5913, %v11660, %v10188
  %v11726 = vsel %vm5913, %v11662, %v10190
  %v11728 = vsel %vm5913, %v11664, %v10192
  %v11730 = vsel %vm5913, %v11666, %v10194
  %v11732 = vsel %vm5913, %v11668, %v10196
  %v11734 = vsel %vm5913, %v11670, %v10198
  %v11736 = vsel %vm5913, %v11672, %v10200
  %v11738 = vsel %vm5913, %v11674, %v10202
  %v11740 = vsel %vm5913, %v11676, %v10204
  %v11742 = vsel %vm5913, %v11678, %v10206
  %v11744 = vsel %vm5913, %v11680, %v10208
  %v11746 = vsel %vm5913, %v11682, %v10210
  %v11748 = vsel %vm5913, %v11684, %v10212
  %v11750 = vsel %vm5913, %v11686, %v10214
  %v11752 = vsel %vm5978, %v11688, %v10408
  %v11754 = vsel %vm5978, %v11690, %v10410
  %v11756 = vsel %vm5978, %v11692, %v10412
  %v11758 = vsel %vm5978, %v11694, %v10414
  %v11760 = vsel %vm5978, %v11696, %v10416
  %v11762 = vsel %vm5978, %v11698, %v10418
  %v11764 = vsel %vm5978, %v11700, %v10420
  %v11766 = vsel %vm5978, %v11702, %v10422
  %v11768 = vsel %vm5978, %v11704, %v10424
  %v11770 = vsel %vm5978, %v11706, %v10426
  %v11772 = vsel %vm5978, %v11708, %v10428
  %v11774 = vsel %vm5978, %v11710, %v10430
  %v11776 = vsel %vm5978, %v11712, %v10432
  %v11778 = vsel %vm5978, %v11714, %v10434
  %v11780 = vsel %vm5978, %v11716, %v10436
  %v11782 = vsel %vm5978, %v11718, %v10438
  %v11784 = vsel %vm5978, %v11720, %v10440
  %v11786 = vsel %vm5978, %v11722, %v10442
  %v11788 = vsel %vm5978, %v11724, %v10444
  %v11790 = vsel %vm5978, %v11726, %v10446
  %v11792 = vsel %vm5978, %v11728, %v10448
  %v11794 = vsel %vm5978, %v11730, %v10450
  %v11796 = vsel %vm5978, %v11732, %v10452
  %v11798 = vsel %vm5978, %v11734, %v10454
  %v11800 = vsel %vm5978, %v11736, %v10456
  %v11802 = vsel %vm5978, %v11738, %v10458
  %v11804 = vsel %vm5978, %v11740, %v10460
  %v11806 = vsel %vm5978, %v11742, %v10462
  %v11808 = vsel %vm5978, %v11744, %v10464
  %v11810 = vsel %vm5978, %v11746, %v10466
  %v11812 = vsel %vm5978, %v11748, %v10468
  %v11814 = vsel %vm5978, %v11750, %v10470
  %v11816 = vsel %vm6043, %v11752, %v10632
  %v11818 = vsel %vm6043, %v11754, %v10634
  %v11820 = vsel %vm6043, %v11756, %v10636
  %v11822 = vsel %vm6043, %v11758, %v10638
  %v11824 = vsel %vm6043, %v11760, %v10640
  %v11826 = vsel %vm6043, %v11762, %v10642
  %v11828 = vsel %vm6043, %v11764, %v10644
  %v11830 = vsel %vm6043, %v11766, %v10646
  %v11832 = vsel %vm6043, %v11768, %v10648
  %v11834 = vsel %vm6043, %v11770, %v10650
  %v11836 = vsel %vm6043, %v11772, %v10652
  %v11838 = vsel %vm6043, %v11774, %v10654
  %v11840 = vsel %vm6043, %v11776, %v10656
  %v11842 = vsel %vm6043, %v11778, %v10658
  %v11844 = vsel %vm6043, %v11780, %v10660
  %v11846 = vsel %vm6043, %v11782, %v10662
  %v11848 = vsel %vm6043, %v11784, %v10664
  %v11850 = vsel %vm6043, %v11786, %v10666
  %v11852 = vsel %vm6043, %v11788, %v10668
  %v11854 = vsel %vm6043, %v11790, %v10670
  %v11856 = vsel %vm6043, %v11792, %v10672
  %v11858 = vsel %vm6043, %v11794, %v10674
  %v11860 = vsel %vm6043, %v11796, %v10676
  %v11862 = vsel %vm6043, %v11798, %v10678
  %v11864 = vsel %vm6043, %v11800, %v10680
  %v11866 = vsel %vm6043, %v11802, %v10682
  %v11868 = vsel %vm6043, %v11804, %v10684
  %v11870 = vsel %vm6043, %v11806, %v10686
  %v11872 = vsel %vm6043, %v11808, %v10688
  %v11874 = vsel %vm6043, %v11810, %v10690
  %v11876 = vsel %vm6043, %v11812, %v10692
  %v11878 = vsel %vm6043, %v11814, %v10694
  %v11880 = vsel %vm6108, %v11816, %v11176
  %v11882 = vsel %vm6108, %v11818, %v11178
  %v11884 = vsel %vm6108, %v11820, %v11180
  %v11886 = vsel %vm6108, %v11822, %v11182
  %v11888 = vsel %vm6108, %v11824, %v11184
  %v11890 = vsel %vm6108, %v11826, %v11186
  %v11892 = vsel %vm6108, %v11828, %v11188
  %v11894 = vsel %vm6108, %v11830, %v11190
  %v11896 = vsel %vm6108, %v11832, %v11192
  %v11898 = vsel %vm6108, %v11834, %v11194
  %v11900 = vsel %vm6108, %v11836, %v11196
  %v11902 = vsel %vm6108, %v11838, %v11198
  %v11904 = vsel %vm6108, %v11840, %v11200
  %v11906 = vsel %vm6108, %v11842, %v11202
  %v11908 = vsel %vm6108, %v11844, %v11204
  %v11910 = vsel %vm6108, %v11846, %v11206
  %v11912 = vsel %vm6108, %v11848, %v11208
  %v11914 = vsel %vm6108, %v11850, %v11210
  %v11916 = vsel %vm6108, %v11852, %v11212
  %v11918 = vsel %vm6108, %v11854, %v11214
  %v11920 = vsel %vm6108, %v11856, %v11216
  %v11922 = vsel %vm6108, %v11858, %v11218
  %v11924 = vsel %vm6108, %v11860, %v11220
  %v11926 = vsel %vm6108, %v11862, %v11222
  %v11928 = vsel %vm6108, %v11864, %v11224
  %v11930 = vsel %vm6108, %v11866, %v11226
  %v11932 = vsel %vm6108, %v11868, %v11228
  %v11934 = vsel %vm6108, %v11870, %v11230
  %v11936 = vsel %vm6108, %v11872, %v11232
  %v11938 = vsel %vm6108, %v11874, %v11234
  %v11940 = vsel %vm6108, %v11876, %v11236
  %v11942 = vsel %vm6108, %v11878, %v11238
  %v11944 = vsel %vm6173, %v11880, %v11432
  %v11946 = vsel %vm6173, %v11882, %v11434
  %v11948 = vsel %vm6173, %v11884, %v11436
  %v11950 = vsel %vm6173, %v11886, %v11438
  %v11952 = vsel %vm6173, %v11888, %v11440
  %v11954 = vsel %vm6173, %v11890, %v11442
  %v11956 = vsel %vm6173, %v11892, %v11444
  %v11958 = vsel %vm6173, %v11894, %v11446
  %v11960 = vsel %vm6173, %v11896, %v11448
  %v11962 = vsel %vm6173, %v11898, %v11450
  %v11964 = vsel %vm6173, %v11900, %v11452
  %v11966 = vsel %vm6173, %v11902, %v11454
  %v11968 = vsel %vm6173, %v11904, %v11456
  %v11970 = vsel %vm6173, %v11906, %v11458
  %v11972 = vsel %vm6173, %v11908, %v11460
  %v11974 = vsel %vm6173, %v11910, %v11462
  %v11976 = vsel %vm6173, %v11912, %v11464
  %v11978 = vsel %vm6173, %v11914, %v11466
  %v11980 = vsel %vm6173, %v11916, %v11468
  %v11982 = vsel %vm6173, %v11918, %v11470
  %v11984 = vsel %vm6173, %v11920, %v11472
  %v11986 = vsel %vm6173, %v11922, %v11474
  %v11988 = vsel %vm6173, %v11924, %v11476
  %v11990 = vsel %vm6173, %v11926, %v11478
  %v11992 = vsel %vm6173, %v11928, %v11480
  %v11994 = vsel %vm6173, %v11930, %v11482
  %v11996 = vsel %vm6173, %v11932, %v11484
  %v11998 = vsel %vm6173, %v11934, %v11486
  %v12000 = vsel %vm6173, %v11936, %v11488
  %v12002 = vsel %vm6173, %v11938, %v11490
  %v12004 = vsel %vm6173, %v11940, %v11492
  %v12006 = vsel %vm6173, %v11942, %v11494
  %v12007 = vld [vmem:[%s5] sm:$0xf]
  %v12008 = vld [vmem:[%s5 + $0x4] sm:$0xf]
  %v12009 = vld [vmem:[%s5 + $0x8] sm:$0xf]
  %v12010 = vld [vmem:[%s5 + $0xc] sm:$0xf]
  %v12011 = vld [vmem:[%s5 + $0x10] sm:$0xf]
  %v12012 = vld [vmem:[%s5 + $0x14] sm:$0xf]
  %v12013 = vld [vmem:[%s5 + $0x18] sm:$0xf]
  %v12014 = vld [vmem:[%s5 + $0x1c] sm:$0xf]
  %v12015 = vld [vmem:[%s5 + $0x20] sm:$0xf]
  %v12025 = vunpack.c.l.b16 %v12007
  %v12026 = vunpack.c.l.b16 %v12008
  %v12027 = vunpack.c.l.b16 %v12009
  %v12028 = vunpack.c.l.b16 %v12010
  %v12029 = vunpack.c.l.b16 %v12011
  %v12030 = vunpack.c.l.b16 %v12012
  %v12031 = vunpack.c.l.b16 %v12013
  %v12032 = vunpack.c.l.b16 %v12014
  %v12033 = vunpack.c.l.b16 %v12015
  %v12034 = vpack.c.b16 %v12026, %v12025
  %v12035 = vpack.c.b16 %v12028, %v12027
  %v12036 = vpack.c.b16 %v12030, %v12029
  %v12037 = vpack.c.b16 %v12032, %v12031
  %v12038 = vpack.c.b16 %v12033, %v12033
  %v12043 = vsel %vm6274, %v11944, 0
  %v12045 = vsel %vm6274, %v11946, 0
  %v12047 = vsel %vm6274, %v11948, 0
  %v12049 = vsel %vm6274, %v11950, 0
  %v12051 = vsel %vm6274, %v11952, 0
  %v12053 = vsel %vm6274, %v11954, 0
  %v12055 = vsel %vm6274, %v11956, 0
  %v12057 = vsel %vm6274, %v11958, 0
  %v12059 = vsel %vm6274, %v11960, 0
  %v12061 = vsel %vm6274, %v11962, 0
  %v12063 = vsel %vm6274, %v11964, 0
  %v12065 = vsel %vm6274, %v11966, 0
  %v12067 = vsel %vm6274, %v11968, 0
  %v12069 = vsel %vm6274, %v11970, 0
  %v12071 = vsel %vm6274, %v11972, 0
  %v12073 = vsel %vm6274, %v11974, 0
  %v12075 = vsel %vm6274, %v11976, 0
  %v12077 = vsel %vm6274, %v11978, 0
  %v12079 = vsel %vm6274, %v11980, 0
  %v12081 = vsel %vm6274, %v11982, 0
  %v12083 = vsel %vm6274, %v11984, 0
  %v12085 = vsel %vm6274, %v11986, 0
  %v12087 = vsel %vm6274, %v11988, 0
  %v12089 = vsel %vm6274, %v11990, 0
  %v12091 = vsel %vm6274, %v11992, 0
  %v12093 = vsel %vm6274, %v11994, 0
  %v12095 = vsel %vm6274, %v11996, 0
  %v12097 = vsel %vm6274, %v11998, 0
  %v12099 = vsel %vm6274, %v12000, 0
  %v12101 = vsel %vm6274, %v12002, 0
  %v12103 = vsel %vm6274, %v12004, 0
  %v12105 = vsel %vm6274, %v12006, 0
  %v12108 = vsel %vm6339, %v12038, 0
  %12110 = vmatprep.subr.bf16.mxu0 0
  %12111 = vmatpush1.bf16.msra.mxu0 %v12034
  %12112 = vmatprep.subr.bf16.mxu0 0
  %12113 = vmatpush1.bf16.msra.mxu0 %v12035
  %12114 = vmatprep.subr.bf16.mxu0 0
  %12115 = vmatpush1.bf16.msra.mxu0 %v12036
  %12116 = vmatprep.subr.bf16.mxu0 0
  %12117 = vmatpush1.bf16.msra.mxu0 %v12037
  %12118 = vmatprep.subr.bf16.mxu0 0
  %12119 = vmatpush1.bf16.msra.mxu0 %v12108
  %12120 = vmatprep.subr.bf16.mxu0 0
  %12121 = vmatpush1.bf16.msra.mxu0 0
  %12122 = vmatprep.subr.bf16.mxu0 0
  %12123 = vmatpush1.bf16.msra.mxu0 0
  %12124 = vmatprep.subr.bf16.mxu0 0
  %12125 = vmatpush1.bf16.msra.mxu0 0
  %12126 = vmatprep.subr.bf16.mxu0 0
  %12127 = vmatpush1.bf16.msra.mxu0 0
  %12128 = vmatprep.subr.bf16.mxu0 0
  %12129 = vmatpush1.bf16.msra.mxu0 0
  %12130 = vmatprep.subr.bf16.mxu0 0
  %12131 = vmatpush1.bf16.msra.mxu0 0
  %12132 = vmatprep.subr.bf16.mxu0 0
  %12133 = vmatpush1.bf16.msra.mxu0 0
  %12134 = vmatprep.subr.bf16.mxu0 0
  %12135 = vmatpush1.bf16.msra.mxu0 0
  %12136 = vmatprep.subr.bf16.mxu0 0
  %12137 = vmatpush1.bf16.msra.mxu0 0
  %12138 = vmatprep.subr.bf16.mxu0 0
  %12139 = vmatpush1.bf16.msra.mxu0 0
  %12140 = vmatprep.subr.bf16.mxu0 0
  %12141 = vmatpush1.bf16.msra.mxu0 0
  %12142 = vmatprep.mubr.bf16.mxu0 0
  %12143 = vmatmul.mubr.bf16.gmra.mrb[0].mxu0 %v12043
  %v12144 = vpop.f32.mrb[0].mxu0
  %v12145 = vadd.f32 0.0, %v12144
  %v12146 = vpop.f32.mrb[0].mxu0
  %v12147 = vpop.f32.mrb[0].mxu0
  %v12148 = vadd.f32 0.0, %v12147
  %v12149 = vpop.f32.mrb[0].mxu0
  %12150 = vmatprep.mubr.bf16.mxu0 0
  %12151 = vmatmul.mubr.bf16.gmra.mrb[0].mxu0 %v12045
  %v12152 = vpop.f32.mrb[0].mxu0
  %v12153 = vadd.f32 0.0, %v12152
  %v12154 = vpop.f32.mrb[0].mxu0
  %v12155 = vpop.f32.mrb[0].mxu0
  %v12156 = vadd.f32 0.0, %v12155
  %v12157 = vpop.f32.mrb[0].mxu0
  %12158 = vmatprep.mubr.bf16.mxu0 0
  %12159 = vmatmul.mubr.bf16.gmra.mrb[0].mxu0 %v12047
  %v12160 = vpop.f32.mrb[0].mxu0
  %v12161 = vadd.f32 0.0, %v12160
  %v12162 = vpop.f32.mrb[0].mxu0
  %v12163 = vpop.f32.mrb[0].mxu0
  %v12164 = vadd.f32 0.0, %v12163
  %v12165 = vpop.f32.mrb[0].mxu0
  %12166 = vmatprep.mubr.bf16.mxu0 0
  %12167 = vmatmul.mubr.bf16.gmra.mrb[0].mxu0 %v12049
  %v12168 = vpop.f32.mrb[0].mxu0
  %v12169 = vadd.f32 0.0, %v12168
  %v12170 = vpop.f32.mrb[0].mxu0
  %v12171 = vpop.f32.mrb[0].mxu0
  %v12172 = vadd.f32 0.0, %v12171
  %v12173 = vpop.f32.mrb[0].mxu0
  %12174 = vmatprep.mubr.bf16.mxu0 0
  %12175 = vmatmul.mubr.bf16.gmra.mrb[0].mxu0 %v12051
  %v12176 = vpop.f32.mrb[0].mxu0
  %v12177 = vadd.f32 0.0, %v12176
  %v12178 = vpop.f32.mrb[0].mxu0
  %v12179 = vpop.f32.mrb[0].mxu0
  %v12180 = vadd.f32 0.0, %v12179
  %v12181 = vpop.f32.mrb[0].mxu0
  %12182 = vmatprep.mubr.bf16.mxu0 0
  %12183 = vmatmul.mubr.bf16.gmra.mrb[0].mxu0 %v12053
  %v12184 = vpop.f32.mrb[0].mxu0
  %v12185 = vadd.f32 0.0, %v12184
  %v12186 = vpop.f32.mrb[0].mxu0
  %v12187 = vpop.f32.mrb[0].mxu0
  %v12188 = vadd.f32 0.0, %v12187
  %v12189 = vpop.f32.mrb[0].mxu0
  %12190 = vmatprep.mubr.bf16.mxu0 0
  %12191 = vmatmul.mubr.bf16.gmra.mrb[0].mxu0 %v12055
  %v12192 = vpop.f32.mrb[0].mxu0
  %v12193 = vadd.f32 0.0, %v12192
  %v12194 = vpop.f32.mrb[0].mxu0
  %v12195 = vpop.f32.mrb[0].mxu0
  %v12196 = vadd.f32 0.0, %v12195
  %v12197 = vpop.f32.mrb[0].mxu0
  %12198 = vmatprep.mubr.bf16.mxu0 0
  %12199 = vmatmul.mubr.bf16.gmra.mrb[0].mxu0 %v12057
  %v12200 = vpop.f32.mrb[0].mxu0
  %v12201 = vadd.f32 0.0, %v12200
  %v12202 = vpop.f32.mrb[0].mxu0
  %v12203 = vpop.f32.mrb[0].mxu0
  %v12204 = vadd.f32 0.0, %v12203
  %v12205 = vpop.f32.mrb[0].mxu0
  %12206 = vmatprep.mubr.bf16.mxu0 0
  %12207 = vmatmul.mubr.bf16.gmra.mrb[0].mxu0 %v12059
  %v12208 = vpop.f32.mrb[0].mxu0
  %v12209 = vadd.f32 0.0, %v12208
  %v12210 = vpop.f32.mrb[0].mxu0
  %v12211 = vpop.f32.mrb[0].mxu0
  %v12212 = vadd.f32 0.0, %v12211
  %v12213 = vpop.f32.mrb[0].mxu0
  %12214 = vmatprep.mubr.bf16.mxu0 0
  %12215 = vmatmul.mubr.bf16.gmra.mrb[0].mxu0 %v12061
  %v12216 = vpop.f32.mrb[0].mxu0
  %v12217 = vadd.f32 0.0, %v12216
  %v12218 = vpop.f32.mrb[0].mxu0
  %v12219 = vpop.f32.mrb[0].mxu0
  %v12220 = vadd.f32 0.0, %v12219
  %v12221 = vpop.f32.mrb[0].mxu0
  %12222 = vmatprep.mubr.bf16.mxu0 0
  %12223 = vmatmul.mubr.bf16.gmra.mrb[0].mxu0 %v12063
  %v12224 = vpop.f32.mrb[0].mxu0
  %v12225 = vadd.f32 0.0, %v12224
  %v12226 = vpop.f32.mrb[0].mxu0
  %v12227 = vpop.f32.mrb[0].mxu0
  %v12228 = vadd.f32 0.0, %v12227
  %v12229 = vpop.f32.mrb[0].mxu0
  %12230 = vmatprep.mubr.bf16.mxu0 0
  %12231 = vmatmul.mubr.bf16.gmra.mrb[0].mxu0 %v12065
  %v12232 = vpop.f32.mrb[0].mxu0
  %v12233 = vadd.f32 0.0, %v12232
  %v12234 = vpop.f32.mrb[0].mxu0
  %v12235 = vpop.f32.mrb[0].mxu0
  %v12236 = vadd.f32 0.0, %v12235
  %v12237 = vpop.f32.mrb[0].mxu0
  %12238 = vmatprep.mubr.bf16.mxu0 0
  %12239 = vmatmul.mubr.bf16.gmra.mrb[0].mxu0 %v12067
  %v12240 = vpop.f32.mrb[0].mxu0
  %v12241 = vadd.f32 0.0, %v12240
  %v12242 = vpop.f32.mrb[0].mxu0
  %v12243 = vpop.f32.mrb[0].mxu0
  %v12244 = vadd.f32 0.0, %v12243
  %v12245 = vpop.f32.mrb[0].mxu0
  %12246 = vmatprep.mubr.bf16.mxu0 0
  %12247 = vmatmul.mubr.bf16.gmra.mrb[0].mxu0 %v12069
  %v12248 = vpop.f32.mrb[0].mxu0
  %v12249 = vadd.f32 0.0, %v12248
  %v12250 = vpop.f32.mrb[0].mxu0
  %v12251 = vpop.f32.mrb[0].mxu0
  %v12252 = vadd.f32 0.0, %v12251
  %v12253 = vpop.f32.mrb[0].mxu0
  %12254 = vmatprep.mubr.bf16.mxu0 0
  %12255 = vmatmul.mubr.bf16.gmra.mrb[0].mxu0 %v12071
  %v12256 = vpop.f32.mrb[0].mxu0
  %v12257 = vadd.f32 0.0, %v12256
  %v12258 = vpop.f32.mrb[0].mxu0
  %v12259 = vpop.f32.mrb[0].mxu0
  %v12260 = vadd.f32 0.0, %v12259
  %v12261 = vpop.f32.mrb[0].mxu0
  %12262 = vmatprep.mubr.bf16.mxu0 0
  %12263 = vmatmul.mubr.bf16.gmra.mrb[0].mxu0 %v12073
  %v12264 = vpop.f32.mrb[0].mxu0
  %v12265 = vadd.f32 0.0, %v12264
  %v12266 = vpop.f32.mrb[0].mxu0
  %v12267 = vpop.f32.mrb[0].mxu0
  %v12268 = vadd.f32 0.0, %v12267
  %v12269 = vpop.f32.mrb[0].mxu0
  %12270 = vmatprep.mubr.bf16.mxu0 0
  %12271 = vmatmul.mubr.bf16.gmra.mrb[0].mxu0 %v12075
  %v12272 = vpop.f32.mrb[0].mxu0
  %v12273 = vadd.f32 0.0, %v12272
  %v12274 = vpop.f32.mrb[0].mxu0
  %v12275 = vpop.f32.mrb[0].mxu0
  %v12276 = vadd.f32 0.0, %v12275
  %v12277 = vpop.f32.mrb[0].mxu0
  %12278 = vmatprep.mubr.bf16.mxu0 0
  %12279 = vmatmul.mubr.bf16.gmra.mrb[0].mxu0 %v12077
  %v12280 = vpop.f32.mrb[0].mxu0
  %v12281 = vadd.f32 0.0, %v12280
  %v12282 = vpop.f32.mrb[0].mxu0
  %v12283 = vpop.f32.mrb[0].mxu0
  %v12284 = vadd.f32 0.0, %v12283
  %v12285 = vpop.f32.mrb[0].mxu0
  %12286 = vmatprep.mubr.bf16.mxu0 0
  %12287 = vmatmul.mubr.bf16.gmra.mrb[0].mxu0 %v12079
  %v12288 = vpop.f32.mrb[0].mxu0
  %v12289 = vadd.f32 0.0, %v12288
  %v12290 = vpop.f32.mrb[0].mxu0
  %v12291 = vpop.f32.mrb[0].mxu0
  %v12292 = vadd.f32 0.0, %v12291
  %v12293 = vpop.f32.mrb[0].mxu0
  %12294 = vmatprep.mubr.bf16.mxu0 0
  %12295 = vmatmul.mubr.bf16.gmra.mrb[0].mxu0 %v12081
  %v12296 = vpop.f32.mrb[0].mxu0
  %v12297 = vadd.f32 0.0, %v12296
  %v12298 = vpop.f32.mrb[0].mxu0
  %v12299 = vpop.f32.mrb[0].mxu0
  %v12300 = vadd.f32 0.0, %v12299
  %v12301 = vpop.f32.mrb[0].mxu0
  %12302 = vmatprep.mubr.bf16.mxu0 0
  %12303 = vmatmul.mubr.bf16.gmra.mrb[0].mxu0 %v12083
  %v12304 = vpop.f32.mrb[0].mxu0
  %v12305 = vadd.f32 0.0, %v12304
  %v12306 = vpop.f32.mrb[0].mxu0
  %v12307 = vpop.f32.mrb[0].mxu0
  %v12308 = vadd.f32 0.0, %v12307
  %v12309 = vpop.f32.mrb[0].mxu0
  %12310 = vmatprep.mubr.bf16.mxu0 0
  %12311 = vmatmul.mubr.bf16.gmra.mrb[0].mxu0 %v12085
  %v12312 = vpop.f32.mrb[0].mxu0
  %v12313 = vadd.f32 0.0, %v12312
  %v12314 = vpop.f32.mrb[0].mxu0
  %v12315 = vpop.f32.mrb[0].mxu0
  %v12316 = vadd.f32 0.0, %v12315
  %v12317 = vpop.f32.mrb[0].mxu0
  %12318 = vmatprep.mubr.bf16.mxu0 0
  %12319 = vmatmul.mubr.bf16.gmra.mrb[0].mxu0 %v12087
  %v12320 = vpop.f32.mrb[0].mxu0
  %v12321 = vadd.f32 0.0, %v12320
  %v12322 = vpop.f32.mrb[0].mxu0
  %v12323 = vpop.f32.mrb[0].mxu0
  %v12324 = vadd.f32 0.0, %v12323
  %v12325 = vpop.f32.mrb[0].mxu0
  %12326 = vmatprep.mubr.bf16.mxu0 0
  %12327 = vmatmul.mubr.bf16.gmra.mrb[0].mxu0 %v12089
  %v12328 = vpop.f32.mrb[0].mxu0
  %v12329 = vadd.f32 0.0, %v12328
  %v12330 = vpop.f32.mrb[0].mxu0
  %v12331 = vpop.f32.mrb[0].mxu0
  %v12332 = vadd.f32 0.0, %v12331
  %v12333 = vpop.f32.mrb[0].mxu0
  %12334 = vmatprep.mubr.bf16.mxu0 0
  %12335 = vmatmul.mubr.bf16.gmra.mrb[0].mxu0 %v12091
  %v12336 = vpop.f32.mrb[0].mxu0
  %v12337 = vadd.f32 0.0, %v12336
  %v12338 = vpop.f32.mrb[0].mxu0
  %v12339 = vpop.f32.mrb[0].mxu0
  %v12340 = vadd.f32 0.0, %v12339
  %v12341 = vpop.f32.mrb[0].mxu0
  %12342 = vmatprep.mubr.bf16.mxu0 0
  %12343 = vmatmul.mubr.bf16.gmra.mrb[0].mxu0 %v12093
  %v12344 = vpop.f32.mrb[0].mxu0
  %v12345 = vadd.f32 0.0, %v12344
  %v12346 = vpop.f32.mrb[0].mxu0
  %v12347 = vpop.f32.mrb[0].mxu0
  %v12348 = vadd.f32 0.0, %v12347
  %v12349 = vpop.f32.mrb[0].mxu0
  %12350 = vmatprep.mubr.bf16.mxu0 0
  %12351 = vmatmul.mubr.bf16.gmra.mrb[0].mxu0 %v12095
  %v12352 = vpop.f32.mrb[0].mxu0
  %v12353 = vadd.f32 0.0, %v12352
  %v12354 = vpop.f32.mrb[0].mxu0
  %v12355 = vpop.f32.mrb[0].mxu0
  %v12356 = vadd.f32 0.0, %v12355
  %v12357 = vpop.f32.mrb[0].mxu0
  %12358 = vmatprep.mubr.bf16.mxu0 0
  %12359 = vmatmul.mubr.bf16.gmra.mrb[0].mxu0 %v12097
  %v12360 = vpop.f32.mrb[0].mxu0
  %v12361 = vadd.f32 0.0, %v12360
  %v12362 = vpop.f32.mrb[0].mxu0
  %v12363 = vpop.f32.mrb[0].mxu0
  %v12364 = vadd.f32 0.0, %v12363
  %v12365 = vpop.f32.mrb[0].mxu0
  %12366 = vmatprep.mubr.bf16.mxu0 0
  %12367 = vmatmul.mubr.bf16.gmra.mrb[0].mxu0 %v12099
  %v12368 = vpop.f32.mrb[0].mxu0
  %v12369 = vadd.f32 0.0, %v12368
  %v12370 = vpop.f32.mrb[0].mxu0
  %v12371 = vpop.f32.mrb[0].mxu0
  %v12372 = vadd.f32 0.0, %v12371
  %v12373 = vpop.f32.mrb[0].mxu0
  %12374 = vmatprep.mubr.bf16.mxu0 0
  %12375 = vmatmul.mubr.bf16.gmra.mrb[0].mxu0 %v12101
  %v12376 = vpop.f32.mrb[0].mxu0
  %v12377 = vadd.f32 0.0, %v12376
  %v12378 = vpop.f32.mrb[0].mxu0
  %v12379 = vpop.f32.mrb[0].mxu0
  %v12380 = vadd.f32 0.0, %v12379
  %v12381 = vpop.f32.mrb[0].mxu0
  %12382 = vmatprep.mubr.bf16.mxu0 0
  %12383 = vmatmul.mubr.bf16.gmra.mrb[0].mxu0 %v12103
  %v12384 = vpop.f32.mrb[0].mxu0
  %v12385 = vadd.f32 0.0, %v12384
  %v12386 = vpop.f32.mrb[0].mxu0
  %v12387 = vpop.f32.mrb[0].mxu0
  %v12388 = vadd.f32 0.0, %v12387
  %v12389 = vpop.f32.mrb[0].mxu0
  %12390 = vmatprep.mubr.bf16.mxu0 0
  %12391 = vmatmul.mubr.bf16.gmra.mrb[0].mxu0 %v12105
  %v12392 = vpop.f32.mrb[0].mxu0
  %v12393 = vadd.f32 0.0, %v12392
  %v12394 = vpop.f32.mrb[0].mxu0
  %v12395 = vpop.f32.mrb[0].mxu0
  %v12396 = vadd.f32 0.0, %v12395
  %v12397 = vpop.f32.mrb[0].mxu0
  %12398 = vdwg.mxu0
  %v12399 = vld [vmem:[%s6] sm:$0x1]
  %v12401 = vlaneseq
  %v12402 = vshrl.u32 %v12401, 7
  %v12403 = vsub.s32 0, %v12402
  %v12404 = vrot.slane %v12399, %v12403
  %v12406 = vmul.f32 %v12145, %v12404
  %v12407 = vmul.f32 %v12148, %v12404
  %v12408 = vmul.f32 %v12153, %v12404
  %v12409 = vmul.f32 %v12156, %v12404
  %v12410 = vmul.f32 %v12161, %v12404
  %v12411 = vmul.f32 %v12164, %v12404
  %v12412 = vmul.f32 %v12169, %v12404
  %v12413 = vmul.f32 %v12172, %v12404
  %v12414 = vmul.f32 %v12177, %v12404
  %v12415 = vmul.f32 %v12180, %v12404
  %v12416 = vmul.f32 %v12185, %v12404
  %v12417 = vmul.f32 %v12188, %v12404
  %v12418 = vmul.f32 %v12193, %v12404
  %v12419 = vmul.f32 %v12196, %v12404
  %v12420 = vmul.f32 %v12201, %v12404
  %v12421 = vmul.f32 %v12204, %v12404
  %v12422 = vmul.f32 %v12209, %v12404
  %v12423 = vmul.f32 %v12212, %v12404
  %v12424 = vmul.f32 %v12217, %v12404
  %v12425 = vmul.f32 %v12220, %v12404
  %v12426 = vmul.f32 %v12225, %v12404
  %v12427 = vmul.f32 %v12228, %v12404
  %v12428 = vmul.f32 %v12233, %v12404
  %v12429 = vmul.f32 %v12236, %v12404
  %v12430 = vmul.f32 %v12241, %v12404
  %v12431 = vmul.f32 %v12244, %v12404
  %v12432 = vmul.f32 %v12249, %v12404
  %v12433 = vmul.f32 %v12252, %v12404
  %v12434 = vmul.f32 %v12257, %v12404
  %v12435 = vmul.f32 %v12260, %v12404
  %v12436 = vmul.f32 %v12265, %v12404
  %v12437 = vmul.f32 %v12268, %v12404
  %v12438 = vmul.f32 %v12273, %v12404
  %v12439 = vmul.f32 %v12276, %v12404
  %v12440 = vmul.f32 %v12281, %v12404
  %v12441 = vmul.f32 %v12284, %v12404
  %v12442 = vmul.f32 %v12289, %v12404
  %v12443 = vmul.f32 %v12292, %v12404
  %v12444 = vmul.f32 %v12297, %v12404
  %v12445 = vmul.f32 %v12300, %v12404
  %v12446 = vmul.f32 %v12305, %v12404
  %v12447 = vmul.f32 %v12308, %v12404
  %v12448 = vmul.f32 %v12313, %v12404
  %v12449 = vmul.f32 %v12316, %v12404
  %v12450 = vmul.f32 %v12321, %v12404
  %v12451 = vmul.f32 %v12324, %v12404
  %v12452 = vmul.f32 %v12329, %v12404
  %v12453 = vmul.f32 %v12332, %v12404
  %v12454 = vmul.f32 %v12337, %v12404
  %v12455 = vmul.f32 %v12340, %v12404
  %v12456 = vmul.f32 %v12345, %v12404
  %v12457 = vmul.f32 %v12348, %v12404
  %v12458 = vmul.f32 %v12353, %v12404
  %v12459 = vmul.f32 %v12356, %v12404
  %v12460 = vmul.f32 %v12361, %v12404
  %v12461 = vmul.f32 %v12364, %v12404
  %v12462 = vmul.f32 %v12369, %v12404
  %v12463 = vmul.f32 %v12372, %v12404
  %v12464 = vmul.f32 %v12377, %v12404
  %v12465 = vmul.f32 %v12380, %v12404
  %v12466 = vmul.f32 %v12385, %v12404
  %v12467 = vmul.f32 %v12388, %v12404
  %v12468 = vmul.f32 %v12393, %v12404
  %v12469 = vmul.f32 %v12396, %v12404
  %v12470 = vld [vmem:[%s7] sm:$0x1]
  %v12472 = vlaneseq
  %v12473 = vshrl.u32 %v12472, 7
  %v12474 = vsub.s32 0, %v12473
  %v12475 = vrot.slane %v12470, %v12474
  %v12477 = vadd.f32 %v12406, %v12475
  %v12478 = vadd.f32 %v12407, %v12475
  %v12479 = vadd.f32 %v12408, %v12475
  %v12480 = vadd.f32 %v12409, %v12475
  %v12481 = vadd.f32 %v12410, %v12475
  %v12482 = vadd.f32 %v12411, %v12475
  %v12483 = vadd.f32 %v12412, %v12475
  %v12484 = vadd.f32 %v12413, %v12475
  %v12485 = vadd.f32 %v12414, %v12475
  %v12486 = vadd.f32 %v12415, %v12475
  %v12487 = vadd.f32 %v12416, %v12475
  %v12488 = vadd.f32 %v12417, %v12475
  %v12489 = vadd.f32 %v12418, %v12475
  %v12490 = vadd.f32 %v12419, %v12475
  %v12491 = vadd.f32 %v12420, %v12475
  %v12492 = vadd.f32 %v12421, %v12475
  %v12493 = vadd.f32 %v12422, %v12475
  %v12494 = vadd.f32 %v12423, %v12475
  %v12495 = vadd.f32 %v12424, %v12475
  %v12496 = vadd.f32 %v12425, %v12475
  %v12497 = vadd.f32 %v12426, %v12475
  %v12498 = vadd.f32 %v12427, %v12475
  %v12499 = vadd.f32 %v12428, %v12475
  %v12500 = vadd.f32 %v12429, %v12475
  %v12501 = vadd.f32 %v12430, %v12475
  %v12502 = vadd.f32 %v12431, %v12475
  %v12503 = vadd.f32 %v12432, %v12475
  %v12504 = vadd.f32 %v12433, %v12475
  %v12505 = vadd.f32 %v12434, %v12475
  %v12506 = vadd.f32 %v12435, %v12475
  %v12507 = vadd.f32 %v12436, %v12475
  %v12508 = vadd.f32 %v12437, %v12475
  %v12509 = vadd.f32 %v12438, %v12475
  %v12510 = vadd.f32 %v12439, %v12475
  %v12511 = vadd.f32 %v12440, %v12475
  %v12512 = vadd.f32 %v12441, %v12475
  %v12513 = vadd.f32 %v12442, %v12475
  %v12514 = vadd.f32 %v12443, %v12475
  %v12515 = vadd.f32 %v12444, %v12475
  %v12516 = vadd.f32 %v12445, %v12475
  %v12517 = vadd.f32 %v12446, %v12475
  %v12518 = vadd.f32 %v12447, %v12475
  %v12519 = vadd.f32 %v12448, %v12475
  %v12520 = vadd.f32 %v12449, %v12475
  %v12521 = vadd.f32 %v12450, %v12475
  %v12522 = vadd.f32 %v12451, %v12475
  %v12523 = vadd.f32 %v12452, %v12475
  %v12524 = vadd.f32 %v12453, %v12475
  %v12525 = vadd.f32 %v12454, %v12475
  %v12526 = vadd.f32 %v12455, %v12475
  %v12527 = vadd.f32 %v12456, %v12475
  %v12528 = vadd.f32 %v12457, %v12475
  %v12529 = vadd.f32 %v12458, %v12475
  %v12530 = vadd.f32 %v12459, %v12475
  %v12531 = vadd.f32 %v12460, %v12475
  %v12532 = vadd.f32 %v12461, %v12475
  %v12533 = vadd.f32 %v12462, %v12475
  %v12534 = vadd.f32 %v12463, %v12475
  %v12535 = vadd.f32 %v12464, %v12475
  %v12536 = vadd.f32 %v12465, %v12475
  %v12537 = vadd.f32 %v12466, %v12475
  %v12538 = vadd.f32 %v12467, %v12475
  %v12539 = vadd.f32 %v12468, %v12475
  %v12540 = vadd.f32 %v12469, %v12475
  %v12541 = vmax.f32 %v12477, 0.0
  %v12542 = vmax.f32 %v12478, 0.0
  %v12543 = vmax.f32 %v12479, 0.0
  %v12544 = vmax.f32 %v12480, 0.0
  %v12545 = vmax.f32 %v12481, 0.0
  %v12546 = vmax.f32 %v12482, 0.0
  %v12547 = vmax.f32 %v12483, 0.0
  %v12548 = vmax.f32 %v12484, 0.0
  %v12549 = vmax.f32 %v12485, 0.0
  %v12550 = vmax.f32 %v12486, 0.0
  %v12551 = vmax.f32 %v12487, 0.0
  %v12552 = vmax.f32 %v12488, 0.0
  %v12553 = vmax.f32 %v12489, 0.0
  %v12554 = vmax.f32 %v12490, 0.0
  %v12555 = vmax.f32 %v12491, 0.0
  %v12556 = vmax.f32 %v12492, 0.0
  %v12557 = vmax.f32 %v12493, 0.0
  %v12558 = vmax.f32 %v12494, 0.0
  %v12559 = vmax.f32 %v12495, 0.0
  %v12560 = vmax.f32 %v12496, 0.0
  %v12561 = vmax.f32 %v12497, 0.0
  %v12562 = vmax.f32 %v12498, 0.0
  %v12563 = vmax.f32 %v12499, 0.0
  %v12564 = vmax.f32 %v12500, 0.0
  %v12565 = vmax.f32 %v12501, 0.0
  %v12566 = vmax.f32 %v12502, 0.0
  %v12567 = vmax.f32 %v12503, 0.0
  %v12568 = vmax.f32 %v12504, 0.0
  %v12569 = vmax.f32 %v12505, 0.0
  %v12570 = vmax.f32 %v12506, 0.0
  %v12571 = vmax.f32 %v12507, 0.0
  %v12572 = vmax.f32 %v12508, 0.0
  %v12573 = vmax.f32 %v12509, 0.0
  %v12574 = vmax.f32 %v12510, 0.0
  %v12575 = vmax.f32 %v12511, 0.0
  %v12576 = vmax.f32 %v12512, 0.0
  %v12577 = vmax.f32 %v12513, 0.0
  %v12578 = vmax.f32 %v12514, 0.0
  %v12579 = vmax.f32 %v12515, 0.0
  %v12580 = vmax.f32 %v12516, 0.0
  %v12581 = vmax.f32 %v12517, 0.0
  %v12582 = vmax.f32 %v12518, 0.0
  %v12583 = vmax.f32 %v12519, 0.0
  %v12584 = vmax.f32 %v12520, 0.0
  %v12585 = vmax.f32 %v12521, 0.0
  %v12586 = vmax.f32 %v12522, 0.0
  %v12587 = vmax.f32 %v12523, 0.0
  %v12588 = vmax.f32 %v12524, 0.0
  %v12589 = vmax.f32 %v12525, 0.0
  %v12590 = vmax.f32 %v12526, 0.0
  %v12591 = vmax.f32 %v12527, 0.0
  %v12592 = vmax.f32 %v12528, 0.0
  %v12593 = vmax.f32 %v12529, 0.0
  %v12594 = vmax.f32 %v12530, 0.0
  %v12595 = vmax.f32 %v12531, 0.0
  %v12596 = vmax.f32 %v12532, 0.0
  %v12597 = vmax.f32 %v12533, 0.0
  %v12598 = vmax.f32 %v12534, 0.0
  %v12599 = vmax.f32 %v12535, 0.0
  %v12600 = vmax.f32 %v12536, 0.0
  %v12601 = vmax.f32 %v12537, 0.0
  %v12602 = vmax.f32 %v12538, 0.0
  %v12603 = vmax.f32 %v12539, 0.0
  %v12604 = vmax.f32 %v12540, 0.0
  %v12605 = vld [vmem:[%s8] sm:$0x1]
  %v12607 = vlaneseq
  %v12608 = vshrl.u32 %v12607, 7
  %v12609 = vsub.s32 0, %v12608
  %v12610 = vrot.slane %v12605, %v12609
  %v12612 = vmul.f32 %v12541, %v12610
  %v12613 = vmul.f32 %v12542, %v12610
  %v12614 = vmul.f32 %v12543, %v12610
  %v12615 = vmul.f32 %v12544, %v12610
  %v12616 = vmul.f32 %v12545, %v12610
  %v12617 = vmul.f32 %v12546, %v12610
  %v12618 = vmul.f32 %v12547, %v12610
  %v12619 = vmul.f32 %v12548, %v12610
  %v12620 = vmul.f32 %v12549, %v12610
  %v12621 = vmul.f32 %v12550, %v12610
  %v12622 = vmul.f32 %v12551, %v12610
  %v12623 = vmul.f32 %v12552, %v12610
  %v12624 = vmul.f32 %v12553, %v12610
  %v12625 = vmul.f32 %v12554, %v12610
  %v12626 = vmul.f32 %v12555, %v12610
  %v12627 = vmul.f32 %v12556, %v12610
  %v12628 = vmul.f32 %v12557, %v12610
  %v12629 = vmul.f32 %v12558, %v12610
  %v12630 = vmul.f32 %v12559, %v12610
  %v12631 = vmul.f32 %v12560, %v12610
  %v12632 = vmul.f32 %v12561, %v12610
  %v12633 = vmul.f32 %v12562, %v12610
  %v12634 = vmul.f32 %v12563, %v12610
  %v12635 = vmul.f32 %v12564, %v12610
  %v12636 = vmul.f32 %v12565, %v12610
  %v12637 = vmul.f32 %v12566, %v12610
  %v12638 = vmul.f32 %v12567, %v12610
  %v12639 = vmul.f32 %v12568, %v12610
  %v12640 = vmul.f32 %v12569, %v12610
  %v12641 = vmul.f32 %v12570, %v12610
  %v12642 = vmul.f32 %v12571, %v12610
  %v12643 = vmul.f32 %v12572, %v12610
  %v12644 = vmul.f32 %v12573, %v12610
  %v12645 = vmul.f32 %v12574, %v12610
  %v12646 = vmul.f32 %v12575, %v12610
  %v12647 = vmul.f32 %v12576, %v12610
  %v12648 = vmul.f32 %v12577, %v12610
  %v12649 = vmul.f32 %v12578, %v12610
  %v12650 = vmul.f32 %v12579, %v12610
  %v12651 = vmul.f32 %v12580, %v12610
  %v12652 = vmul.f32 %v12581, %v12610
  %v12653 = vmul.f32 %v12582, %v12610
  %v12654 = vmul.f32 %v12583, %v12610
  %v12655 = vmul.f32 %v12584, %v12610
  %v12656 = vmul.f32 %v12585, %v12610
  %v12657 = vmul.f32 %v12586, %v12610
  %v12658 = vmul.f32 %v12587, %v12610
  %v12659 = vmul.f32 %v12588, %v12610
  %v12660 = vmul.f32 %v12589, %v12610
  %v12661 = vmul.f32 %v12590, %v12610
  %v12662 = vmul.f32 %v12591, %v12610
  %v12663 = vmul.f32 %v12592, %v12610
  %v12664 = vmul.f32 %v12593, %v12610
  %v12665 = vmul.f32 %v12594, %v12610
  %v12666 = vmul.f32 %v12595, %v12610
  %v12667 = vmul.f32 %v12596, %v12610
  %v12668 = vmul.f32 %v12597, %v12610
  %v12669 = vmul.f32 %v12598, %v12610
  %v12670 = vmul.f32 %v12599, %v12610
  %v12671 = vmul.f32 %v12600, %v12610
  %v12672 = vmul.f32 %v12601, %v12610
  %v12673 = vmul.f32 %v12602, %v12610
  %v12674 = vmul.f32 %v12603, %v12610
  %v12675 = vmul.f32 %v12604, %v12610
  %vm12676 = vcmask 31744
  %v12677 = vsel %vm12676, %v12612, 0.0
  %12678 = vadd.xlane.f32.xlu0 %v12677
  %v12679 = vpop.xlane.xlu0 %12678
  %v12680 = vsel %vm12676, %v12613, 0.0
  %12681 = vadd.xlane.f32.xlu0 %v12680
  %v12682 = vpop.xlane.xlu0 %12681
  %v12683 = vsel %vm12676, %v12614, 0.0
  %12684 = vadd.xlane.f32.xlu0 %v12683
  %v12685 = vpop.xlane.xlu0 %12684
  %v12686 = vsel %vm12676, %v12615, 0.0
  %12687 = vadd.xlane.f32.xlu0 %v12686
  %v12688 = vpop.xlane.xlu0 %12687
  %v12689 = vsel %vm12676, %v12616, 0.0
  %12690 = vadd.xlane.f32.xlu0 %v12689
  %v12691 = vpop.xlane.xlu0 %12690
  %v12692 = vsel %vm12676, %v12617, 0.0
  %12693 = vadd.xlane.f32.xlu0 %v12692
  %v12694 = vpop.xlane.xlu0 %12693
  %v12695 = vsel %vm12676, %v12618, 0.0
  %12696 = vadd.xlane.f32.xlu0 %v12695
  %v12697 = vpop.xlane.xlu0 %12696
  %v12698 = vsel %vm12676, %v12619, 0.0
  %12699 = vadd.xlane.f32.xlu0 %v12698
  %v12700 = vpop.xlane.xlu0 %12699
  %v12701 = vsel %vm12676, %v12620, 0.0
  %12702 = vadd.xlane.f32.xlu0 %v12701
  %v12703 = vpop.xlane.xlu0 %12702
  %v12704 = vsel %vm12676, %v12621, 0.0
  %12705 = vadd.xlane.f32.xlu0 %v12704
  %v12706 = vpop.xlane.xlu0 %12705
  %v12707 = vsel %vm12676, %v12622, 0.0
  %12708 = vadd.xlane.f32.xlu0 %v12707
  %v12709 = vpop.xlane.xlu0 %12708
  %v12710 = vsel %vm12676, %v12623, 0.0
  %12711 = vadd.xlane.f32.xlu0 %v12710
  %v12712 = vpop.xlane.xlu0 %12711
  %v12713 = vsel %vm12676, %v12624, 0.0
  %12714 = vadd.xlane.f32.xlu0 %v12713
  %v12715 = vpop.xlane.xlu0 %12714
  %v12716 = vsel %vm12676, %v12625, 0.0
  %12717 = vadd.xlane.f32.xlu0 %v12716
  %v12718 = vpop.xlane.xlu0 %12717
  %v12719 = vsel %vm12676, %v12626, 0.0
  %12720 = vadd.xlane.f32.xlu0 %v12719
  %v12721 = vpop.xlane.xlu0 %12720
  %v12722 = vsel %vm12676, %v12627, 0.0
  %12723 = vadd.xlane.f32.xlu0 %v12722
  %v12724 = vpop.xlane.xlu0 %12723
  %v12725 = vsel %vm12676, %v12628, 0.0
  %12726 = vadd.xlane.f32.xlu0 %v12725
  %v12727 = vpop.xlane.xlu0 %12726
  %v12728 = vsel %vm12676, %v12629, 0.0
  %12729 = vadd.xlane.f32.xlu0 %v12728
  %v12730 = vpop.xlane.xlu0 %12729
  %v12731 = vsel %vm12676, %v12630, 0.0
  %12732 = vadd.xlane.f32.xlu0 %v12731
  %v12733 = vpop.xlane.xlu0 %12732
  %v12734 = vsel %vm12676, %v12631, 0.0
  %12735 = vadd.xlane.f32.xlu0 %v12734
  %v12736 = vpop.xlane.xlu0 %12735
  %v12737 = vsel %vm12676, %v12632, 0.0
  %12738 = vadd.xlane.f32.xlu0 %v12737
  %v12739 = vpop.xlane.xlu0 %12738
  %v12740 = vsel %vm12676, %v12633, 0.0
  %12741 = vadd.xlane.f32.xlu0 %v12740
  %v12742 = vpop.xlane.xlu0 %12741
  %v12743 = vsel %vm12676, %v12634, 0.0
  %12744 = vadd.xlane.f32.xlu0 %v12743
  %v12745 = vpop.xlane.xlu0 %12744
  %v12746 = vsel %vm12676, %v12635, 0.0
  %12747 = vadd.xlane.f32.xlu0 %v12746
  %v12748 = vpop.xlane.xlu0 %12747
  %v12749 = vsel %vm12676, %v12636, 0.0
  %12750 = vadd.xlane.f32.xlu0 %v12749
  %v12751 = vpop.xlane.xlu0 %12750
  %v12752 = vsel %vm12676, %v12637, 0.0
  %12753 = vadd.xlane.f32.xlu0 %v12752
  %v12754 = vpop.xlane.xlu0 %12753
  %v12755 = vsel %vm12676, %v12638, 0.0
  %12756 = vadd.xlane.f32.xlu0 %v12755
  %v12757 = vpop.xlane.xlu0 %12756
  %v12758 = vsel %vm12676, %v12639, 0.0
  %12759 = vadd.xlane.f32.xlu0 %v12758
  %v12760 = vpop.xlane.xlu0 %12759
  %v12761 = vsel %vm12676, %v12640, 0.0
  %12762 = vadd.xlane.f32.xlu0 %v12761
  %v12763 = vpop.xlane.xlu0 %12762
  %v12764 = vsel %vm12676, %v12641, 0.0
  %12765 = vadd.xlane.f32.xlu0 %v12764
  %v12766 = vpop.xlane.xlu0 %12765
  %v12767 = vsel %vm12676, %v12642, 0.0
  %12768 = vadd.xlane.f32.xlu0 %v12767
  %v12769 = vpop.xlane.xlu0 %12768
  %v12770 = vsel %vm12676, %v12643, 0.0
  %12771 = vadd.xlane.f32.xlu0 %v12770
  %v12772 = vpop.xlane.xlu0 %12771
  %v12773 = vsel %vm12676, %v12644, 0.0
  %12774 = vadd.xlane.f32.xlu0 %v12773
  %v12775 = vpop.xlane.xlu0 %12774
  %v12776 = vsel %vm12676, %v12645, 0.0
  %12777 = vadd.xlane.f32.xlu0 %v12776
  %v12778 = vpop.xlane.xlu0 %12777
  %v12779 = vsel %vm12676, %v12646, 0.0
  %12780 = vadd.xlane.f32.xlu0 %v12779
  %v12781 = vpop.xlane.xlu0 %12780
  %v12782 = vsel %vm12676, %v12647, 0.0
  %12783 = vadd.xlane.f32.xlu0 %v12782
  %v12784 = vpop.xlane.xlu0 %12783
  %v12785 = vsel %vm12676, %v12648, 0.0
  %12786 = vadd.xlane.f32.xlu0 %v12785
  %v12787 = vpop.xlane.xlu0 %12786
  %v12788 = vsel %vm12676, %v12649, 0.0
  %12789 = vadd.xlane.f32.xlu0 %v12788
  %v12790 = vpop.xlane.xlu0 %12789
  %v12791 = vsel %vm12676, %v12650, 0.0
  %12792 = vadd.xlane.f32.xlu0 %v12791
  %v12793 = vpop.xlane.xlu0 %12792
  %v12794 = vsel %vm12676, %v12651, 0.0
  %12795 = vadd.xlane.f32.xlu0 %v12794
  %v12796 = vpop.xlane.xlu0 %12795
  %v12797 = vsel %vm12676, %v12652, 0.0
  %12798 = vadd.xlane.f32.xlu0 %v12797
  %v12799 = vpop.xlane.xlu0 %12798
  %v12800 = vsel %vm12676, %v12653, 0.0
  %12801 = vadd.xlane.f32.xlu0 %v12800
  %v12802 = vpop.xlane.xlu0 %12801
  %v12803 = vsel %vm12676, %v12654, 0.0
  %12804 = vadd.xlane.f32.xlu0 %v12803
  %v12805 = vpop.xlane.xlu0 %12804
  %v12806 = vsel %vm12676, %v12655, 0.0
  %12807 = vadd.xlane.f32.xlu0 %v12806
  %v12808 = vpop.xlane.xlu0 %12807
  %v12809 = vsel %vm12676, %v12656, 0.0
  %12810 = vadd.xlane.f32.xlu0 %v12809
  %v12811 = vpop.xlane.xlu0 %12810
  %v12812 = vsel %vm12676, %v12657, 0.0
  %12813 = vadd.xlane.f32.xlu0 %v12812
  %v12814 = vpop.xlane.xlu0 %12813
  %v12815 = vsel %vm12676, %v12658, 0.0
  %12816 = vadd.xlane.f32.xlu0 %v12815
  %v12817 = vpop.xlane.xlu0 %12816
  %v12818 = vsel %vm12676, %v12659, 0.0
  %12819 = vadd.xlane.f32.xlu0 %v12818
  %v12820 = vpop.xlane.xlu0 %12819
  %v12821 = vsel %vm12676, %v12660, 0.0
  %12822 = vadd.xlane.f32.xlu0 %v12821
  %v12823 = vpop.xlane.xlu0 %12822
  %v12824 = vsel %vm12676, %v12661, 0.0
  %12825 = vadd.xlane.f32.xlu0 %v12824
  %v12826 = vpop.xlane.xlu0 %12825
  %v12827 = vsel %vm12676, %v12662, 0.0
  %12828 = vadd.xlane.f32.xlu0 %v12827
  %v12829 = vpop.xlane.xlu0 %12828
  %v12830 = vsel %vm12676, %v12663, 0.0
  %12831 = vadd.xlane.f32.xlu0 %v12830
  %v12832 = vpop.xlane.xlu0 %12831
  %v12833 = vsel %vm12676, %v12664, 0.0
  %12834 = vadd.xlane.f32.xlu0 %v12833
  %v12835 = vpop.xlane.xlu0 %12834
  %v12836 = vsel %vm12676, %v12665, 0.0
  %12837 = vadd.xlane.f32.xlu0 %v12836
  %v12838 = vpop.xlane.xlu0 %12837
  %v12839 = vsel %vm12676, %v12666, 0.0
  %12840 = vadd.xlane.f32.xlu0 %v12839
  %v12841 = vpop.xlane.xlu0 %12840
  %v12842 = vsel %vm12676, %v12667, 0.0
  %12843 = vadd.xlane.f32.xlu0 %v12842
  %v12844 = vpop.xlane.xlu0 %12843
  %v12845 = vsel %vm12676, %v12668, 0.0
  %12846 = vadd.xlane.f32.xlu0 %v12845
  %v12847 = vpop.xlane.xlu0 %12846
  %v12848 = vsel %vm12676, %v12669, 0.0
  %12849 = vadd.xlane.f32.xlu0 %v12848
  %v12850 = vpop.xlane.xlu0 %12849
  %v12851 = vsel %vm12676, %v12670, 0.0
  %12852 = vadd.xlane.f32.xlu0 %v12851
  %v12853 = vpop.xlane.xlu0 %12852
  %v12854 = vsel %vm12676, %v12671, 0.0
  %12855 = vadd.xlane.f32.xlu0 %v12854
  %v12856 = vpop.xlane.xlu0 %12855
  %v12857 = vsel %vm12676, %v12672, 0.0
  %12858 = vadd.xlane.f32.xlu0 %v12857
  %v12859 = vpop.xlane.xlu0 %12858
  %v12860 = vsel %vm12676, %v12673, 0.0
  %12861 = vadd.xlane.f32.xlu0 %v12860
  %v12862 = vpop.xlane.xlu0 %12861
  %v12863 = vsel %vm12676, %v12674, 0.0
  %12864 = vadd.xlane.f32.xlu0 %v12863
  %v12865 = vpop.xlane.xlu0 %12864
  %v12866 = vsel %vm12676, %v12675, 0.0
  %12867 = vadd.xlane.f32.xlu0 %v12866
  %v12868 = vpop.xlane.xlu0 %12867
  %v12869 = vld [vmem:[#allocation4] sm:$0x1]
  %v12871 = vlaneseq
  %v12872 = vshrl.u32 %v12871, 7
  %v12873 = vsub.s32 0, %v12872
  %v12874 = vrot.slane %v12869, %v12873
  %v12876 = vadd.f32 %v12679, %v12874
  %v12877 = vadd.f32 %v12682, %v12874
  %v12878 = vadd.f32 %v12685, %v12874
  %v12879 = vadd.f32 %v12688, %v12874
  %v12880 = vadd.f32 %v12691, %v12874
  %v12881 = vadd.f32 %v12694, %v12874
  %v12882 = vadd.f32 %v12697, %v12874
  %v12883 = vadd.f32 %v12700, %v12874
  %v12884 = vadd.f32 %v12703, %v12874
  %v12885 = vadd.f32 %v12706, %v12874
  %v12886 = vadd.f32 %v12709, %v12874
  %v12887 = vadd.f32 %v12712, %v12874
  %v12888 = vadd.f32 %v12715, %v12874
  %v12889 = vadd.f32 %v12718, %v12874
  %v12890 = vadd.f32 %v12721, %v12874
  %v12891 = vadd.f32 %v12724, %v12874
  %v12892 = vadd.f32 %v12727, %v12874
  %v12893 = vadd.f32 %v12730, %v12874
  %v12894 = vadd.f32 %v12733, %v12874
  %v12895 = vadd.f32 %v12736, %v12874
  %v12896 = vadd.f32 %v12739, %v12874
  %v12897 = vadd.f32 %v12742, %v12874
  %v12898 = vadd.f32 %v12745, %v12874
  %v12899 = vadd.f32 %v12748, %v12874
  %v12900 = vadd.f32 %v12751, %v12874
  %v12901 = vadd.f32 %v12754, %v12874
  %v12902 = vadd.f32 %v12757, %v12874
  %v12903 = vadd.f32 %v12760, %v12874
  %v12904 = vadd.f32 %v12763, %v12874
  %v12905 = vadd.f32 %v12766, %v12874
  %v12906 = vadd.f32 %v12769, %v12874
  %v12907 = vadd.f32 %v12772, %v12874
  %v12908 = vadd.f32 %v12775, %v12874
  %v12909 = vadd.f32 %v12778, %v12874
  %v12910 = vadd.f32 %v12781, %v12874
  %v12911 = vadd.f32 %v12784, %v12874
  %v12912 = vadd.f32 %v12787, %v12874
  %v12913 = vadd.f32 %v12790, %v12874
  %v12914 = vadd.f32 %v12793, %v12874
  %v12915 = vadd.f32 %v12796, %v12874
  %v12916 = vadd.f32 %v12799, %v12874
  %v12917 = vadd.f32 %v12802, %v12874
  %v12918 = vadd.f32 %v12805, %v12874
  %v12919 = vadd.f32 %v12808, %v12874
  %v12920 = vadd.f32 %v12811, %v12874
  %v12921 = vadd.f32 %v12814, %v12874
  %v12922 = vadd.f32 %v12817, %v12874
  %v12923 = vadd.f32 %v12820, %v12874
  %v12924 = vadd.f32 %v12823, %v12874
  %v12925 = vadd.f32 %v12826, %v12874
  %v12926 = vadd.f32 %v12829, %v12874
  %v12927 = vadd.f32 %v12832, %v12874
  %v12928 = vadd.f32 %v12835, %v12874
  %v12929 = vadd.f32 %v12838, %v12874
  %v12930 = vadd.f32 %v12841, %v12874
  %v12931 = vadd.f32 %v12844, %v12874
  %v12932 = vadd.f32 %v12847, %v12874
  %v12933 = vadd.f32 %v12850, %v12874
  %v12934 = vadd.f32 %v12853, %v12874
  %v12935 = vadd.f32 %v12856, %v12874
  %v12936 = vadd.f32 %v12859, %v12874
  %v12937 = vadd.f32 %v12862, %v12874
  %v12938 = vadd.f32 %v12865, %v12874
  %v12939 = vadd.f32 %v12868, %v12874
  %v12940 = vxor.u32 %v12876, 2147483648
  %v12941 = vxor.u32 %v12877, 2147483648
  %v12942 = vxor.u32 %v12878, 2147483648
  %v12943 = vxor.u32 %v12879, 2147483648
  %v12944 = vxor.u32 %v12880, 2147483648
  %v12945 = vxor.u32 %v12881, 2147483648
  %v12946 = vxor.u32 %v12882, 2147483648
  %v12947 = vxor.u32 %v12883, 2147483648
  %v12948 = vxor.u32 %v12884, 2147483648
  %v12949 = vxor.u32 %v12885, 2147483648
  %v12950 = vxor.u32 %v12886, 2147483648
  %v12951 = vxor.u32 %v12887, 2147483648
  %v12952 = vxor.u32 %v12888, 2147483648
  %v12953 = vxor.u32 %v12889, 2147483648
  %v12954 = vxor.u32 %v12890, 2147483648
  %v12955 = vxor.u32 %v12891, 2147483648
  %v12956 = vxor.u32 %v12892, 2147483648
  %v12957 = vxor.u32 %v12893, 2147483648
  %v12958 = vxor.u32 %v12894, 2147483648
  %v12959 = vxor.u32 %v12895, 2147483648
  %v12960 = vxor.u32 %v12896, 2147483648
  %v12961 = vxor.u32 %v12897, 2147483648
  %v12962 = vxor.u32 %v12898, 2147483648
  %v12963 = vxor.u32 %v12899, 2147483648
  %v12964 = vxor.u32 %v12900, 2147483648
  %v12965 = vxor.u32 %v12901, 2147483648
  %v12966 = vxor.u32 %v12902, 2147483648
  %v12967 = vxor.u32 %v12903, 2147483648
  %v12968 = vxor.u32 %v12904, 2147483648
  %v12969 = vxor.u32 %v12905, 2147483648
  %v12970 = vxor.u32 %v12906, 2147483648
  %v12971 = vxor.u32 %v12907, 2147483648
  %v12972 = vxor.u32 %v12908, 2147483648
  %v12973 = vxor.u32 %v12909, 2147483648
  %v12974 = vxor.u32 %v12910, 2147483648
  %v12975 = vxor.u32 %v12911, 2147483648
  %v12976 = vxor.u32 %v12912, 2147483648
  %v12977 = vxor.u32 %v12913, 2147483648
  %v12978 = vxor.u32 %v12914, 2147483648
  %v12979 = vxor.u32 %v12915, 2147483648
  %v12980 = vxor.u32 %v12916, 2147483648
  %v12981 = vxor.u32 %v12917, 2147483648
  %v12982 = vxor.u32 %v12918, 2147483648
  %v12983 = vxor.u32 %v12919, 2147483648
  %v12984 = vxor.u32 %v12920, 2147483648
  %v12985 = vxor.u32 %v12921, 2147483648
  %v12986 = vxor.u32 %v12922, 2147483648
  %v12987 = vxor.u32 %v12923, 2147483648
  %v12988 = vxor.u32 %v12924, 2147483648
  %v12989 = vxor.u32 %v12925, 2147483648
  %v12990 = vxor.u32 %v12926, 2147483648
  %v12991 = vxor.u32 %v12927, 2147483648
  %v12992 = vxor.u32 %v12928, 2147483648
  %v12993 = vxor.u32 %v12929, 2147483648
  %v12994 = vxor.u32 %v12930, 2147483648
  %v12995 = vxor.u32 %v12931, 2147483648
  %v12996 = vxor.u32 %v12932, 2147483648
  %v12997 = vxor.u32 %v12933, 2147483648
  %v12998 = vxor.u32 %v12934, 2147483648
  %v12999 = vxor.u32 %v12935, 2147483648
  %v13000 = vxor.u32 %v12936, 2147483648
  %v13001 = vxor.u32 %v12937, 2147483648
  %v13002 = vxor.u32 %v12938, 2147483648
  %v13003 = vxor.u32 %v12939, 2147483648
  %v13004 = vmul.f32 %v12940, 1.442695
  %v13005 = vpow.pop %v13004
  %v13006 = vmul.f32 %v12941, 1.442695
  %v13007 = vpow.pop %v13006
  %v13008 = vmul.f32 %v12942, 1.442695
  %v13009 = vpow.pop %v13008
  %v13010 = vmul.f32 %v12943, 1.442695
  %v13011 = vpow.pop %v13010
  %v13012 = vmul.f32 %v12944, 1.442695
  %v13013 = vpow.pop %v13012
  %v13014 = vmul.f32 %v12945, 1.442695
  %v13015 = vpow.pop %v13014
  %v13016 = vmul.f32 %v12946, 1.442695
  %v13017 = vpow.pop %v13016
  %v13018 = vmul.f32 %v12947, 1.442695
  %v13019 = vpow.pop %v13018
  %v13020 = vmul.f32 %v12948, 1.442695
  %v13021 = vpow.pop %v13020
  %v13022 = vmul.f32 %v12949, 1.442695
  %v13023 = vpow.pop %v13022
  %v13024 = vmul.f32 %v12950, 1.442695
  %v13025 = vpow.pop %v13024
  %v13026 = vmul.f32 %v12951, 1.442695
  %v13027 = vpow.pop %v13026
  %v13028 = vmul.f32 %v12952, 1.442695
  %v13029 = vpow.pop %v13028
  %v13030 = vmul.f32 %v12953, 1.442695
  %v13031 = vpow.pop %v13030
  %v13032 = vmul.f32 %v12954, 1.442695
  %v13033 = vpow.pop %v13032
  %v13034 = vmul.f32 %v12955, 1.442695
  %v13035 = vpow.pop %v13034
  %v13036 = vmul.f32 %v12956, 1.442695
  %v13037 = vpow.pop %v13036
  %v13038 = vmul.f32 %v12957, 1.442695
  %v13039 = vpow.pop %v13038
  %v13040 = vmul.f32 %v12958, 1.442695
  %v13041 = vpow.pop %v13040
  %v13042 = vmul.f32 %v12959, 1.442695
  %v13043 = vpow.pop %v13042
  %v13044 = vmul.f32 %v12960, 1.442695
  %v13045 = vpow.pop %v13044
  %v13046 = vmul.f32 %v12961, 1.442695
  %v13047 = vpow.pop %v13046
  %v13048 = vmul.f32 %v12962, 1.442695
  %v13049 = vpow.pop %v13048
  %v13050 = vmul.f32 %v12963, 1.442695
  %v13051 = vpow.pop %v13050
  %v13052 = vmul.f32 %v12964, 1.442695
  %v13053 = vpow.pop %v13052
  %v13054 = vmul.f32 %v12965, 1.442695
  %v13055 = vpow.pop %v13054
  %v13056 = vmul.f32 %v12966, 1.442695
  %v13057 = vpow.pop %v13056
  %v13058 = vmul.f32 %v12967, 1.442695
  %v13059 = vpow.pop %v13058
  %v13060 = vmul.f32 %v12968, 1.442695
  %v13061 = vpow.pop %v13060
  %v13062 = vmul.f32 %v12969, 1.442695
  %v13063 = vpow.pop %v13062
  %v13064 = vmul.f32 %v12970, 1.442695
  %v13065 = vpow.pop %v13064
  %v13066 = vmul.f32 %v12971, 1.442695
  %v13067 = vpow.pop %v13066
  %v13068 = vmul.f32 %v12972, 1.442695
  %v13069 = vpow.pop %v13068
  %v13070 = vmul.f32 %v12973, 1.442695
  %v13071 = vpow.pop %v13070
  %v13072 = vmul.f32 %v12974, 1.442695
  %v13073 = vpow.pop %v13072
  %v13074 = vmul.f32 %v12975, 1.442695
  %v13075 = vpow.pop %v13074
  %v13076 = vmul.f32 %v12976, 1.442695
  %v13077 = vpow.pop %v13076
  %v13078 = vmul.f32 %v12977, 1.442695
  %v13079 = vpow.pop %v13078
  %v13080 = vmul.f32 %v12978, 1.442695
  %v13081 = vpow.pop %v13080
  %v13082 = vmul.f32 %v12979, 1.442695
  %v13083 = vpow.pop %v13082
  %v13084 = vmul.f32 %v12980, 1.442695
  %v13085 = vpow.pop %v13084
  %v13086 = vmul.f32 %v12981, 1.442695
  %v13087 = vpow.pop %v13086
  %v13088 = vmul.f32 %v12982, 1.442695
  %v13089 = vpow.pop %v13088
  %v13090 = vmul.f32 %v12983, 1.442695
  %v13091 = vpow.pop %v13090
  %v13092 = vmul.f32 %v12984, 1.442695
  %v13093 = vpow.pop %v13092
  %v13094 = vmul.f32 %v12985, 1.442695
  %v13095 = vpow.pop %v13094
  %v13096 = vmul.f32 %v12986, 1.442695
  %v13097 = vpow.pop %v13096
  %v13098 = vmul.f32 %v12987, 1.442695
  %v13099 = vpow.pop %v13098
  %v13100 = vmul.f32 %v12988, 1.442695
  %v13101 = vpow.pop %v13100
  %v13102 = vmul.f32 %v12989, 1.442695
  %v13103 = vpow.pop %v13102
  %v13104 = vmul.f32 %v12990, 1.442695
  %v13105 = vpow.pop %v13104
  %v13106 = vmul.f32 %v12991, 1.442695
  %v13107 = vpow.pop %v13106
  %v13108 = vmul.f32 %v12992, 1.442695
  %v13109 = vpow.pop %v13108
  %v13110 = vmul.f32 %v12993, 1.442695
  %v13111 = vpow.pop %v13110
  %v13112 = vmul.f32 %v12994, 1.442695
  %v13113 = vpow.pop %v13112
  %v13114 = vmul.f32 %v12995, 1.442695
  %v13115 = vpow.pop %v13114
  %v13116 = vmul.f32 %v12996, 1.442695
  %v13117 = vpow.pop %v13116
  %v13118 = vmul.f32 %v12997, 1.442695
  %v13119 = vpow.pop %v13118
  %v13120 = vmul.f32 %v12998, 1.442695
  %v13121 = vpow.pop %v13120
  %v13122 = vmul.f32 %v12999, 1.442695
  %v13123 = vpow.pop %v13122
  %v13124 = vmul.f32 %v13000, 1.442695
  %v13125 = vpow.pop %v13124
  %v13126 = vmul.f32 %v13001, 1.442695
  %v13127 = vpow.pop %v13126
  %v13128 = vmul.f32 %v13002, 1.442695
  %v13129 = vpow.pop %v13128
  %v13130 = vmul.f32 %v13003, 1.442695
  %v13131 = vpow.pop %v13130
  %v13132 = vadd.f32 %v13005, 1.0
  %v13133 = vadd.f32 %v13007, 1.0
  %v13134 = vadd.f32 %v13009, 1.0
  %v13135 = vadd.f32 %v13011, 1.0
  %v13136 = vadd.f32 %v13013, 1.0
  %v13137 = vadd.f32 %v13015, 1.0
  %v13138 = vadd.f32 %v13017, 1.0
  %v13139 = vadd.f32 %v13019, 1.0
  %v13140 = vadd.f32 %v13021, 1.0
  %v13141 = vadd.f32 %v13023, 1.0
  %v13142 = vadd.f32 %v13025, 1.0
  %v13143 = vadd.f32 %v13027, 1.0
  %v13144 = vadd.f32 %v13029, 1.0
  %v13145 = vadd.f32 %v13031, 1.0
  %v13146 = vadd.f32 %v13033, 1.0
  %v13147 = vadd.f32 %v13035, 1.0
  %v13148 = vadd.f32 %v13037, 1.0
  %v13149 = vadd.f32 %v13039, 1.0
  %v13150 = vadd.f32 %v13041, 1.0
  %v13151 = vadd.f32 %v13043, 1.0
  %v13152 = vadd.f32 %v13045, 1.0
  %v13153 = vadd.f32 %v13047, 1.0
  %v13154 = vadd.f32 %v13049, 1.0
  %v13155 = vadd.f32 %v13051, 1.0
  %v13156 = vadd.f32 %v13053, 1.0
  %v13157 = vadd.f32 %v13055, 1.0
  %v13158 = vadd.f32 %v13057, 1.0
  %v13159 = vadd.f32 %v13059, 1.0
  %v13160 = vadd.f32 %v13061, 1.0
  %v13161 = vadd.f32 %v13063, 1.0
  %v13162 = vadd.f32 %v13065, 1.0
  %v13163 = vadd.f32 %v13067, 1.0
  %v13164 = vadd.f32 %v13069, 1.0
  %v13165 = vadd.f32 %v13071, 1.0
  %v13166 = vadd.f32 %v13073, 1.0
  %v13167 = vadd.f32 %v13075, 1.0
  %v13168 = vadd.f32 %v13077, 1.0
  %v13169 = vadd.f32 %v13079, 1.0
  %v13170 = vadd.f32 %v13081, 1.0
  %v13171 = vadd.f32 %v13083, 1.0
  %v13172 = vadd.f32 %v13085, 1.0
  %v13173 = vadd.f32 %v13087, 1.0
  %v13174 = vadd.f32 %v13089, 1.0
  %v13175 = vadd.f32 %v13091, 1.0
  %v13176 = vadd.f32 %v13093, 1.0
  %v13177 = vadd.f32 %v13095, 1.0
  %v13178 = vadd.f32 %v13097, 1.0
  %v13179 = vadd.f32 %v13099, 1.0
  %v13180 = vadd.f32 %v13101, 1.0
  %v13181 = vadd.f32 %v13103, 1.0
  %v13182 = vadd.f32 %v13105, 1.0
  %v13183 = vadd.f32 %v13107, 1.0
  %v13184 = vadd.f32 %v13109, 1.0
  %v13185 = vadd.f32 %v13111, 1.0
  %v13186 = vadd.f32 %v13113, 1.0
  %v13187 = vadd.f32 %v13115, 1.0
  %v13188 = vadd.f32 %v13117, 1.0
  %v13189 = vadd.f32 %v13119, 1.0
  %v13190 = vadd.f32 %v13121, 1.0
  %v13191 = vadd.f32 %v13123, 1.0
  %v13192 = vadd.f32 %v13125, 1.0
  %v13193 = vadd.f32 %v13127, 1.0
  %v13194 = vadd.f32 %v13129, 1.0
  %v13195 = vadd.f32 %v13131, 1.0
  %v13196 = vrcp.pop %v13132
  %v13197 = vmul.f32 1.0, %v13196
  %v13198 = vrcp.pop %v13133
  %v13199 = vmul.f32 1.0, %v13198
  %v13200 = vrcp.pop %v13134
  %v13201 = vmul.f32 1.0, %v13200
  %v13202 = vrcp.pop %v13135
  %v13203 = vmul.f32 1.0, %v13202
  %v13204 = vrcp.pop %v13136
  %v13205 = vmul.f32 1.0, %v13204
  %v13206 = vrcp.pop %v13137
  %v13207 = vmul.f32 1.0, %v13206
  %v13208 = vrcp.pop %v13138
  %v13209 = vmul.f32 1.0, %v13208
  %v13210 = vrcp.pop %v13139
  %v13211 = vmul.f32 1.0, %v13210
  %v13212 = vrcp.pop %v13140
  %v13213 = vmul.f32 1.0, %v13212
  %v13214 = vrcp.pop %v13141
  %v13215 = vmul.f32 1.0, %v13214
  %v13216 = vrcp.pop %v13142
  %v13217 = vmul.f32 1.0, %v13216
  %v13218 = vrcp.pop %v13143
  %v13219 = vmul.f32 1.0, %v13218
  %v13220 = vrcp.pop %v13144
  %v13221 = vmul.f32 1.0, %v13220
  %v13222 = vrcp.pop %v13145
  %v13223 = vmul.f32 1.0, %v13222
  %v13224 = vrcp.pop %v13146
  %v13225 = vmul.f32 1.0, %v13224
  %v13226 = vrcp.pop %v13147
  %v13227 = vmul.f32 1.0, %v13226
  %v13228 = vrcp.pop %v13148
  %v13229 = vmul.f32 1.0, %v13228
  %v13230 = vrcp.pop %v13149
  %v13231 = vmul.f32 1.0, %v13230
  %v13232 = vrcp.pop %v13150
  %v13233 = vmul.f32 1.0, %v13232
  %v13234 = vrcp.pop %v13151
  %v13235 = vmul.f32 1.0, %v13234
  %v13236 = vrcp.pop %v13152
  %v13237 = vmul.f32 1.0, %v13236
  %v13238 = vrcp.pop %v13153
  %v13239 = vmul.f32 1.0, %v13238
  %v13240 = vrcp.pop %v13154
  %v13241 = vmul.f32 1.0, %v13240
  %v13242 = vrcp.pop %v13155
  %v13243 = vmul.f32 1.0, %v13242
  %v13244 = vrcp.pop %v13156
  %v13245 = vmul.f32 1.0, %v13244
  %v13246 = vrcp.pop %v13157
  %v13247 = vmul.f32 1.0, %v13246
  %v13248 = vrcp.pop %v13158
  %v13249 = vmul.f32 1.0, %v13248
  %v13250 = vrcp.pop %v13159
  %v13251 = vmul.f32 1.0, %v13250
  %v13252 = vrcp.pop %v13160
  %v13253 = vmul.f32 1.0, %v13252
  %v13254 = vrcp.pop %v13161
  %v13255 = vmul.f32 1.0, %v13254
  %v13256 = vrcp.pop %v13162
  %v13257 = vmul.f32 1.0, %v13256
  %v13258 = vrcp.pop %v13163
  %v13259 = vmul.f32 1.0, %v13258
  %v13260 = vrcp.pop %v13164
  %v13261 = vmul.f32 1.0, %v13260
  %v13262 = vrcp.pop %v13165
  %v13263 = vmul.f32 1.0, %v13262
  %v13264 = vrcp.pop %v13166
  %v13265 = vmul.f32 1.0, %v13264
  %v13266 = vrcp.pop %v13167
  %v13267 = vmul.f32 1.0, %v13266
  %v13268 = vrcp.pop %v13168
  %v13269 = vmul.f32 1.0, %v13268
  %v13270 = vrcp.pop %v13169
  %v13271 = vmul.f32 1.0, %v13270
  %v13272 = vrcp.pop %v13170
  %v13273 = vmul.f32 1.0, %v13272
  %v13274 = vrcp.pop %v13171
  %v13275 = vmul.f32 1.0, %v13274
  %v13276 = vrcp.pop %v13172
  %v13277 = vmul.f32 1.0, %v13276
  %v13278 = vrcp.pop %v13173
  %v13279 = vmul.f32 1.0, %v13278
  %v13280 = vrcp.pop %v13174
  %v13281 = vmul.f32 1.0, %v13280
  %v13282 = vrcp.pop %v13175
  %v13283 = vmul.f32 1.0, %v13282
  %v13284 = vrcp.pop %v13176
  %v13285 = vmul.f32 1.0, %v13284
  %v13286 = vrcp.pop %v13177
  %v13287 = vmul.f32 1.0, %v13286
  %v13288 = vrcp.pop %v13178
  %v13289 = vmul.f32 1.0, %v13288
  %v13290 = vrcp.pop %v13179
  %v13291 = vmul.f32 1.0, %v13290
  %v13292 = vrcp.pop %v13180
  %v13293 = vmul.f32 1.0, %v13292
  %v13294 = vrcp.pop %v13181
  %v13295 = vmul.f32 1.0, %v13294
  %v13296 = vrcp.pop %v13182
  %v13297 = vmul.f32 1.0, %v13296
  %v13298 = vrcp.pop %v13183
  %v13299 = vmul.f32 1.0, %v13298
  %v13300 = vrcp.pop %v13184
  %v13301 = vmul.f32 1.0, %v13300
  %v13302 = vrcp.pop %v13185
  %v13303 = vmul.f32 1.0, %v13302
  %v13304 = vrcp.pop %v13186
  %v13305 = vmul.f32 1.0, %v13304
  %v13306 = vrcp.pop %v13187
  %v13307 = vmul.f32 1.0, %v13306
  %v13308 = vrcp.pop %v13188
  %v13309 = vmul.f32 1.0, %v13308
  %v13310 = vrcp.pop %v13189
  %v13311 = vmul.f32 1.0, %v13310
  %v13312 = vrcp.pop %v13190
  %v13313 = vmul.f32 1.0, %v13312
  %v13314 = vrcp.pop %v13191
  %v13315 = vmul.f32 1.0, %v13314
  %v13316 = vrcp.pop %v13192
  %v13317 = vmul.f32 1.0, %v13316
  %v13318 = vrcp.pop %v13193
  %v13319 = vmul.f32 1.0, %v13318
  %v13320 = vrcp.pop %v13194
  %v13321 = vmul.f32 1.0, %v13320
  %v13322 = vrcp.pop %v13195
  %v13323 = vmul.f32 1.0, %v13322
  %v13324 = vsel %vm12676, %v12541, 0.0
  %v13325 = vsel %vm12676, %v12542, 0.0
  %v13326 = vadd.f32 %v13324, %v13325
  %v13327 = vsel %vm12676, %v12543, 0.0
  %v13328 = vadd.f32 %v13326, %v13327
  %v13329 = vsel %vm12676, %v12544, 0.0
  %v13330 = vadd.f32 %v13328, %v13329
  %v13331 = vsel %vm12676, %v12545, 0.0
  %v13332 = vadd.f32 %v13330, %v13331
  %v13333 = vsel %vm12676, %v12546, 0.0
  %v13334 = vadd.f32 %v13332, %v13333
  %v13335 = vsel %vm12676, %v12547, 0.0
  %v13336 = vadd.f32 %v13334, %v13335
  %v13337 = vsel %vm12676, %v12548, 0.0
  %v13338 = vadd.f32 %v13336, %v13337
  %v13339 = vsel %vm12676, %v12549, 0.0
  %v13340 = vadd.f32 %v13338, %v13339
  %v13341 = vsel %vm12676, %v12550, 0.0
  %v13342 = vadd.f32 %v13340, %v13341
  %v13343 = vsel %vm12676, %v12551, 0.0
  %v13344 = vadd.f32 %v13342, %v13343
  %v13345 = vsel %vm12676, %v12552, 0.0
  %v13346 = vadd.f32 %v13344, %v13345
  %v13347 = vsel %vm12676, %v12553, 0.0
  %v13348 = vadd.f32 %v13346, %v13347
  %v13349 = vsel %vm12676, %v12554, 0.0
  %v13350 = vadd.f32 %v13348, %v13349
  %v13351 = vsel %vm12676, %v12555, 0.0
  %v13352 = vadd.f32 %v13350, %v13351
  %v13353 = vsel %vm12676, %v12556, 0.0
  %v13354 = vadd.f32 %v13352, %v13353
  %v13355 = vsel %vm12676, %v12557, 0.0
  %v13356 = vadd.f32 %v13354, %v13355
  %v13357 = vsel %vm12676, %v12558, 0.0
  %v13358 = vadd.f32 %v13356, %v13357
  %v13359 = vsel %vm12676, %v12559, 0.0
  %v13360 = vadd.f32 %v13358, %v13359
  %v13361 = vsel %vm12676, %v12560, 0.0
  %v13362 = vadd.f32 %v13360, %v13361
  %v13363 = vsel %vm12676, %v12561, 0.0
  %v13364 = vadd.f32 %v13362, %v13363
  %v13365 = vsel %vm12676, %v12562, 0.0
  %v13366 = vadd.f32 %v13364, %v13365
  %v13367 = vsel %vm12676, %v12563, 0.0
  %v13368 = vadd.f32 %v13366, %v13367
  %v13369 = vsel %vm12676, %v12564, 0.0
  %v13370 = vadd.f32 %v13368, %v13369
  %v13371 = vsel %vm12676, %v12565, 0.0
  %v13372 = vadd.f32 %v13370, %v13371
  %v13373 = vsel %vm12676, %v12566, 0.0
  %v13374 = vadd.f32 %v13372, %v13373
  %v13375 = vsel %vm12676, %v12567, 0.0
  %v13376 = vadd.f32 %v13374, %v13375
  %v13377 = vsel %vm12676, %v12568, 0.0
  %v13378 = vadd.f32 %v13376, %v13377
  %v13379 = vsel %vm12676, %v12569, 0.0
  %v13380 = vadd.f32 %v13378, %v13379
  %v13381 = vsel %vm12676, %v12570, 0.0
  %v13382 = vadd.f32 %v13380, %v13381
  %v13383 = vsel %vm12676, %v12571, 0.0
  %v13384 = vadd.f32 %v13382, %v13383
  %v13385 = vsel %vm12676, %v12572, 0.0
  %v13386 = vadd.f32 %v13384, %v13385
  %v13387 = vrot.slane %v13386, 4
  %v13388 = vadd.f32 %v13386, %v13387
  %v13389 = vrot.slane %v13388, 2
  %v13390 = vadd.f32 %v13388, %v13389
  %v13391 = vrot.slane %v13390, 1
  %v13392 = vadd.f32 %v13390, %v13391
  %v13393 = vsel %vm12676, %v12573, 0.0
  %v13394 = vsel %vm12676, %v12574, 0.0
  %v13395 = vadd.f32 %v13393, %v13394
  %v13396 = vsel %vm12676, %v12575, 0.0
  %v13397 = vadd.f32 %v13395, %v13396
  %v13398 = vsel %vm12676, %v12576, 0.0
  %v13399 = vadd.f32 %v13397, %v13398
  %v13400 = vsel %vm12676, %v12577, 0.0
  %v13401 = vadd.f32 %v13399, %v13400
  %v13402 = vsel %vm12676, %v12578, 0.0
  %v13403 = vadd.f32 %v13401, %v13402
  %v13404 = vsel %vm12676, %v12579, 0.0
  %v13405 = vadd.f32 %v13403, %v13404
  %v13406 = vsel %vm12676, %v12580, 0.0
  %v13407 = vadd.f32 %v13405, %v13406
  %v13408 = vsel %vm12676, %v12581, 0.0
  %v13409 = vadd.f32 %v13407, %v13408
  %v13410 = vsel %vm12676, %v12582, 0.0
  %v13411 = vadd.f32 %v13409, %v13410
  %v13412 = vsel %vm12676, %v12583, 0.0
  %v13413 = vadd.f32 %v13411, %v13412
  %v13414 = vsel %vm12676, %v12584, 0.0
  %v13415 = vadd.f32 %v13413, %v13414
  %v13416 = vsel %vm12676, %v12585, 0.0
  %v13417 = vadd.f32 %v13415, %v13416
  %v13418 = vsel %vm12676, %v12586, 0.0
  %v13419 = vadd.f32 %v13417, %v13418
  %v13420 = vsel %vm12676, %v12587, 0.0
  %v13421 = vadd.f32 %v13419, %v13420
  %v13422 = vsel %vm12676, %v12588, 0.0
  %v13423 = vadd.f32 %v13421, %v13422
  %v13424 = vsel %vm12676, %v12589, 0.0
  %v13425 = vadd.f32 %v13423, %v13424
  %v13426 = vsel %vm12676, %v12590, 0.0
  %v13427 = vadd.f32 %v13425, %v13426
  %v13428 = vsel %vm12676, %v12591, 0.0
  %v13429 = vadd.f32 %v13427, %v13428
  %v13430 = vsel %vm12676, %v12592, 0.0
  %v13431 = vadd.f32 %v13429, %v13430
  %v13432 = vsel %vm12676, %v12593, 0.0
  %v13433 = vadd.f32 %v13431, %v13432
  %v13434 = vsel %vm12676, %v12594, 0.0
  %v13435 = vadd.f32 %v13433, %v13434
  %v13436 = vsel %vm12676, %v12595, 0.0
  %v13437 = vadd.f32 %v13435, %v13436
  %v13438 = vsel %vm12676, %v12596, 0.0
  %v13439 = vadd.f32 %v13437, %v13438
  %v13440 = vsel %vm12676, %v12597, 0.0
  %v13441 = vadd.f32 %v13439, %v13440
  %v13442 = vsel %vm12676, %v12598, 0.0
  %v13443 = vadd.f32 %v13441, %v13442
  %v13444 = vsel %vm12676, %v12599, 0.0
  %v13445 = vadd.f32 %v13443, %v13444
  %v13446 = vsel %vm12676, %v12600, 0.0
  %v13447 = vadd.f32 %v13445, %v13446
  %v13448 = vsel %vm12676, %v12601, 0.0
  %v13449 = vadd.f32 %v13447, %v13448
  %v13450 = vsel %vm12676, %v12602, 0.0
  %v13451 = vadd.f32 %v13449, %v13450
  %v13452 = vsel %vm12676, %v12603, 0.0
  %v13453 = vadd.f32 %v13451, %v13452
  %v13454 = vsel %vm12676, %v12604, 0.0
  %v13455 = vadd.f32 %v13453, %v13454
  %v13456 = vrot.slane %v13455, 4
  %v13457 = vadd.f32 %v13455, %v13456
  %v13458 = vrot.slane %v13457, 2
  %v13459 = vadd.f32 %v13457, %v13458
  %v13460 = vrot.slane %v13459, 1
  %v13461 = vadd.f32 %v13459, %v13460
  %v13462 = vrcp.pop 256.0
  %v13463 = vmul.f32 %v13392, %v13462
  %v13464 = vmul.f32 %v13461, %v13462
  %v13465 = vld [vmem:[%s10] sm:$0xf]
  %v13466 = vld [vmem:[%s11] sm:$0x1]
  %v13468 = vlaneseq
  %v13469 = vshrl.u32 %v13468, 7
  %v13470 = vsub.s32 0, %v13469
  %v13471 = vrot.slane %v13466, %v13470
  %vm13475 = vcmask 1041409
  %v13476 = vsel %vm13475, %v13464, %v13463
  %v13477 = vsel %vm12676, %v13476, 0
  %v13480 = vsel %vm6339, %v13465, 0
  %13482 = vmatprep.subr.mxu0 0.0
  %13483 = vmatpush1.msra.mxu0 %v13480
  %13484 = vmatprep.subr.mxu0 0.0
  %13485 = vmatpush1.msra.mxu0 0.0
  %13486 = vmatprep.subr.mxu0 0.0
  %13487 = vmatpush1.msra.mxu0 0.0
  %13488 = vmatprep.subr.mxu0 0.0
  %13489 = vmatpush1.msra.mxu0 0.0
  %13490 = vmatprep.subr.mxu0 0.0
  %13491 = vmatpush1.msra.mxu0 0.0
  %13492 = vmatprep.subr.mxu0 0.0
  %13493 = vmatpush1.msra.mxu0 0.0
  %13494 = vmatprep.subr.mxu0 0.0
  %13495 = vmatpush1.msra.mxu0 0.0
  %13496 = vmatprep.subr.mxu0 0.0
  %13497 = vmatpush1.msra.mxu0 0.0
  %13498 = vmatprep.subr.mxu0 0.0
  %13499 = vmatpush1.msra.mxu0 0.0
  %13500 = vmatprep.subr.mxu0 0.0
  %13501 = vmatpush1.msra.mxu0 0.0
  %13502 = vmatprep.subr.mxu0 0.0
  %13503 = vmatpush1.msra.mxu0 0.0
  %13504 = vmatprep.subr.mxu0 0.0
  %13505 = vmatpush1.msra.mxu0 0.0
  %13506 = vmatprep.subr.mxu0 0.0
  %13507 = vmatpush1.msra.mxu0 0.0
  %13508 = vmatprep.subr.mxu0 0.0
  %13509 = vmatpush1.msra.mxu0 0.0
  %13510 = vmatprep.subr.mxu0 0.0
  %13511 = vmatpush1.msra.mxu0 0.0
  %13512 = vmatprep.subr.mxu0 0.0
  %13513 = vmatpush1.msra.mxu0 0.0
  %13514 = vmatprep.subr.mxu0 0.0
  %13515 = vmatpush1.msra.mxu0 0.0
  %13516 = vmatprep.subr.mxu0 0.0
  %13517 = vmatpush1.msra.mxu0 0.0
  %13518 = vmatprep.subr.mxu0 0.0
  %13519 = vmatpush1.msra.mxu0 0.0
  %13520 = vmatprep.subr.mxu0 0.0
  %13521 = vmatpush1.msra.mxu0 0.0
  %13522 = vmatprep.subr.mxu0 0.0
  %13523 = vmatpush1.msra.mxu0 0.0
  %13524 = vmatprep.subr.mxu0 0.0
  %13525 = vmatpush1.msra.mxu0 0.0
  %13526 = vmatprep.subr.mxu0 0.0
  %13527 = vmatpush1.msra.mxu0 0.0
  %13528 = vmatprep.subr.mxu0 0.0
  %13529 = vmatpush1.msra.mxu0 0.0
  %13530 = vmatprep.subr.mxu0 0.0
  %13531 = vmatpush1.msra.mxu0 0.0
  %13532 = vmatprep.subr.mxu0 0.0
  %13533 = vmatpush1.msra.mxu0 0.0
  %13534 = vmatprep.subr.mxu0 0.0
  %13535 = vmatpush1.msra.mxu0 0.0
  %13536 = vmatprep.subr.mxu0 0.0
  %13537 = vmatpush1.msra.mxu0 0.0
  %13538 = vmatprep.subr.mxu0 0.0
  %13539 = vmatpush1.msra.mxu0 0.0
  %13540 = vmatprep.subr.mxu0 0.0
  %13541 = vmatpush1.msra.mxu0 0.0
  %13542 = vmatprep.subr.mxu0 0.0
  %13543 = vmatpush1.msra.mxu0 0.0
  %13544 = vmatprep.subr.mxu0 0.0
  %13545 = vmatpush1.msra.mxu0 0.0
  %13546 = vmatprep.mubr.f32.mxu0 0.0
  %13547 = vmatmul.mubr.f32.gmra.mrb[0].mxu0 %v13477
  %v13548 = vpop.f32.mrb[0].mxu0
  %v13549 = vadd.f32 %v13471, %v13548
  %v13550 = vpop.f32.mrb[0].mxu0
  %13551 = vdwg.mxu0
  %v13552 = vmax.f32 %v13549, 0.0
  %v13553 = vld [vmem:[%s12] sm:$0x3]
  %v13554 = vld [vmem:[%s13] sm:$0x1]
  %v13556 = vlaneseq
  %v13557 = vshrl.u32 %v13556, 7
  %v13558 = vsub.s32 0, %v13557
  %v13559 = vrot.slane %v13554, %v13558
  %vm13561 = vcmask 15360
  %v13563 = vsel %vm13561, %v13552, 0
  %vm13565 = vcmask 1041408
  %v13567 = vsel %vm13565, %v13553, 0
  %13569 = vmatprep.subr.mxu0 0.0
  %13570 = vmatpush1.msra.mxu0 %v13567
  %13571 = vmatprep.subr.mxu0 0.0
  %13572 = vmatpush1.msra.mxu0 0.0
  %13573 = vmatprep.subr.mxu0 0.0
  %13574 = vmatpush1.msra.mxu0 0.0
  %13575 = vmatprep.subr.mxu0 0.0
  %13576 = vmatpush1.msra.mxu0 0.0
  %13577 = vmatprep.subr.mxu0 0.0
  %13578 = vmatpush1.msra.mxu0 0.0
  %13579 = vmatprep.subr.mxu0 0.0
  %13580 = vmatpush1.msra.mxu0 0.0
  %13581 = vmatprep.subr.mxu0 0.0
  %13582 = vmatpush1.msra.mxu0 0.0
  %13583 = vmatprep.subr.mxu0 0.0
  %13584 = vmatpush1.msra.mxu0 0.0
  %13585 = vmatprep.subr.mxu0 0.0
  %13586 = vmatpush1.msra.mxu0 0.0
  %13587 = vmatprep.subr.mxu0 0.0
  %13588 = vmatpush1.msra.mxu0 0.0
  %13589 = vmatprep.subr.mxu0 0.0
  %13590 = vmatpush1.msra.mxu0 0.0
  %13591 = vmatprep.subr.mxu0 0.0
  %13592 = vmatpush1.msra.mxu0 0.0
  %13593 = vmatprep.subr.mxu0 0.0
  %13594 = vmatpush1.msra.mxu0 0.0
  %13595 = vmatprep.subr.mxu0 0.0
  %13596 = vmatpush1.msra.mxu0 0.0
  %13597 = vmatprep.subr.mxu0 0.0
  %13598 = vmatpush1.msra.mxu0 0.0
  %13599 = vmatprep.subr.mxu0 0.0
  %13600 = vmatpush1.msra.mxu0 0.0
  %13601 = vmatprep.subr.mxu0 0.0
  %13602 = vmatpush1.msra.mxu0 0.0
  %13603 = vmatprep.subr.mxu0 0.0
  %13604 = vmatpush1.msra.mxu0 0.0
  %13605 = vmatprep.subr.mxu0 0.0
  %13606 = vmatpush1.msra.mxu0 0.0
  %13607 = vmatprep.subr.mxu0 0.0
  %13608 = vmatpush1.msra.mxu0 0.0
  %13609 = vmatprep.subr.mxu0 0.0
  %13610 = vmatpush1.msra.mxu0 0.0
  %13611 = vmatprep.subr.mxu0 0.0
  %13612 = vmatpush1.msra.mxu0 0.0
  %13613 = vmatprep.subr.mxu0 0.0
  %13614 = vmatpush1.msra.mxu0 0.0
  %13615 = vmatprep.subr.mxu0 0.0
  %13616 = vmatpush1.msra.mxu0 0.0
  %13617 = vmatprep.subr.mxu0 0.0
  %13618 = vmatpush1.msra.mxu0 0.0
  %13619 = vmatprep.subr.mxu0 0.0
  %13620 = vmatpush1.msra.mxu0 0.0
  %13621 = vmatprep.subr.mxu0 0.0
  %13622 = vmatpush1.msra.mxu0 0.0
  %13623 = vmatprep.subr.mxu0 0.0
  %13624 = vmatpush1.msra.mxu0 0.0
  %13625 = vmatprep.subr.mxu0 0.0
  %13626 = vmatpush1.msra.mxu0 0.0
  %13627 = vmatprep.subr.mxu0 0.0
  %13628 = vmatpush1.msra.mxu0 0.0
  %13629 = vmatprep.subr.mxu0 0.0
  %13630 = vmatpush1.msra.mxu0 0.0
  %13631 = vmatprep.subr.mxu0 0.0
  %13632 = vmatpush1.msra.mxu0 0.0
  %13633 = vmatprep.mubr.f32.mxu0 0.0
  %13634 = vmatmul.mubr.f32.gmra.mrb[0].mxu0 %v13563
  %v13635 = vpop.f32.mrb[0].mxu0
  %v13636 = vadd.f32 %v13559, %v13635
  %v13637 = vpop.f32.mrb[0].mxu0
  %13638 = vdwg.mxu0
  %v13639 = vxor.u32 %v13636, 2147483648
  %v13640 = vmul.f32 %v13639, 1.442695
  %v13641 = vpow.pop %v13640
  %v13642 = vadd.f32 %v13641, 1.0
  %v13643 = vrcp.pop %v13642
  %v13644 = vmul.f32 1.0, %v13643
  %v13647 = vunpack.c.l.s4 1966171168
  %v13648 = vunpack.c.0.s8 %v13647
  %v13649 = vlaneseq
  %v13650 = vshrl.u32 %v13649, 7
  %v13651 = vsub.s32 %v13648, %v13650
  %v13652 = vrot.slane %v13644, %v13651
  %v13653 = vcombine.high %v13652, %v13652
  %v13655 = vunpack.c.l.s4 1966171168
  %v13656 = vunpack.c.0.s8 %v13655
  %v13657 = vlaneseq
  %v13658 = vshrl.u32 %v13657, 7
  %v13659 = vsub.s32 %v13656, %v13658
  %v13660 = vrot.slane %v13652, %v13659
  %v13662 = vunpack.c.l.s4 1966171168
  %v13663 = vunpack.c.0.s8 %v13662
  %v13664 = vlaneseq
  %v13665 = vshrl.u32 %v13664, 7
  %v13666 = vsub.s32 %v13663, %v13665
  %v13667 = vrot.slane %v13653, %v13666
  %13669 = vset.pattern.permute.xlu0 0
  %13670 = vperm.xlu0 %13669, %v13197
  %v13671 = vpop.permute.xlu0 %13670
  %13674 = vset.pattern.permute.xlu0 0
  %13675 = vperm.xlu0 %13674, %v13199
  %v13676 = vpop.permute.xlu0 %13675
  %13679 = vset.pattern.permute.xlu0 0
  %13680 = vperm.xlu0 %13679, %v13201
  %v13681 = vpop.permute.xlu0 %13680
  %13684 = vset.pattern.permute.xlu0 0
  %13685 = vperm.xlu0 %13684, %v13203
  %v13686 = vpop.permute.xlu0 %13685
  %13689 = vset.pattern.permute.xlu0 0
  %13690 = vperm.xlu0 %13689, %v13205
  %v13691 = vpop.permute.xlu0 %13690
  %13694 = vset.pattern.permute.xlu0 0
  %13695 = vperm.xlu0 %13694, %v13207
  %v13696 = vpop.permute.xlu0 %13695
  %13699 = vset.pattern.permute.xlu0 0
  %13700 = vperm.xlu0 %13699, %v13209
  %v13701 = vpop.permute.xlu0 %13700
  %13704 = vset.pattern.permute.xlu0 0
  %13705 = vperm.xlu0 %13704, %v13211
  %v13706 = vpop.permute.xlu0 %13705
  %13709 = vset.pattern.permute.xlu0 0
  %13710 = vperm.xlu0 %13709, %v13213
  %v13711 = vpop.permute.xlu0 %13710
  %13714 = vset.pattern.permute.xlu0 0
  %13715 = vperm.xlu0 %13714, %v13215
  %v13716 = vpop.permute.xlu0 %13715
  %13719 = vset.pattern.permute.xlu0 0
  %13720 = vperm.xlu0 %13719, %v13217
  %v13721 = vpop.permute.xlu0 %13720
  %13724 = vset.pattern.permute.xlu0 0
  %13725 = vperm.xlu0 %13724, %v13219
  %v13726 = vpop.permute.xlu0 %13725
  %13729 = vset.pattern.permute.xlu0 0
  %13730 = vperm.xlu0 %13729, %v13221
  %v13731 = vpop.permute.xlu0 %13730
  %13734 = vset.pattern.permute.xlu0 0
  %13735 = vperm.xlu0 %13734, %v13223
  %v13736 = vpop.permute.xlu0 %13735
  %13739 = vset.pattern.permute.xlu0 0
  %13740 = vperm.xlu0 %13739, %v13225
  %v13741 = vpop.permute.xlu0 %13740
  %13744 = vset.pattern.permute.xlu0 0
  %13745 = vperm.xlu0 %13744, %v13227
  %v13746 = vpop.permute.xlu0 %13745
  %13749 = vset.pattern.permute.xlu0 0
  %13750 = vperm.xlu0 %13749, %v13229
  %v13751 = vpop.permute.xlu0 %13750
  %13754 = vset.pattern.permute.xlu0 0
  %13755 = vperm.xlu0 %13754, %v13231
  %v13756 = vpop.permute.xlu0 %13755
  %13759 = vset.pattern.permute.xlu0 0
  %13760 = vperm.xlu0 %13759, %v13233
  %v13761 = vpop.permute.xlu0 %13760
  %13764 = vset.pattern.permute.xlu0 0
  %13765 = vperm.xlu0 %13764, %v13235
  %v13766 = vpop.permute.xlu0 %13765
  %13769 = vset.pattern.permute.xlu0 0
  %13770 = vperm.xlu0 %13769, %v13237
  %v13771 = vpop.permute.xlu0 %13770
  %13774 = vset.pattern.permute.xlu0 0
  %13775 = vperm.xlu0 %13774, %v13239
  %v13776 = vpop.permute.xlu0 %13775
  %13779 = vset.pattern.permute.xlu0 0
  %13780 = vperm.xlu0 %13779, %v13241
  %v13781 = vpop.permute.xlu0 %13780
  %13784 = vset.pattern.permute.xlu0 0
  %13785 = vperm.xlu0 %13784, %v13243
  %v13786 = vpop.permute.xlu0 %13785
  %13789 = vset.pattern.permute.xlu0 0
  %13790 = vperm.xlu0 %13789, %v13245
  %v13791 = vpop.permute.xlu0 %13790
  %13794 = vset.pattern.permute.xlu0 0
  %13795 = vperm.xlu0 %13794, %v13247
  %v13796 = vpop.permute.xlu0 %13795
  %13799 = vset.pattern.permute.xlu0 0
  %13800 = vperm.xlu0 %13799, %v13249
  %v13801 = vpop.permute.xlu0 %13800
  %13804 = vset.pattern.permute.xlu0 0
  %13805 = vperm.xlu0 %13804, %v13251
  %v13806 = vpop.permute.xlu0 %13805
  %13809 = vset.pattern.permute.xlu0 0
  %13810 = vperm.xlu0 %13809, %v13253
  %v13811 = vpop.permute.xlu0 %13810
  %13814 = vset.pattern.permute.xlu0 0
  %13815 = vperm.xlu0 %13814, %v13255
  %v13816 = vpop.permute.xlu0 %13815
  %13819 = vset.pattern.permute.xlu0 0
  %13820 = vperm.xlu0 %13819, %v13257
  %v13821 = vpop.permute.xlu0 %13820
  %13824 = vset.pattern.permute.xlu0 0
  %13825 = vperm.xlu0 %13824, %v13259
  %v13826 = vpop.permute.xlu0 %13825
  %13829 = vset.pattern.permute.xlu0 0
  %13830 = vperm.xlu0 %13829, %v13261
  %v13831 = vpop.permute.xlu0 %13830
  %13834 = vset.pattern.permute.xlu0 0
  %13835 = vperm.xlu0 %13834, %v13263
  %v13836 = vpop.permute.xlu0 %13835
  %13839 = vset.pattern.permute.xlu0 0
  %13840 = vperm.xlu0 %13839, %v13265
  %v13841 = vpop.permute.xlu0 %13840
  %13844 = vset.pattern.permute.xlu0 0
  %13845 = vperm.xlu0 %13844, %v13267
  %v13846 = vpop.permute.xlu0 %13845
  %13849 = vset.pattern.permute.xlu0 0
  %13850 = vperm.xlu0 %13849, %v13269
  %v13851 = vpop.permute.xlu0 %13850
  %13854 = vset.pattern.permute.xlu0 0
  %13855 = vperm.xlu0 %13854, %v13271
  %v13856 = vpop.permute.xlu0 %13855
  %13859 = vset.pattern.permute.xlu0 0
  %13860 = vperm.xlu0 %13859, %v13273
  %v13861 = vpop.permute.xlu0 %13860
  %13864 = vset.pattern.permute.xlu0 0
  %13865 = vperm.xlu0 %13864, %v13275
  %v13866 = vpop.permute.xlu0 %13865
  %13869 = vset.pattern.permute.xlu0 0
  %13870 = vperm.xlu0 %13869, %v13277
  %v13871 = vpop.permute.xlu0 %13870
  %13874 = vset.pattern.permute.xlu0 0
  %13875 = vperm.xlu0 %13874, %v13279
  %v13876 = vpop.permute.xlu0 %13875
  %13879 = vset.pattern.permute.xlu0 0
  %13880 = vperm.xlu0 %13879, %v13281
  %v13881 = vpop.permute.xlu0 %13880
  %13884 = vset.pattern.permute.xlu0 0
  %13885 = vperm.xlu0 %13884, %v13283
  %v13886 = vpop.permute.xlu0 %13885
  %13889 = vset.pattern.permute.xlu0 0
  %13890 = vperm.xlu0 %13889, %v13285
  %v13891 = vpop.permute.xlu0 %13890
  %13894 = vset.pattern.permute.xlu0 0
  %13895 = vperm.xlu0 %13894, %v13287
  %v13896 = vpop.permute.xlu0 %13895
  %13899 = vset.pattern.permute.xlu0 0
  %13900 = vperm.xlu0 %13899, %v13289
  %v13901 = vpop.permute.xlu0 %13900
  %13904 = vset.pattern.permute.xlu0 0
  %13905 = vperm.xlu0 %13904, %v13291
  %v13906 = vpop.permute.xlu0 %13905
  %13909 = vset.pattern.permute.xlu0 0
  %13910 = vperm.xlu0 %13909, %v13293
  %v13911 = vpop.permute.xlu0 %13910
  %13914 = vset.pattern.permute.xlu0 0
  %13915 = vperm.xlu0 %13914, %v13295
  %v13916 = vpop.permute.xlu0 %13915
  %13919 = vset.pattern.permute.xlu0 0
  %13920 = vperm.xlu0 %13919, %v13297
  %v13921 = vpop.permute.xlu0 %13920
  %13924 = vset.pattern.permute.xlu0 0
  %13925 = vperm.xlu0 %13924, %v13299
  %v13926 = vpop.permute.xlu0 %13925
  %13929 = vset.pattern.permute.xlu0 0
  %13930 = vperm.xlu0 %13929, %v13301
  %v13931 = vpop.permute.xlu0 %13930
  %13934 = vset.pattern.permute.xlu0 0
  %13935 = vperm.xlu0 %13934, %v13303
  %v13936 = vpop.permute.xlu0 %13935
  %13939 = vset.pattern.permute.xlu0 0
  %13940 = vperm.xlu0 %13939, %v13305
  %v13941 = vpop.permute.xlu0 %13940
  %13944 = vset.pattern.permute.xlu0 0
  %13945 = vperm.xlu0 %13944, %v13307
  %v13946 = vpop.permute.xlu0 %13945
  %13949 = vset.pattern.permute.xlu0 0
  %13950 = vperm.xlu0 %13949, %v13309
  %v13951 = vpop.permute.xlu0 %13950
  %13954 = vset.pattern.permute.xlu0 0
  %13955 = vperm.xlu0 %13954, %v13311
  %v13956 = vpop.permute.xlu0 %13955
  %13959 = vset.pattern.permute.xlu0 0
  %13960 = vperm.xlu0 %13959, %v13313
  %v13961 = vpop.permute.xlu0 %13960
  %13964 = vset.pattern.permute.xlu0 0
  %13965 = vperm.xlu0 %13964, %v13315
  %v13966 = vpop.permute.xlu0 %13965
  %13969 = vset.pattern.permute.xlu0 0
  %13970 = vperm.xlu0 %13969, %v13317
  %v13971 = vpop.permute.xlu0 %13970
  %13974 = vset.pattern.permute.xlu0 0
  %13975 = vperm.xlu0 %13974, %v13319
  %v13976 = vpop.permute.xlu0 %13975
  %13979 = vset.pattern.permute.xlu0 0
  %13980 = vperm.xlu0 %13979, %v13321
  %v13981 = vpop.permute.xlu0 %13980
  %13984 = vset.pattern.permute.xlu0 0
  %13985 = vperm.xlu0 %13984, %v13323
  %v13986 = vpop.permute.xlu0 %13985
  %v13988 = vlaneseq
  %v13989 = vshrl.u32 %v13988, 7
  %v13990 = vsub.s32 0, %v13989
  %v13991 = vrot.slane %v13660, %v13990
  %v13992 = vlaneseq
  %v13993 = vshrl.u32 %v13992, 7
  %v13994 = vsub.s32 0, %v13993
  %v13995 = vrot.slane %v13667, %v13994
  %v13998 = vadd.f32 %v13671, %v13991
  %v13999 = vadd.f32 %v13676, %v13991
  %v14000 = vadd.f32 %v13681, %v13991
  %v14001 = vadd.f32 %v13686, %v13991
  %v14002 = vadd.f32 %v13691, %v13991
  %v14003 = vadd.f32 %v13696, %v13991
  %v14004 = vadd.f32 %v13701, %v13991
  %v14005 = vadd.f32 %v13706, %v13991
  %v14006 = vadd.f32 %v13711, %v13991
  %v14007 = vadd.f32 %v13716, %v13991
  %v14008 = vadd.f32 %v13721, %v13991
  %v14009 = vadd.f32 %v13726, %v13991
  %v14010 = vadd.f32 %v13731, %v13991
  %v14011 = vadd.f32 %v13736, %v13991
  %v14012 = vadd.f32 %v13741, %v13991
  %v14013 = vadd.f32 %v13746, %v13991
  %v14014 = vadd.f32 %v13751, %v13991
  %v14015 = vadd.f32 %v13756, %v13991
  %v14016 = vadd.f32 %v13761, %v13991
  %v14017 = vadd.f32 %v13766, %v13991
  %v14018 = vadd.f32 %v13771, %v13991
  %v14019 = vadd.f32 %v13776, %v13991
  %v14020 = vadd.f32 %v13781, %v13991
  %v14021 = vadd.f32 %v13786, %v13991
  %v14022 = vadd.f32 %v13791, %v13991
  %v14023 = vadd.f32 %v13796, %v13991
  %v14024 = vadd.f32 %v13801, %v13991
  %v14025 = vadd.f32 %v13806, %v13991
  %v14026 = vadd.f32 %v13811, %v13991
  %v14027 = vadd.f32 %v13816, %v13991
  %v14028 = vadd.f32 %v13821, %v13991
  %v14029 = vadd.f32 %v13826, %v13991
  %v14030 = vadd.f32 %v13831, %v13995
  %v14031 = vadd.f32 %v13836, %v13995
  %v14032 = vadd.f32 %v13841, %v13995
  %v14033 = vadd.f32 %v13846, %v13995
  %v14034 = vadd.f32 %v13851, %v13995
  %v14035 = vadd.f32 %v13856, %v13995
  %v14036 = vadd.f32 %v13861, %v13995
  %v14037 = vadd.f32 %v13866, %v13995
  %v14038 = vadd.f32 %v13871, %v13995
  %v14039 = vadd.f32 %v13876, %v13995
  %v14040 = vadd.f32 %v13881, %v13995
  %v14041 = vadd.f32 %v13886, %v13995
  %v14042 = vadd.f32 %v13891, %v13995
  %v14043 = vadd.f32 %v13896, %v13995
  %v14044 = vadd.f32 %v13901, %v13995
  %v14045 = vadd.f32 %v13906, %v13995
  %v14046 = vadd.f32 %v13911, %v13995
  %v14047 = vadd.f32 %v13916, %v13995
  %v14048 = vadd.f32 %v13921, %v13995
  %v14049 = vadd.f32 %v13926, %v13995
  %v14050 = vadd.f32 %v13931, %v13995
  %v14051 = vadd.f32 %v13936, %v13995
  %v14052 = vadd.f32 %v13941, %v13995
  %v14053 = vadd.f32 %v13946, %v13995
  %v14054 = vadd.f32 %v13951, %v13995
  %v14055 = vadd.f32 %v13956, %v13995
  %v14056 = vadd.f32 %v13961, %v13995
  %v14057 = vadd.f32 %v13966, %v13995
  %v14058 = vadd.f32 %v13971, %v13995
  %v14059 = vadd.f32 %v13976, %v13995
  %v14060 = vadd.f32 %v13981, %v13995
  %v14061 = vadd.f32 %v13986, %v13995
  %v14062 = vmul.f32 %v13998, %v12541
  %v14063 = vmul.f32 %v13999, %v12542
  %v14064 = vmul.f32 %v14000, %v12543
  %v14065 = vmul.f32 %v14001, %v12544
  %v14066 = vmul.f32 %v14002, %v12545
  %v14067 = vmul.f32 %v14003, %v12546
  %v14068 = vmul.f32 %v14004, %v12547
  %v14069 = vmul.f32 %v14005, %v12548
  %v14070 = vmul.f32 %v14006, %v12549
  %v14071 = vmul.f32 %v14007, %v12550
  %v14072 = vmul.f32 %v14008, %v12551
  %v14073 = vmul.f32 %v14009, %v12552
  %v14074 = vmul.f32 %v14010, %v12553
  %v14075 = vmul.f32 %v14011, %v12554
  %v14076 = vmul.f32 %v14012, %v12555
  %v14077 = vmul.f32 %v14013, %v12556
  %v14078 = vmul.f32 %v14014, %v12557
  %v14079 = vmul.f32 %v14015, %v12558
  %v14080 = vmul.f32 %v14016, %v12559
  %v14081 = vmul.f32 %v14017, %v12560
  %v14082 = vmul.f32 %v14018, %v12561
  %v14083 = vmul.f32 %v14019, %v12562
  %v14084 = vmul.f32 %v14020, %v12563
  %v14085 = vmul.f32 %v14021, %v12564
  %v14086 = vmul.f32 %v14022, %v12565
  %v14087 = vmul.f32 %v14023, %v12566
  %v14088 = vmul.f32 %v14024, %v12567
  %v14089 = vmul.f32 %v14025, %v12568
  %v14090 = vmul.f32 %v14026, %v12569
  %v14091 = vmul.f32 %v14027, %v12570
  %v14092 = vmul.f32 %v14028, %v12571
  %v14093 = vmul.f32 %v14029, %v12572
  %v14094 = vmul.f32 %v14030, %v12573
  %v14095 = vmul.f32 %v14031, %v12574
  %v14096 = vmul.f32 %v14032, %v12575
  %v14097 = vmul.f32 %v14033, %v12576
  %v14098 = vmul.f32 %v14034, %v12577
  %v14099 = vmul.f32 %v14035, %v12578
  %v14100 = vmul.f32 %v14036, %v12579
  %v14101 = vmul.f32 %v14037, %v12580
  %v14102 = vmul.f32 %v14038, %v12581
  %v14103 = vmul.f32 %v14039, %v12582
  %v14104 = vmul.f32 %v14040, %v12583
  %v14105 = vmul.f32 %v14041, %v12584
  %v14106 = vmul.f32 %v14042, %v12585
  %v14107 = vmul.f32 %v14043, %v12586
  %v14108 = vmul.f32 %v14044, %v12587
  %v14109 = vmul.f32 %v14045, %v12588
  %v14110 = vmul.f32 %v14046, %v12589
  %v14111 = vmul.f32 %v14047, %v12590
  %v14112 = vmul.f32 %v14048, %v12591
  %v14113 = vmul.f32 %v14049, %v12592
  %v14114 = vmul.f32 %v14050, %v12593
  %v14115 = vmul.f32 %v14051, %v12594
  %v14116 = vmul.f32 %v14052, %v12595
  %v14117 = vmul.f32 %v14053, %v12596
  %v14118 = vmul.f32 %v14054, %v12597
  %v14119 = vmul.f32 %v14055, %v12598
  %v14120 = vmul.f32 %v14056, %v12599
  %v14121 = vmul.f32 %v14057, %v12600
  %v14122 = vmul.f32 %v14058, %v12601
  %v14123 = vmul.f32 %v14059, %v12602
  %v14124 = vmul.f32 %v14060, %v12603
  %v14125 = vmul.f32 %v14061, %v12604
  %14126 = vst.msk [vmem:[%s14] sm:$0xff] %vm12676, %v14062
  %14127 = vst.msk [vmem:[%s14 + $0x8] sm:$0xff] %vm12676, %v14063
  %14128 = vst.msk [vmem:[%s14 + $0x10] sm:$0xff] %vm12676, %v14064
  %14129 = vst.msk [vmem:[%s14 + $0x18] sm:$0xff] %vm12676, %v14065
  %14130 = vst.msk [vmem:[%s14 + $0x20] sm:$0xff] %vm12676, %v14066
  %14131 = vst.msk [vmem:[%s14 + $0x28] sm:$0xff] %vm12676, %v14067
  %14132 = vst.msk [vmem:[%s14 + $0x30] sm:$0xff] %vm12676, %v14068
  %14133 = vst.msk [vmem:[%s14 + $0x38] sm:$0xff] %vm12676, %v14069
  %14134 = vst.msk [vmem:[%s14 + $0x40] sm:$0xff] %vm12676, %v14070
  %14135 = vst.msk [vmem:[%s14 + $0x48] sm:$0xff] %vm12676, %v14071
  %14136 = vst.msk [vmem:[%s14 + $0x50] sm:$0xff] %vm12676, %v14072
  %14137 = vst.msk [vmem:[%s14 + $0x58] sm:$0xff] %vm12676, %v14073
  %14138 = vst.msk [vmem:[%s14 + $0x60] sm:$0xff] %vm12676, %v14074
  %14139 = vst.msk [vmem:[%s14 + $0x68] sm:$0xff] %vm12676, %v14075
  %14140 = vst.msk [vmem:[%s14 + $0x70] sm:$0xff] %vm12676, %v14076
  %14141 = vst.msk [vmem:[%s14 + $0x78] sm:$0xff] %vm12676, %v14077
  %14142 = vst.msk [vmem:[%s14 + $0x80] sm:$0xff] %vm12676, %v14078
  %14143 = vst.msk [vmem:[%s14 + $0x88] sm:$0xff] %vm12676, %v14079
  %14144 = vst.msk [vmem:[%s14 + $0x90] sm:$0xff] %vm12676, %v14080
  %14145 = vst.msk [vmem:[%s14 + $0x98] sm:$0xff] %vm12676, %v14081
  %14146 = vst.msk [vmem:[%s14 + $0xa0] sm:$0xff] %vm12676, %v14082
  %14147 = vst.msk [vmem:[%s14 + $0xa8] sm:$0xff] %vm12676, %v14083
  %14148 = vst.msk [vmem:[%s14 + $0xb0] sm:$0xff] %vm12676, %v14084
  %14149 = vst.msk [vmem:[%s14 + $0xb8] sm:$0xff] %vm12676, %v14085
  %14150 = vst.msk [vmem:[%s14 + $0xc0] sm:$0xff] %vm12676, %v14086
  %14151 = vst.msk [vmem:[%s14 + $0xc8] sm:$0xff] %vm12676, %v14087
  %14152 = vst.msk [vmem:[%s14 + $0xd0] sm:$0xff] %vm12676, %v14088
  %14153 = vst.msk [vmem:[%s14 + $0xd8] sm:$0xff] %vm12676, %v14089
  %14154 = vst.msk [vmem:[%s14 + $0xe0] sm:$0xff] %vm12676, %v14090
  %14155 = vst.msk [vmem:[%s14 + $0xe8] sm:$0xff] %vm12676, %v14091
  %14156 = vst.msk [vmem:[%s14 + $0xf0] sm:$0xff] %vm12676, %v14092
  %14157 = vst.msk [vmem:[%s14 + $0xf8] sm:$0xff] %vm12676, %v14093
  %14158 = vst.msk [vmem:[%s14 + $0x100] sm:$0xff] %vm12676, %v14094
  %14159 = vst.msk [vmem:[%s14 + $0x108] sm:$0xff] %vm12676, %v14095
  %14160 = vst.msk [vmem:[%s14 + $0x110] sm:$0xff] %vm12676, %v14096
  %14161 = vst.msk [vmem:[%s14 + $0x118] sm:$0xff] %vm12676, %v14097
  %14162 = vst.msk [vmem:[%s14 + $0x120] sm:$0xff] %vm12676, %v14098
  %14163 = vst.msk [vmem:[%s14 + $0x128] sm:$0xff] %vm12676, %v14099
  %14164 = vst.msk [vmem:[%s14 + $0x130] sm:$0xff] %vm12676, %v14100
  %14165 = vst.msk [vmem:[%s14 + $0x138] sm:$0xff] %vm12676, %v14101
  %14166 = vst.msk [vmem:[%s14 + $0x140] sm:$0xff] %vm12676, %v14102
  %14167 = vst.msk [vmem:[%s14 + $0x148] sm:$0xff] %vm12676, %v14103
  %14168 = vst.msk [vmem:[%s14 + $0x150] sm:$0xff] %vm12676, %v14104
  %14169 = vst.msk [vmem:[%s14 + $0x158] sm:$0xff] %vm12676, %v14105
  %14170 = vst.msk [vmem:[%s14 + $0x160] sm:$0xff] %vm12676, %v14106
  %14171 = vst.msk [vmem:[%s14 + $0x168] sm:$0xff] %vm12676, %v14107
  %14172 = vst.msk [vmem:[%s14 + $0x170] sm:$0xff] %vm12676, %v14108
  %14173 = vst.msk [vmem:[%s14 + $0x178] sm:$0xff] %vm12676, %v14109
  %14174 = vst.msk [vmem:[%s14 + $0x180] sm:$0xff] %vm12676, %v14110
  %14175 = vst.msk [vmem:[%s14 + $0x188] sm:$0xff] %vm12676, %v14111
  %14176 = vst.msk [vmem:[%s14 + $0x190] sm:$0xff] %vm12676, %v14112
  %14177 = vst.msk [vmem:[%s14 + $0x198] sm:$0xff] %vm12676, %v14113
  %14178 = vst.msk [vmem:[%s14 + $0x1a0] sm:$0xff] %vm12676, %v14114
  %14179 = vst.msk [vmem:[%s14 + $0x1a8] sm:$0xff] %vm12676, %v14115
  %14180 = vst.msk [vmem:[%s14 + $0x1b0] sm:$0xff] %vm12676, %v14116
  %14181 = vst.msk [vmem:[%s14 + $0x1b8] sm:$0xff] %vm12676, %v14117
  %14182 = vst.msk [vmem:[%s14 + $0x1c0] sm:$0xff] %vm12676, %v14118
  %14183 = vst.msk [vmem:[%s14 + $0x1c8] sm:$0xff] %vm12676, %v14119
  %14184 = vst.msk [vmem:[%s14 + $0x1d0] sm:$0xff] %vm12676, %v14120
  %14185 = vst.msk [vmem:[%s14 + $0x1d8] sm:$0xff] %vm12676, %v14121
  %14186 = vst.msk [vmem:[%s14 + $0x1e0] sm:$0xff] %vm12676, %v14122
  %14187 = vst.msk [vmem:[%s14 + $0x1e8] sm:$0xff] %vm12676, %v14123
  %14188 = vst.msk [vmem:[%s14 + $0x1f0] sm:$0xff] %vm12676, %v14124
  %14189 = vst.msk [vmem:[%s14 + $0x1f8] sm:$0xff] %vm12676, %v14125
  // Predicated region
  $region58: #{tpu_custom_call.1} parent=0 // pred_check
    _
  $region59: #{tpu_custom_call.1} parent=0 // pred_check_branch
    %14191 = sbr.rel (0) target = $region61
  $region60: #{tpu_custom_call.1} parent=0 // pred_region
    _
  $region61: #{tpu_custom_call.1} parent=0 // pred_fallthru
    _
  // Predicated region
  $region62: #{tpu_custom_call.1} parent=0 // pred_check
    _
  $region63: #{tpu_custom_call.1} parent=0 // pred_check_branch
    %14193 = sbr.rel (0) target = $region65
  $region64: #{tpu_custom_call.1} parent=0 // pred_region
    _
  $region65: #{tpu_custom_call.1} parent=0 // pred_fallthru
    _

</llo_original>
